<compile_context>
chip_gen: v6e
topology: v6e:2x2x1
jax: 0.10.0
libtpu: 0.0.40
codegen_flags: <defaults>
</compile_context>

<pallas_src>
import functools
import math

import jax
import jax.numpy as jnp
from jax import lax
from jax.experimental import pallas as pl
from jax.experimental.pallas import tpu as pltpu

LANE = 128
SUBLANE = 8
VMEM_LIMIT = 48 * 1024 * 1024   # <= 48 MiB: safe on v7x (64 MiB physical)


def _round_up(x, m):
    return (x + m - 1) // m * m


def _unroll_factor(T, cap=8):
    """Largest divisor of T that is <= cap (timesteps unrolled per grid step)."""
    for u in range(min(cap, T), 0, -1):
        if T % u == 0:
            return u
    return 1


# ----------------------------------------------------------------------------
# Row-tiled GEMM + bias kernels (MXU).  Inputs may be f32 while weights are
# bf16: the activations are cast to the weight dtype at the dot and results
# accumulate in f32.
# ----------------------------------------------------------------------------
def _matmul_bias_kernel(x_ref, w_ref, b_ref, o_ref):
    x = x_ref[...]
    w = w_ref[...]
    if x.dtype != w.dtype:
        x = x.astype(w.dtype)
    o_ref[...] = jnp.dot(x, w, preferred_element_type=jnp.float32) + b_ref[...]


def _matmul2_bias_kernel(x1_ref, x2_ref, w1_ref, w2_ref, b_ref, o_ref):
    x1 = x1_ref[...]
    x2 = x2_ref[...]
    w1 = w1_ref[...]
    w2 = w2_ref[...]
    if x1.dtype != w1.dtype:
        x1 = x1.astype(w1.dtype)
        x2 = x2.astype(w2.dtype)
    o_ref[...] = (jnp.dot(x1, w1, preferred_element_type=jnp.float32)
                  + jnp.dot(x2, w2, preferred_element_type=jnp.float32)
                  + b_ref[...])


def matmul_bias(x, w, b, *, tm=512):
    """x: (M, K), w: (K, N), b: (1, N) -> (M, N) f32."""
    M, K = x.shape
    N = w.shape[1]
    tm = min(tm, _round_up(M, SUBLANE))
    Mp = _round_up(M, tm)
    if Mp != M:                                   # skip pad round-trip if M | tm
        x = jnp.pad(x, ((0, Mp - M), (0, 0)))
    out = pl.pallas_call(
        _matmul_bias_kernel,
        out_shape=jax.ShapeDtypeStruct((Mp, N), jnp.float32),
        grid_spec=pltpu.PrefetchScalarGridSpec(
            num_scalar_prefetch=0,
            grid=(Mp // tm,),
            in_specs=[pl.BlockSpec((tm, K), lambda i: (i, 0)),
                      pl.BlockSpec((K, N), lambda i: (0, 0)),
                      pl.BlockSpec((1, N), lambda i: (0, 0))],
            out_specs=pl.BlockSpec((tm, N), lambda i: (i, 0)),
        ),
        compiler_params=pltpu.CompilerParams(
            dimension_semantics=("parallel",),
            vmem_limit_bytes=VMEM_LIMIT),
    )(x, w, b)
    return out[:M] if Mp != M else out


def matmul2_bias(x1, x2, w1, w2, b, *, tm=512):
    """x1 @ w1 + x2 @ w2 + b  (avoids materializing concat([x1, x2]))."""
    M, K1 = x1.shape
    K2 = x2.shape[1]
    N = w1.shape[1]
    tm = min(tm, _round_up(M, SUBLANE))
    Mp = _round_up(M, tm)
    if Mp != M:
        x1 = jnp.pad(x1, ((0, Mp - M), (0, 0)))
        x2 = jnp.pad(x2, ((0, Mp - M), (0, 0)))
    out = pl.pallas_call(
        _matmul2_bias_kernel,
        out_shape=jax.ShapeDtypeStruct((Mp, N), jnp.float32),
        grid_spec=pltpu.PrefetchScalarGridSpec(
            num_scalar_prefetch=0,
            grid=(Mp // tm,),
            in_specs=[pl.BlockSpec((tm, K1), lambda i: (i, 0)),
                      pl.BlockSpec((tm, K2), lambda i: (i, 0)),
                      pl.BlockSpec((K1, N), lambda i: (0, 0)),
                      pl.BlockSpec((K2, N), lambda i: (0, 0)),
                      pl.BlockSpec((1, N), lambda i: (0, 0))],
            out_specs=pl.BlockSpec((tm, N), lambda i: (i, 0)),
        ),
        compiler_params=pltpu.CompilerParams(
            dimension_semantics=("parallel",),
            vmem_limit_bytes=VMEM_LIMIT),
    )(x1, x2, w1, w2, b)
    return out[:M] if Mp != M else out


# ----------------------------------------------------------------------------
# Fused bidirectional LSTM recurrence, U timesteps unrolled per grid step.
#   grid=(T/U,): step blk processes forward times [blk*U, blk*U+U) and
#   backward times mirrored from the end.  Input gates gx are precomputed
#   (one (T, B, 8Hp) array; the fwd/bwd halves are selected by BlockSpec).
#   Outputs are streamed in (U, B, Hp) blocks (nothing T-sized stays in VMEM).
# ----------------------------------------------------------------------------
def _bilstm_kernel(nvalid_ref,                  # SMEM (T,) scalar prefetch
                   gxf_ref, gxb_ref,            # (U, Bp, 4Hp) gate blocks
                   whhf_ref, whhb_ref,          # (Hp, 4Hp) recurrent weights
                   outf_ref, outb_ref,          # (U, Bp, Hp) streamed outputs
                   hf, cf, hb, cb,              # (Bp, Hp) f32 scratch states
                   *, hidden, unroll, total_t):
    Hp, U = hidden, unroll
    blk = pl.program_id(0)

    @pl.when(blk == 0)
    def _():
        hf[...] = jnp.zeros_like(hf)
        cf[...] = jnp.zeros_like(cf)
        hb[...] = jnp.zeros_like(hb)
        cb[...] = jnp.zeros_like(cb)

    Bp = hf.shape[0]
    row = lax.broadcasted_iota(jnp.int32, (Bp, 1), 0)

    def step(gx, h_ref, c_ref, w_ref, n_valid):
        h = h_ref[...]
        c = c_ref[...]
        w = w_ref[...]
        hk = h if h.dtype == w.dtype else h.astype(w.dtype)
        gates = gx + jnp.dot(hk, w, preferred_element_type=jnp.float32)
        # PyTorch gate order i, f, g, o; every slice is 128-lane aligned.
        i_g = jax.nn.sigmoid(gates[:, 0 * Hp:1 * Hp])
        f_g = jax.nn.sigmoid(gates[:, 1 * Hp:2 * Hp])
        g_g = jnp.tanh(gates[:, 2 * Hp:3 * Hp])
        o_g = jax.nn.sigmoid(gates[:, 3 * Hp:4 * Hp])
        c_new = f_g * c + i_g * g_g
        h_new = o_g * jnp.tanh(c_new)
        valid = row < n_valid                    # packed-sequence gating
        h_ref[...] = jnp.where(valid, h_new, h)
        c_ref[...] = jnp.where(valid, c_new, c)
        return jnp.where(valid, h_new, jnp.float32(0.0))

    for u in range(U):                            # fully unrolled inner loop
        t = blk * U + u                           # forward global time
        ub = U - 1 - u                            # backward local row in block
        tb = total_t - 1 - t                      # backward global time
        outf_ref[u] = step(gxf_ref[u], hf, cf, whhf_ref, nvalid_ref[t])
        outb_ref[ub] = step(gxb_ref[ub], hb, cb, whhb_ref, nvalid_ref[tb])


def bilstm_layer(nvalid, gx, w_hh_f, w_hh_b, *, unroll):
    """gx: (T, Bp, 8Hp) precomputed x@W_ih+b for both directions.
       Returns (out_f, out_b), each (T, Bp, Hp) f32."""
    T, Bp, g8 = gx.shape
    Hp = w_hh_f.shape[0]
    assert g8 == 8 * Hp
    U = unroll
    nblk = T // U
    kernel = functools.partial(_bilstm_kernel, hidden=Hp, unroll=U, total_t=T)
    out_f, out_b = pl.pallas_call(
        kernel,
        out_shape=(jax.ShapeDtypeStruct((T, Bp, Hp), jnp.float32),
                   jax.ShapeDtypeStruct((T, Bp, Hp), jnp.float32)),
        grid_spec=pltpu.PrefetchScalarGridSpec(
            num_scalar_prefetch=1,                          # nvalid -> SMEM
            grid=(nblk,),
            in_specs=[
                # fwd gate half of gx, time block blk
                pl.BlockSpec((U, Bp, 4 * Hp), lambda i, nv: (i, 0, 0)),
                # bwd gate half of gx, mirrored time block
                pl.BlockSpec((U, Bp, 4 * Hp), lambda i, nv: (nblk - 1 - i, 0, 1)),
                pl.BlockSpec((Hp, 4 * Hp), lambda i, nv: (0, 0)),
                pl.BlockSpec((Hp, 4 * Hp), lambda i, nv: (0, 0)),
            ],
            out_specs=[
                pl.BlockSpec((U, Bp, Hp), lambda i, nv: (i, 0, 0)),
                pl.BlockSpec((U, Bp, Hp), lambda i, nv: (nblk - 1 - i, 0, 0)),
            ],
            scratch_shapes=[pltpu.VMEM((Bp, Hp), jnp.float32)
                            for _ in range(4)],             # hf, cf, hb, cb
        ),
        compiler_params=pltpu.CompilerParams(
            dimension_semantics=("arbitrary",),             # time recurrence
            vmem_limit_bytes=VMEM_LIMIT),
    )(nvalid, gx, gx, w_hh_f, w_hh_b)
    return out_f, out_b


# ----------------------------------------------------------------------------
# Wordseg.forward equivalent
# ----------------------------------------------------------------------------
def wordseg_forward(params, input_seq, input_lengths):
    """input_seq: (B, T, input_size) float32 (batch_first, like PyTorch).
       input_lengths: (B,) int — sorted descending, max == T.
       Returns pred_prob: (B, T, 2) float32."""
    B, T, _ = input_seq.shape
    Hp = params["lstm"][0]["w_hh_f"].shape[0]
    Bp = _round_up(max(B, SUBLANE), SUBLANE)
    U = _unroll_factor(T)

    x = jnp.transpose(input_seq, (1, 0, 2)).astype(jnp.float32)      # (T, B, D)
    lengths = input_lengths.astype(jnp.int32)
    if Bp != B:
        x = jnp.pad(x, ((0, 0), (0, Bp - B), (0, 0)))
        lengths = jnp.pad(lengths, (0, Bp - B))          # pad rows: length 0

    # Number of still-active sequences at each timestep (lengths sorted desc).
    nvalid = jnp.sum(lengths[None, :] > jnp.arange(T)[:, None],
                     axis=1).astype(jnp.int32)                        # (T,)

    # Layer 0: single fused projection over the raw embeddings.
    layer0 = params["lstm"][0]
    gx = matmul_bias(x.reshape(T * Bp, -1), layer0["w_ih"], layer0["b"])
    out_f, out_b = bilstm_layer(nvalid, gx.reshape(T, Bp, 8 * Hp),
                                layer0["w_hh_f"], layer0["w_hh_b"], unroll=U)

    # Layers 1..2: projection consumes both direction halves without concat.
    for layer in params["lstm"][1:]:
        gx = matmul2_bias(out_f.reshape(T * Bp, Hp), out_b.reshape(T * Bp, Hp),
                          layer["w_top"], layer["w_bot"], layer["b"])
        out_f, out_b = bilstm_layer(nvalid, gx.reshape(T, Bp, 8 * Hp),
                                    layer["w_hh_f"], layer["w_hh_b"], unroll=U)

    # fc head, output padded to 128 lanes; real 2 logits sliced on the host.
    logits = matmul2_bias(out_f.reshape(T * Bp, Hp), out_b.reshape(T * Bp, Hp),
                          params["fc_w_top"], params["fc_w_bot"],
                          params["fc_b"])                             # (T*Bp,128)
    logits = logits[:, :2].reshape(T, Bp, 2)
    return jnp.transpose(logits, (1, 0, 2))[:B]                       # (B, T, 2)


# ----------------------------------------------------------------------------
# Pure-JAX reference (lax.scan, unpadded params) to validate the kernels.
# ----------------------------------------------------------------------------
def _lstm_dir_ref(x_tbd, lengths_b1, w_ih, w_hh, b, reverse):
    T, B, _ = x_tbd.shape
    H = w_hh.shape[0]
    ts = jnp.arange(T)
    if reverse:
        ts = ts[::-1]

    def step(carry, t):
        h, c = carry
        gates = x_tbd[t] @ w_ih + h @ w_hh + b
        i = jax.nn.sigmoid(gates[:, :H])
        f = jax.nn.sigmoid(gates[:, H:2 * H])
        g = jnp.tanh(gates[:, 2 * H:3 * H])
        o = jax.nn.sigmoid(gates[:, 3 * H:])
        c_new = f * c + i * g
        h_new = o * jnp.tanh(c_new)
        valid = t < lengths_b1
        carry = (jnp.where(valid, h_new, h), jnp.where(valid, c_new, c))
        return carry, (t, jnp.where(valid, h_new, 0.0))

    init = (jnp.zeros((B, H), jnp.float32), jnp.zeros((B, H), jnp.float32))
    _, (tt, outs) = lax.scan(step, init, ts)
    return jnp.zeros((T, B, H), jnp.float32).at[tt].set(outs)


def wordseg_forward_ref(params, input_seq, input_lengths):
    x = jnp.transpose(input_seq, (1, 0, 2)).astype(jnp.float32)
    lengths = input_lengths.astype(jnp.int32).reshape(-1, 1)
    for layer in params["lstm"]:
        fwd = _lstm_dir_ref(x, lengths, layer["w_ih_f"], layer["w_hh_f"],
                            layer["b_f"], reverse=False)
        bwd = _lstm_dir_ref(x, lengths, layer["w_ih_b"], layer["w_hh_b"],
                            layer["b_b"], reverse=True)
        x = jnp.concatenate([fwd, bwd], axis=-1)
    T, B, F = x.shape
    logits = x.reshape(T * B, F) @ params["fc_w"] + params["fc_b"]
    return jnp.transpose(logits.reshape(T, B, -1), (1, 0, 2))


# ----------------------------------------------------------------------------
# Deterministic parameter init (PyTorch default U(-1/sqrt(H), 1/sqrt(H))),
# unpadded layout: w_ih (Din, 4H), w_hh (H, 4H), b = b_ih + b_hh (1, 4H).
# ----------------------------------------------------------------------------
def init_params(key, input_size, hidden, n_layers, num_classes=2):
    k = 1.0 / math.sqrt(hidden)

    def unif(kk, shape, bound):
        return jax.random.uniform(kk, shape, jnp.float32, -bound, bound)

    layers = []
    for l in range(n_layers):
        din = input_size if l == 0 else 2 * hidden
        key, *ks = jax.random.split(key, 9)
        layers.append(dict(
            w_ih_f=unif(ks[0], (din, 4 * hidden), k),
            w_hh_f=unif(ks[1], (hidden, 4 * hidden), k),
            b_f=unif(ks[2], (1, 4 * hidden), k) + unif(ks[3], (1, 4 * hidden), k),
            w_ih_b=unif(ks[4], (din, 4 * hidden), k),
            w_hh_b=unif(ks[5], (hidden, 4 * hidden), k),
            b_b=unif(ks[6], (1, 4 * hidden), k) + unif(ks[7], (1, 4 * hidden), k),
        ))
    key, k1, k2 = jax.random.split(key, 3)
    kf = 1.0 / math.sqrt(2 * hidden)
    return {
        "lstm": layers,
        "fc_w": unif(k1, (2 * hidden, num_classes), kf),
        "fc_b": unif(k2, (1, num_classes), kf),
    }


# ----------------------------------------------------------------------------
# Re-lay out parameters for the kernels:
#   * hidden padded to a multiple of 128 (lane-aligned gate slices / halves);
#     padded rows/cols are ZERO so the padded h/c lanes stay exactly 0.
#   * fwd and bwd input projections fused into one (Din, 8Hp) weight so each
#     layer's projection is a single GEMM over x.
#   * layers >0 and the fc head get the weight split into top (fwd-half input)
#     and bottom (bwd-half input) so no concat is ever materialized.
#   * fc output padded from 2 to 128 columns (lane-dense stores).
#   * weight_dtype=jnp.bfloat16 halves weight HBM/VMEM traffic (f32 accum).
# ----------------------------------------------------------------------------
def pad_params(params, hidden, weight_dtype=jnp.float32):
    H = hidden
    Hp = _round_up(H, LANE)
    CPAD = LANE

    def gate_cols(w):                 # (r, 4H) -> (r, 4Hp), gates lane-aligned
        out = jnp.zeros((w.shape[0], 4 * Hp), jnp.float32)
        for g in range(4):
            out = out.at[:, g * Hp:g * Hp + H].set(w[:, g * H:(g + 1) * H])
        return out

    def pad_rows(w, rows):
        return jnp.zeros((rows, w.shape[1]), w.dtype).at[:w.shape[0]].set(w)

    layers = []
    for l, layer in enumerate(params["lstm"]):
        wf = gate_cols(layer["w_ih_f"])                    # (Din, 4Hp)
        wb = gate_cols(layer["w_ih_b"])
        entry = dict(
            b=jnp.concatenate([gate_cols(layer["b_f"]),
                               gate_cols(layer["b_b"])], axis=1),   # (1, 8Hp)
            w_hh_f=pad_rows(gate_cols(layer["w_hh_f"]), Hp).astype(weight_dtype),
            w_hh_b=pad_rows(gate_cols(layer["w_hh_b"]), Hp).astype(weight_dtype),
        )
        if l == 0:
            entry["w_ih"] = jnp.concatenate([wf, wb], axis=1).astype(weight_dtype)
        else:
            # rows 0..H multiply the fwd half of the input, rows H..2H the bwd.
            entry["w_top"] = pad_rows(
                jnp.concatenate([wf[:H], wb[:H]], axis=1), Hp).astype(weight_dtype)
            entry["w_bot"] = pad_rows(
                jnp.concatenate([wf[H:2 * H], wb[H:2 * H]], axis=1),
                Hp).astype(weight_dtype)
        layers.append(entry)

    fc_w = params["fc_w"]                                   # (2H, C)
    C = fc_w.shape[1]
    fc_cols = jnp.zeros((2 * H, CPAD), jnp.float32).at[:, :C].set(fc_w)
    return {
        "lstm": layers,
        "fc_w_top": pad_rows(fc_cols[:H], Hp).astype(weight_dtype),
        "fc_w_bot": pad_rows(fc_cols[H:], Hp).astype(weight_dtype),
        "fc_b": jnp.zeros((1, CPAD), jnp.float32).at[:, :C].set(params["fc_b"]),
    }


# TODO(synk): ELMo/word2vec embedding lookup, full-width->half-width string
# preprocessing, and the argmax/word-reconstruction in cut()/test() are
# host-side Python/embedding code with no Pallas equivalent; only the neural
# forward pass (bi-LSTM stack + linear head) is implemented here.

if __name__ == "__main__":
    B, T = 2, 8
    INPUT_SIZE, HIDDEN, N_LAYERS = 64, 32, 3   # real Wordseg uses 1024, 300, 3

    key = jax.random.PRNGKey(0)
    key, pkey, xkey = jax.random.split(key, 3)
    raw_params = init_params(pkey, INPUT_SIZE, HIDDEN, N_LAYERS)
    params_f32 = pad_params(raw_params, HIDDEN, weight_dtype=jnp.float32)
    params_bf16 = pad_params(raw_params, HIDDEN, weight_dtype=jnp.bfloat16)

    input_seq = jax.random.normal(xkey, (B, T, INPUT_SIZE), jnp.float32)
    # pack_padded_sequence contract: lengths sorted descending, max == T.
    input_lengths = jnp.array([T, T - 3], dtype=jnp.int32)

    fwd = jax.jit(wordseg_forward)

    # f32 weights: must match the lax.scan reference tightly.
    out = jax.block_until_ready(fwd(params_f32, input_seq, input_lengths))
    assert out.shape == (B, T, 2) and out.dtype == jnp.float32
    ref = jax.block_until_ready(
        wordseg_forward_ref(raw_params, input_seq, input_lengths))
    max_err = float(jnp.max(jnp.abs(out - ref)))
    assert max_err < 1e-3, f"f32 mismatch vs reference: {max_err}"

    # bf16 weights (production memory-bound path): loose sanity check only.
    out_bf16 = jax.block_until_ready(fwd(params_bf16, input_seq, input_lengths))
    assert out_bf16.shape == (B, T, 2)
    bf16_err = float(jnp.max(jnp.abs(out_bf16 - ref)))
    assert bf16_err < 0.25, f"bf16 path diverged: {bf16_err}"

    print("KERNEL_OK")
</pallas_src>

<mosaic_0001>
module attributes {stable_mosaic.version = 11 : i64} {
  func.func @_matmul_bias_kernel(%arg0: i32, %arg1: memref<64x64xf32, #tpu.memory_space<vmem>>, %arg2: memref<64x1024xf32, #tpu.memory_space<vmem>>, %arg3: memref<1x1024xf32, #tpu.memory_space<vmem>>, %arg4: memref<64x1024xf32, #tpu.memory_space<vmem>>) attributes {dimension_semantics = [#tpu.dimension_semantics<parallel>], iteration_bounds = array<i64: 1>, scalar_prefetch = 0 : i64, scratch_operands = 0 : i64, tpu.core_type = #tpu.core_type<tc>, window_params = [{transform_indices = @transform_0, window_bounds = array<i64: 64, 64>}, {pipeline_mode = #tpu.pipeline_mode<synchronous>, transform_indices = @transform_1, window_bounds = array<i64: 64, 1024>}, {pipeline_mode = #tpu.pipeline_mode<synchronous>, transform_indices = @transform_2, window_bounds = array<i64: 1, 1024>}, {transform_indices = @transform_3, window_bounds = array<i64: 64, 1024>}]} {
    %c0 = arith.constant 0 : index
    %c0_0 = arith.constant 0 : index
    %0 = vector.load %arg1[%c0, %c0_0] : memref<64x64xf32, #tpu.memory_space<vmem>>, vector<64x64xf32>
    %c0_1 = arith.constant 0 : index
    %c0_2 = arith.constant 0 : index
    %1 = vector.load %arg2[%c0_1, %c0_2] : memref<64x1024xf32, #tpu.memory_space<vmem>>, vector<64x1024xf32>
    %cst = arith.constant dense<0.000000e+00> : vector<64x1024xf32>
    %2 = tpu.matmul %0, %1, %cst {dimension_numbers = #tpu.dot_dimension_numbers<[1], [0], [0], [1], [0, 0, 1, 1], [], []>} : vector<64x64xf32>, vector<64x1024xf32>, vector<64x1024xf32> -> vector<64x1024xf32>
    %c0_3 = arith.constant 0 : index
    %c0_4 = arith.constant 0 : index
    %3 = vector.load %arg3[%c0_3, %c0_4] : memref<1x1024xf32, #tpu.memory_space<vmem>>, vector<1x1024xf32>
    %4 = vector.broadcast %3 : vector<1x1024xf32> to vector<64x1024xf32>
    %5 = arith.addf %2, %4 : vector<64x1024xf32>
    %c0_5 = arith.constant 0 : index
    %c0_6 = arith.constant 0 : index
    %6 = vector.load %arg4[%c0_5, %c0_6] : memref<64x1024xf32, #tpu.memory_space<vmem>>, vector<64x1024xf32>
    tpu.vector_store %arg4[%c0_5, %c0_6], %5 {strides = array<i32>} : memref<64x1024xf32, #tpu.memory_space<vmem>>, vector<64x1024xf32>,
    return
  }
  func.func @transform_0(%arg0: i32) -> (i32, i32) {
    %c0_i32 = arith.constant 0 : i32
    %c0_i32_0 = arith.constant 0 : i32
    return %arg0, %c0_i32 : i32, i32
  }
  func.func @transform_1(%arg0: i32) -> (i32, i32) {
    %c0_i32 = arith.constant 0 : i32
    %c0_i32_0 = arith.constant 0 : i32
    %c0_i32_1 = arith.constant 0 : i32
    return %c0_i32, %c0_i32_0 : i32, i32
  }
  func.func @transform_2(%arg0: i32) -> (i32, i32) {
    %c0_i32 = arith.constant 0 : i32
    %c0_i32_0 = arith.constant 0 : i32
    %c0_i32_1 = arith.constant 0 : i32
    return %c0_i32, %c0_i32_0 : i32, i32
  }
  func.func @transform_3(%arg0: i32) -> (i32, i32) {
    %c0_i32 = arith.constant 0 : i32
    %c0_i32_0 = arith.constant 0 : i32
    return %arg0, %c0_i32 : i32, i32
  }
}

module attributes {stable_mosaic.version = 11 : i64} {
  func.func @_matmul2_bias_kernel(%arg0: i32, %arg1: memref<64x128xf32, #tpu.memory_space<vmem>>, %arg2: memref<64x128xf32, #tpu.memory_space<vmem>>, %arg3: memref<128x128xf32, #tpu.memory_space<vmem>>, %arg4: memref<128x128xf32, #tpu.memory_space<vmem>>, %arg5: memref<1x128xf32, #tpu.memory_space<vmem>>, %arg6: memref<64x128xf32, #tpu.memory_space<vmem>>) attributes {dimension_semantics = [#tpu.dimension_semantics<parallel>], iteration_bounds = array<i64: 1>, scalar_prefetch = 0 : i64, scratch_operands = 0 : i64, tpu.core_type = #tpu.core_type<tc>, window_params = [{transform_indices = @transform_0, window_bounds = array<i64: 64, 128>}, {transform_indices = @transform_1, window_bounds = array<i64: 64, 128>}, {pipeline_mode = #tpu.pipeline_mode<synchronous>, transform_indices = @transform_2, window_bounds = array<i64: 128, 128>}, {pipeline_mode = #tpu.pipeline_mode<synchronous>, transform_indices = @transform_3, window_bounds = array<i64: 128, 128>}, {pipeline_mode = #tpu.pipeline_mode<synchronous>, transform_indices = @transform_4, window_bounds = array<i64: 1, 128>}, {transform_indices = @transform_5, window_bounds = array<i64: 64, 128>}]} {
    %c0 = arith.constant 0 : index
    %c0_0 = arith.constant 0 : index
    %0 = vector.load %arg1[%c0, %c0_0] : memref<64x128xf32, #tpu.memory_space<vmem>>, vector<64x128xf32>
    %c0_1 = arith.constant 0 : index
    %c0_2 = arith.constant 0 : index
    %1 = vector.load %arg2[%c0_1, %c0_2] : memref<64x128xf32, #tpu.memory_space<vmem>>, vector<64x128xf32>
    %c0_3 = arith.constant 0 : index
    %c0_4 = arith.constant 0 : index
    %2 = vector.load %arg3[%c0_3, %c0_4] : memref<128x128xf32, #tpu.memory_space<vmem>>, vector<128x128xf32>
    %c0_5 = arith.constant 0 : index
    %c0_6 = arith.constant 0 : index
    %3 = vector.load %arg4[%c0_5, %c0_6] : memref<128x128xf32, #tpu.memory_space<vmem>>, vector<128x128xf32>
    %cst = arith.constant dense<0.000000e+00> : vector<64x128xf32>
    %4 = tpu.matmul %0, %2, %cst {dimension_numbers = #tpu.dot_dimension_numbers<[1], [0], [0], [1], [0, 0, 1, 1], [], []>} : vector<64x128xf32>, vector<128x128xf32>, vector<64x128xf32> -> vector<64x128xf32>
    %cst_7 = arith.constant dense<0.000000e+00> : vector<64x128xf32>
    %5 = tpu.matmul %1, %3, %cst_7 {dimension_numbers = #tpu.dot_dimension_numbers<[1], [0], [0], [1], [0, 0, 1, 1], [], []>} : vector<64x128xf32>, vector<128x128xf32>, vector<64x128xf32> -> vector<64x128xf32>
    %6 = arith.addf %4, %5 : vector<64x128xf32>
    %c0_8 = arith.constant 0 : index
    %c0_9 = arith.constant 0 : index
    %7 = vector.load %arg5[%c0_8, %c0_9] : memref<1x128xf32, #tpu.memory_space<vmem>>, vector<1x128xf32>
    %8 = vector.broadcast %7 : vector<1x128xf32> to vector<64x128xf32>
    %9 = arith.addf %6, %8 : vector<64x128xf32>
    %c0_10 = arith.constant 0 : index
    %c0_11 = arith.constant 0 : index
    %10 = vector.load %arg6[%c0_10, %c0_11] : memref<64x128xf32, #tpu.memory_space<vmem>>, vector<64x128xf32>
    tpu.vector_store %arg6[%c0_10, %c0_11], %9 {strides = array<i32>} : memref<64x128xf32, #tpu.memory_space<vmem>>, vector<64x128xf32>,
    return
  }
  func.func @transform_0(%arg0: i32) -> (i32, i32) {
    %c0_i32 = arith.constant 0 : i32
    %c0_i32_0 = arith.constant 0 : i32
    return %arg0, %c0_i32 : i32, i32
  }
  func.func @transform_1(%arg0: i32) -> (i32, i32) {
    %c0_i32 = arith.constant 0 : i32
    %c0_i32_0 = arith.constant 0 : i32
    return %arg0, %c0_i32 : i32, i32
  }
  func.func @transform_2(%arg0: i32) -> (i32, i32) {
    %c0_i32 = arith.constant 0 : i32
    %c0_i32_0 = arith.constant 0 : i32
    %c0_i32_1 = arith.constant 0 : i32
    return %c0_i32, %c0_i32_0 : i32, i32
  }
  func.func @transform_3(%arg0: i32) -> (i32, i32) {
    %c0_i32 = arith.constant 0 : i32
    %c0_i32_0 = arith.constant 0 : i32
    %c0_i32_1 = arith.constant 0 : i32
    return %c0_i32, %c0_i32_0 : i32, i32
  }
  func.func @transform_4(%arg0: i32) -> (i32, i32) {
    %c0_i32 = arith.constant 0 : i32
    %c0_i32_0 = arith.constant 0 : i32
    %c0_i32_1 = arith.constant 0 : i32
    return %c0_i32, %c0_i32_0 : i32, i32
  }
  func.func @transform_5(%arg0: i32) -> (i32, i32) {
    %c0_i32 = arith.constant 0 : i32
    %c0_i32_0 = arith.constant 0 : i32
    return %arg0, %c0_i32 : i32, i32
  }
}

module attributes {stable_mosaic.version = 11 : i64} {
  func.func @_matmul2_bias_kernel(%arg0: i32, %arg1: memref<64x128xf32, #tpu.memory_space<vmem>>, %arg2: memref<64x128xf32, #tpu.memory_space<vmem>>, %arg3: memref<128x1024xf32, #tpu.memory_space<vmem>>, %arg4: memref<128x1024xf32, #tpu.memory_space<vmem>>, %arg5: memref<1x1024xf32, #tpu.memory_space<vmem>>, %arg6: memref<64x1024xf32, #tpu.memory_space<vmem>>) attributes {dimension_semantics = [#tpu.dimension_semantics<parallel>], iteration_bounds = array<i64: 1>, scalar_prefetch = 0 : i64, scratch_operands = 0 : i64, tpu.core_type = #tpu.core_type<tc>, window_params = [{transform_indices = @transform_0, window_bounds = array<i64: 64, 128>}, {transform_indices = @transform_1, window_bounds = array<i64: 64, 128>}, {pipeline_mode = #tpu.pipeline_mode<synchronous>, transform_indices = @transform_2, window_bounds = array<i64: 128, 1024>}, {pipeline_mode = #tpu.pipeline_mode<synchronous>, transform_indices = @transform_3, window_bounds = array<i64: 128, 1024>}, {pipeline_mode = #tpu.pipeline_mode<synchronous>, transform_indices = @transform_4, window_bounds = array<i64: 1, 1024>}, {transform_indices = @transform_5, window_bounds = array<i64: 64, 1024>}]} {
    %c0 = arith.constant 0 : index
    %c0_0 = arith.constant 0 : index
    %0 = vector.load %arg1[%c0, %c0_0] : memref<64x128xf32, #tpu.memory_space<vmem>>, vector<64x128xf32>
    %c0_1 = arith.constant 0 : index
    %c0_2 = arith.constant 0 : index
    %1 = vector.load %arg2[%c0_1, %c0_2] : memref<64x128xf32, #tpu.memory_space<vmem>>, vector<64x128xf32>
    %c0_3 = arith.constant 0 : index
    %c0_4 = arith.constant 0 : index
    %2 = vector.load %arg3[%c0_3, %c0_4] : memref<128x1024xf32, #tpu.memory_space<vmem>>, vector<128x1024xf32>
    %c0_5 = arith.constant 0 : index
    %c0_6 = arith.constant 0 : index
    %3 = vector.load %arg4[%c0_5, %c0_6] : memref<128x1024xf32, #tpu.memory_space<vmem>>, vector<128x1024xf32>
    %cst = arith.constant dense<0.000000e+00> : vector<64x1024xf32>
    %4 = tpu.matmul %0, %2, %cst {dimension_numbers = #tpu.dot_dimension_numbers<[1], [0], [0], [1], [0, 0, 1, 1], [], []>} : vector<64x128xf32>, vector<128x1024xf32>, vector<64x1024xf32> -> vector<64x1024xf32>
    %cst_7 = arith.constant dense<0.000000e+00> : vector<64x1024xf32>
    %5 = tpu.matmul %1, %3, %cst_7 {dimension_numbers = #tpu.dot_dimension_numbers<[1], [0], [0], [1], [0, 0, 1, 1], [], []>} : vector<64x128xf32>, vector<128x1024xf32>, vector<64x1024xf32> -> vector<64x1024xf32>
    %6 = arith.addf %4, %5 : vector<64x1024xf32>
    %c0_8 = arith.constant 0 : index
    %c0_9 = arith.constant 0 : index
    %7 = vector.load %arg5[%c0_8, %c0_9] : memref<1x1024xf32, #tpu.memory_space<vmem>>, vector<1x1024xf32>
    %8 = vector.broadcast %7 : vector<1x1024xf32> to vector<64x1024xf32>
    %9 = arith.addf %6, %8 : vector<64x1024xf32>
    %c0_10 = arith.constant 0 : index
    %c0_11 = arith.constant 0 : index
    %10 = vector.load %arg6[%c0_10, %c0_11] : memref<64x1024xf32, #tpu.memory_space<vmem>>, vector<64x1024xf32>
    tpu.vector_store %arg6[%c0_10, %c0_11], %9 {strides = array<i32>} : memref<64x1024xf32, #tpu.memory_space<vmem>>, vector<64x1024xf32>,
    return
  }
  func.func @transform_0(%arg0: i32) -> (i32, i32) {
    %c0_i32 = arith.constant 0 : i32
    %c0_i32_0 = arith.constant 0 : i32
    return %arg0, %c0_i32 : i32, i32
  }
  func.func @transform_1(%arg0: i32) -> (i32, i32) {
    %c0_i32 = arith.constant 0 : i32
    %c0_i32_0 = arith.constant 0 : i32
    return %arg0, %c0_i32 : i32, i32
  }
  func.func @transform_2(%arg0: i32) -> (i32, i32) {
    %c0_i32 = arith.constant 0 : i32
    %c0_i32_0 = arith.constant 0 : i32
    %c0_i32_1 = arith.constant 0 : i32
    return %c0_i32, %c0_i32_0 : i32, i32
  }
  func.func @transform_3(%arg0: i32) -> (i32, i32) {
    %c0_i32 = arith.constant 0 : i32
    %c0_i32_0 = arith.constant 0 : i32
    %c0_i32_1 = arith.constant 0 : i32
    return %c0_i32, %c0_i32_0 : i32, i32
  }
  func.func @transform_4(%arg0: i32) -> (i32, i32) {
    %c0_i32 = arith.constant 0 : i32
    %c0_i32_0 = arith.constant 0 : i32
    %c0_i32_1 = arith.constant 0 : i32
    return %c0_i32, %c0_i32_0 : i32, i32
  }
  func.func @transform_5(%arg0: i32) -> (i32, i32) {
    %c0_i32 = arith.constant 0 : i32
    %c0_i32_0 = arith.constant 0 : i32
    return %arg0, %c0_i32 : i32, i32
  }
}

module attributes {stable_mosaic.version = 11 : i64} {
  func.func @_bilstm_kernel(%arg0: i32, %arg1: memref<8xi32, #tpu.memory_space<smem>>, %arg2: memref<8x8x512xf32, #tpu.memory_space<vmem>>, %arg3: memref<8x8x512xf32, #tpu.memory_space<vmem>>, %arg4: memref<128x512xf32, #tpu.memory_space<vmem>>, %arg5: memref<128x512xf32, #tpu.memory_space<vmem>>, %arg6: memref<8x8x128xf32, #tpu.memory_space<vmem>>, %arg7: memref<8x8x128xf32, #tpu.memory_space<vmem>>, %arg8: memref<8x128xf32, #tpu.memory_space<vmem>>, %arg9: memref<8x128xf32, #tpu.memory_space<vmem>>, %arg10: memref<8x128xf32, #tpu.memory_space<vmem>>, %arg11: memref<8x128xf32, #tpu.memory_space<vmem>>) attributes {dimension_semantics = [#tpu.dimension_semantics<arbitrary>], iteration_bounds = array<i64: 1>, scalar_prefetch = 1 : i64, scratch_operands = 4 : i64, tpu.core_type = #tpu.core_type<tc>, window_params = [{transform_indices = @transform_0, window_bounds = array<i64: 8, 8, 512>}, {transform_indices = @transform_1, window_bounds = array<i64: 8, 8, 512>}, {pipeline_mode = #tpu.pipeline_mode<synchronous>, transform_indices = @transform_2, window_bounds = array<i64: 128, 512>}, {pipeline_mode = #tpu.pipeline_mode<synchronous>, transform_indices = @transform_3, window_bounds = array<i64: 128, 512>}, {transform_indices = @transform_4, window_bounds = array<i64: 8, 8, 128>}, {transform_indices = @transform_5, window_bounds = array<i64: 8, 8, 128>}]} {
    %c0_i32 = arith.constant 0 : i32
    %0 = arith.cmpi eq, %arg0, %c0_i32 : i32
    %1 = arith.extui %0 : i1 to i32
    %c0_i32_0 = arith.constant 0 : i32
    %2 = arith.cmpi ne, %1, %c0_i32_0 : i32
    scf.if %2 {
      %cst_344 = arith.constant 0.000000e+00 : f32
      %844 = vector.broadcast %cst_344 : f32 to vector<8x128xf32>
      %c0_345 = arith.constant 0 : index
      %c0_346 = arith.constant 0 : index
      %845 = vector.load %arg8[%c0_345, %c0_346] : memref<8x128xf32, #tpu.memory_space<vmem>>, vector<8x128xf32>
      tpu.vector_store %arg8[%c0_345, %c0_346], %844 {strides = array<i32>} : memref<8x128xf32, #tpu.memory_space<vmem>>, vector<8x128xf32>,
      %cst_347 = arith.constant 0.000000e+00 : f32
      %846 = vector.broadcast %cst_347 : f32 to vector<8x128xf32>
      %c0_348 = arith.constant 0 : index
      %c0_349 = arith.constant 0 : index
      %847 = vector.load %arg9[%c0_348, %c0_349] : memref<8x128xf32, #tpu.memory_space<vmem>>, vector<8x128xf32>
      tpu.vector_store %arg9[%c0_348, %c0_349], %846 {strides = array<i32>} : memref<8x128xf32, #tpu.memory_space<vmem>>, vector<8x128xf32>,
      %cst_350 = arith.constant 0.000000e+00 : f32
      %848 = vector.broadcast %cst_350 : f32 to vector<8x128xf32>
      %c0_351 = arith.constant 0 : index
      %c0_352 = arith.constant 0 : index
      %849 = vector.load %arg10[%c0_351, %c0_352] : memref<8x128xf32, #tpu.memory_space<vmem>>, vector<8x128xf32>
      tpu.vector_store %arg10[%c0_351, %c0_352], %848 {strides = array<i32>} : memref<8x128xf32, #tpu.memory_space<vmem>>, vector<8x128xf32>,
      %cst_353 = arith.constant 0.000000e+00 : f32
      %850 = vector.broadcast %cst_353 : f32 to vector<8x128xf32>
      %c0_354 = arith.constant 0 : index
      %c0_355 = arith.constant 0 : index
      %851 = vector.load %arg11[%c0_354, %c0_355] : memref<8x128xf32, #tpu.memory_space<vmem>>, vector<8x128xf32>
      tpu.vector_store %arg11[%c0_354, %c0_355], %850 {strides = array<i32>} : memref<8x128xf32, #tpu.memory_space<vmem>>, vector<8x128xf32>,
    } else {
    }
    %3 = tpu.iota {dimensions = array<i32: 0>} : vector<8x1xi32>
    %c8_i32 = arith.constant 8 : i32
    %4 = arith.muli %arg0, %c8_i32 : i32
    %c0_i32_1 = arith.constant 0 : i32
    %5 = arith.addi %4, %c0_i32_1 : i32
    %c7_i32 = arith.constant 7 : i32
    %6 = arith.subi %c7_i32, %5 : i32
    %c0 = arith.constant 0 : index
    %c0_2 = arith.constant 0 : index
    %c0_3 = arith.constant 0 : index
    %7 = vector.load %arg2[%c0, %c0_2, %c0_3] : memref<8x8x512xf32, #tpu.memory_space<vmem>>, vector<1x8x512xf32>
    %8 = vector.shape_cast %7 : vector<1x8x512xf32> to vector<8x512xf32>
    %9 = arith.index_cast %5 : i32 to index
    %10 = memref.load %arg1[%9] : memref<8xi32, #tpu.memory_space<smem>>
    %c0_4 = arith.constant 0 : index
    %c0_5 = arith.constant 0 : index
    %11 = vector.load %arg8[%c0_4, %c0_5] : memref<8x128xf32, #tpu.memory_space<vmem>>, vector<8x128xf32>
    %c0_6 = arith.constant 0 : index
    %c0_7 = arith.constant 0 : index
    %12 = vector.load %arg9[%c0_6, %c0_7] : memref<8x128xf32, #tpu.memory_space<vmem>>, vector<8x128xf32>
    %c0_8 = arith.constant 0 : index
    %c0_9 = arith.constant 0 : index
    %13 = vector.load %arg4[%c0_8, %c0_9] : memref<128x512xf32, #tpu.memory_space<vmem>>, vector<128x512xf32>
    %cst = arith.constant dense<0.000000e+00> : vector<8x512xf32>
    %14 = tpu.matmul %11, %13, %cst {dimension_numbers = #tpu.dot_dimension_numbers<[1], [0], [0], [1], [0, 0, 1, 1], [], []>} : vector<8x128xf32>, vector<128x512xf32>, vector<8x512xf32> -> vector<8x512xf32>
    %15 = arith.addf %8, %14 : vector<8x512xf32>
    %16 = vector.extract_strided_slice %15 {offsets = [0, 0], sizes = [8, 128], strides = [1, 1]} : vector<8x512xf32> to vector<8x128xf32>
    %17 = arith.negf %16 : vector<8x128xf32>
    %18 = math.exp %17 : vector<8x128xf32>
    %cst_10 = arith.constant 1.000000e+00 : f32
    %19 = vector.broadcast %cst_10 : f32 to vector<8x128xf32>
    %20 = arith.addf %19, %18 : vector<8x128xf32>
    %21 = arith.divf %19, %20 : vector<8x128xf32>
    %22 = vector.extract_strided_slice %15 {offsets = [0, 128], sizes = [8, 128], strides = [1, 1]} : vector<8x512xf32> to vector<8x128xf32>
    %23 = arith.negf %22 : vector<8x128xf32>
    %24 = math.exp %23 : vector<8x128xf32>
    %cst_11 = arith.constant 1.000000e+00 : f32
    %25 = vector.broadcast %cst_11 : f32 to vector<8x128xf32>
    %26 = arith.addf %25, %24 : vector<8x128xf32>
    %27 = arith.divf %25, %26 : vector<8x128xf32>
    %28 = vector.extract_strided_slice %15 {offsets = [0, 256], sizes = [8, 128], strides = [1, 1]} : vector<8x512xf32> to vector<8x128xf32>
    %29 = math.tanh %28 : vector<8x128xf32>
    %30 = vector.extract_strided_slice %15 {offsets = [0, 384], sizes = [8, 128], strides = [1, 1]} : vector<8x512xf32> to vector<8x128xf32>
    %31 = arith.negf %30 : vector<8x128xf32>
    %32 = math.exp %31 : vector<8x128xf32>
    %cst_12 = arith.constant 1.000000e+00 : f32
    %33 = vector.broadcast %cst_12 : f32 to vector<8x128xf32>
    %34 = arith.addf %33, %32 : vector<8x128xf32>
    %35 = arith.divf %33, %34 : vector<8x128xf32>
    %36 = arith.mulf %27, %12 : vector<8x128xf32>
    %37 = arith.mulf %21, %29 : vector<8x128xf32>
    %38 = arith.addf %36, %37 : vector<8x128xf32>
    %39 = math.tanh %38 : vector<8x128xf32>
    %40 = arith.mulf %35, %39 : vector<8x128xf32>
    %41 = vector.broadcast %10 : i32 to vector<8x1xi32>
    %42 = arith.cmpi slt, %3, %41 : vector<8x1xi32>
    %43 = vector.shape_cast %42 : vector<8x1xi1> to vector<8x1xi1>
    %44 = vector.broadcast %43 : vector<8x1xi1> to vector<8x128xi1>
    %45 = arith.select %44, %40, %11 : vector<8x128xi1>, vector<8x128xf32>
    %c0_13 = arith.constant 0 : index
    %c0_14 = arith.constant 0 : index
    %46 = vector.load %arg8[%c0_13, %c0_14] : memref<8x128xf32, #tpu.memory_space<vmem>>, vector<8x128xf32>
    tpu.vector_store %arg8[%c0_13, %c0_14], %45 {strides = array<i32>} : memref<8x128xf32, #tpu.memory_space<vmem>>, vector<8x128xf32>,
    %47 = vector.shape_cast %42 : vector<8x1xi1> to vector<8x1xi1>
    %48 = vector.broadcast %47 : vector<8x1xi1> to vector<8x128xi1>
    %49 = arith.select %48, %38, %12 : vector<8x128xi1>, vector<8x128xf32>
    %c0_15 = arith.constant 0 : index
    %c0_16 = arith.constant 0 : index
    %50 = vector.load %arg9[%c0_15, %c0_16] : memref<8x128xf32, #tpu.memory_space<vmem>>, vector<8x128xf32>
    tpu.vector_store %arg9[%c0_15, %c0_16], %49 {strides = array<i32>} : memref<8x128xf32, #tpu.memory_space<vmem>>, vector<8x128xf32>,
    %cst_17 = arith.constant 0.000000e+00 : f32
    %51 = vector.shape_cast %42 : vector<8x1xi1> to vector<8x1xi1>
    %52 = vector.broadcast %51 : vector<8x1xi1> to vector<8x128xi1>
    %53 = vector.broadcast %cst_17 : f32 to vector<8x128xf32>
    %54 = arith.select %52, %40, %53 : vector<8x128xi1>, vector<8x128xf32>
    %c0_18 = arith.constant 0 : index
    %c0_19 = arith.constant 0 : index
    %c0_20 = arith.constant 0 : index
    %55 = vector.load %arg6[%c0_18, %c0_19, %c0_20] : memref<8x8x128xf32, #tpu.memory_space<vmem>>, vector<1x8x128xf32>
    %56 = vector.shape_cast %55 : vector<1x8x128xf32> to vector<8x128xf32>
    %57 = vector.shape_cast %54 : vector<8x128xf32> to vector<1x8x128xf32>
    tpu.vector_store %arg6[%c0_18, %c0_19, %c0_20], %57 {strides = array<i32>} : memref<8x8x128xf32, #tpu.memory_space<vmem>>, vector<1x8x128xf32>,
    %c7 = arith.constant 7 : index
    %c0_21 = arith.constant 0 : index
    %c0_22 = arith.constant 0 : index
    %58 = vector.load %arg3[%c7, %c0_21, %c0_22] : memref<8x8x512xf32, #tpu.memory_space<vmem>>, vector<1x8x512xf32>
    %59 = vector.shape_cast %58 : vector<1x8x512xf32> to vector<8x512xf32>
    %60 = arith.index_cast %6 : i32 to index
    %61 = memref.load %arg1[%60] : memref<8xi32, #tpu.memory_space<smem>>
    %c0_23 = arith.constant 0 : index
    %c0_24 = arith.constant 0 : index
    %62 = vector.load %arg10[%c0_23, %c0_24] : memref<8x128xf32, #tpu.memory_space<vmem>>, vector<8x128xf32>
    %c0_25 = arith.constant 0 : index
    %c0_26 = arith.constant 0 : index
    %63 = vector.load %arg11[%c0_25, %c0_26] : memref<8x128xf32, #tpu.memory_space<vmem>>, vector<8x128xf32>
    %c0_27 = arith.constant 0 : index
    %c0_28 = arith.constant 0 : index
    %64 = vector.load %arg5[%c0_27, %c0_28] : memref<128x512xf32, #tpu.memory_space<vmem>>, vector<128x512xf32>
    %cst_29 = arith.constant dense<0.000000e+00> : vector<8x512xf32>
    %65 = tpu.matmul %62, %64, %cst_29 {dimension_numbers = #tpu.dot_dimension_numbers<[1], [0], [0], [1], [0, 0, 1, 1], [], []>} : vector<8x128xf32>, vector<128x512xf32>, vector<8x512xf32> -> vector<8x512xf32>
    %66 = arith.addf %59, %65 : vector<8x512xf32>
    %67 = vector.extract_strided_slice %66 {offsets = [0, 0], sizes = [8, 128], strides = [1, 1]} : vector<8x512xf32> to vector<8x128xf32>
    %68 = arith.negf %67 : vector<8x128xf32>
    %69 = math.exp %68 : vector<8x128xf32>
    %cst_30 = arith.constant 1.000000e+00 : f32
    %70 = vector.broadcast %cst_30 : f32 to vector<8x128xf32>
    %71 = arith.addf %70, %69 : vector<8x128xf32>
    %72 = arith.divf %70, %71 : vector<8x128xf32>
    %73 = vector.extract_strided_slice %66 {offsets = [0, 128], sizes = [8, 128], strides = [1, 1]} : vector<8x512xf32> to vector<8x128xf32>
    %74 = arith.negf %73 : vector<8x128xf32>
    %75 = math.exp %74 : vector<8x128xf32>
    %cst_31 = arith.constant 1.000000e+00 : f32
    %76 = vector.broadcast %cst_31 : f32 to vector<8x128xf32>
    %77 = arith.addf %76, %75 : vector<8x128xf32>
    %78 = arith.divf %76, %77 : vector<8x128xf32>
    %79 = vector.extract_strided_slice %66 {offsets = [0, 256], sizes = [8, 128], strides = [1, 1]} : vector<8x512xf32> to vector<8x128xf32>
    %80 = math.tanh %79 : vector<8x128xf32>
    %81 = vector.extract_strided_slice %66 {offsets = [0, 384], sizes = [8, 128], strides = [1, 1]} : vector<8x512xf32> to vector<8x128xf32>
    %82 = arith.negf %81 : vector<8x128xf32>
    %83 = math.exp %82 : vector<8x128xf32>
    %cst_32 = arith.constant 1.000000e+00 : f32
    %84 = vector.broadcast %cst_32 : f32 to vector<8x128xf32>
    %85 = arith.addf %84, %83 : vector<8x128xf32>
    %86 = arith.divf %84, %85 : vector<8x128xf32>
    %87 = arith.mulf %78, %63 : vector<8x128xf32>
    %88 = arith.mulf %72, %80 : vector<8x128xf32>
    %89 = arith.addf %87, %88 : vector<8x128xf32>
    %90 = math.tanh %89 : vector<8x128xf32>
    %91 = arith.mulf %86, %90 : vector<8x128xf32>
    %92 = vector.broadcast %61 : i32 to vector<8x1xi32>
    %93 = arith.cmpi slt, %3, %92 : vector<8x1xi32>
    %94 = vector.shape_cast %93 : vector<8x1xi1> to vector<8x1xi1>
    %95 = vector.broadcast %94 : vector<8x1xi1> to vector<8x128xi1>
    %96 = arith.select %95, %91, %62 : vector<8x128xi1>, vector<8x128xf32>
    %c0_33 = arith.constant 0 : index
    %c0_34 = arith.constant 0 : index
    %97 = vector.load %arg10[%c0_33, %c0_34] : memref<8x128xf32, #tpu.memory_space<vmem>>, vector<8x128xf32>
    tpu.vector_store %arg10[%c0_33, %c0_34], %96 {strides = array<i32>} : memref<8x128xf32, #tpu.memory_space<vmem>>, vector<8x128xf32>,
    %98 = vector.shape_cast %93 : vector<8x1xi1> to vector<8x1xi1>
    %99 = vector.broadcast %98 : vector<8x1xi1> to vector<8x128xi1>
    %100 = arith.select %99, %89, %63 : vector<8x128xi1>, vector<8x128xf32>
    %c0_35 = arith.constant 0 : index
    %c0_36 = arith.constant 0 : index
    %101 = vector.load %arg11[%c0_35, %c0_36] : memref<8x128xf32, #tpu.memory_space<vmem>>, vector<8x128xf32>
    tpu.vector_store %arg11[%c0_35, %c0_36], %100 {strides = array<i32>} : memref<8x128xf32, #tpu.memory_space<vmem>>, vector<8x128xf32>,
    %cst_37 = arith.constant 0.000000e+00 : f32
    %102 = vector.shape_cast %93 : vector<8x1xi1> to vector<8x1xi1>
    %103 = vector.broadcast %102 : vector<8x1xi1> to vector<8x128xi1>
    %104 = vector.broadcast %cst_37 : f32 to vector<8x128xf32>
    %105 = arith.select %103, %91, %104 : vector<8x128xi1>, vector<8x128xf32>
    %c7_38 = arith.constant 7 : index
    %c0_39 = arith.constant 0 : index
    %c0_40 = arith.constant 0 : index
    %106 = vector.load %arg7[%c7_38, %c0_39, %c0_40] : memref<8x8x128xf32, #tpu.memory_space<vmem>>, vector<1x8x128xf32>
    %107 = vector.shape_cast %106 : vector<1x8x128xf32> to vector<8x128xf32>
    %108 = vector.shape_cast %105 : vector<8x128xf32> to vector<1x8x128xf32>
    tpu.vector_store %arg7[%c7_38, %c0_39, %c0_40], %108 {strides = array<i32>} : memref<8x8x128xf32, #tpu.memory_space<vmem>>, vector<1x8x128xf32>,
    %c8_i32_41 = arith.constant 8 : i32
    %109 = arith.muli %arg0, %c8_i32_41 : i32
    %c1_i32 = arith.constant 1 : i32
    %110 = arith.addi %109, %c1_i32 : i32
    %c7_i32_42 = arith.constant 7 : i32
    %111 = arith.subi %c7_i32_42, %110 : i32
    %c1 = arith.constant 1 : index
    %c0_43 = arith.constant 0 : index
    %c0_44 = arith.constant 0 : index
    %112 = vector.load %arg2[%c1, %c0_43, %c0_44] : memref<8x8x512xf32, #tpu.memory_space<vmem>>, vector<1x8x512xf32>
    %113 = vector.shape_cast %112 : vector<1x8x512xf32> to vector<8x512xf32>
    %114 = arith.index_cast %110 : i32 to index
    %115 = memref.load %arg1[%114] : memref<8xi32, #tpu.memory_space<smem>>
    %c0_45 = arith.constant 0 : index
    %c0_46 = arith.constant 0 : index
    %116 = vector.load %arg8[%c0_45, %c0_46] : memref<8x128xf32, #tpu.memory_space<vmem>>, vector<8x128xf32>
    %c0_47 = arith.constant 0 : index
    %c0_48 = arith.constant 0 : index
    %117 = vector.load %arg9[%c0_47, %c0_48] : memref<8x128xf32, #tpu.memory_space<vmem>>, vector<8x128xf32>
    %c0_49 = arith.constant 0 : index
    %c0_50 = arith.constant 0 : index
    %118 = vector.load %arg4[%c0_49, %c0_50] : memref<128x512xf32, #tpu.memory_space<vmem>>, vector<128x512xf32>
    %cst_51 = arith.constant dense<0.000000e+00> : vector<8x512xf32>
    %119 = tpu.matmul %116, %118, %cst_51 {dimension_numbers = #tpu.dot_dimension_numbers<[1], [0], [0], [1], [0, 0, 1, 1], [], []>} : vector<8x128xf32>, vector<128x512xf32>, vector<8x512xf32> -> vector<8x512xf32>
    %120 = arith.addf %113, %119 : vector<8x512xf32>
    %121 = vector.extract_strided_slice %120 {offsets = [0, 0], sizes = [8, 128], strides = [1, 1]} : vector<8x512xf32> to vector<8x128xf32>
    %122 = arith.negf %121 : vector<8x128xf32>
    %123 = math.exp %122 : vector<8x128xf32>
    %cst_52 = arith.constant 1.000000e+00 : f32
    %124 = vector.broadcast %cst_52 : f32 to vector<8x128xf32>
    %125 = arith.addf %124, %123 : vector<8x128xf32>
    %126 = arith.divf %124, %125 : vector<8x128xf32>
    %127 = vector.extract_strided_slice %120 {offsets = [0, 128], sizes = [8, 128], strides = [1, 1]} : vector<8x512xf32> to vector<8x128xf32>
    %128 = arith.negf %127 : vector<8x128xf32>
    %129 = math.exp %128 : vector<8x128xf32>
    %cst_53 = arith.constant 1.000000e+00 : f32
    %130 = vector.broadcast %cst_53 : f32 to vector<8x128xf32>
    %131 = arith.addf %130, %129 : vector<8x128xf32>
    %132 = arith.divf %130, %131 : vector<8x128xf32>
    %133 = vector.extract_strided_slice %120 {offsets = [0, 256], sizes = [8, 128], strides = [1, 1]} : vector<8x512xf32> to vector<8x128xf32>
    %134 = math.tanh %133 : vector<8x128xf32>
    %135 = vector.extract_strided_slice %120 {offsets = [0, 384], sizes = [8, 128], strides = [1, 1]} : vector<8x512xf32> to vector<8x128xf32>
    %136 = arith.negf %135 : vector<8x128xf32>
    %137 = math.exp %136 : vector<8x128xf32>
    %cst_54 = arith.constant 1.000000e+00 : f32
    %138 = vector.broadcast %cst_54 : f32 to vector<8x128xf32>
    %139 = arith.addf %138, %137 : vector<8x128xf32>
    %140 = arith.divf %138, %139 : vector<8x128xf32>
    %141 = arith.mulf %132, %117 : vector<8x128xf32>
    %142 = arith.mulf %126, %134 : vector<8x128xf32>
    %143 = arith.addf %141, %142 : vector<8x128xf32>
    %144 = math.tanh %143 : vector<8x128xf32>
    %145 = arith.mulf %140, %144 : vector<8x128xf32>
    %146 = vector.broadcast %115 : i32 to vector<8x1xi32>
    %147 = arith.cmpi slt, %3, %146 : vector<8x1xi32>
    %148 = vector.shape_cast %147 : vector<8x1xi1> to vector<8x1xi1>
    %149 = vector.broadcast %148 : vector<8x1xi1> to vector<8x128xi1>
    %150 = arith.select %149, %145, %116 : vector<8x128xi1>, vector<8x128xf32>
    %c0_55 = arith.constant 0 : index
    %c0_56 = arith.constant 0 : index
    %151 = vector.load %arg8[%c0_55, %c0_56] : memref<8x128xf32, #tpu.memory_space<vmem>>, vector<8x128xf32>
    tpu.vector_store %arg8[%c0_55, %c0_56], %150 {strides = array<i32>} : memref<8x128xf32, #tpu.memory_space<vmem>>, vector<8x128xf32>,
    %152 = vector.shape_cast %147 : vector<8x1xi1> to vector<8x1xi1>
    %153 = vector.broadcast %152 : vector<8x1xi1> to vector<8x128xi1>
    %154 = arith.select %153, %143, %117 : vector<8x128xi1>, vector<8x128xf32>
    %c0_57 = arith.constant 0 : index
    %c0_58 = arith.constant 0 : index
    %155 = vector.load %arg9[%c0_57, %c0_58] : memref<8x128xf32, #tpu.memory_space<vmem>>, vector<8x128xf32>
    tpu.vector_store %arg9[%c0_57, %c0_58], %154 {strides = array<i32>} : memref<8x128xf32, #tpu.memory_space<vmem>>, vector<8x128xf32>,
    %cst_59 = arith.constant 0.000000e+00 : f32
    %156 = vector.shape_cast %147 : vector<8x1xi1> to vector<8x1xi1>
    %157 = vector.broadcast %156 : vector<8x1xi1> to vector<8x128xi1>
    %158 = vector.broadcast %cst_59 : f32 to vector<8x128xf32>
    %159 = arith.select %157, %145, %158 : vector<8x128xi1>, vector<8x128xf32>
    %c1_60 = arith.constant 1 : index
    %c0_61 = arith.constant 0 : index
    %c0_62 = arith.constant 0 : index
    %160 = vector.load %arg6[%c1_60, %c0_61, %c0_62] : memref<8x8x128xf32, #tpu.memory_space<vmem>>, vector<1x8x128xf32>
    %161 = vector.shape_cast %160 : vector<1x8x128xf32> to vector<8x128xf32>
    %162 = vector.shape_cast %159 : vector<8x128xf32> to vector<1x8x128xf32>
    tpu.vector_store %arg6[%c1_60, %c0_61, %c0_62], %162 {strides = array<i32>} : memref<8x8x128xf32, #tpu.memory_space<vmem>>, vector<1x8x128xf32>,
    %c6 = arith.constant 6 : index
    %c0_63 = arith.constant 0 : index
    %c0_64 = arith.constant 0 : index
    %163 = vector.load %arg3[%c6, %c0_63, %c0_64] : memref<8x8x512xf32, #tpu.memory_space<vmem>>, vector<1x8x512xf32>
    %164 = vector.shape_cast %163 : vector<1x8x512xf32> to vector<8x512xf32>
    %165 = arith.index_cast %111 : i32 to index
    %166 = memref.load %arg1[%165] : memref<8xi32, #tpu.memory_space<smem>>
    %c0_65 = arith.constant 0 : index
    %c0_66 = arith.constant 0 : index
    %167 = vector.load %arg10[%c0_65, %c0_66] : memref<8x128xf32, #tpu.memory_space<vmem>>, vector<8x128xf32>
    %c0_67 = arith.constant 0 : index
    %c0_68 = arith.constant 0 : index
    %168 = vector.load %arg11[%c0_67, %c0_68] : memref<8x128xf32, #tpu.memory_space<vmem>>, vector<8x128xf32>
    %c0_69 = arith.constant 0 : index
    %c0_70 = arith.constant 0 : index
    %169 = vector.load %arg5[%c0_69, %c0_70] : memref<128x512xf32, #tpu.memory_space<vmem>>, vector<128x512xf32>
    %cst_71 = arith.constant dense<0.000000e+00> : vector<8x512xf32>
    %170 = tpu.matmul %167, %169, %cst_71 {dimension_numbers = #tpu.dot_dimension_numbers<[1], [0], [0], [1], [0, 0, 1, 1], [], []>} : vector<8x128xf32>, vector<128x512xf32>, vector<8x512xf32> -> vector<8x512xf32>
    %171 = arith.addf %164, %170 : vector<8x512xf32>
    %172 = vector.extract_strided_slice %171 {offsets = [0, 0], sizes = [8, 128], strides = [1, 1]} : vector<8x512xf32> to vector<8x128xf32>
    %173 = arith.negf %172 : vector<8x128xf32>
    %174 = math.exp %173 : vector<8x128xf32>
    %cst_72 = arith.constant 1.000000e+00 : f32
    %175 = vector.broadcast %cst_72 : f32 to vector<8x128xf32>
    %176 = arith.addf %175, %174 : vector<8x128xf32>
    %177 = arith.divf %175, %176 : vector<8x128xf32>
    %178 = vector.extract_strided_slice %171 {offsets = [0, 128], sizes = [8, 128], strides = [1, 1]} : vector<8x512xf32> to vector<8x128xf32>
    %179 = arith.negf %178 : vector<8x128xf32>
    %180 = math.exp %179 : vector<8x128xf32>
    %cst_73 = arith.constant 1.000000e+00 : f32
    %181 = vector.broadcast %cst_73 : f32 to vector<8x128xf32>
    %182 = arith.addf %181, %180 : vector<8x128xf32>
    %183 = arith.divf %181, %182 : vector<8x128xf32>
    %184 = vector.extract_strided_slice %171 {offsets = [0, 256], sizes = [8, 128], strides = [1, 1]} : vector<8x512xf32> to vector<8x128xf32>
    %185 = math.tanh %184 : vector<8x128xf32>
    %186 = vector.extract_strided_slice %171 {offsets = [0, 384], sizes = [8, 128], strides = [1, 1]} : vector<8x512xf32> to vector<8x128xf32>
    %187 = arith.negf %186 : vector<8x128xf32>
    %188 = math.exp %187 : vector<8x128xf32>
    %cst_74 = arith.constant 1.000000e+00 : f32
    %189 = vector.broadcast %cst_74 : f32 to vector<8x128xf32>
    %190 = arith.addf %189, %188 : vector<8x128xf32>
    %191 = arith.divf %189, %190 : vector<8x128xf32>
    %192 = arith.mulf %183, %168 : vector<8x128xf32>
    %193 = arith.mulf %177, %185 : vector<8x128xf32>
    %194 = arith.addf %192, %193 : vector<8x128xf32>
    %195 = math.tanh %194 : vector<8x128xf32>
    %196 = arith.mulf %191, %195 : vector<8x128xf32>
    %197 = vector.broadcast %166 : i32 to vector<8x1xi32>
    %198 = arith.cmpi slt, %3, %197 : vector<8x1xi32>
    %199 = vector.shape_cast %198 : vector<8x1xi1> to vector<8x1xi1>
    %200 = vector.broadcast %199 : vector<8x1xi1> to vector<8x128xi1>
    %201 = arith.select %200, %196, %167 : vector<8x128xi1>, vector<8x128xf32>
    %c0_75 = arith.constant 0 : index
    %c0_76 = arith.constant 0 : index
    %202 = vector.load %arg10[%c0_75, %c0_76] : memref<8x128xf32, #tpu.memory_space<vmem>>, vector<8x128xf32>
    tpu.vector_store %arg10[%c0_75, %c0_76], %201 {strides = array<i32>} : memref<8x128xf32, #tpu.memory_space<vmem>>, vector<8x128xf32>,
    %203 = vector.shape_cast %198 : vector<8x1xi1> to vector<8x1xi1>
    %204 = vector.broadcast %203 : vector<8x1xi1> to vector<8x128xi1>
    %205 = arith.select %204, %194, %168 : vector<8x128xi1>, vector<8x128xf32>
    %c0_77 = arith.constant 0 : index
    %c0_78 = arith.constant 0 : index
    %206 = vector.load %arg11[%c0_77, %c0_78] : memref<8x128xf32, #tpu.memory_space<vmem>>, vector<8x128xf32>
    tpu.vector_store %arg11[%c0_77, %c0_78], %205 {strides = array<i32>} : memref<8x128xf32, #tpu.memory_space<vmem>>, vector<8x128xf32>,
    %cst_79 = arith.constant 0.000000e+00 : f32
    %207 = vector.shape_cast %198 : vector<8x1xi1> to vector<8x1xi1>
    %208 = vector.broadcast %207 : vector<8x1xi1> to vector<8x128xi1>
    %209 = vector.broadcast %cst_79 : f32 to vector<8x128xf32>
    %210 = arith.select %208, %196, %209 : vector<8x128xi1>, vector<8x128xf32>
    %c6_80 = arith.constant 6 : index
    %c0_81 = arith.constant 0 : index
    %c0_82 = arith.constant 0 : index
    %211 = vector.load %arg7[%c6_80, %c0_81, %c0_82] : memref<8x8x128xf32, #tpu.memory_space<vmem>>, vector<1x8x128xf32>
    %212 = vector.shape_cast %211 : vector<1x8x128xf32> to vector<8x128xf32>
    %213 = vector.shape_cast %210 : vector<8x128xf32> to vector<1x8x128xf32>
    tpu.vector_store %arg7[%c6_80, %c0_81, %c0_82], %213 {strides = array<i32>} : memref<8x8x128xf32, #tpu.memory_space<vmem>>, vector<1x8x128xf32>,
    %c8_i32_83 = arith.constant 8 : i32
    %214 = arith.muli %arg0, %c8_i32_83 : i32
    %c2_i32 = arith.constant 2 : i32
    %215 = arith.addi %214, %c2_i32 : i32
    %c7_i32_84 = arith.constant 7 : i32
    %216 = arith.subi %c7_i32_84, %215 : i32
    %c2 = arith.constant 2 : index
    %c0_85 = arith.constant 0 : index
    %c0_86 = arith.constant 0 : index
    %217 = vector.load %arg2[%c2, %c0_85, %c0_86] : memref<8x8x512xf32, #tpu.memory_space<vmem>>, vector<1x8x512xf32>
    %218 = vector.shape_cast %217 : vector<1x8x512xf32> to vector<8x512xf32>
    %219 = arith.index_cast %215 : i32 to index
    %220 = memref.load %arg1[%219] : memref<8xi32, #tpu.memory_space<smem>>
    %c0_87 = arith.constant 0 : index
    %c0_88 = arith.constant 0 : index
    %221 = vector.load %arg8[%c0_87, %c0_88] : memref<8x128xf32, #tpu.memory_space<vmem>>, vector<8x128xf32>
    %c0_89 = arith.constant 0 : index
    %c0_90 = arith.constant 0 : index
    %222 = vector.load %arg9[%c0_89, %c0_90] : memref<8x128xf32, #tpu.memory_space<vmem>>, vector<8x128xf32>
    %c0_91 = arith.constant 0 : index
    %c0_92 = arith.constant 0 : index
    %223 = vector.load %arg4[%c0_91, %c0_92] : memref<128x512xf32, #tpu.memory_space<vmem>>, vector<128x512xf32>
    %cst_93 = arith.constant dense<0.000000e+00> : vector<8x512xf32>
    %224 = tpu.matmul %221, %223, %cst_93 {dimension_numbers = #tpu.dot_dimension_numbers<[1], [0], [0], [1], [0, 0, 1, 1], [], []>} : vector<8x128xf32>, vector<128x512xf32>, vector<8x512xf32> -> vector<8x512xf32>
    %225 = arith.addf %218, %224 : vector<8x512xf32>
    %226 = vector.extract_strided_slice %225 {offsets = [0, 0], sizes = [8, 128], strides = [1, 1]} : vector<8x512xf32> to vector<8x128xf32>
    %227 = arith.negf %226 : vector<8x128xf32>
    %228 = math.exp %227 : vector<8x128xf32>
    %cst_94 = arith.constant 1.000000e+00 : f32
    %229 = vector.broadcast %cst_94 : f32 to vector<8x128xf32>
    %230 = arith.addf %229, %228 : vector<8x128xf32>
    %231 = arith.divf %229, %230 : vector<8x128xf32>
    %232 = vector.extract_strided_slice %225 {offsets = [0, 128], sizes = [8, 128], strides = [1, 1]} : vector<8x512xf32> to vector<8x128xf32>
    %233 = arith.negf %232 : vector<8x128xf32>
    %234 = math.exp %233 : vector<8x128xf32>
    %cst_95 = arith.constant 1.000000e+00 : f32
    %235 = vector.broadcast %cst_95 : f32 to vector<8x128xf32>
    %236 = arith.addf %235, %234 : vector<8x128xf32>
    %237 = arith.divf %235, %236 : vector<8x128xf32>
    %238 = vector.extract_strided_slice %225 {offsets = [0, 256], sizes = [8, 128], strides = [1, 1]} : vector<8x512xf32> to vector<8x128xf32>
    %239 = math.tanh %238 : vector<8x128xf32>
    %240 = vector.extract_strided_slice %225 {offsets = [0, 384], sizes = [8, 128], strides = [1, 1]} : vector<8x512xf32> to vector<8x128xf32>
    %241 = arith.negf %240 : vector<8x128xf32>
    %242 = math.exp %241 : vector<8x128xf32>
    %cst_96 = arith.constant 1.000000e+00 : f32
    %243 = vector.broadcast %cst_96 : f32 to vector<8x128xf32>
    %244 = arith.addf %243, %242 : vector<8x128xf32>
    %245 = arith.divf %243, %244 : vector<8x128xf32>
    %246 = arith.mulf %237, %222 : vector<8x128xf32>
    %247 = arith.mulf %231, %239 : vector<8x128xf32>
    %248 = arith.addf %246, %247 : vector<8x128xf32>
    %249 = math.tanh %248 : vector<8x128xf32>
    %250 = arith.mulf %245, %249 : vector<8x128xf32>
    %251 = vector.broadcast %220 : i32 to vector<8x1xi32>
    %252 = arith.cmpi slt, %3, %251 : vector<8x1xi32>
    %253 = vector.shape_cast %252 : vector<8x1xi1> to vector<8x1xi1>
    %254 = vector.broadcast %253 : vector<8x1xi1> to vector<8x128xi1>
    %255 = arith.select %254, %250, %221 : vector<8x128xi1>, vector<8x128xf32>
    %c0_97 = arith.constant 0 : index
    %c0_98 = arith.constant 0 : index
    %256 = vector.load %arg8[%c0_97, %c0_98] : memref<8x128xf32, #tpu.memory_space<vmem>>, vector<8x128xf32>
    tpu.vector_store %arg8[%c0_97, %c0_98], %255 {strides = array<i32>} : memref<8x128xf32, #tpu.memory_space<vmem>>, vector<8x128xf32>,
    %257 = vector.shape_cast %252 : vector<8x1xi1> to vector<8x1xi1>
    %258 = vector.broadcast %257 : vector<8x1xi1> to vector<8x128xi1>
    %259 = arith.select %258, %248, %222 : vector<8x128xi1>, vector<8x128xf32>
    %c0_99 = arith.constant 0 : index
    %c0_100 = arith.constant 0 : index
    %260 = vector.load %arg9[%c0_99, %c0_100] : memref<8x128xf32, #tpu.memory_space<vmem>>, vector<8x128xf32>
    tpu.vector_store %arg9[%c0_99, %c0_100], %259 {strides = array<i32>} : memref<8x128xf32, #tpu.memory_space<vmem>>, vector<8x128xf32>,
    %cst_101 = arith.constant 0.000000e+00 : f32
    %261 = vector.shape_cast %252 : vector<8x1xi1> to vector<8x1xi1>
    %262 = vector.broadcast %261 : vector<8x1xi1> to vector<8x128xi1>
    %263 = vector.broadcast %cst_101 : f32 to vector<8x128xf32>
    %264 = arith.select %262, %250, %263 : vector<8x128xi1>, vector<8x128xf32>
    %c2_102 = arith.constant 2 : index
    %c0_103 = arith.constant 0 : index
    %c0_104 = arith.constant 0 : index
    %265 = vector.load %arg6[%c2_102, %c0_103, %c0_104] : memref<8x8x128xf32, #tpu.memory_space<vmem>>, vector<1x8x128xf32>
    %266 = vector.shape_cast %265 : vector<1x8x128xf32> to vector<8x128xf32>
    %267 = vector.shape_cast %264 : vector<8x128xf32> to vector<1x8x128xf32>
    tpu.vector_store %arg6[%c2_102, %c0_103, %c0_104], %267 {strides = array<i32>} : memref<8x8x128xf32, #tpu.memory_space<vmem>>, vector<1x8x128xf32>,
    %c5 = arith.constant 5 : index
    %c0_105 = arith.constant 0 : index
    %c0_106 = arith.constant 0 : index
    %268 = vector.load %arg3[%c5, %c0_105, %c0_106] : memref<8x8x512xf32, #tpu.memory_space<vmem>>, vector<1x8x512xf32>
    %269 = vector.shape_cast %268 : vector<1x8x512xf32> to vector<8x512xf32>
    %270 = arith.index_cast %216 : i32 to index
    %271 = memref.load %arg1[%270] : memref<8xi32, #tpu.memory_space<smem>>
    %c0_107 = arith.constant 0 : index
    %c0_108 = arith.constant 0 : index
    %272 = vector.load %arg10[%c0_107, %c0_108] : memref<8x128xf32, #tpu.memory_space<vmem>>, vector<8x128xf32>
    %c0_109 = arith.constant 0 : index
    %c0_110 = arith.constant 0 : index
    %273 = vector.load %arg11[%c0_109, %c0_110] : memref<8x128xf32, #tpu.memory_space<vmem>>, vector<8x128xf32>
    %c0_111 = arith.constant 0 : index
    %c0_112 = arith.constant 0 : index
    %274 = vector.load %arg5[%c0_111, %c0_112] : memref<128x512xf32, #tpu.memory_space<vmem>>, vector<128x512xf32>
    %cst_113 = arith.constant dense<0.000000e+00> : vector<8x512xf32>
    %275 = tpu.matmul %272, %274, %cst_113 {dimension_numbers = #tpu.dot_dimension_numbers<[1], [0], [0], [1], [0, 0, 1, 1], [], []>} : vector<8x128xf32>, vector<128x512xf32>, vector<8x512xf32> -> vector<8x512xf32>
    %276 = arith.addf %269, %275 : vector<8x512xf32>
    %277 = vector.extract_strided_slice %276 {offsets = [0, 0], sizes = [8, 128], strides = [1, 1]} : vector<8x512xf32> to vector<8x128xf32>
    %278 = arith.negf %277 : vector<8x128xf32>
    %279 = math.exp %278 : vector<8x128xf32>
    %cst_114 = arith.constant 1.000000e+00 : f32
    %280 = vector.broadcast %cst_114 : f32 to vector<8x128xf32>
    %281 = arith.addf %280, %279 : vector<8x128xf32>
    %282 = arith.divf %280, %281 : vector<8x128xf32>
    %283 = vector.extract_strided_slice %276 {offsets = [0, 128], sizes = [8, 128], strides = [1, 1]} : vector<8x512xf32> to vector<8x128xf32>
    %284 = arith.negf %283 : vector<8x128xf32>
    %285 = math.exp %284 : vector<8x128xf32>
    %cst_115 = arith.constant 1.000000e+00 : f32
    %286 = vector.broadcast %cst_115 : f32 to vector<8x128xf32>
    %287 = arith.addf %286, %285 : vector<8x128xf32>
    %288 = arith.divf %286, %287 : vector<8x128xf32>
    %289 = vector.extract_strided_slice %276 {offsets = [0, 256], sizes = [8, 128], strides = [1, 1]} : vector<8x512xf32> to vector<8x128xf32>
    %290 = math.tanh %289 : vector<8x128xf32>
    %291 = vector.extract_strided_slice %276 {offsets = [0, 384], sizes = [8, 128], strides = [1, 1]} : vector<8x512xf32> to vector<8x128xf32>
    %292 = arith.negf %291 : vector<8x128xf32>
    %293 = math.exp %292 : vector<8x128xf32>
    %cst_116 = arith.constant 1.000000e+00 : f32
    %294 = vector.broadcast %cst_116 : f32 to vector<8x128xf32>
    %295 = arith.addf %294, %293 : vector<8x128xf32>
    %296 = arith.divf %294, %295 : vector<8x128xf32>
    %297 = arith.mulf %288, %273 : vector<8x128xf32>
    %298 = arith.mulf %282, %290 : vector<8x128xf32>
    %299 = arith.addf %297, %298 : vector<8x128xf32>
    %300 = math.tanh %299 : vector<8x128xf32>
    %301 = arith.mulf %296, %300 : vector<8x128xf32>
    %302 = vector.broadcast %271 : i32 to vector<8x1xi32>
    %303 = arith.cmpi slt, %3, %302 : vector<8x1xi32>
    %304 = vector.shape_cast %303 : vector<8x1xi1> to vector<8x1xi1>
    %305 = vector.broadcast %304 : vector<8x1xi1> to vector<8x128xi1>
    %306 = arith.select %305, %301, %272 : vector<8x128xi1>, vector<8x128xf32>
    %c0_117 = arith.constant 0 : index
    %c0_118 = arith.constant 0 : index
    %307 = vector.load %arg10[%c0_117, %c0_118] : memref<8x128xf32, #tpu.memory_space<vmem>>, vector<8x128xf32>
    tpu.vector_store %arg10[%c0_117, %c0_118], %306 {strides = array<i32>} : memref<8x128xf32, #tpu.memory_space<vmem>>, vector<8x128xf32>,
    %308 = vector.shape_cast %303 : vector<8x1xi1> to vector<8x1xi1>
    %309 = vector.broadcast %308 : vector<8x1xi1> to vector<8x128xi1>
    %310 = arith.select %309, %299, %273 : vector<8x128xi1>, vector<8x128xf32>
    %c0_119 = arith.constant 0 : index
    %c0_120 = arith.constant 0 : index
    %311 = vector.load %arg11[%c0_119, %c0_120] : memref<8x128xf32, #tpu.memory_space<vmem>>, vector<8x128xf32>
    tpu.vector_store %arg11[%c0_119, %c0_120], %310 {strides = array<i32>} : memref<8x128xf32, #tpu.memory_space<vmem>>, vector<8x128xf32>,
    %cst_121 = arith.constant 0.000000e+00 : f32
    %312 = vector.shape_cast %303 : vector<8x1xi1> to vector<8x1xi1>
    %313 = vector.broadcast %312 : vector<8x1xi1> to vector<8x128xi1>
    %314 = vector.broadcast %cst_121 : f32 to vector<8x128xf32>
    %315 = arith.select %313, %301, %314 : vector<8x128xi1>, vector<8x128xf32>
    %c5_122 = arith.constant 5 : index
    %c0_123 = arith.constant 0 : index
    %c0_124 = arith.constant 0 : index
    %316 = vector.load %arg7[%c5_122, %c0_123, %c0_124] : memref<8x8x128xf32, #tpu.memory_space<vmem>>, vector<1x8x128xf32>
    %317 = vector.shape_cast %316 : vector<1x8x128xf32> to vector<8x128xf32>
    %318 = vector.shape_cast %315 : vector<8x128xf32> to vector<1x8x128xf32>
    tpu.vector_store %arg7[%c5_122, %c0_123, %c0_124], %318 {strides = array<i32>} : memref<8x8x128xf32, #tpu.memory_space<vmem>>, vector<1x8x128xf32>,
    %c8_i32_125 = arith.constant 8 : i32
    %319 = arith.muli %arg0, %c8_i32_125 : i32
    %c3_i32 = arith.constant 3 : i32
    %320 = arith.addi %319, %c3_i32 : i32
    %c7_i32_126 = arith.constant 7 : i32
    %321 = arith.subi %c7_i32_126, %320 : i32
    %c3 = arith.constant 3 : index
    %c0_127 = arith.constant 0 : index
    %c0_128 = arith.constant 0 : index
    %322 = vector.load %arg2[%c3, %c0_127, %c0_128] : memref<8x8x512xf32, #tpu.memory_space<vmem>>, vector<1x8x512xf32>
    %323 = vector.shape_cast %322 : vector<1x8x512xf32> to vector<8x512xf32>
    %324 = arith.index_cast %320 : i32 to index
    %325 = memref.load %arg1[%324] : memref<8xi32, #tpu.memory_space<smem>>
    %c0_129 = arith.constant 0 : index
    %c0_130 = arith.constant 0 : index
    %326 = vector.load %arg8[%c0_129, %c0_130] : memref<8x128xf32, #tpu.memory_space<vmem>>, vector<8x128xf32>
    %c0_131 = arith.constant 0 : index
    %c0_132 = arith.constant 0 : index
    %327 = vector.load %arg9[%c0_131, %c0_132] : memref<8x128xf32, #tpu.memory_space<vmem>>, vector<8x128xf32>
    %c0_133 = arith.constant 0 : index
    %c0_134 = arith.constant 0 : index
    %328 = vector.load %arg4[%c0_133, %c0_134] : memref<128x512xf32, #tpu.memory_space<vmem>>, vector<128x512xf32>
    %cst_135 = arith.constant dense<0.000000e+00> : vector<8x512xf32>
    %329 = tpu.matmul %326, %328, %cst_135 {dimension_numbers = #tpu.dot_dimension_numbers<[1], [0], [0], [1], [0, 0, 1, 1], [], []>} : vector<8x128xf32>, vector<128x512xf32>, vector<8x512xf32> -> vector<8x512xf32>
    %330 = arith.addf %323, %329 : vector<8x512xf32>
    %331 = vector.extract_strided_slice %330 {offsets = [0, 0], sizes = [8, 128], strides = [1, 1]} : vector<8x512xf32> to vector<8x128xf32>
    %332 = arith.negf %331 : vector<8x128xf32>
    %333 = math.exp %332 : vector<8x128xf32>
    %cst_136 = arith.constant 1.000000e+00 : f32
    %334 = vector.broadcast %cst_136 : f32 to vector<8x128xf32>
    %335 = arith.addf %334, %333 : vector<8x128xf32>
    %336 = arith.divf %334, %335 : vector<8x128xf32>
    %337 = vector.extract_strided_slice %330 {offsets = [0, 128], sizes = [8, 128], strides = [1, 1]} : vector<8x512xf32> to vector<8x128xf32>
    %338 = arith.negf %337 : vector<8x128xf32>
    %339 = math.exp %338 : vector<8x128xf32>
    %cst_137 = arith.constant 1.000000e+00 : f32
    %340 = vector.broadcast %cst_137 : f32 to vector<8x128xf32>
    %341 = arith.addf %340, %339 : vector<8x128xf32>
    %342 = arith.divf %340, %341 : vector<8x128xf32>
    %343 = vector.extract_strided_slice %330 {offsets = [0, 256], sizes = [8, 128], strides = [1, 1]} : vector<8x512xf32> to vector<8x128xf32>
    %344 = math.tanh %343 : vector<8x128xf32>
    %345 = vector.extract_strided_slice %330 {offsets = [0, 384], sizes = [8, 128], strides = [1, 1]} : vector<8x512xf32> to vector<8x128xf32>
    %346 = arith.negf %345 : vector<8x128xf32>
    %347 = math.exp %346 : vector<8x128xf32>
    %cst_138 = arith.constant 1.000000e+00 : f32
    %348 = vector.broadcast %cst_138 : f32 to vector<8x128xf32>
    %349 = arith.addf %348, %347 : vector<8x128xf32>
    %350 = arith.divf %348, %349 : vector<8x128xf32>
    %351 = arith.mulf %342, %327 : vector<8x128xf32>
    %352 = arith.mulf %336, %344 : vector<8x128xf32>
    %353 = arith.addf %351, %352 : vector<8x128xf32>
    %354 = math.tanh %353 : vector<8x128xf32>
    %355 = arith.mulf %350, %354 : vector<8x128xf32>
    %356 = vector.broadcast %325 : i32 to vector<8x1xi32>
    %357 = arith.cmpi slt, %3, %356 : vector<8x1xi32>
    %358 = vector.shape_cast %357 : vector<8x1xi1> to vector<8x1xi1>
    %359 = vector.broadcast %358 : vector<8x1xi1> to vector<8x128xi1>
    %360 = arith.select %359, %355, %326 : vector<8x128xi1>, vector<8x128xf32>
    %c0_139 = arith.constant 0 : index
    %c0_140 = arith.constant 0 : index
    %361 = vector.load %arg8[%c0_139, %c0_140] : memref<8x128xf32, #tpu.memory_space<vmem>>, vector<8x128xf32>
    tpu.vector_store %arg8[%c0_139, %c0_140], %360 {strides = array<i32>} : memref<8x128xf32, #tpu.memory_space<vmem>>, vector<8x128xf32>,
    %362 = vector.shape_cast %357 : vector<8x1xi1> to vector<8x1xi1>
    %363 = vector.broadcast %362 : vector<8x1xi1> to vector<8x128xi1>
    %364 = arith.select %363, %353, %327 : vector<8x128xi1>, vector<8x128xf32>
    %c0_141 = arith.constant 0 : index
    %c0_142 = arith.constant 0 : index
    %365 = vector.load %arg9[%c0_141, %c0_142] : memref<8x128xf32, #tpu.memory_space<vmem>>, vector<8x128xf32>
    tpu.vector_store %arg9[%c0_141, %c0_142], %364 {strides = array<i32>} : memref<8x128xf32, #tpu.memory_space<vmem>>, vector<8x128xf32>,
    %cst_143 = arith.constant 0.000000e+00 : f32
    %366 = vector.shape_cast %357 : vector<8x1xi1> to vector<8x1xi1>
    %367 = vector.broadcast %366 : vector<8x1xi1> to vector<8x128xi1>
    %368 = vector.broadcast %cst_143 : f32 to vector<8x128xf32>
    %369 = arith.select %367, %355, %368 : vector<8x128xi1>, vector<8x128xf32>
    %c3_144 = arith.constant 3 : index
    %c0_145 = arith.constant 0 : index
    %c0_146 = arith.constant 0 : index
    %370 = vector.load %arg6[%c3_144, %c0_145, %c0_146] : memref<8x8x128xf32, #tpu.memory_space<vmem>>, vector<1x8x128xf32>
    %371 = vector.shape_cast %370 : vector<1x8x128xf32> to vector<8x128xf32>
    %372 = vector.shape_cast %369 : vector<8x128xf32> to vector<1x8x128xf32>
    tpu.vector_store %arg6[%c3_144, %c0_145, %c0_146], %372 {strides = array<i32>} : memref<8x8x128xf32, #tpu.memory_space<vmem>>, vector<1x8x128xf32>,
    %c4 = arith.constant 4 : index
    %c0_147 = arith.constant 0 : index
    %c0_148 = arith.constant 0 : index
    %373 = vector.load %arg3[%c4, %c0_147, %c0_148] : memref<8x8x512xf32, #tpu.memory_space<vmem>>, vector<1x8x512xf32>
    %374 = vector.shape_cast %373 : vector<1x8x512xf32> to vector<8x512xf32>
    %375 = arith.index_cast %321 : i32 to index
    %376 = memref.load %arg1[%375] : memref<8xi32, #tpu.memory_space<smem>>
    %c0_149 = arith.constant 0 : index
    %c0_150 = arith.constant 0 : index
    %377 = vector.load %arg10[%c0_149, %c0_150] : memref<8x128xf32, #tpu.memory_space<vmem>>, vector<8x128xf32>
    %c0_151 = arith.constant 0 : index
    %c0_152 = arith.constant 0 : index
    %378 = vector.load %arg11[%c0_151, %c0_152] : memref<8x128xf32, #tpu.memory_space<vmem>>, vector<8x128xf32>
    %c0_153 = arith.constant 0 : index
    %c0_154 = arith.constant 0 : index
    %379 = vector.load %arg5[%c0_153, %c0_154] : memref<128x512xf32, #tpu.memory_space<vmem>>, vector<128x512xf32>
    %cst_155 = arith.constant dense<0.000000e+00> : vector<8x512xf32>
    %380 = tpu.matmul %377, %379, %cst_155 {dimension_numbers = #tpu.dot_dimension_numbers<[1], [0], [0], [1], [0, 0, 1, 1], [], []>} : vector<8x128xf32>, vector<128x512xf32>, vector<8x512xf32> -> vector<8x512xf32>
    %381 = arith.addf %374, %380 : vector<8x512xf32>
    %382 = vector.extract_strided_slice %381 {offsets = [0, 0], sizes = [8, 128], strides = [1, 1]} : vector<8x512xf32> to vector<8x128xf32>
    %383 = arith.negf %382 : vector<8x128xf32>
    %384 = math.exp %383 : vector<8x128xf32>
    %cst_156 = arith.constant 1.000000e+00 : f32
    %385 = vector.broadcast %cst_156 : f32 to vector<8x128xf32>
    %386 = arith.addf %385, %384 : vector<8x128xf32>
    %387 = arith.divf %385, %386 : vector<8x128xf32>
    %388 = vector.extract_strided_slice %381 {offsets = [0, 128], sizes = [8, 128], strides = [1, 1]} : vector<8x512xf32> to vector<8x128xf32>
    %389 = arith.negf %388 : vector<8x128xf32>
    %390 = math.exp %389 : vector<8x128xf32>
    %cst_157 = arith.constant 1.000000e+00 : f32
    %391 = vector.broadcast %cst_157 : f32 to vector<8x128xf32>
    %392 = arith.addf %391, %390 : vector<8x128xf32>
    %393 = arith.divf %391, %392 : vector<8x128xf32>
    %394 = vector.extract_strided_slice %381 {offsets = [0, 256], sizes = [8, 128], strides = [1, 1]} : vector<8x512xf32> to vector<8x128xf32>
    %395 = math.tanh %394 : vector<8x128xf32>
    %396 = vector.extract_strided_slice %381 {offsets = [0, 384], sizes = [8, 128], strides = [1, 1]} : vector<8x512xf32> to vector<8x128xf32>
    %397 = arith.negf %396 : vector<8x128xf32>
    %398 = math.exp %397 : vector<8x128xf32>
    %cst_158 = arith.constant 1.000000e+00 : f32
    %399 = vector.broadcast %cst_158 : f32 to vector<8x128xf32>
    %400 = arith.addf %399, %398 : vector<8x128xf32>
    %401 = arith.divf %399, %400 : vector<8x128xf32>
    %402 = arith.mulf %393, %378 : vector<8x128xf32>
    %403 = arith.mulf %387, %395 : vector<8x128xf32>
    %404 = arith.addf %402, %403 : vector<8x128xf32>
    %405 = math.tanh %404 : vector<8x128xf32>
    %406 = arith.mulf %401, %405 : vector<8x128xf32>
    %407 = vector.broadcast %376 : i32 to vector<8x1xi32>
    %408 = arith.cmpi slt, %3, %407 : vector<8x1xi32>
    %409 = vector.shape_cast %408 : vector<8x1xi1> to vector<8x1xi1>
    %410 = vector.broadcast %409 : vector<8x1xi1> to vector<8x128xi1>
    %411 = arith.select %410, %406, %377 : vector<8x128xi1>, vector<8x128xf32>
    %c0_159 = arith.constant 0 : index
    %c0_160 = arith.constant 0 : index
    %412 = vector.load %arg10[%c0_159, %c0_160] : memref<8x128xf32, #tpu.memory_space<vmem>>, vector<8x128xf32>
    tpu.vector_store %arg10[%c0_159, %c0_160], %411 {strides = array<i32>} : memref<8x128xf32, #tpu.memory_space<vmem>>, vector<8x128xf32>,
    %413 = vector.shape_cast %408 : vector<8x1xi1> to vector<8x1xi1>
    %414 = vector.broadcast %413 : vector<8x1xi1> to vector<8x128xi1>
    %415 = arith.select %414, %404, %378 : vector<8x128xi1>, vector<8x128xf32>
    %c0_161 = arith.constant 0 : index
    %c0_162 = arith.constant 0 : index
    %416 = vector.load %arg11[%c0_161, %c0_162] : memref<8x128xf32, #tpu.memory_space<vmem>>, vector<8x128xf32>
    tpu.vector_store %arg11[%c0_161, %c0_162], %415 {strides = array<i32>} : memref<8x128xf32, #tpu.memory_space<vmem>>, vector<8x128xf32>,
    %cst_163 = arith.constant 0.000000e+00 : f32
    %417 = vector.shape_cast %408 : vector<8x1xi1> to vector<8x1xi1>
    %418 = vector.broadcast %417 : vector<8x1xi1> to vector<8x128xi1>
    %419 = vector.broadcast %cst_163 : f32 to vector<8x128xf32>
    %420 = arith.select %418, %406, %419 : vector<8x128xi1>, vector<8x128xf32>
    %c4_164 = arith.constant 4 : index
    %c0_165 = arith.constant 0 : index
    %c0_166 = arith.constant 0 : index
    %421 = vector.load %arg7[%c4_164, %c0_165, %c0_166] : memref<8x8x128xf32, #tpu.memory_space<vmem>>, vector<1x8x128xf32>
    %422 = vector.shape_cast %421 : vector<1x8x128xf32> to vector<8x128xf32>
    %423 = vector.shape_cast %420 : vector<8x128xf32> to vector<1x8x128xf32>
    tpu.vector_store %arg7[%c4_164, %c0_165, %c0_166], %423 {strides = array<i32>} : memref<8x8x128xf32, #tpu.memory_space<vmem>>, vector<1x8x128xf32>,
    %c8_i32_167 = arith.constant 8 : i32
    %424 = arith.muli %arg0, %c8_i32_167 : i32
    %c4_i32 = arith.constant 4 : i32
    %425 = arith.addi %424, %c4_i32 : i32
    %c7_i32_168 = arith.constant 7 : i32
    %426 = arith.subi %c7_i32_168, %425 : i32
    %c4_169 = arith.constant 4 : index
    %c0_170 = arith.constant 0 : index
    %c0_171 = arith.constant 0 : index
    %427 = vector.load %arg2[%c4_169, %c0_170, %c0_171] : memref<8x8x512xf32, #tpu.memory_space<vmem>>, vector<1x8x512xf32>
    %428 = vector.shape_cast %427 : vector<1x8x512xf32> to vector<8x512xf32>
    %429 = arith.index_cast %425 : i32 to index
    %430 = memref.load %arg1[%429] : memref<8xi32, #tpu.memory_space<smem>>
    %c0_172 = arith.constant 0 : index
    %c0_173 = arith.constant 0 : index
    %431 = vector.load %arg8[%c0_172, %c0_173] : memref<8x128xf32, #tpu.memory_space<vmem>>, vector<8x128xf32>
    %c0_174 = arith.constant 0 : index
    %c0_175 = arith.constant 0 : index
    %432 = vector.load %arg9[%c0_174, %c0_175] : memref<8x128xf32, #tpu.memory_space<vmem>>, vector<8x128xf32>
    %c0_176 = arith.constant 0 : index
    %c0_177 = arith.constant 0 : index
    %433 = vector.load %arg4[%c0_176, %c0_177] : memref<128x512xf32, #tpu.memory_space<vmem>>, vector<128x512xf32>
    %cst_178 = arith.constant dense<0.000000e+00> : vector<8x512xf32>
    %434 = tpu.matmul %431, %433, %cst_178 {dimension_numbers = #tpu.dot_dimension_numbers<[1], [0], [0], [1], [0, 0, 1, 1], [], []>} : vector<8x128xf32>, vector<128x512xf32>, vector<8x512xf32> -> vector<8x512xf32>
    %435 = arith.addf %428, %434 : vector<8x512xf32>
    %436 = vector.extract_strided_slice %435 {offsets = [0, 0], sizes = [8, 128], strides = [1, 1]} : vector<8x512xf32> to vector<8x128xf32>
    %437 = arith.negf %436 : vector<8x128xf32>
    %438 = math.exp %437 : vector<8x128xf32>
    %cst_179 = arith.constant 1.000000e+00 : f32
    %439 = vector.broadcast %cst_179 : f32 to vector<8x128xf32>
    %440 = arith.addf %439, %438 : vector<8x128xf32>
    %441 = arith.divf %439, %440 : vector<8x128xf32>
    %442 = vector.extract_strided_slice %435 {offsets = [0, 128], sizes = [8, 128], strides = [1, 1]} : vector<8x512xf32> to vector<8x128xf32>
    %443 = arith.negf %442 : vector<8x128xf32>
    %444 = math.exp %443 : vector<8x128xf32>
    %cst_180 = arith.constant 1.000000e+00 : f32
    %445 = vector.broadcast %cst_180 : f32 to vector<8x128xf32>
    %446 = arith.addf %445, %444 : vector<8x128xf32>
    %447 = arith.divf %445, %446 : vector<8x128xf32>
    %448 = vector.extract_strided_slice %435 {offsets = [0, 256], sizes = [8, 128], strides = [1, 1]} : vector<8x512xf32> to vector<8x128xf32>
    %449 = math.tanh %448 : vector<8x128xf32>
    %450 = vector.extract_strided_slice %435 {offsets = [0, 384], sizes = [8, 128], strides = [1, 1]} : vector<8x512xf32> to vector<8x128xf32>
    %451 = arith.negf %450 : vector<8x128xf32>
    %452 = math.exp %451 : vector<8x128xf32>
    %cst_181 = arith.constant 1.000000e+00 : f32
    %453 = vector.broadcast %cst_181 : f32 to vector<8x128xf32>
    %454 = arith.addf %453, %452 : vector<8x128xf32>
    %455 = arith.divf %453, %454 : vector<8x128xf32>
    %456 = arith.mulf %447, %432 : vector<8x128xf32>
    %457 = arith.mulf %441, %449 : vector<8x128xf32>
    %458 = arith.addf %456, %457 : vector<8x128xf32>
    %459 = math.tanh %458 : vector<8x128xf32>
    %460 = arith.mulf %455, %459 : vector<8x128xf32>
    %461 = vector.broadcast %430 : i32 to vector<8x1xi32>
    %462 = arith.cmpi slt, %3, %461 : vector<8x1xi32>
    %463 = vector.shape_cast %462 : vector<8x1xi1> to vector<8x1xi1>
    %464 = vector.broadcast %463 : vector<8x1xi1> to vector<8x128xi1>
    %465 = arith.select %464, %460, %431 : vector<8x128xi1>, vector<8x128xf32>
    %c0_182 = arith.constant 0 : index
    %c0_183 = arith.constant 0 : index
    %466 = vector.load %arg8[%c0_182, %c0_183] : memref<8x128xf32, #tpu.memory_space<vmem>>, vector<8x128xf32>
    tpu.vector_store %arg8[%c0_182, %c0_183], %465 {strides = array<i32>} : memref<8x128xf32, #tpu.memory_space<vmem>>, vector<8x128xf32>,
    %467 = vector.shape_cast %462 : vector<8x1xi1> to vector<8x1xi1>
    %468 = vector.broadcast %467 : vector<8x1xi1> to vector<8x128xi1>
    %469 = arith.select %468, %458, %432 : vector<8x128xi1>, vector<8x128xf32>
    %c0_184 = arith.constant 0 : index
    %c0_185 = arith.constant 0 : index
    %470 = vector.load %arg9[%c0_184, %c0_185] : memref<8x128xf32, #tpu.memory_space<vmem>>, vector<8x128xf32>
    tpu.vector_store %arg9[%c0_184, %c0_185], %469 {strides = array<i32>} : memref<8x128xf32, #tpu.memory_space<vmem>>, vector<8x128xf32>,
    %cst_186 = arith.constant 0.000000e+00 : f32
    %471 = vector.shape_cast %462 : vector<8x1xi1> to vector<8x1xi1>
    %472 = vector.broadcast %471 : vector<8x1xi1> to vector<8x128xi1>
    %473 = vector.broadcast %cst_186 : f32 to vector<8x128xf32>
    %474 = arith.select %472, %460, %473 : vector<8x128xi1>, vector<8x128xf32>
    %c4_187 = arith.constant 4 : index
    %c0_188 = arith.constant 0 : index
    %c0_189 = arith.constant 0 : index
    %475 = vector.load %arg6[%c4_187, %c0_188, %c0_189] : memref<8x8x128xf32, #tpu.memory_space<vmem>>, vector<1x8x128xf32>
    %476 = vector.shape_cast %475 : vector<1x8x128xf32> to vector<8x128xf32>
    %477 = vector.shape_cast %474 : vector<8x128xf32> to vector<1x8x128xf32>
    tpu.vector_store %arg6[%c4_187, %c0_188, %c0_189], %477 {strides = array<i32>} : memref<8x8x128xf32, #tpu.memory_space<vmem>>, vector<1x8x128xf32>,
    %c3_190 = arith.constant 3 : index
    %c0_191 = arith.constant 0 : index
    %c0_192 = arith.constant 0 : index
    %478 = vector.load %arg3[%c3_190, %c0_191, %c0_192] : memref<8x8x512xf32, #tpu.memory_space<vmem>>, vector<1x8x512xf32>
    %479 = vector.shape_cast %478 : vector<1x8x512xf32> to vector<8x512xf32>
    %480 = arith.index_cast %426 : i32 to index
    %481 = memref.load %arg1[%480] : memref<8xi32, #tpu.memory_space<smem>>
    %c0_193 = arith.constant 0 : index
    %c0_194 = arith.constant 0 : index
    %482 = vector.load %arg10[%c0_193, %c0_194] : memref<8x128xf32, #tpu.memory_space<vmem>>, vector<8x128xf32>
    %c0_195 = arith.constant 0 : index
    %c0_196 = arith.constant 0 : index
    %483 = vector.load %arg11[%c0_195, %c0_196] : memref<8x128xf32, #tpu.memory_space<vmem>>, vector<8x128xf32>
    %c0_197 = arith.constant 0 : index
    %c0_198 = arith.constant 0 : index
    %484 = vector.load %arg5[%c0_197, %c0_198] : memref<128x512xf32, #tpu.memory_space<vmem>>, vector<128x512xf32>
    %cst_199 = arith.constant dense<0.000000e+00> : vector<8x512xf32>
    %485 = tpu.matmul %482, %484, %cst_199 {dimension_numbers = #tpu.dot_dimension_numbers<[1], [0], [0], [1], [0, 0, 1, 1], [], []>} : vector<8x128xf32>, vector<128x512xf32>, vector<8x512xf32> -> vector<8x512xf32>
    %486 = arith.addf %479, %485 : vector<8x512xf32>
    %487 = vector.extract_strided_slice %486 {offsets = [0, 0], sizes = [8, 128], strides = [1, 1]} : vector<8x512xf32> to vector<8x128xf32>
    %488 = arith.negf %487 : vector<8x128xf32>
    %489 = math.exp %488 : vector<8x128xf32>
    %cst_200 = arith.constant 1.000000e+00 : f32
    %490 = vector.broadcast %cst_200 : f32 to vector<8x128xf32>
    %491 = arith.addf %490, %489 : vector<8x128xf32>
    %492 = arith.divf %490, %491 : vector<8x128xf32>
    %493 = vector.extract_strided_slice %486 {offsets = [0, 128], sizes = [8, 128], strides = [1, 1]} : vector<8x512xf32> to vector<8x128xf32>
    %494 = arith.negf %493 : vector<8x128xf32>
    %495 = math.exp %494 : vector<8x128xf32>
    %cst_201 = arith.constant 1.000000e+00 : f32
    %496 = vector.broadcast %cst_201 : f32 to vector<8x128xf32>
    %497 = arith.addf %496, %495 : vector<8x128xf32>
    %498 = arith.divf %496, %497 : vector<8x128xf32>
    %499 = vector.extract_strided_slice %486 {offsets = [0, 256], sizes = [8, 128], strides = [1, 1]} : vector<8x512xf32> to vector<8x128xf32>
    %500 = math.tanh %499 : vector<8x128xf32>
    %501 = vector.extract_strided_slice %486 {offsets = [0, 384], sizes = [8, 128], strides = [1, 1]} : vector<8x512xf32> to vector<8x128xf32>
    %502 = arith.negf %501 : vector<8x128xf32>
    %503 = math.exp %502 : vector<8x128xf32>
    %cst_202 = arith.constant 1.000000e+00 : f32
    %504 = vector.broadcast %cst_202 : f32 to vector<8x128xf32>
    %505 = arith.addf %504, %503 : vector<8x128xf32>
    %506 = arith.divf %504, %505 : vector<8x128xf32>
    %507 = arith.mulf %498, %483 : vector<8x128xf32>
    %508 = arith.mulf %492, %500 : vector<8x128xf32>
    %509 = arith.addf %507, %508 : vector<8x128xf32>
    %510 = math.tanh %509 : vector<8x128xf32>
    %511 = arith.mulf %506, %510 : vector<8x128xf32>
    %512 = vector.broadcast %481 : i32 to vector<8x1xi32>
    %513 = arith.cmpi slt, %3, %512 : vector<8x1xi32>
    %514 = vector.shape_cast %513 : vector<8x1xi1> to vector<8x1xi1>
    %515 = vector.broadcast %514 : vector<8x1xi1> to vector<8x128xi1>
    %516 = arith.select %515, %511, %482 : vector<8x128xi1>, vector<8x128xf32>
    %c0_203 = arith.constant 0 : index
    %c0_204 = arith.constant 0 : index
    %517 = vector.load %arg10[%c0_203, %c0_204] : memref<8x128xf32, #tpu.memory_space<vmem>>, vector<8x128xf32>
    tpu.vector_store %arg10[%c0_203, %c0_204], %516 {strides = array<i32>} : memref<8x128xf32, #tpu.memory_space<vmem>>, vector<8x128xf32>,
    %518 = vector.shape_cast %513 : vector<8x1xi1> to vector<8x1xi1>
    %519 = vector.broadcast %518 : vector<8x1xi1> to vector<8x128xi1>
    %520 = arith.select %519, %509, %483 : vector<8x128xi1>, vector<8x128xf32>
    %c0_205 = arith.constant 0 : index
    %c0_206 = arith.constant 0 : index
    %521 = vector.load %arg11[%c0_205, %c0_206] : memref<8x128xf32, #tpu.memory_space<vmem>>, vector<8x128xf32>
    tpu.vector_store %arg11[%c0_205, %c0_206], %520 {strides = array<i32>} : memref<8x128xf32, #tpu.memory_space<vmem>>, vector<8x128xf32>,
    %cst_207 = arith.constant 0.000000e+00 : f32
    %522 = vector.shape_cast %513 : vector<8x1xi1> to vector<8x1xi1>
    %523 = vector.broadcast %522 : vector<8x1xi1> to vector<8x128xi1>
    %524 = vector.broadcast %cst_207 : f32 to vector<8x128xf32>
    %525 = arith.select %523, %511, %524 : vector<8x128xi1>, vector<8x128xf32>
    %c3_208 = arith.constant 3 : index
    %c0_209 = arith.constant 0 : index
    %c0_210 = arith.constant 0 : index
    %526 = vector.load %arg7[%c3_208, %c0_209, %c0_210] : memref<8x8x128xf32, #tpu.memory_space<vmem>>, vector<1x8x128xf32>
    %527 = vector.shape_cast %526 : vector<1x8x128xf32> to vector<8x128xf32>
    %528 = vector.shape_cast %525 : vector<8x128xf32> to vector<1x8x128xf32>
    tpu.vector_store %arg7[%c3_208, %c0_209, %c0_210], %528 {strides = array<i32>} : memref<8x8x128xf32, #tpu.memory_space<vmem>>, vector<1x8x128xf32>,
    %c8_i32_211 = arith.constant 8 : i32
    %529 = arith.muli %arg0, %c8_i32_211 : i32
    %c5_i32 = arith.constant 5 : i32
    %530 = arith.addi %529, %c5_i32 : i32
    %c7_i32_212 = arith.constant 7 : i32
    %531 = arith.subi %c7_i32_212, %530 : i32
    %c5_213 = arith.constant 5 : index
    %c0_214 = arith.constant 0 : index
    %c0_215 = arith.constant 0 : index
    %532 = vector.load %arg2[%c5_213, %c0_214, %c0_215] : memref<8x8x512xf32, #tpu.memory_space<vmem>>, vector<1x8x512xf32>
    %533 = vector.shape_cast %532 : vector<1x8x512xf32> to vector<8x512xf32>
    %534 = arith.index_cast %530 : i32 to index
    %535 = memref.load %arg1[%534] : memref<8xi32, #tpu.memory_space<smem>>
    %c0_216 = arith.constant 0 : index
    %c0_217 = arith.constant 0 : index
    %536 = vector.load %arg8[%c0_216, %c0_217] : memref<8x128xf32, #tpu.memory_space<vmem>>, vector<8x128xf32>
    %c0_218 = arith.constant 0 : index
    %c0_219 = arith.constant 0 : index
    %537 = vector.load %arg9[%c0_218, %c0_219] : memref<8x128xf32, #tpu.memory_space<vmem>>, vector<8x128xf32>
    %c0_220 = arith.constant 0 : index
    %c0_221 = arith.constant 0 : index
    %538 = vector.load %arg4[%c0_220, %c0_221] : memref<128x512xf32, #tpu.memory_space<vmem>>, vector<128x512xf32>
    %cst_222 = arith.constant dense<0.000000e+00> : vector<8x512xf32>
    %539 = tpu.matmul %536, %538, %cst_222 {dimension_numbers = #tpu.dot_dimension_numbers<[1], [0], [0], [1], [0, 0, 1, 1], [], []>} : vector<8x128xf32>, vector<128x512xf32>, vector<8x512xf32> -> vector<8x512xf32>
    %540 = arith.addf %533, %539 : vector<8x512xf32>
    %541 = vector.extract_strided_slice %540 {offsets = [0, 0], sizes = [8, 128], strides = [1, 1]} : vector<8x512xf32> to vector<8x128xf32>
    %542 = arith.negf %541 : vector<8x128xf32>
    %543 = math.exp %542 : vector<8x128xf32>
    %cst_223 = arith.constant 1.000000e+00 : f32
    %544 = vector.broadcast %cst_223 : f32 to vector<8x128xf32>
    %545 = arith.addf %544, %543 : vector<8x128xf32>
    %546 = arith.divf %544, %545 : vector<8x128xf32>
    %547 = vector.extract_strided_slice %540 {offsets = [0, 128], sizes = [8, 128], strides = [1, 1]} : vector<8x512xf32> to vector<8x128xf32>
    %548 = arith.negf %547 : vector<8x128xf32>
    %549 = math.exp %548 : vector<8x128xf32>
    %cst_224 = arith.constant 1.000000e+00 : f32
    %550 = vector.broadcast %cst_224 : f32 to vector<8x128xf32>
    %551 = arith.addf %550, %549 : vector<8x128xf32>
    %552 = arith.divf %550, %551 : vector<8x128xf32>
    %553 = vector.extract_strided_slice %540 {offsets = [0, 256], sizes = [8, 128], strides = [1, 1]} : vector<8x512xf32> to vector<8x128xf32>
    %554 = math.tanh %553 : vector<8x128xf32>
    %555 = vector.extract_strided_slice %540 {offsets = [0, 384], sizes = [8, 128], strides = [1, 1]} : vector<8x512xf32> to vector<8x128xf32>
    %556 = arith.negf %555 : vector<8x128xf32>
    %557 = math.exp %556 : vector<8x128xf32>
    %cst_225 = arith.constant 1.000000e+00 : f32
    %558 = vector.broadcast %cst_225 : f32 to vector<8x128xf32>
    %559 = arith.addf %558, %557 : vector<8x128xf32>
    %560 = arith.divf %558, %559 : vector<8x128xf32>
    %561 = arith.mulf %552, %537 : vector<8x128xf32>
    %562 = arith.mulf %546, %554 : vector<8x128xf32>
    %563 = arith.addf %561, %562 : vector<8x128xf32>
    %564 = math.tanh %563 : vector<8x128xf32>
    %565 = arith.mulf %560, %564 : vector<8x128xf32>
    %566 = vector.broadcast %535 : i32 to vector<8x1xi32>
    %567 = arith.cmpi slt, %3, %566 : vector<8x1xi32>
    %568 = vector.shape_cast %567 : vector<8x1xi1> to vector<8x1xi1>
    %569 = vector.broadcast %568 : vector<8x1xi1> to vector<8x128xi1>
    %570 = arith.select %569, %565, %536 : vector<8x128xi1>, vector<8x128xf32>
    %c0_226 = arith.constant 0 : index
    %c0_227 = arith.constant 0 : index
    %571 = vector.load %arg8[%c0_226, %c0_227] : memref<8x128xf32, #tpu.memory_space<vmem>>, vector<8x128xf32>
    tpu.vector_store %arg8[%c0_226, %c0_227], %570 {strides = array<i32>} : memref<8x128xf32, #tpu.memory_space<vmem>>, vector<8x128xf32>,
    %572 = vector.shape_cast %567 : vector<8x1xi1> to vector<8x1xi1>
    %573 = vector.broadcast %572 : vector<8x1xi1> to vector<8x128xi1>
    %574 = arith.select %573, %563, %537 : vector<8x128xi1>, vector<8x128xf32>
    %c0_228 = arith.constant 0 : index
    %c0_229 = arith.constant 0 : index
    %575 = vector.load %arg9[%c0_228, %c0_229] : memref<8x128xf32, #tpu.memory_space<vmem>>, vector<8x128xf32>
    tpu.vector_store %arg9[%c0_228, %c0_229], %574 {strides = array<i32>} : memref<8x128xf32, #tpu.memory_space<vmem>>, vector<8x128xf32>,
    %cst_230 = arith.constant 0.000000e+00 : f32
    %576 = vector.shape_cast %567 : vector<8x1xi1> to vector<8x1xi1>
    %577 = vector.broadcast %576 : vector<8x1xi1> to vector<8x128xi1>
    %578 = vector.broadcast %cst_230 : f32 to vector<8x128xf32>
    %579 = arith.select %577, %565, %578 : vector<8x128xi1>, vector<8x128xf32>
    %c5_231 = arith.constant 5 : index
    %c0_232 = arith.constant 0 : index
    %c0_233 = arith.constant 0 : index
    %580 = vector.load %arg6[%c5_231, %c0_232, %c0_233] : memref<8x8x128xf32, #tpu.memory_space<vmem>>, vector<1x8x128xf32>
    %581 = vector.shape_cast %580 : vector<1x8x128xf32> to vector<8x128xf32>
    %582 = vector.shape_cast %579 : vector<8x128xf32> to vector<1x8x128xf32>
    tpu.vector_store %arg6[%c5_231, %c0_232, %c0_233], %582 {strides = array<i32>} : memref<8x8x128xf32, #tpu.memory_space<vmem>>, vector<1x8x128xf32>,
    %c2_234 = arith.constant 2 : index
    %c0_235 = arith.constant 0 : index
    %c0_236 = arith.constant 0 : index
    %583 = vector.load %arg3[%c2_234, %c0_235, %c0_236] : memref<8x8x512xf32, #tpu.memory_space<vmem>>, vector<1x8x512xf32>
    %584 = vector.shape_cast %583 : vector<1x8x512xf32> to vector<8x512xf32>
    %585 = arith.index_cast %531 : i32 to index
    %586 = memref.load %arg1[%585] : memref<8xi32, #tpu.memory_space<smem>>
    %c0_237 = arith.constant 0 : index
    %c0_238 = arith.constant 0 : index
    %587 = vector.load %arg10[%c0_237, %c0_238] : memref<8x128xf32, #tpu.memory_space<vmem>>, vector<8x128xf32>
    %c0_239 = arith.constant 0 : index
    %c0_240 = arith.constant 0 : index
    %588 = vector.load %arg11[%c0_239, %c0_240] : memref<8x128xf32, #tpu.memory_space<vmem>>, vector<8x128xf32>
    %c0_241 = arith.constant 0 : index
    %c0_242 = arith.constant 0 : index
    %589 = vector.load %arg5[%c0_241, %c0_242] : memref<128x512xf32, #tpu.memory_space<vmem>>, vector<128x512xf32>
    %cst_243 = arith.constant dense<0.000000e+00> : vector<8x512xf32>
    %590 = tpu.matmul %587, %589, %cst_243 {dimension_numbers = #tpu.dot_dimension_numbers<[1], [0], [0], [1], [0, 0, 1, 1], [], []>} : vector<8x128xf32>, vector<128x512xf32>, vector<8x512xf32> -> vector<8x512xf32>
    %591 = arith.addf %584, %590 : vector<8x512xf32>
    %592 = vector.extract_strided_slice %591 {offsets = [0, 0], sizes = [8, 128], strides = [1, 1]} : vector<8x512xf32> to vector<8x128xf32>
    %593 = arith.negf %592 : vector<8x128xf32>
    %594 = math.exp %593 : vector<8x128xf32>
    %cst_244 = arith.constant 1.000000e+00 : f32
    %595 = vector.broadcast %cst_244 : f32 to vector<8x128xf32>
    %596 = arith.addf %595, %594 : vector<8x128xf32>
    %597 = arith.divf %595, %596 : vector<8x128xf32>
    %598 = vector.extract_strided_slice %591 {offsets = [0, 128], sizes = [8, 128], strides = [1, 1]} : vector<8x512xf32> to vector<8x128xf32>
    %599 = arith.negf %598 : vector<8x128xf32>
    %600 = math.exp %599 : vector<8x128xf32>
    %cst_245 = arith.constant 1.000000e+00 : f32
    %601 = vector.broadcast %cst_245 : f32 to vector<8x128xf32>
    %602 = arith.addf %601, %600 : vector<8x128xf32>
    %603 = arith.divf %601, %602 : vector<8x128xf32>
    %604 = vector.extract_strided_slice %591 {offsets = [0, 256], sizes = [8, 128], strides = [1, 1]} : vector<8x512xf32> to vector<8x128xf32>
    %605 = math.tanh %604 : vector<8x128xf32>
    %606 = vector.extract_strided_slice %591 {offsets = [0, 384], sizes = [8, 128], strides = [1, 1]} : vector<8x512xf32> to vector<8x128xf32>
    %607 = arith.negf %606 : vector<8x128xf32>
    %608 = math.exp %607 : vector<8x128xf32>
    %cst_246 = arith.constant 1.000000e+00 : f32
    %609 = vector.broadcast %cst_246 : f32 to vector<8x128xf32>
    %610 = arith.addf %609, %608 : vector<8x128xf32>
    %611 = arith.divf %609, %610 : vector<8x128xf32>
    %612 = arith.mulf %603, %588 : vector<8x128xf32>
    %613 = arith.mulf %597, %605 : vector<8x128xf32>
    %614 = arith.addf %612, %613 : vector<8x128xf32>
    %615 = math.tanh %614 : vector<8x128xf32>
    %616 = arith.mulf %611, %615 : vector<8x128xf32>
    %617 = vector.broadcast %586 : i32 to vector<8x1xi32>
    %618 = arith.cmpi slt, %3, %617 : vector<8x1xi32>
    %619 = vector.shape_cast %618 : vector<8x1xi1> to vector<8x1xi1>
    %620 = vector.broadcast %619 : vector<8x1xi1> to vector<8x128xi1>
    %621 = arith.select %620, %616, %587 : vector<8x128xi1>, vector<8x128xf32>
    %c0_247 = arith.constant 0 : index
    %c0_248 = arith.constant 0 : index
    %622 = vector.load %arg10[%c0_247, %c0_248] : memref<8x128xf32, #tpu.memory_space<vmem>>, vector<8x128xf32>
    tpu.vector_store %arg10[%c0_247, %c0_248], %621 {strides = array<i32>} : memref<8x128xf32, #tpu.memory_space<vmem>>, vector<8x128xf32>,
    %623 = vector.shape_cast %618 : vector<8x1xi1> to vector<8x1xi1>
    %624 = vector.broadcast %623 : vector<8x1xi1> to vector<8x128xi1>
    %625 = arith.select %624, %614, %588 : vector<8x128xi1>, vector<8x128xf32>
    %c0_249 = arith.constant 0 : index
    %c0_250 = arith.constant 0 : index
    %626 = vector.load %arg11[%c0_249, %c0_250] : memref<8x128xf32, #tpu.memory_space<vmem>>, vector<8x128xf32>
    tpu.vector_store %arg11[%c0_249, %c0_250], %625 {strides = array<i32>} : memref<8x128xf32, #tpu.memory_space<vmem>>, vector<8x128xf32>,
    %cst_251 = arith.constant 0.000000e+00 : f32
    %627 = vector.shape_cast %618 : vector<8x1xi1> to vector<8x1xi1>
    %628 = vector.broadcast %627 : vector<8x1xi1> to vector<8x128xi1>
    %629 = vector.broadcast %cst_251 : f32 to vector<8x128xf32>
    %630 = arith.select %628, %616, %629 : vector<8x128xi1>, vector<8x128xf32>
    %c2_252 = arith.constant 2 : index
    %c0_253 = arith.constant 0 : index
    %c0_254 = arith.constant 0 : index
    %631 = vector.load %arg7[%c2_252, %c0_253, %c0_254] : memref<8x8x128xf32, #tpu.memory_space<vmem>>, vector<1x8x128xf32>
    %632 = vector.shape_cast %631 : vector<1x8x128xf32> to vector<8x128xf32>
    %633 = vector.shape_cast %630 : vector<8x128xf32> to vector<1x8x128xf32>
    tpu.vector_store %arg7[%c2_252, %c0_253, %c0_254], %633 {strides = array<i32>} : memref<8x8x128xf32, #tpu.memory_space<vmem>>, vector<1x8x128xf32>,
    %c8_i32_255 = arith.constant 8 : i32
    %634 = arith.muli %arg0, %c8_i32_255 : i32
    %c6_i32 = arith.constant 6 : i32
    %635 = arith.addi %634, %c6_i32 : i32
    %c7_i32_256 = arith.constant 7 : i32
    %636 = arith.subi %c7_i32_256, %635 : i32
    %c6_257 = arith.constant 6 : index
    %c0_258 = arith.constant 0 : index
    %c0_259 = arith.constant 0 : index
    %637 = vector.load %arg2[%c6_257, %c0_258, %c0_259] : memref<8x8x512xf32, #tpu.memory_space<vmem>>, vector<1x8x512xf32>
    %638 = vector.shape_cast %637 : vector<1x8x512xf32> to vector<8x512xf32>
    %639 = arith.index_cast %635 : i32 to index
    %640 = memref.load %arg1[%639] : memref<8xi32, #tpu.memory_space<smem>>
    %c0_260 = arith.constant 0 : index
    %c0_261 = arith.constant 0 : index
    %641 = vector.load %arg8[%c0_260, %c0_261] : memref<8x128xf32, #tpu.memory_space<vmem>>, vector<8x128xf32>
    %c0_262 = arith.constant 0 : index
    %c0_263 = arith.constant 0 : index
    %642 = vector.load %arg9[%c0_262, %c0_263] : memref<8x128xf32, #tpu.memory_space<vmem>>, vector<8x128xf32>
    %c0_264 = arith.constant 0 : index
    %c0_265 = arith.constant 0 : index
    %643 = vector.load %arg4[%c0_264, %c0_265] : memref<128x512xf32, #tpu.memory_space<vmem>>, vector<128x512xf32>
    %cst_266 = arith.constant dense<0.000000e+00> : vector<8x512xf32>
    %644 = tpu.matmul %641, %643, %cst_266 {dimension_numbers = #tpu.dot_dimension_numbers<[1], [0], [0], [1], [0, 0, 1, 1], [], []>} : vector<8x128xf32>, vector<128x512xf32>, vector<8x512xf32> -> vector<8x512xf32>
    %645 = arith.addf %638, %644 : vector<8x512xf32>
    %646 = vector.extract_strided_slice %645 {offsets = [0, 0], sizes = [8, 128], strides = [1, 1]} : vector<8x512xf32> to vector<8x128xf32>
    %647 = arith.negf %646 : vector<8x128xf32>
    %648 = math.exp %647 : vector<8x128xf32>
    %cst_267 = arith.constant 1.000000e+00 : f32
    %649 = vector.broadcast %cst_267 : f32 to vector<8x128xf32>
    %650 = arith.addf %649, %648 : vector<8x128xf32>
    %651 = arith.divf %649, %650 : vector<8x128xf32>
    %652 = vector.extract_strided_slice %645 {offsets = [0, 128], sizes = [8, 128], strides = [1, 1]} : vector<8x512xf32> to vector<8x128xf32>
    %653 = arith.negf %652 : vector<8x128xf32>
    %654 = math.exp %653 : vector<8x128xf32>
    %cst_268 = arith.constant 1.000000e+00 : f32
    %655 = vector.broadcast %cst_268 : f32 to vector<8x128xf32>
    %656 = arith.addf %655, %654 : vector<8x128xf32>
    %657 = arith.divf %655, %656 : vector<8x128xf32>
    %658 = vector.extract_strided_slice %645 {offsets = [0, 256], sizes = [8, 128], strides = [1, 1]} : vector<8x512xf32> to vector<8x128xf32>
    %659 = math.tanh %658 : vector<8x128xf32>
    %660 = vector.extract_strided_slice %645 {offsets = [0, 384], sizes = [8, 128], strides = [1, 1]} : vector<8x512xf32> to vector<8x128xf32>
    %661 = arith.negf %660 : vector<8x128xf32>
    %662 = math.exp %661 : vector<8x128xf32>
    %cst_269 = arith.constant 1.000000e+00 : f32
    %663 = vector.broadcast %cst_269 : f32 to vector<8x128xf32>
    %664 = arith.addf %663, %662 : vector<8x128xf32>
    %665 = arith.divf %663, %664 : vector<8x128xf32>
    %666 = arith.mulf %657, %642 : vector<8x128xf32>
    %667 = arith.mulf %651, %659 : vector<8x128xf32>
    %668 = arith.addf %666, %667 : vector<8x128xf32>
    %669 = math.tanh %668 : vector<8x128xf32>
    %670 = arith.mulf %665, %669 : vector<8x128xf32>
    %671 = vector.broadcast %640 : i32 to vector<8x1xi32>
    %672 = arith.cmpi slt, %3, %671 : vector<8x1xi32>
    %673 = vector.shape_cast %672 : vector<8x1xi1> to vector<8x1xi1>
    %674 = vector.broadcast %673 : vector<8x1xi1> to vector<8x128xi1>
    %675 = arith.select %674, %670, %641 : vector<8x128xi1>, vector<8x128xf32>
    %c0_270 = arith.constant 0 : index
    %c0_271 = arith.constant 0 : index
    %676 = vector.load %arg8[%c0_270, %c0_271] : memref<8x128xf32, #tpu.memory_space<vmem>>, vector<8x128xf32>
    tpu.vector_store %arg8[%c0_270, %c0_271], %675 {strides = array<i32>} : memref<8x128xf32, #tpu.memory_space<vmem>>, vector<8x128xf32>,
    %677 = vector.shape_cast %672 : vector<8x1xi1> to vector<8x1xi1>
    %678 = vector.broadcast %677 : vector<8x1xi1> to vector<8x128xi1>
    %679 = arith.select %678, %668, %642 : vector<8x128xi1>, vector<8x128xf32>
    %c0_272 = arith.constant 0 : index
    %c0_273 = arith.constant 0 : index
    %680 = vector.load %arg9[%c0_272, %c0_273] : memref<8x128xf32, #tpu.memory_space<vmem>>, vector<8x128xf32>
    tpu.vector_store %arg9[%c0_272, %c0_273], %679 {strides = array<i32>} : memref<8x128xf32, #tpu.memory_space<vmem>>, vector<8x128xf32>,
    %cst_274 = arith.constant 0.000000e+00 : f32
    %681 = vector.shape_cast %672 : vector<8x1xi1> to vector<8x1xi1>
    %682 = vector.broadcast %681 : vector<8x1xi1> to vector<8x128xi1>
    %683 = vector.broadcast %cst_274 : f32 to vector<8x128xf32>
    %684 = arith.select %682, %670, %683 : vector<8x128xi1>, vector<8x128xf32>
    %c6_275 = arith.constant 6 : index
    %c0_276 = arith.constant 0 : index
    %c0_277 = arith.constant 0 : index
    %685 = vector.load %arg6[%c6_275, %c0_276, %c0_277] : memref<8x8x128xf32, #tpu.memory_space<vmem>>, vector<1x8x128xf32>
    %686 = vector.shape_cast %685 : vector<1x8x128xf32> to vector<8x128xf32>
    %687 = vector.shape_cast %684 : vector<8x128xf32> to vector<1x8x128xf32>
    tpu.vector_store %arg6[%c6_275, %c0_276, %c0_277], %687 {strides = array<i32>} : memref<8x8x128xf32, #tpu.memory_space<vmem>>, vector<1x8x128xf32>,
    %c1_278 = arith.constant 1 : index
    %c0_279 = arith.constant 0 : index
    %c0_280 = arith.constant 0 : index
    %688 = vector.load %arg3[%c1_278, %c0_279, %c0_280] : memref<8x8x512xf32, #tpu.memory_space<vmem>>, vector<1x8x512xf32>
    %689 = vector.shape_cast %688 : vector<1x8x512xf32> to vector<8x512xf32>
    %690 = arith.index_cast %636 : i32 to index
    %691 = memref.load %arg1[%690] : memref<8xi32, #tpu.memory_space<smem>>
    %c0_281 = arith.constant 0 : index
    %c0_282 = arith.constant 0 : index
    %692 = vector.load %arg10[%c0_281, %c0_282] : memref<8x128xf32, #tpu.memory_space<vmem>>, vector<8x128xf32>
    %c0_283 = arith.constant 0 : index
    %c0_284 = arith.constant 0 : index
    %693 = vector.load %arg11[%c0_283, %c0_284] : memref<8x128xf32, #tpu.memory_space<vmem>>, vector<8x128xf32>
    %c0_285 = arith.constant 0 : index
    %c0_286 = arith.constant 0 : index
    %694 = vector.load %arg5[%c0_285, %c0_286] : memref<128x512xf32, #tpu.memory_space<vmem>>, vector<128x512xf32>
    %cst_287 = arith.constant dense<0.000000e+00> : vector<8x512xf32>
    %695 = tpu.matmul %692, %694, %cst_287 {dimension_numbers = #tpu.dot_dimension_numbers<[1], [0], [0], [1], [0, 0, 1, 1], [], []>} : vector<8x128xf32>, vector<128x512xf32>, vector<8x512xf32> -> vector<8x512xf32>
    %696 = arith.addf %689, %695 : vector<8x512xf32>
    %697 = vector.extract_strided_slice %696 {offsets = [0, 0], sizes = [8, 128], strides = [1, 1]} : vector<8x512xf32> to vector<8x128xf32>
    %698 = arith.negf %697 : vector<8x128xf32>
    %699 = math.exp %698 : vector<8x128xf32>
    %cst_288 = arith.constant 1.000000e+00 : f32
    %700 = vector.broadcast %cst_288 : f32 to vector<8x128xf32>
    %701 = arith.addf %700, %699 : vector<8x128xf32>
    %702 = arith.divf %700, %701 : vector<8x128xf32>
    %703 = vector.extract_strided_slice %696 {offsets = [0, 128], sizes = [8, 128], strides = [1, 1]} : vector<8x512xf32> to vector<8x128xf32>
    %704 = arith.negf %703 : vector<8x128xf32>
    %705 = math.exp %704 : vector<8x128xf32>
    %cst_289 = arith.constant 1.000000e+00 : f32
    %706 = vector.broadcast %cst_289 : f32 to vector<8x128xf32>
    %707 = arith.addf %706, %705 : vector<8x128xf32>
    %708 = arith.divf %706, %707 : vector<8x128xf32>
    %709 = vector.extract_strided_slice %696 {offsets = [0, 256], sizes = [8, 128], strides = [1, 1]} : vector<8x512xf32> to vector<8x128xf32>
    %710 = math.tanh %709 : vector<8x128xf32>
    %711 = vector.extract_strided_slice %696 {offsets = [0, 384], sizes = [8, 128], strides = [1, 1]} : vector<8x512xf32> to vector<8x128xf32>
    %712 = arith.negf %711 : vector<8x128xf32>
    %713 = math.exp %712 : vector<8x128xf32>
    %cst_290 = arith.constant 1.000000e+00 : f32
    %714 = vector.broadcast %cst_290 : f32 to vector<8x128xf32>
    %715 = arith.addf %714, %713 : vector<8x128xf32>
    %716 = arith.divf %714, %715 : vector<8x128xf32>
    %717 = arith.mulf %708, %693 : vector<8x128xf32>
    %718 = arith.mulf %702, %710 : vector<8x128xf32>
    %719 = arith.addf %717, %718 : vector<8x128xf32>
    %720 = math.tanh %719 : vector<8x128xf32>
    %721 = arith.mulf %716, %720 : vector<8x128xf32>
    %722 = vector.broadcast %691 : i32 to vector<8x1xi32>
    %723 = arith.cmpi slt, %3, %722 : vector<8x1xi32>
    %724 = vector.shape_cast %723 : vector<8x1xi1> to vector<8x1xi1>
    %725 = vector.broadcast %724 : vector<8x1xi1> to vector<8x128xi1>
    %726 = arith.select %725, %721, %692 : vector<8x128xi1>, vector<8x128xf32>
    %c0_291 = arith.constant 0 : index
    %c0_292 = arith.constant 0 : index
    %727 = vector.load %arg10[%c0_291, %c0_292] : memref<8x128xf32, #tpu.memory_space<vmem>>, vector<8x128xf32>
    tpu.vector_store %arg10[%c0_291, %c0_292], %726 {strides = array<i32>} : memref<8x128xf32, #tpu.memory_space<vmem>>, vector<8x128xf32>,
    %728 = vector.shape_cast %723 : vector<8x1xi1> to vector<8x1xi1>
    %729 = vector.broadcast %728 : vector<8x1xi1> to vector<8x128xi1>
    %730 = arith.select %729, %719, %693 : vector<8x128xi1>, vector<8x128xf32>
    %c0_293 = arith.constant 0 : index
    %c0_294 = arith.constant 0 : index
    %731 = vector.load %arg11[%c0_293, %c0_294] : memref<8x128xf32, #tpu.memory_space<vmem>>, vector<8x128xf32>
    tpu.vector_store %arg11[%c0_293, %c0_294], %730 {strides = array<i32>} : memref<8x128xf32, #tpu.memory_space<vmem>>, vector<8x128xf32>,
    %cst_295 = arith.constant 0.000000e+00 : f32
    %732 = vector.shape_cast %723 : vector<8x1xi1> to vector<8x1xi1>
    %733 = vector.broadcast %732 : vector<8x1xi1> to vector<8x128xi1>
    %734 = vector.broadcast %cst_295 : f32 to vector<8x128xf32>
    %735 = arith.select %733, %721, %734 : vector<8x128xi1>, vector<8x128xf32>
    %c1_296 = arith.constant 1 : index
    %c0_297 = arith.constant 0 : index
    %c0_298 = arith.constant 0 : index
    %736 = vector.load %arg7[%c1_296, %c0_297, %c0_298] : memref<8x8x128xf32, #tpu.memory_space<vmem>>, vector<1x8x128xf32>
    %737 = vector.shape_cast %736 : vector<1x8x128xf32> to vector<8x128xf32>
    %738 = vector.shape_cast %735 : vector<8x128xf32> to vector<1x8x128xf32>
    tpu.vector_store %arg7[%c1_296, %c0_297, %c0_298], %738 {strides = array<i32>} : memref<8x8x128xf32, #tpu.memory_space<vmem>>, vector<1x8x128xf32>,
    %c8_i32_299 = arith.constant 8 : i32
    %739 = arith.muli %arg0, %c8_i32_299 : i32
    %c7_i32_300 = arith.constant 7 : i32
    %740 = arith.addi %739, %c7_i32_300 : i32
    %c7_i32_301 = arith.constant 7 : i32
    %741 = arith.subi %c7_i32_301, %740 : i32
    %c7_302 = arith.constant 7 : index
    %c0_303 = arith.constant 0 : index
    %c0_304 = arith.constant 0 : index
    %742 = vector.load %arg2[%c7_302, %c0_303, %c0_304] : memref<8x8x512xf32, #tpu.memory_space<vmem>>, vector<1x8x512xf32>
    %743 = vector.shape_cast %742 : vector<1x8x512xf32> to vector<8x512xf32>
    %744 = arith.index_cast %740 : i32 to index
    %745 = memref.load %arg1[%744] : memref<8xi32, #tpu.memory_space<smem>>
    %c0_305 = arith.constant 0 : index
    %c0_306 = arith.constant 0 : index
    %746 = vector.load %arg8[%c0_305, %c0_306] : memref<8x128xf32, #tpu.memory_space<vmem>>, vector<8x128xf32>
    %c0_307 = arith.constant 0 : index
    %c0_308 = arith.constant 0 : index
    %747 = vector.load %arg9[%c0_307, %c0_308] : memref<8x128xf32, #tpu.memory_space<vmem>>, vector<8x128xf32>
    %c0_309 = arith.constant 0 : index
    %c0_310 = arith.constant 0 : index
    %748 = vector.load %arg4[%c0_309, %c0_310] : memref<128x512xf32, #tpu.memory_space<vmem>>, vector<128x512xf32>
    %cst_311 = arith.constant dense<0.000000e+00> : vector<8x512xf32>
    %749 = tpu.matmul %746, %748, %cst_311 {dimension_numbers = #tpu.dot_dimension_numbers<[1], [0], [0], [1], [0, 0, 1, 1], [], []>} : vector<8x128xf32>, vector<128x512xf32>, vector<8x512xf32> -> vector<8x512xf32>
    %750 = arith.addf %743, %749 : vector<8x512xf32>
    %751 = vector.extract_strided_slice %750 {offsets = [0, 0], sizes = [8, 128], strides = [1, 1]} : vector<8x512xf32> to vector<8x128xf32>
    %752 = arith.negf %751 : vector<8x128xf32>
    %753 = math.exp %752 : vector<8x128xf32>
    %cst_312 = arith.constant 1.000000e+00 : f32
    %754 = vector.broadcast %cst_312 : f32 to vector<8x128xf32>
    %755 = arith.addf %754, %753 : vector<8x128xf32>
    %756 = arith.divf %754, %755 : vector<8x128xf32>
    %757 = vector.extract_strided_slice %750 {offsets = [0, 128], sizes = [8, 128], strides = [1, 1]} : vector<8x512xf32> to vector<8x128xf32>
    %758 = arith.negf %757 : vector<8x128xf32>
    %759 = math.exp %758 : vector<8x128xf32>
    %cst_313 = arith.constant 1.000000e+00 : f32
    %760 = vector.broadcast %cst_313 : f32 to vector<8x128xf32>
    %761 = arith.addf %760, %759 : vector<8x128xf32>
    %762 = arith.divf %760, %761 : vector<8x128xf32>
    %763 = vector.extract_strided_slice %750 {offsets = [0, 256], sizes = [8, 128], strides = [1, 1]} : vector<8x512xf32> to vector<8x128xf32>
    %764 = math.tanh %763 : vector<8x128xf32>
    %765 = vector.extract_strided_slice %750 {offsets = [0, 384], sizes = [8, 128], strides = [1, 1]} : vector<8x512xf32> to vector<8x128xf32>
    %766 = arith.negf %765 : vector<8x128xf32>
    %767 = math.exp %766 : vector<8x128xf32>
    %cst_314 = arith.constant 1.000000e+00 : f32
    %768 = vector.broadcast %cst_314 : f32 to vector<8x128xf32>
    %769 = arith.addf %768, %767 : vector<8x128xf32>
    %770 = arith.divf %768, %769 : vector<8x128xf32>
    %771 = arith.mulf %762, %747 : vector<8x128xf32>
    %772 = arith.mulf %756, %764 : vector<8x128xf32>
    %773 = arith.addf %771, %772 : vector<8x128xf32>
    %774 = math.tanh %773 : vector<8x128xf32>
    %775 = arith.mulf %770, %774 : vector<8x128xf32>
    %776 = vector.broadcast %745 : i32 to vector<8x1xi32>
    %777 = arith.cmpi slt, %3, %776 : vector<8x1xi32>
    %778 = vector.shape_cast %777 : vector<8x1xi1> to vector<8x1xi1>
    %779 = vector.broadcast %778 : vector<8x1xi1> to vector<8x128xi1>
    %780 = arith.select %779, %775, %746 : vector<8x128xi1>, vector<8x128xf32>
    %c0_315 = arith.constant 0 : index
    %c0_316 = arith.constant 0 : index
    %781 = vector.load %arg8[%c0_315, %c0_316] : memref<8x128xf32, #tpu.memory_space<vmem>>, vector<8x128xf32>
    tpu.vector_store %arg8[%c0_315, %c0_316], %780 {strides = array<i32>} : memref<8x128xf32, #tpu.memory_space<vmem>>, vector<8x128xf32>,
    %782 = vector.shape_cast %777 : vector<8x1xi1> to vector<8x1xi1>
    %783 = vector.broadcast %782 : vector<8x1xi1> to vector<8x128xi1>
    %784 = arith.select %783, %773, %747 : vector<8x128xi1>, vector<8x128xf32>
    %c0_317 = arith.constant 0 : index
    %c0_318 = arith.constant 0 : index
    %785 = vector.load %arg9[%c0_317, %c0_318] : memref<8x128xf32, #tpu.memory_space<vmem>>, vector<8x128xf32>
    tpu.vector_store %arg9[%c0_317, %c0_318], %784 {strides = array<i32>} : memref<8x128xf32, #tpu.memory_space<vmem>>, vector<8x128xf32>,
    %cst_319 = arith.constant 0.000000e+00 : f32
    %786 = vector.shape_cast %777 : vector<8x1xi1> to vector<8x1xi1>
    %787 = vector.broadcast %786 : vector<8x1xi1> to vector<8x128xi1>
    %788 = vector.broadcast %cst_319 : f32 to vector<8x128xf32>
    %789 = arith.select %787, %775, %788 : vector<8x128xi1>, vector<8x128xf32>
    %c7_320 = arith.constant 7 : index
    %c0_321 = arith.constant 0 : index
    %c0_322 = arith.constant 0 : index
    %790 = vector.load %arg6[%c7_320, %c0_321, %c0_322] : memref<8x8x128xf32, #tpu.memory_space<vmem>>, vector<1x8x128xf32>
    %791 = vector.shape_cast %790 : vector<1x8x128xf32> to vector<8x128xf32>
    %792 = vector.shape_cast %789 : vector<8x128xf32> to vector<1x8x128xf32>
    tpu.vector_store %arg6[%c7_320, %c0_321, %c0_322], %792 {strides = array<i32>} : memref<8x8x128xf32, #tpu.memory_space<vmem>>, vector<1x8x128xf32>,
    %c0_323 = arith.constant 0 : index
    %c0_324 = arith.constant 0 : index
    %c0_325 = arith.constant 0 : index
    %793 = vector.load %arg3[%c0_323, %c0_324, %c0_325] : memref<8x8x512xf32, #tpu.memory_space<vmem>>, vector<1x8x512xf32>
    %794 = vector.shape_cast %793 : vector<1x8x512xf32> to vector<8x512xf32>
    %795 = arith.index_cast %741 : i32 to index
    %796 = memref.load %arg1[%795] : memref<8xi32, #tpu.memory_space<smem>>
    %c0_326 = arith.constant 0 : index
    %c0_327 = arith.constant 0 : index
    %797 = vector.load %arg10[%c0_326, %c0_327] : memref<8x128xf32, #tpu.memory_space<vmem>>, vector<8x128xf32>
    %c0_328 = arith.constant 0 : index
    %c0_329 = arith.constant 0 : index
    %798 = vector.load %arg11[%c0_328, %c0_329] : memref<8x128xf32, #tpu.memory_space<vmem>>, vector<8x128xf32>
    %c0_330 = arith.constant 0 : index
    %c0_331 = arith.constant 0 : index
    %799 = vector.load %arg5[%c0_330, %c0_331] : memref<128x512xf32, #tpu.memory_space<vmem>>, vector<128x512xf32>
    %cst_332 = arith.constant dense<0.000000e+00> : vector<8x512xf32>
    %800 = tpu.matmul %797, %799, %cst_332 {dimension_numbers = #tpu.dot_dimension_numbers<[1], [0], [0], [1], [0, 0, 1, 1], [], []>} : vector<8x128xf32>, vector<128x512xf32>, vector<8x512xf32> -> vector<8x512xf32>
    %801 = arith.addf %794, %800 : vector<8x512xf32>
    %802 = vector.extract_strided_slice %801 {offsets = [0, 0], sizes = [8, 128], strides = [1, 1]} : vector<8x512xf32> to vector<8x128xf32>
    %803 = arith.negf %802 : vector<8x128xf32>
    %804 = math.exp %803 : vector<8x128xf32>
    %cst_333 = arith.constant 1.000000e+00 : f32
    %805 = vector.broadcast %cst_333 : f32 to vector<8x128xf32>
    %806 = arith.addf %805, %804 : vector<8x128xf32>
    %807 = arith.divf %805, %806 : vector<8x128xf32>
    %808 = vector.extract_strided_slice %801 {offsets = [0, 128], sizes = [8, 128], strides = [1, 1]} : vector<8x512xf32> to vector<8x128xf32>
    %809 = arith.negf %808 : vector<8x128xf32>
    %810 = math.exp %809 : vector<8x128xf32>
    %cst_334 = arith.constant 1.000000e+00 : f32
    %811 = vector.broadcast %cst_334 : f32 to vector<8x128xf32>
    %812 = arith.addf %811, %810 : vector<8x128xf32>
    %813 = arith.divf %811, %812 : vector<8x128xf32>
    %814 = vector.extract_strided_slice %801 {offsets = [0, 256], sizes = [8, 128], strides = [1, 1]} : vector<8x512xf32> to vector<8x128xf32>
    %815 = math.tanh %814 : vector<8x128xf32>
    %816 = vector.extract_strided_slice %801 {offsets = [0, 384], sizes = [8, 128], strides = [1, 1]} : vector<8x512xf32> to vector<8x128xf32>
    %817 = arith.negf %816 : vector<8x128xf32>
    %818 = math.exp %817 : vector<8x128xf32>
    %cst_335 = arith.constant 1.000000e+00 : f32
    %819 = vector.broadcast %cst_335 : f32 to vector<8x128xf32>
    %820 = arith.addf %819, %818 : vector<8x128xf32>
    %821 = arith.divf %819, %820 : vector<8x128xf32>
    %822 = arith.mulf %813, %798 : vector<8x128xf32>
    %823 = arith.mulf %807, %815 : vector<8x128xf32>
    %824 = arith.addf %822, %823 : vector<8x128xf32>
    %825 = math.tanh %824 : vector<8x128xf32>
    %826 = arith.mulf %821, %825 : vector<8x128xf32>
    %827 = vector.broadcast %796 : i32 to vector<8x1xi32>
    %828 = arith.cmpi slt, %3, %827 : vector<8x1xi32>
    %829 = vector.shape_cast %828 : vector<8x1xi1> to vector<8x1xi1>
    %830 = vector.broadcast %829 : vector<8x1xi1> to vector<8x128xi1>
    %831 = arith.select %830, %826, %797 : vector<8x128xi1>, vector<8x128xf32>
    %c0_336 = arith.constant 0 : index
    %c0_337 = arith.constant 0 : index
    %832 = vector.load %arg10[%c0_336, %c0_337] : memref<8x128xf32, #tpu.memory_space<vmem>>, vector<8x128xf32>
    tpu.vector_store %arg10[%c0_336, %c0_337], %831 {strides = array<i32>} : memref<8x128xf32, #tpu.memory_space<vmem>>, vector<8x128xf32>,
    %833 = vector.shape_cast %828 : vector<8x1xi1> to vector<8x1xi1>
    %834 = vector.broadcast %833 : vector<8x1xi1> to vector<8x128xi1>
    %835 = arith.select %834, %824, %798 : vector<8x128xi1>, vector<8x128xf32>
    %c0_338 = arith.constant 0 : index
    %c0_339 = arith.constant 0 : index
    %836 = vector.load %arg11[%c0_338, %c0_339] : memref<8x128xf32, #tpu.memory_space<vmem>>, vector<8x128xf32>
    tpu.vector_store %arg11[%c0_338, %c0_339], %835 {strides = array<i32>} : memref<8x128xf32, #tpu.memory_space<vmem>>, vector<8x128xf32>,
    %cst_340 = arith.constant 0.000000e+00 : f32
    %837 = vector.shape_cast %828 : vector<8x1xi1> to vector<8x1xi1>
    %838 = vector.broadcast %837 : vector<8x1xi1> to vector<8x128xi1>
    %839 = vector.broadcast %cst_340 : f32 to vector<8x128xf32>
    %840 = arith.select %838, %826, %839 : vector<8x128xi1>, vector<8x128xf32>
    %c0_341 = arith.constant 0 : index
    %c0_342 = arith.constant 0 : index
    %c0_343 = arith.constant 0 : index
    %841 = vector.load %arg7[%c0_341, %c0_342, %c0_343] : memref<8x8x128xf32, #tpu.memory_space<vmem>>, vector<1x8x128xf32>
    %842 = vector.shape_cast %841 : vector<1x8x128xf32> to vector<8x128xf32>
    %843 = vector.shape_cast %840 : vector<8x128xf32> to vector<1x8x128xf32>
    tpu.vector_store %arg7[%c0_341, %c0_342, %c0_343], %843 {strides = array<i32>} : memref<8x8x128xf32, #tpu.memory_space<vmem>>, vector<1x8x128xf32>,
    return
  }
  func.func @transform_0(%arg0: i32, %arg1: memref<8xi32, #tpu.memory_space<smem>>) -> (i32, i32, i32) {
    %c0_i32 = arith.constant 0 : i32
    %c0_i32_0 = arith.constant 0 : i32
    %c0_i32_1 = arith.constant 0 : i32
    return %arg0, %c0_i32, %c0_i32_0 : i32, i32, i32
  }
  func.func @transform_1(%arg0: i32, %arg1: memref<8xi32, #tpu.memory_space<smem>>) -> (i32, i32, i32) {
    %c0_i32 = arith.constant 0 : i32
    %0 = arith.subi %c0_i32, %arg0 : i32
    %c0_i32_0 = arith.constant 0 : i32
    %c1_i32 = arith.constant 1 : i32
    %c0_i32_1 = arith.constant 0 : i32
    return %0, %c0_i32_0, %c1_i32 : i32, i32, i32
  }
  func.func @transform_2(%arg0: i32, %arg1: memref<8xi32, #tpu.memory_space<smem>>) -> (i32, i32) {
    %c0_i32 = arith.constant 0 : i32
    %c0_i32_0 = arith.constant 0 : i32
    %c0_i32_1 = arith.constant 0 : i32
    return %c0_i32, %c0_i32_0 : i32, i32
  }
  func.func @transform_3(%arg0: i32, %arg1: memref<8xi32, #tpu.memory_space<smem>>) -> (i32, i32) {
    %c0_i32 = arith.constant 0 : i32
    %c0_i32_0 = arith.constant 0 : i32
    %c0_i32_1 = arith.constant 0 : i32
    return %c0_i32, %c0_i32_0 : i32, i32
  }
  func.func @transform_4(%arg0: i32, %arg1: memref<8xi32, #tpu.memory_space<smem>>) -> (i32, i32, i32) {
    %c0_i32 = arith.constant 0 : i32
    %c0_i32_0 = arith.constant 0 : i32
    %c0_i32_1 = arith.constant 0 : i32
    return %arg0, %c0_i32, %c0_i32_0 : i32, i32, i32
  }
  func.func @transform_5(%arg0: i32, %arg1: memref<8xi32, #tpu.memory_space<smem>>) -> (i32, i32, i32) {
    %c0_i32 = arith.constant 0 : i32
    %0 = arith.subi %c0_i32, %arg0 : i32
    %c0_i32_0 = arith.constant 0 : i32
    %c0_i32_1 = arith.constant 0 : i32
    %c0_i32_2 = arith.constant 0 : i32
    return %0, %c0_i32_0, %c0_i32_1 : i32, i32, i32
  }
}

</mosaic_0001>

<llo_original>
// kernel: wordseg_forward.7
$region0: #{wordseg_forward.7}
  #allocation0 [shape = 'u32[]', space=smem, size = 0x4, offset = 0x4, fixed_abs, tag = 'smem constant byte address 0x4 - core index']
  #allocation1 [shape = 'u32[144,128]{1,0:T(1,128)}', space=vmem, size = 0x12000, scoped, tag = 'internal scratch']
  %s0 = inlined_call_operand.vmem [shape: f32[64,64], index: 0, kind: input, shape index: {}]
  %s1 = inlined_call_operand.hbm [shape: f32[64,1024], index: 1, kind: input, shape index: {}]
  %s2 = inlined_call_operand.vmem [shape: f32[1,1024], index: 2, kind: input, shape index: {}]
  %s3 = inlined_call_operand.vmem [shape: f32[64,1024], index: 3, kind: output, shape index: {}]
  %s4 = sld [smem:[#allocation0]]
  $region26: #{wordseg_forward.7} parent=0
    _
  %s6 = ssub.s32 1, %s4
  %s7 = scalar_select 0, %s6, %s4
  $region1: #{wordseg_forward.7} parent=0
    #allocation2 [shape = 'u8[262144]{0}', space=vmem, size = 0x40000, scoped, tag = 'input window, operand 1, single buffered']
    #allocation3 [shape = 's32[1]{0}', space=sflag, size = 0x4, scoped, tag = 'scoped memory for wordseg_forward.7']
    %8 = vsyncpa [#allocation3], 0
    // Predicated region
    $region2: #{wordseg_forward.7} parent=1 // pred_check
      _
    $region3: #{wordseg_forward.7} parent=1 // pred_check_branch
      %10 = sbr.rel (0) target = $region5
    $region4: #{wordseg_forward.7} parent=1 // pred_region
      _
    $region5: #{wordseg_forward.7} parent=1 // pred_fallthru
      _
    // Predicated region
    $region6: #{wordseg_forward.7} parent=1 // pred_check
      _
    $region7: #{wordseg_forward.7} parent=1 // pred_check_branch
      %12 = sbr.rel (0) target = $region9
    $region8: #{wordseg_forward.7} parent=1 // pred_region
      %s14 = ssub.s32 8192, 8192
      %15 = vsyncadd [#allocation3], %s14
      %s16 = sshll.u32 [#allocation2], 4
      %s17 = int_to_ptr.vmem [resolvable:$true] %s16
      %22 = dma.hbm_to_vmem [thread:$0]  %s1, 8192, %s17, [#allocation3], 1024, 1024, 64
    $region9: #{wordseg_forward.7} parent=1 // pred_fallthru
      _
    // Predicated region
    $region10: #{wordseg_forward.7} parent=1 // pred_check
      _
    $region11: #{wordseg_forward.7} parent=1 // pred_check_branch
      %24 = sbr.rel (0) target = $region13
    $region12: #{wordseg_forward.7} parent=1 // pred_region
      _
    $region13: #{wordseg_forward.7} parent=1 // pred_fallthru
      _
    // Predicated region
    $region14: #{wordseg_forward.7} parent=1 // pred_check
      _
    $region15: #{wordseg_forward.7} parent=1 // pred_check_branch
      %26 = sbr.rel (0) target = $region17
    $region16: #{wordseg_forward.7} parent=1 // pred_region
      %27 = dma.done [#allocation3], 8192
    $region17: #{wordseg_forward.7} parent=1 // pred_fallthru
      _
    %v28 = vld [vmem:[%s0] sm:$0xff]
    %v29 = vld [vmem:[%s0 + $0x8] sm:$0xff]
    %v30 = vld [vmem:[%s0 + $0x10] sm:$0xff]
    %v31 = vld [vmem:[%s0 + $0x18] sm:$0xff]
    %v32 = vld [vmem:[%s0 + $0x20] sm:$0xff]
    %v33 = vld [vmem:[%s0 + $0x28] sm:$0xff]
    %v34 = vld [vmem:[%s0 + $0x30] sm:$0xff]
    %v35 = vld [vmem:[%s0 + $0x38] sm:$0xff]
    %v36 = vld [vmem:[#allocation2] sm:$0xff]
    %v37 = vld [vmem:[#allocation2 + $0x8] sm:$0xff]
    %v38 = vld [vmem:[#allocation2 + $0x10] sm:$0xff]
    %v39 = vld [vmem:[#allocation2 + $0x18] sm:$0xff]
    %v40 = vld [vmem:[#allocation2 + $0x20] sm:$0xff]
    %v41 = vld [vmem:[#allocation2 + $0x28] sm:$0xff]
    %v42 = vld [vmem:[#allocation2 + $0x30] sm:$0xff]
    %v43 = vld [vmem:[#allocation2 + $0x38] sm:$0xff]
    %v44 = vld [vmem:[#allocation2 + $0x40] sm:$0xff]
    %v45 = vld [vmem:[#allocation2 + $0x48] sm:$0xff]
    %v46 = vld [vmem:[#allocation2 + $0x50] sm:$0xff]
    %v47 = vld [vmem:[#allocation2 + $0x58] sm:$0xff]
    %v48 = vld [vmem:[#allocation2 + $0x60] sm:$0xff]
    %v49 = vld [vmem:[#allocation2 + $0x68] sm:$0xff]
    %v50 = vld [vmem:[#allocation2 + $0x70] sm:$0xff]
    %v51 = vld [vmem:[#allocation2 + $0x78] sm:$0xff]
    %v52 = vld [vmem:[#allocation2 + $0x80] sm:$0xff]
    %v53 = vld [vmem:[#allocation2 + $0x88] sm:$0xff]
    %v54 = vld [vmem:[#allocation2 + $0x90] sm:$0xff]
    %v55 = vld [vmem:[#allocation2 + $0x98] sm:$0xff]
    %v56 = vld [vmem:[#allocation2 + $0xa0] sm:$0xff]
    %v57 = vld [vmem:[#allocation2 + $0xa8] sm:$0xff]
    %v58 = vld [vmem:[#allocation2 + $0xb0] sm:$0xff]
    %v59 = vld [vmem:[#allocation2 + $0xb8] sm:$0xff]
    %v60 = vld [vmem:[#allocation2 + $0xc0] sm:$0xff]
    %v61 = vld [vmem:[#allocation2 + $0xc8] sm:$0xff]
    %v62 = vld [vmem:[#allocation2 + $0xd0] sm:$0xff]
    %v63 = vld [vmem:[#allocation2 + $0xd8] sm:$0xff]
    %v64 = vld [vmem:[#allocation2 + $0xe0] sm:$0xff]
    %v65 = vld [vmem:[#allocation2 + $0xe8] sm:$0xff]
    %v66 = vld [vmem:[#allocation2 + $0xf0] sm:$0xff]
    %v67 = vld [vmem:[#allocation2 + $0xf8] sm:$0xff]
    %v68 = vld [vmem:[#allocation2 + $0x100] sm:$0xff]
    %v69 = vld [vmem:[#allocation2 + $0x108] sm:$0xff]
    %v70 = vld [vmem:[#allocation2 + $0x110] sm:$0xff]
    %v71 = vld [vmem:[#allocation2 + $0x118] sm:$0xff]
    %v72 = vld [vmem:[#allocation2 + $0x120] sm:$0xff]
    %v73 = vld [vmem:[#allocation2 + $0x128] sm:$0xff]
    %v74 = vld [vmem:[#allocation2 + $0x130] sm:$0xff]
    %v75 = vld [vmem:[#allocation2 + $0x138] sm:$0xff]
    %v76 = vld [vmem:[#allocation2 + $0x140] sm:$0xff]
    %v77 = vld [vmem:[#allocation2 + $0x148] sm:$0xff]
    %v78 = vld [vmem:[#allocation2 + $0x150] sm:$0xff]
    %v79 = vld [vmem:[#allocation2 + $0x158] sm:$0xff]
    %v80 = vld [vmem:[#allocation2 + $0x160] sm:$0xff]
    %v81 = vld [vmem:[#allocation2 + $0x168] sm:$0xff]
    %v82 = vld [vmem:[#allocation2 + $0x170] sm:$0xff]
    %v83 = vld [vmem:[#allocation2 + $0x178] sm:$0xff]
    %v84 = vld [vmem:[#allocation2 + $0x180] sm:$0xff]
    %v85 = vld [vmem:[#allocation2 + $0x188] sm:$0xff]
    %v86 = vld [vmem:[#allocation2 + $0x190] sm:$0xff]
    %v87 = vld [vmem:[#allocation2 + $0x198] sm:$0xff]
    %v88 = vld [vmem:[#allocation2 + $0x1a0] sm:$0xff]
    %v89 = vld [vmem:[#allocation2 + $0x1a8] sm:$0xff]
    %v90 = vld [vmem:[#allocation2 + $0x1b0] sm:$0xff]
    %v91 = vld [vmem:[#allocation2 + $0x1b8] sm:$0xff]
    %v92 = vld [vmem:[#allocation2 + $0x1c0] sm:$0xff]
    %v93 = vld [vmem:[#allocation2 + $0x1c8] sm:$0xff]
    %v94 = vld [vmem:[#allocation2 + $0x1d0] sm:$0xff]
    %v95 = vld [vmem:[#allocation2 + $0x1d8] sm:$0xff]
    %v96 = vld [vmem:[#allocation2 + $0x1e0] sm:$0xff]
    %v97 = vld [vmem:[#allocation2 + $0x1e8] sm:$0xff]
    %v98 = vld [vmem:[#allocation2 + $0x1f0] sm:$0xff]
    %v99 = vld [vmem:[#allocation2 + $0x1f8] sm:$0xff]
    %v100 = vld [vmem:[%s2] sm:$0xff]
    %v102 = vlaneseq
    %v103 = vshrl.u32 %v102, 7
    %v104 = vsub.s32 0, %v103
    %v105 = vrot.slane %v100, %v104
    %v106 = vlaneseq
    %v107 = vshrl.u32 %v106, 7
    %v108 = vsub.s32 1, %v107
    %v109 = vrot.slane %v100, %v108
    %v110 = vlaneseq
    %v111 = vshrl.u32 %v110, 7
    %v112 = vsub.s32 2, %v111
    %v113 = vrot.slane %v100, %v112
    %v114 = vlaneseq
    %v115 = vshrl.u32 %v114, 7
    %v116 = vsub.s32 3, %v115
    %v117 = vrot.slane %v100, %v116
    %v118 = vlaneseq
    %v119 = vshrl.u32 %v118, 7
    %v120 = vsub.s32 4, %v119
    %v121 = vrot.slane %v100, %v120
    %v122 = vlaneseq
    %v123 = vshrl.u32 %v122, 7
    %v124 = vsub.s32 5, %v123
    %v125 = vrot.slane %v100, %v124
    %v126 = vlaneseq
    %v127 = vshrl.u32 %v126, 7
    %v128 = vsub.s32 6, %v127
    %v129 = vrot.slane %v100, %v128
    %v130 = vlaneseq
    %v131 = vshrl.u32 %v130, 7
    %v132 = vsub.s32 7, %v131
    %v133 = vrot.slane %v100, %v132
    %vm142 = vcmask 523264
    %v144 = vsel %vm142, %v28, 0
    %v147 = vsel %vm142, %v29, 0
    %v150 = vsel %vm142, %v30, 0
    %v153 = vsel %vm142, %v31, 0
    %v156 = vsel %vm142, %v32, 0
    %v159 = vsel %vm142, %v33, 0
    %v162 = vsel %vm142, %v34, 0
    %v165 = vsel %vm142, %v35, 0
    %167 = vmatprep.subr.mxu0 0.0
    %168 = vmatpush1.msra.mxu0 0.0
    %169 = vmatprep.subr.mxu0 0.0
    %170 = vmatpush1.msra.mxu0 0.0
    %171 = vmatprep.subr.mxu0 0.0
    %172 = vmatpush1.msra.mxu0 0.0
    %173 = vmatprep.subr.mxu0 0.0
    %174 = vmatpush1.msra.mxu0 0.0
    %175 = vmatprep.subr.mxu0 0.0
    %176 = vmatpush1.msra.mxu0 0.0
    %177 = vmatprep.subr.mxu0 0.0
    %178 = vmatpush1.msra.mxu0 0.0
    %179 = vmatprep.subr.mxu0 0.0
    %180 = vmatpush1.msra.mxu0 0.0
    %181 = vmatprep.subr.mxu0 0.0
    %182 = vmatpush1.msra.mxu0 0.0
    %183 = vmatprep.subr.mxu0 %v93
    %184 = vmatpush1.msra.mxu0 %v92
    %185 = vmatprep.subr.mxu0 %v85
    %186 = vmatpush1.msra.mxu0 %v84
    %187 = vmatprep.subr.mxu0 %v77
    %188 = vmatpush1.msra.mxu0 %v76
    %189 = vmatprep.subr.mxu0 %v69
    %190 = vmatpush1.msra.mxu0 %v68
    %191 = vmatprep.subr.mxu0 %v61
    %192 = vmatpush1.msra.mxu0 %v60
    %193 = vmatprep.subr.mxu0 %v53
    %194 = vmatpush1.msra.mxu0 %v52
    %195 = vmatprep.subr.mxu0 %v45
    %196 = vmatpush1.msra.mxu0 %v44
    %197 = vmatprep.subr.mxu0 %v37
    %198 = vmatpush1.msra.mxu0 %v36
    %199 = vmatprep.subr.mxu0 0.0
    %200 = vmatpush2.msra.mxu0 0.0
    %201 = vmatprep.subr.mxu0 0.0
    %202 = vmatpush2.msra.mxu0 0.0
    %203 = vmatprep.subr.mxu0 0.0
    %204 = vmatpush2.msra.mxu0 0.0
    %205 = vmatprep.subr.mxu0 0.0
    %206 = vmatpush2.msra.mxu0 0.0
    %207 = vmatprep.subr.mxu0 0.0
    %208 = vmatpush2.msra.mxu0 0.0
    %209 = vmatprep.subr.mxu0 0.0
    %210 = vmatpush2.msra.mxu0 0.0
    %211 = vmatprep.subr.mxu0 0.0
    %212 = vmatpush2.msra.mxu0 0.0
    %213 = vmatprep.subr.mxu0 0.0
    %214 = vmatpush2.msra.mxu0 0.0
    %215 = vmatprep.subr.mxu0 0.0
    %216 = vmatpush2.msra.mxu0 0.0
    %217 = vmatprep.subr.mxu0 0.0
    %218 = vmatpush2.msra.mxu0 0.0
    %219 = vmatprep.subr.mxu0 0.0
    %220 = vmatpush2.msra.mxu0 0.0
    %221 = vmatprep.subr.mxu0 0.0
    %222 = vmatpush2.msra.mxu0 0.0
    %223 = vmatprep.subr.mxu0 0.0
    %224 = vmatpush2.msra.mxu0 0.0
    %225 = vmatprep.subr.mxu0 0.0
    %226 = vmatpush2.msra.mxu0 0.0
    %227 = vmatprep.subr.mxu0 0.0
    %228 = vmatpush2.msra.mxu0 0.0
    %229 = vmatprep.subr.mxu0 0.0
    %230 = vmatpush2.msra.mxu0 0.0
    %231 = vmatprep.mubr.f32.mxu0 0.0
    %232 = vmatmul.mubr.f32.gmra.mxu0 %v144
    %v233 = vpop.f32.mrf.mxu0
    %v234 = vadd.f32 %v105, %v233
    %v235 = vpop.f32.mrf.mxu0
    %v236 = vadd.f32 %v109, %v235
    %237 = vmatprep.mubr.f32.mxu0 0.0
    %238 = vmatmul.mubr.f32.gmra.mxu0 %v147
    %v239 = vpop.f32.mrf.mxu0
    %v240 = vadd.f32 %v105, %v239
    %v241 = vpop.f32.mrf.mxu0
    %v242 = vadd.f32 %v109, %v241
    %243 = vmatprep.mubr.f32.mxu0 0.0
    %244 = vmatmul.mubr.f32.gmra.mxu0 %v150
    %v245 = vpop.f32.mrf.mxu0
    %v246 = vadd.f32 %v105, %v245
    %v247 = vpop.f32.mrf.mxu0
    %v248 = vadd.f32 %v109, %v247
    %249 = vmatprep.mubr.f32.mxu0 0.0
    %250 = vmatmul.mubr.f32.gmra.mxu0 %v153
    %v251 = vpop.f32.mrf.mxu0
    %v252 = vadd.f32 %v105, %v251
    %v253 = vpop.f32.mrf.mxu0
    %v254 = vadd.f32 %v109, %v253
    %255 = vmatprep.mubr.f32.mxu0 0.0
    %256 = vmatmul.mubr.f32.gmra.mxu0 %v156
    %v257 = vpop.f32.mrf.mxu0
    %v258 = vadd.f32 %v105, %v257
    %v259 = vpop.f32.mrf.mxu0
    %v260 = vadd.f32 %v109, %v259
    %261 = vmatprep.mubr.f32.mxu0 0.0
    %262 = vmatmul.mubr.f32.gmra.mxu0 %v159
    %v263 = vpop.f32.mrf.mxu0
    %v264 = vadd.f32 %v105, %v263
    %v265 = vpop.f32.mrf.mxu0
    %v266 = vadd.f32 %v109, %v265
    %267 = vmatprep.mubr.f32.mxu0 0.0
    %268 = vmatmul.mubr.f32.gmra.mxu0 %v162
    %v269 = vpop.f32.mrf.mxu0
    %v270 = vadd.f32 %v105, %v269
    %v271 = vpop.f32.mrf.mxu0
    %v272 = vadd.f32 %v109, %v271
    %273 = vmatprep.mubr.f32.mxu0 0.0
    %274 = vmatmul.mubr.f32.gmra.mxu0 %v165
    %v275 = vpop.f32.mrf.mxu0
    %v276 = vadd.f32 %v105, %v275
    %v277 = vpop.f32.mrf.mxu0
    %v278 = vadd.f32 %v109, %v277
    %279 = vdwg.mxu0
    %280 = vmatprep.subr.mxu0 0.0
    %281 = vmatpush1.msra.mxu0 0.0
    %282 = vmatprep.subr.mxu0 0.0
    %283 = vmatpush1.msra.mxu0 0.0
    %284 = vmatprep.subr.mxu0 0.0
    %285 = vmatpush1.msra.mxu0 0.0
    %286 = vmatprep.subr.mxu0 0.0
    %287 = vmatpush1.msra.mxu0 0.0
    %288 = vmatprep.subr.mxu0 0.0
    %289 = vmatpush1.msra.mxu0 0.0
    %290 = vmatprep.subr.mxu0 0.0
    %291 = vmatpush1.msra.mxu0 0.0
    %292 = vmatprep.subr.mxu0 0.0
    %293 = vmatpush1.msra.mxu0 0.0
    %294 = vmatprep.subr.mxu0 0.0
    %295 = vmatpush1.msra.mxu0 0.0
    %296 = vmatprep.subr.mxu0 %v95
    %297 = vmatpush1.msra.mxu0 %v94
    %298 = vmatprep.subr.mxu0 %v87
    %299 = vmatpush1.msra.mxu0 %v86
    %300 = vmatprep.subr.mxu0 %v79
    %301 = vmatpush1.msra.mxu0 %v78
    %302 = vmatprep.subr.mxu0 %v71
    %303 = vmatpush1.msra.mxu0 %v70
    %304 = vmatprep.subr.mxu0 %v63
    %305 = vmatpush1.msra.mxu0 %v62
    %306 = vmatprep.subr.mxu0 %v55
    %307 = vmatpush1.msra.mxu0 %v54
    %308 = vmatprep.subr.mxu0 %v47
    %309 = vmatpush1.msra.mxu0 %v46
    %310 = vmatprep.subr.mxu0 %v39
    %311 = vmatpush1.msra.mxu0 %v38
    %312 = vmatprep.subr.mxu0 0.0
    %313 = vmatpush2.msra.mxu0 0.0
    %314 = vmatprep.subr.mxu0 0.0
    %315 = vmatpush2.msra.mxu0 0.0
    %316 = vmatprep.subr.mxu0 0.0
    %317 = vmatpush2.msra.mxu0 0.0
    %318 = vmatprep.subr.mxu0 0.0
    %319 = vmatpush2.msra.mxu0 0.0
    %320 = vmatprep.subr.mxu0 0.0
    %321 = vmatpush2.msra.mxu0 0.0
    %322 = vmatprep.subr.mxu0 0.0
    %323 = vmatpush2.msra.mxu0 0.0
    %324 = vmatprep.subr.mxu0 0.0
    %325 = vmatpush2.msra.mxu0 0.0
    %326 = vmatprep.subr.mxu0 0.0
    %327 = vmatpush2.msra.mxu0 0.0
    %328 = vmatprep.subr.mxu0 0.0
    %329 = vmatpush2.msra.mxu0 0.0
    %330 = vmatprep.subr.mxu0 0.0
    %331 = vmatpush2.msra.mxu0 0.0
    %332 = vmatprep.subr.mxu0 0.0
    %333 = vmatpush2.msra.mxu0 0.0
    %334 = vmatprep.subr.mxu0 0.0
    %335 = vmatpush2.msra.mxu0 0.0
    %336 = vmatprep.subr.mxu0 0.0
    %337 = vmatpush2.msra.mxu0 0.0
    %338 = vmatprep.subr.mxu0 0.0
    %339 = vmatpush2.msra.mxu0 0.0
    %340 = vmatprep.subr.mxu0 0.0
    %341 = vmatpush2.msra.mxu0 0.0
    %342 = vmatprep.subr.mxu0 0.0
    %343 = vmatpush2.msra.mxu0 0.0
    %344 = vmatprep.mubr.f32.mxu0 0.0
    %345 = vmatmul.mubr.f32.gmra.mxu0 %v144
    %v346 = vpop.f32.mrf.mxu0
    %v347 = vadd.f32 %v113, %v346
    %v348 = vpop.f32.mrf.mxu0
    %v349 = vadd.f32 %v117, %v348
    %350 = vmatprep.mubr.f32.mxu0 0.0
    %351 = vmatmul.mubr.f32.gmra.mxu0 %v147
    %v352 = vpop.f32.mrf.mxu0
    %v353 = vadd.f32 %v113, %v352
    %v354 = vpop.f32.mrf.mxu0
    %v355 = vadd.f32 %v117, %v354
    %356 = vmatprep.mubr.f32.mxu0 0.0
    %357 = vmatmul.mubr.f32.gmra.mxu0 %v150
    %v358 = vpop.f32.mrf.mxu0
    %v359 = vadd.f32 %v113, %v358
    %v360 = vpop.f32.mrf.mxu0
    %v361 = vadd.f32 %v117, %v360
    %362 = vmatprep.mubr.f32.mxu0 0.0
    %363 = vmatmul.mubr.f32.gmra.mxu0 %v153
    %v364 = vpop.f32.mrf.mxu0
    %v365 = vadd.f32 %v113, %v364
    %v366 = vpop.f32.mrf.mxu0
    %v367 = vadd.f32 %v117, %v366
    %368 = vmatprep.mubr.f32.mxu0 0.0
    %369 = vmatmul.mubr.f32.gmra.mxu0 %v156
    %v370 = vpop.f32.mrf.mxu0
    %v371 = vadd.f32 %v113, %v370
    %v372 = vpop.f32.mrf.mxu0
    %v373 = vadd.f32 %v117, %v372
    %374 = vmatprep.mubr.f32.mxu0 0.0
    %375 = vmatmul.mubr.f32.gmra.mxu0 %v159
    %v376 = vpop.f32.mrf.mxu0
    %v377 = vadd.f32 %v113, %v376
    %v378 = vpop.f32.mrf.mxu0
    %v379 = vadd.f32 %v117, %v378
    %380 = vmatprep.mubr.f32.mxu0 0.0
    %381 = vmatmul.mubr.f32.gmra.mxu0 %v162
    %v382 = vpop.f32.mrf.mxu0
    %v383 = vadd.f32 %v113, %v382
    %v384 = vpop.f32.mrf.mxu0
    %v385 = vadd.f32 %v117, %v384
    %386 = vmatprep.mubr.f32.mxu0 0.0
    %387 = vmatmul.mubr.f32.gmra.mxu0 %v165
    %v388 = vpop.f32.mrf.mxu0
    %v389 = vadd.f32 %v113, %v388
    %v390 = vpop.f32.mrf.mxu0
    %v391 = vadd.f32 %v117, %v390
    %392 = vdwg.mxu0
    %393 = vmatprep.subr.mxu0 0.0
    %394 = vmatpush1.msra.mxu0 0.0
    %395 = vmatprep.subr.mxu0 0.0
    %396 = vmatpush1.msra.mxu0 0.0
    %397 = vmatprep.subr.mxu0 0.0
    %398 = vmatpush1.msra.mxu0 0.0
    %399 = vmatprep.subr.mxu0 0.0
    %400 = vmatpush1.msra.mxu0 0.0
    %401 = vmatprep.subr.mxu0 0.0
    %402 = vmatpush1.msra.mxu0 0.0
    %403 = vmatprep.subr.mxu0 0.0
    %404 = vmatpush1.msra.mxu0 0.0
    %405 = vmatprep.subr.mxu0 0.0
    %406 = vmatpush1.msra.mxu0 0.0
    %407 = vmatprep.subr.mxu0 0.0
    %408 = vmatpush1.msra.mxu0 0.0
    %409 = vmatprep.subr.mxu0 %v97
    %410 = vmatpush1.msra.mxu0 %v96
    %411 = vmatprep.subr.mxu0 %v89
    %412 = vmatpush1.msra.mxu0 %v88
    %413 = vmatprep.subr.mxu0 %v81
    %414 = vmatpush1.msra.mxu0 %v80
    %415 = vmatprep.subr.mxu0 %v73
    %416 = vmatpush1.msra.mxu0 %v72
    %417 = vmatprep.subr.mxu0 %v65
    %418 = vmatpush1.msra.mxu0 %v64
    %419 = vmatprep.subr.mxu0 %v57
    %420 = vmatpush1.msra.mxu0 %v56
    %421 = vmatprep.subr.mxu0 %v49
    %422 = vmatpush1.msra.mxu0 %v48
    %423 = vmatprep.subr.mxu0 %v41
    %424 = vmatpush1.msra.mxu0 %v40
    %425 = vmatprep.subr.mxu0 0.0
    %426 = vmatpush2.msra.mxu0 0.0
    %427 = vmatprep.subr.mxu0 0.0
    %428 = vmatpush2.msra.mxu0 0.0
    %429 = vmatprep.subr.mxu0 0.0
    %430 = vmatpush2.msra.mxu0 0.0
    %431 = vmatprep.subr.mxu0 0.0
    %432 = vmatpush2.msra.mxu0 0.0
    %433 = vmatprep.subr.mxu0 0.0
    %434 = vmatpush2.msra.mxu0 0.0
    %435 = vmatprep.subr.mxu0 0.0
    %436 = vmatpush2.msra.mxu0 0.0
    %437 = vmatprep.subr.mxu0 0.0
    %438 = vmatpush2.msra.mxu0 0.0
    %439 = vmatprep.subr.mxu0 0.0
    %440 = vmatpush2.msra.mxu0 0.0
    %441 = vmatprep.subr.mxu0 0.0
    %442 = vmatpush2.msra.mxu0 0.0
    %443 = vmatprep.subr.mxu0 0.0
    %444 = vmatpush2.msra.mxu0 0.0
    %445 = vmatprep.subr.mxu0 0.0
    %446 = vmatpush2.msra.mxu0 0.0
    %447 = vmatprep.subr.mxu0 0.0
    %448 = vmatpush2.msra.mxu0 0.0
    %449 = vmatprep.subr.mxu0 0.0
    %450 = vmatpush2.msra.mxu0 0.0
    %451 = vmatprep.subr.mxu0 0.0
    %452 = vmatpush2.msra.mxu0 0.0
    %453 = vmatprep.subr.mxu0 0.0
    %454 = vmatpush2.msra.mxu0 0.0
    %455 = vmatprep.subr.mxu0 0.0
    %456 = vmatpush2.msra.mxu0 0.0
    %457 = vmatprep.mubr.f32.mxu0 0.0
    %458 = vmatmul.mubr.f32.gmra.mxu0 %v144
    %v459 = vpop.f32.mrf.mxu0
    %v460 = vadd.f32 %v121, %v459
    %v461 = vpop.f32.mrf.mxu0
    %v462 = vadd.f32 %v125, %v461
    %463 = vmatprep.mubr.f32.mxu0 0.0
    %464 = vmatmul.mubr.f32.gmra.mxu0 %v147
    %v465 = vpop.f32.mrf.mxu0
    %v466 = vadd.f32 %v121, %v465
    %v467 = vpop.f32.mrf.mxu0
    %v468 = vadd.f32 %v125, %v467
    %469 = vmatprep.mubr.f32.mxu0 0.0
    %470 = vmatmul.mubr.f32.gmra.mxu0 %v150
    %v471 = vpop.f32.mrf.mxu0
    %v472 = vadd.f32 %v121, %v471
    %v473 = vpop.f32.mrf.mxu0
    %v474 = vadd.f32 %v125, %v473
    %475 = vmatprep.mubr.f32.mxu0 0.0
    %476 = vmatmul.mubr.f32.gmra.mxu0 %v153
    %v477 = vpop.f32.mrf.mxu0
    %v478 = vadd.f32 %v121, %v477
    %v479 = vpop.f32.mrf.mxu0
    %v480 = vadd.f32 %v125, %v479
    %481 = vmatprep.mubr.f32.mxu0 0.0
    %482 = vmatmul.mubr.f32.gmra.mxu0 %v156
    %v483 = vpop.f32.mrf.mxu0
    %v484 = vadd.f32 %v121, %v483
    %v485 = vpop.f32.mrf.mxu0
    %v486 = vadd.f32 %v125, %v485
    %487 = vmatprep.mubr.f32.mxu0 0.0
    %488 = vmatmul.mubr.f32.gmra.mxu0 %v159
    %v489 = vpop.f32.mrf.mxu0
    %v490 = vadd.f32 %v121, %v489
    %v491 = vpop.f32.mrf.mxu0
    %v492 = vadd.f32 %v125, %v491
    %493 = vmatprep.mubr.f32.mxu0 0.0
    %494 = vmatmul.mubr.f32.gmra.mxu0 %v162
    %v495 = vpop.f32.mrf.mxu0
    %v496 = vadd.f32 %v121, %v495
    %v497 = vpop.f32.mrf.mxu0
    %v498 = vadd.f32 %v125, %v497
    %499 = vmatprep.mubr.f32.mxu0 0.0
    %500 = vmatmul.mubr.f32.gmra.mxu0 %v165
    %v501 = vpop.f32.mrf.mxu0
    %v502 = vadd.f32 %v121, %v501
    %v503 = vpop.f32.mrf.mxu0
    %v504 = vadd.f32 %v125, %v503
    %505 = vdwg.mxu0
    %506 = vmatprep.subr.mxu0 0.0
    %507 = vmatpush1.msra.mxu0 0.0
    %508 = vmatprep.subr.mxu0 0.0
    %509 = vmatpush1.msra.mxu0 0.0
    %510 = vmatprep.subr.mxu0 0.0
    %511 = vmatpush1.msra.mxu0 0.0
    %512 = vmatprep.subr.mxu0 0.0
    %513 = vmatpush1.msra.mxu0 0.0
    %514 = vmatprep.subr.mxu0 0.0
    %515 = vmatpush1.msra.mxu0 0.0
    %516 = vmatprep.subr.mxu0 0.0
    %517 = vmatpush1.msra.mxu0 0.0
    %518 = vmatprep.subr.mxu0 0.0
    %519 = vmatpush1.msra.mxu0 0.0
    %520 = vmatprep.subr.mxu0 0.0
    %521 = vmatpush1.msra.mxu0 0.0
    %522 = vmatprep.subr.mxu0 %v99
    %523 = vmatpush1.msra.mxu0 %v98
    %524 = vmatprep.subr.mxu0 %v91
    %525 = vmatpush1.msra.mxu0 %v90
    %526 = vmatprep.subr.mxu0 %v83
    %527 = vmatpush1.msra.mxu0 %v82
    %528 = vmatprep.subr.mxu0 %v75
    %529 = vmatpush1.msra.mxu0 %v74
    %530 = vmatprep.subr.mxu0 %v67
    %531 = vmatpush1.msra.mxu0 %v66
    %532 = vmatprep.subr.mxu0 %v59
    %533 = vmatpush1.msra.mxu0 %v58
    %534 = vmatprep.subr.mxu0 %v51
    %535 = vmatpush1.msra.mxu0 %v50
    %536 = vmatprep.subr.mxu0 %v43
    %537 = vmatpush1.msra.mxu0 %v42
    %538 = vmatprep.subr.mxu0 0.0
    %539 = vmatpush2.msra.mxu0 0.0
    %540 = vmatprep.subr.mxu0 0.0
    %541 = vmatpush2.msra.mxu0 0.0
    %542 = vmatprep.subr.mxu0 0.0
    %543 = vmatpush2.msra.mxu0 0.0
    %544 = vmatprep.subr.mxu0 0.0
    %545 = vmatpush2.msra.mxu0 0.0
    %546 = vmatprep.subr.mxu0 0.0
    %547 = vmatpush2.msra.mxu0 0.0
    %548 = vmatprep.subr.mxu0 0.0
    %549 = vmatpush2.msra.mxu0 0.0
    %550 = vmatprep.subr.mxu0 0.0
    %551 = vmatpush2.msra.mxu0 0.0
    %552 = vmatprep.subr.mxu0 0.0
    %553 = vmatpush2.msra.mxu0 0.0
    %554 = vmatprep.subr.mxu0 0.0
    %555 = vmatpush2.msra.mxu0 0.0
    %556 = vmatprep.subr.mxu0 0.0
    %557 = vmatpush2.msra.mxu0 0.0
    %558 = vmatprep.subr.mxu0 0.0
    %559 = vmatpush2.msra.mxu0 0.0
    %560 = vmatprep.subr.mxu0 0.0
    %561 = vmatpush2.msra.mxu0 0.0
    %562 = vmatprep.subr.mxu0 0.0
    %563 = vmatpush2.msra.mxu0 0.0
    %564 = vmatprep.subr.mxu0 0.0
    %565 = vmatpush2.msra.mxu0 0.0
    %566 = vmatprep.subr.mxu0 0.0
    %567 = vmatpush2.msra.mxu0 0.0
    %568 = vmatprep.subr.mxu0 0.0
    %569 = vmatpush2.msra.mxu0 0.0
    %570 = vmatprep.mubr.f32.mxu0 0.0
    %571 = vmatmul.mubr.f32.gmra.mxu0 %v144
    %v572 = vpop.f32.mrf.mxu0
    %v573 = vadd.f32 %v129, %v572
    %v574 = vpop.f32.mrf.mxu0
    %v575 = vadd.f32 %v133, %v574
    %576 = vmatprep.mubr.f32.mxu0 0.0
    %577 = vmatmul.mubr.f32.gmra.mxu0 %v147
    %v578 = vpop.f32.mrf.mxu0
    %v579 = vadd.f32 %v129, %v578
    %v580 = vpop.f32.mrf.mxu0
    %v581 = vadd.f32 %v133, %v580
    %582 = vmatprep.mubr.f32.mxu0 0.0
    %583 = vmatmul.mubr.f32.gmra.mxu0 %v150
    %v584 = vpop.f32.mrf.mxu0
    %v585 = vadd.f32 %v129, %v584
    %v586 = vpop.f32.mrf.mxu0
    %v587 = vadd.f32 %v133, %v586
    %588 = vmatprep.mubr.f32.mxu0 0.0
    %589 = vmatmul.mubr.f32.gmra.mxu0 %v153
    %v590 = vpop.f32.mrf.mxu0
    %v591 = vadd.f32 %v129, %v590
    %v592 = vpop.f32.mrf.mxu0
    %v593 = vadd.f32 %v133, %v592
    %594 = vmatprep.mubr.f32.mxu0 0.0
    %595 = vmatmul.mubr.f32.gmra.mxu0 %v156
    %v596 = vpop.f32.mrf.mxu0
    %v597 = vadd.f32 %v129, %v596
    %v598 = vpop.f32.mrf.mxu0
    %v599 = vadd.f32 %v133, %v598
    %600 = vmatprep.mubr.f32.mxu0 0.0
    %601 = vmatmul.mubr.f32.gmra.mxu0 %v159
    %v602 = vpop.f32.mrf.mxu0
    %v603 = vadd.f32 %v129, %v602
    %v604 = vpop.f32.mrf.mxu0
    %v605 = vadd.f32 %v133, %v604
    %606 = vmatprep.mubr.f32.mxu0 0.0
    %607 = vmatmul.mubr.f32.gmra.mxu0 %v162
    %v608 = vpop.f32.mrf.mxu0
    %v609 = vadd.f32 %v129, %v608
    %v610 = vpop.f32.mrf.mxu0
    %v611 = vadd.f32 %v133, %v610
    %612 = vmatprep.mubr.f32.mxu0 0.0
    %613 = vmatmul.mubr.f32.gmra.mxu0 %v165
    %v614 = vpop.f32.mrf.mxu0
    %v615 = vadd.f32 %v129, %v614
    %v616 = vpop.f32.mrf.mxu0
    %v617 = vadd.f32 %v133, %v616
    %618 = vdwg.mxu0
    %619 = vst [vmem:[%s3] sm:$0xff] %v234
    %620 = vst [vmem:[%s3 + $0x8] sm:$0xff] %v236
    %621 = vst [vmem:[%s3 + $0x10] sm:$0xff] %v347
    %622 = vst [vmem:[%s3 + $0x18] sm:$0xff] %v349
    %623 = vst [vmem:[%s3 + $0x20] sm:$0xff] %v460
    %624 = vst [vmem:[%s3 + $0x28] sm:$0xff] %v462
    %625 = vst [vmem:[%s3 + $0x30] sm:$0xff] %v573
    %626 = vst [vmem:[%s3 + $0x38] sm:$0xff] %v575
    %627 = vst [vmem:[%s3 + $0x40] sm:$0xff] %v240
    %628 = vst [vmem:[%s3 + $0x48] sm:$0xff] %v242
    %629 = vst [vmem:[%s3 + $0x50] sm:$0xff] %v353
    %630 = vst [vmem:[%s3 + $0x58] sm:$0xff] %v355
    %631 = vst [vmem:[%s3 + $0x60] sm:$0xff] %v466
    %632 = vst [vmem:[%s3 + $0x68] sm:$0xff] %v468
    %633 = vst [vmem:[%s3 + $0x70] sm:$0xff] %v579
    %634 = vst [vmem:[%s3 + $0x78] sm:$0xff] %v581
    %635 = vst [vmem:[%s3 + $0x80] sm:$0xff] %v246
    %636 = vst [vmem:[%s3 + $0x88] sm:$0xff] %v248
    %637 = vst [vmem:[%s3 + $0x90] sm:$0xff] %v359
    %638 = vst [vmem:[%s3 + $0x98] sm:$0xff] %v361
    %639 = vst [vmem:[%s3 + $0xa0] sm:$0xff] %v472
    %640 = vst [vmem:[%s3 + $0xa8] sm:$0xff] %v474
    %641 = vst [vmem:[%s3 + $0xb0] sm:$0xff] %v585
    %642 = vst [vmem:[%s3 + $0xb8] sm:$0xff] %v587
    %643 = vst [vmem:[%s3 + $0xc0] sm:$0xff] %v252
    %644 = vst [vmem:[%s3 + $0xc8] sm:$0xff] %v254
    %645 = vst [vmem:[%s3 + $0xd0] sm:$0xff] %v365
    %646 = vst [vmem:[%s3 + $0xd8] sm:$0xff] %v367
    %647 = vst [vmem:[%s3 + $0xe0] sm:$0xff] %v478
    %648 = vst [vmem:[%s3 + $0xe8] sm:$0xff] %v480
    %649 = vst [vmem:[%s3 + $0xf0] sm:$0xff] %v591
    %650 = vst [vmem:[%s3 + $0xf8] sm:$0xff] %v593
    %651 = vst [vmem:[%s3 + $0x100] sm:$0xff] %v258
    %652 = vst [vmem:[%s3 + $0x108] sm:$0xff] %v260
    %653 = vst [vmem:[%s3 + $0x110] sm:$0xff] %v371
    %654 = vst [vmem:[%s3 + $0x118] sm:$0xff] %v373
    %655 = vst [vmem:[%s3 + $0x120] sm:$0xff] %v484
    %656 = vst [vmem:[%s3 + $0x128] sm:$0xff] %v486
    %657 = vst [vmem:[%s3 + $0x130] sm:$0xff] %v597
    %658 = vst [vmem:[%s3 + $0x138] sm:$0xff] %v599
    %659 = vst [vmem:[%s3 + $0x140] sm:$0xff] %v264
    %660 = vst [vmem:[%s3 + $0x148] sm:$0xff] %v266
    %661 = vst [vmem:[%s3 + $0x150] sm:$0xff] %v377
    %662 = vst [vmem:[%s3 + $0x158] sm:$0xff] %v379
    %663 = vst [vmem:[%s3 + $0x160] sm:$0xff] %v490
    %664 = vst [vmem:[%s3 + $0x168] sm:$0xff] %v492
    %665 = vst [vmem:[%s3 + $0x170] sm:$0xff] %v603
    %666 = vst [vmem:[%s3 + $0x178] sm:$0xff] %v605
    %667 = vst [vmem:[%s3 + $0x180] sm:$0xff] %v270
    %668 = vst [vmem:[%s3 + $0x188] sm:$0xff] %v272
    %669 = vst [vmem:[%s3 + $0x190] sm:$0xff] %v383
    %670 = vst [vmem:[%s3 + $0x198] sm:$0xff] %v385
    %671 = vst [vmem:[%s3 + $0x1a0] sm:$0xff] %v496
    %672 = vst [vmem:[%s3 + $0x1a8] sm:$0xff] %v498
    %673 = vst [vmem:[%s3 + $0x1b0] sm:$0xff] %v609
    %674 = vst [vmem:[%s3 + $0x1b8] sm:$0xff] %v611
    %675 = vst [vmem:[%s3 + $0x1c0] sm:$0xff] %v276
    %676 = vst [vmem:[%s3 + $0x1c8] sm:$0xff] %v278
    %677 = vst [vmem:[%s3 + $0x1d0] sm:$0xff] %v389
    %678 = vst [vmem:[%s3 + $0x1d8] sm:$0xff] %v391
    %679 = vst [vmem:[%s3 + $0x1e0] sm:$0xff] %v502
    %680 = vst [vmem:[%s3 + $0x1e8] sm:$0xff] %v504
    %681 = vst [vmem:[%s3 + $0x1f0] sm:$0xff] %v615
    %682 = vst [vmem:[%s3 + $0x1f8] sm:$0xff] %v617
    // Predicated region
    $region18: #{wordseg_forward.7} parent=1 // pred_check
      _
    $region19: #{wordseg_forward.7} parent=1 // pred_check_branch
      %684 = sbr.rel (0) target = $region21
    $region20: #{wordseg_forward.7} parent=1 // pred_region
      _
    $region21: #{wordseg_forward.7} parent=1 // pred_fallthru
      _
    // Predicated region
    $region22: #{wordseg_forward.7} parent=1 // pred_check
      _
    $region23: #{wordseg_forward.7} parent=1 // pred_check_branch
      %686 = sbr.rel (0) target = $region25
    $region24: #{wordseg_forward.7} parent=1 // pred_region
      _
    $region25: #{wordseg_forward.7} parent=1 // pred_fallthru
      _
    %687 = vsyncpa [#allocation3], 1

// kernel: wordseg_forward.13
$region0: #{wordseg_forward.13}
  #allocation0 [shape = 'u32[]', space=smem, size = 0x4, offset = 0x4, fixed_abs, tag = 'smem constant byte address 0x4 - core index']
  #allocation1 [shape = 'u32[144,128]{1,0:T(1,128)}', space=vmem, size = 0x12000, scoped, tag = 'internal scratch']
  %s0 = inlined_call_operand.vmem [shape: f32[64,128], index: 0, kind: input, shape index: {}]
  %s1 = inlined_call_operand.vmem [shape: f32[64,128], index: 1, kind: input, shape index: {}]
  %s2 = inlined_call_operand.vmem [shape: f32[128,128], index: 2, kind: input, shape index: {}]
  %s3 = inlined_call_operand.vmem [shape: f32[128,128], index: 3, kind: input, shape index: {}]
  %s4 = inlined_call_operand.vmem [shape: f32[1,128], index: 4, kind: input, shape index: {}]
  %s5 = inlined_call_operand.vmem [shape: f32[64,128], index: 5, kind: output, shape index: {}]
  %s6 = sld [smem:[#allocation0]]
  $region30: #{wordseg_forward.13} parent=0
    _
  %s8 = ssub.s32 1, %s6
  %s9 = scalar_select 0, %s8, %s6
  // Predicated region
  $region2: #{wordseg_forward.13} parent=0 // pred_check
    _
  $region3: #{wordseg_forward.13} parent=0 // pred_check_branch
    %11 = sbr.rel (0) target = $region5
  $region4: #{wordseg_forward.13} parent=0 // pred_region
    _
  $region5: #{wordseg_forward.13} parent=0 // pred_fallthru
    _
  // Predicated region
  $region6: #{wordseg_forward.13} parent=0 // pred_check
    _
  $region7: #{wordseg_forward.13} parent=0 // pred_check_branch
    %13 = sbr.rel (0) target = $region9
  $region8: #{wordseg_forward.13} parent=0 // pred_region
    _
  $region9: #{wordseg_forward.13} parent=0 // pred_fallthru
    _
  // Predicated region
  $region10: #{wordseg_forward.13} parent=0 // pred_check
    _
  $region11: #{wordseg_forward.13} parent=0 // pred_check_branch
    %15 = sbr.rel (0) target = $region13
  $region12: #{wordseg_forward.13} parent=0 // pred_region
    _
  $region13: #{wordseg_forward.13} parent=0 // pred_fallthru
    _
  // Predicated region
  $region14: #{wordseg_forward.13} parent=0 // pred_check
    _
  $region15: #{wordseg_forward.13} parent=0 // pred_check_branch
    %17 = sbr.rel (0) target = $region17
  $region16: #{wordseg_forward.13} parent=0 // pred_region
    _
  $region17: #{wordseg_forward.13} parent=0 // pred_fallthru
    _
  // Predicated region
  $region18: #{wordseg_forward.13} parent=0 // pred_check
    _
  $region19: #{wordseg_forward.13} parent=0 // pred_check_branch
    %19 = sbr.rel (0) target = $region21
  $region20: #{wordseg_forward.13} parent=0 // pred_region
    _
  $region21: #{wordseg_forward.13} parent=0 // pred_fallthru
    _
  %v20 = vld [vmem:[%s0] sm:$0xff]
  %v21 = vld [vmem:[%s0 + $0x8] sm:$0xff]
  %v22 = vld [vmem:[%s0 + $0x10] sm:$0xff]
  %v23 = vld [vmem:[%s0 + $0x18] sm:$0xff]
  %v24 = vld [vmem:[%s0 + $0x20] sm:$0xff]
  %v25 = vld [vmem:[%s0 + $0x28] sm:$0xff]
  %v26 = vld [vmem:[%s0 + $0x30] sm:$0xff]
  %v27 = vld [vmem:[%s0 + $0x38] sm:$0xff]
  %v28 = vld [vmem:[%s1] sm:$0xff]
  %v29 = vld [vmem:[%s1 + $0x8] sm:$0xff]
  %v30 = vld [vmem:[%s1 + $0x10] sm:$0xff]
  %v31 = vld [vmem:[%s1 + $0x18] sm:$0xff]
  %v32 = vld [vmem:[%s1 + $0x20] sm:$0xff]
  %v33 = vld [vmem:[%s1 + $0x28] sm:$0xff]
  %v34 = vld [vmem:[%s1 + $0x30] sm:$0xff]
  %v35 = vld [vmem:[%s1 + $0x38] sm:$0xff]
  %v36 = vld [vmem:[%s2] sm:$0xff]
  %v37 = vld [vmem:[%s2 + $0x8] sm:$0xff]
  %v38 = vld [vmem:[%s2 + $0x10] sm:$0xff]
  %v39 = vld [vmem:[%s2 + $0x18] sm:$0xff]
  %v40 = vld [vmem:[%s2 + $0x20] sm:$0xff]
  %v41 = vld [vmem:[%s2 + $0x28] sm:$0xff]
  %v42 = vld [vmem:[%s2 + $0x30] sm:$0xff]
  %v43 = vld [vmem:[%s2 + $0x38] sm:$0xff]
  %v44 = vld [vmem:[%s2 + $0x40] sm:$0xff]
  %v45 = vld [vmem:[%s2 + $0x48] sm:$0xff]
  %v46 = vld [vmem:[%s2 + $0x50] sm:$0xff]
  %v47 = vld [vmem:[%s2 + $0x58] sm:$0xff]
  %v48 = vld [vmem:[%s2 + $0x60] sm:$0xff]
  %v49 = vld [vmem:[%s2 + $0x68] sm:$0xff]
  %v50 = vld [vmem:[%s2 + $0x70] sm:$0xff]
  %v51 = vld [vmem:[%s2 + $0x78] sm:$0xff]
  %v52 = vld [vmem:[%s3] sm:$0xff]
  %v53 = vld [vmem:[%s3 + $0x8] sm:$0xff]
  %v54 = vld [vmem:[%s3 + $0x10] sm:$0xff]
  %v55 = vld [vmem:[%s3 + $0x18] sm:$0xff]
  %v56 = vld [vmem:[%s3 + $0x20] sm:$0xff]
  %v57 = vld [vmem:[%s3 + $0x28] sm:$0xff]
  %v58 = vld [vmem:[%s3 + $0x30] sm:$0xff]
  %v59 = vld [vmem:[%s3 + $0x38] sm:$0xff]
  %v60 = vld [vmem:[%s3 + $0x40] sm:$0xff]
  %v61 = vld [vmem:[%s3 + $0x48] sm:$0xff]
  %v62 = vld [vmem:[%s3 + $0x50] sm:$0xff]
  %v63 = vld [vmem:[%s3 + $0x58] sm:$0xff]
  %v64 = vld [vmem:[%s3 + $0x60] sm:$0xff]
  %v65 = vld [vmem:[%s3 + $0x68] sm:$0xff]
  %v66 = vld [vmem:[%s3 + $0x70] sm:$0xff]
  %v67 = vld [vmem:[%s3 + $0x78] sm:$0xff]
  %68 = vmatprep.subr.mxu0 0.0
  %69 = vmatpush1.msra.mxu0 %v67
  %70 = vmatprep.subr.mxu0 0.0
  %71 = vmatpush1.msra.mxu0 %v66
  %72 = vmatprep.subr.mxu0 0.0
  %73 = vmatpush1.msra.mxu0 %v65
  %74 = vmatprep.subr.mxu0 0.0
  %75 = vmatpush1.msra.mxu0 %v64
  %76 = vmatprep.subr.mxu0 0.0
  %77 = vmatpush1.msra.mxu0 %v63
  %78 = vmatprep.subr.mxu0 0.0
  %79 = vmatpush1.msra.mxu0 %v62
  %80 = vmatprep.subr.mxu0 0.0
  %81 = vmatpush1.msra.mxu0 %v61
  %82 = vmatprep.subr.mxu0 0.0
  %83 = vmatpush1.msra.mxu0 %v60
  %84 = vmatprep.subr.mxu0 0.0
  %85 = vmatpush1.msra.mxu0 %v59
  %86 = vmatprep.subr.mxu0 0.0
  %87 = vmatpush1.msra.mxu0 %v58
  %88 = vmatprep.subr.mxu0 0.0
  %89 = vmatpush1.msra.mxu0 %v57
  %90 = vmatprep.subr.mxu0 0.0
  %91 = vmatpush1.msra.mxu0 %v56
  %92 = vmatprep.subr.mxu0 0.0
  %93 = vmatpush1.msra.mxu0 %v55
  %94 = vmatprep.subr.mxu0 0.0
  %95 = vmatpush1.msra.mxu0 %v54
  %96 = vmatprep.subr.mxu0 0.0
  %97 = vmatpush1.msra.mxu0 %v53
  %98 = vmatprep.subr.mxu0 0.0
  %99 = vmatpush1.msra.mxu0 %v52
  %100 = vmatprep.subr.mxu0 0.0
  %101 = vmatpush2.msra.mxu0 0.0
  %102 = vmatprep.subr.mxu0 0.0
  %103 = vmatpush2.msra.mxu0 0.0
  %104 = vmatprep.subr.mxu0 0.0
  %105 = vmatpush2.msra.mxu0 0.0
  %106 = vmatprep.subr.mxu0 0.0
  %107 = vmatpush2.msra.mxu0 0.0
  %108 = vmatprep.subr.mxu0 0.0
  %109 = vmatpush2.msra.mxu0 0.0
  %110 = vmatprep.subr.mxu0 0.0
  %111 = vmatpush2.msra.mxu0 0.0
  %112 = vmatprep.subr.mxu0 0.0
  %113 = vmatpush2.msra.mxu0 0.0
  %114 = vmatprep.subr.mxu0 0.0
  %115 = vmatpush2.msra.mxu0 0.0
  %116 = vmatprep.subr.mxu0 0.0
  %117 = vmatpush2.msra.mxu0 0.0
  %118 = vmatprep.subr.mxu0 0.0
  %119 = vmatpush2.msra.mxu0 0.0
  %120 = vmatprep.subr.mxu0 0.0
  %121 = vmatpush2.msra.mxu0 0.0
  %122 = vmatprep.subr.mxu0 0.0
  %123 = vmatpush2.msra.mxu0 0.0
  %124 = vmatprep.subr.mxu0 0.0
  %125 = vmatpush2.msra.mxu0 0.0
  %126 = vmatprep.subr.mxu0 0.0
  %127 = vmatpush2.msra.mxu0 0.0
  %128 = vmatprep.subr.mxu0 0.0
  %129 = vmatpush2.msra.mxu0 0.0
  %130 = vmatprep.subr.mxu0 0.0
  %131 = vmatpush2.msra.mxu0 0.0
  %132 = vmatprep.mubr.f32.mxu0 0.0
  %133 = vmatmul.mubr.f32.gmra.mxu0 %v28
  %v134 = vpop.f32.mrf.mxu0
  %v135 = vadd.f32 0.0, %v134
  %v136 = vpop.f32.mrf.mxu0
  %137 = vmatprep.mubr.f32.mxu0 0.0
  %138 = vmatmul.mubr.f32.gmra.mxu0 %v29
  %v139 = vpop.f32.mrf.mxu0
  %v140 = vadd.f32 0.0, %v139
  %v141 = vpop.f32.mrf.mxu0
  %142 = vmatprep.mubr.f32.mxu0 0.0
  %143 = vmatmul.mubr.f32.gmra.mxu0 %v30
  %v144 = vpop.f32.mrf.mxu0
  %v145 = vadd.f32 0.0, %v144
  %v146 = vpop.f32.mrf.mxu0
  %147 = vmatprep.mubr.f32.mxu0 0.0
  %148 = vmatmul.mubr.f32.gmra.mxu0 %v31
  %v149 = vpop.f32.mrf.mxu0
  %v150 = vadd.f32 0.0, %v149
  %v151 = vpop.f32.mrf.mxu0
  %152 = vmatprep.mubr.f32.mxu0 0.0
  %153 = vmatmul.mubr.f32.gmra.mxu0 %v32
  %v154 = vpop.f32.mrf.mxu0
  %v155 = vadd.f32 0.0, %v154
  %v156 = vpop.f32.mrf.mxu0
  %157 = vmatprep.mubr.f32.mxu0 0.0
  %158 = vmatmul.mubr.f32.gmra.mxu0 %v33
  %v159 = vpop.f32.mrf.mxu0
  %v160 = vadd.f32 0.0, %v159
  %v161 = vpop.f32.mrf.mxu0
  %162 = vmatprep.mubr.f32.mxu0 0.0
  %163 = vmatmul.mubr.f32.gmra.mxu0 %v34
  %v164 = vpop.f32.mrf.mxu0
  %v165 = vadd.f32 0.0, %v164
  %v166 = vpop.f32.mrf.mxu0
  %167 = vmatprep.mubr.f32.mxu0 0.0
  %168 = vmatmul.mubr.f32.gmra.mxu0 %v35
  %v169 = vpop.f32.mrf.mxu0
  %v170 = vadd.f32 0.0, %v169
  %v171 = vpop.f32.mrf.mxu0
  %172 = vdwg.mxu0
  %173 = vmatprep.subr.mxu0 0.0
  %174 = vmatpush1.msra.mxu0 %v51
  %175 = vmatprep.subr.mxu0 0.0
  %176 = vmatpush1.msra.mxu0 %v50
  %177 = vmatprep.subr.mxu0 0.0
  %178 = vmatpush1.msra.mxu0 %v49
  %179 = vmatprep.subr.mxu0 0.0
  %180 = vmatpush1.msra.mxu0 %v48
  %181 = vmatprep.subr.mxu0 0.0
  %182 = vmatpush1.msra.mxu0 %v47
  %183 = vmatprep.subr.mxu0 0.0
  %184 = vmatpush1.msra.mxu0 %v46
  %185 = vmatprep.subr.mxu0 0.0
  %186 = vmatpush1.msra.mxu0 %v45
  %187 = vmatprep.subr.mxu0 0.0
  %188 = vmatpush1.msra.mxu0 %v44
  %189 = vmatprep.subr.mxu0 0.0
  %190 = vmatpush1.msra.mxu0 %v43
  %191 = vmatprep.subr.mxu0 0.0
  %192 = vmatpush1.msra.mxu0 %v42
  %193 = vmatprep.subr.mxu0 0.0
  %194 = vmatpush1.msra.mxu0 %v41
  %195 = vmatprep.subr.mxu0 0.0
  %196 = vmatpush1.msra.mxu0 %v40
  %197 = vmatprep.subr.mxu0 0.0
  %198 = vmatpush1.msra.mxu0 %v39
  %199 = vmatprep.subr.mxu0 0.0
  %200 = vmatpush1.msra.mxu0 %v38
  %201 = vmatprep.subr.mxu0 0.0
  %202 = vmatpush1.msra.mxu0 %v37
  %203 = vmatprep.subr.mxu0 0.0
  %204 = vmatpush1.msra.mxu0 %v36
  %205 = vmatprep.subr.mxu0 0.0
  %206 = vmatpush2.msra.mxu0 0.0
  %207 = vmatprep.subr.mxu0 0.0
  %208 = vmatpush2.msra.mxu0 0.0
  %209 = vmatprep.subr.mxu0 0.0
  %210 = vmatpush2.msra.mxu0 0.0
  %211 = vmatprep.subr.mxu0 0.0
  %212 = vmatpush2.msra.mxu0 0.0
  %213 = vmatprep.subr.mxu0 0.0
  %214 = vmatpush2.msra.mxu0 0.0
  %215 = vmatprep.subr.mxu0 0.0
  %216 = vmatpush2.msra.mxu0 0.0
  %217 = vmatprep.subr.mxu0 0.0
  %218 = vmatpush2.msra.mxu0 0.0
  %219 = vmatprep.subr.mxu0 0.0
  %220 = vmatpush2.msra.mxu0 0.0
  %221 = vmatprep.subr.mxu0 0.0
  %222 = vmatpush2.msra.mxu0 0.0
  %223 = vmatprep.subr.mxu0 0.0
  %224 = vmatpush2.msra.mxu0 0.0
  %225 = vmatprep.subr.mxu0 0.0
  %226 = vmatpush2.msra.mxu0 0.0
  %227 = vmatprep.subr.mxu0 0.0
  %228 = vmatpush2.msra.mxu0 0.0
  %229 = vmatprep.subr.mxu0 0.0
  %230 = vmatpush2.msra.mxu0 0.0
  %231 = vmatprep.subr.mxu0 0.0
  %232 = vmatpush2.msra.mxu0 0.0
  %233 = vmatprep.subr.mxu0 0.0
  %234 = vmatpush2.msra.mxu0 0.0
  %235 = vmatprep.subr.mxu0 0.0
  %236 = vmatpush2.msra.mxu0 0.0
  %237 = vmatprep.mubr.f32.mxu0 0.0
  %238 = vmatmul.mubr.f32.gmra.mxu0 %v20
  %v239 = vpop.f32.mrf.mxu0
  %v240 = vadd.f32 %v135, %v239
  %v241 = vpop.f32.mrf.mxu0
  %242 = vmatprep.mubr.f32.mxu0 0.0
  %243 = vmatmul.mubr.f32.gmra.mxu0 %v21
  %v244 = vpop.f32.mrf.mxu0
  %v245 = vadd.f32 %v140, %v244
  %v246 = vpop.f32.mrf.mxu0
  %247 = vmatprep.mubr.f32.mxu0 0.0
  %248 = vmatmul.mubr.f32.gmra.mxu0 %v22
  %v249 = vpop.f32.mrf.mxu0
  %v250 = vadd.f32 %v145, %v249
  %v251 = vpop.f32.mrf.mxu0
  %252 = vmatprep.mubr.f32.mxu0 0.0
  %253 = vmatmul.mubr.f32.gmra.mxu0 %v23
  %v254 = vpop.f32.mrf.mxu0
  %v255 = vadd.f32 %v150, %v254
  %v256 = vpop.f32.mrf.mxu0
  %257 = vmatprep.mubr.f32.mxu0 0.0
  %258 = vmatmul.mubr.f32.gmra.mxu0 %v24
  %v259 = vpop.f32.mrf.mxu0
  %v260 = vadd.f32 %v155, %v259
  %v261 = vpop.f32.mrf.mxu0
  %262 = vmatprep.mubr.f32.mxu0 0.0
  %263 = vmatmul.mubr.f32.gmra.mxu0 %v25
  %v264 = vpop.f32.mrf.mxu0
  %v265 = vadd.f32 %v160, %v264
  %v266 = vpop.f32.mrf.mxu0
  %267 = vmatprep.mubr.f32.mxu0 0.0
  %268 = vmatmul.mubr.f32.gmra.mxu0 %v26
  %v269 = vpop.f32.mrf.mxu0
  %v270 = vadd.f32 %v165, %v269
  %v271 = vpop.f32.mrf.mxu0
  %272 = vmatprep.mubr.f32.mxu0 0.0
  %273 = vmatmul.mubr.f32.gmra.mxu0 %v27
  %v274 = vpop.f32.mrf.mxu0
  %v275 = vadd.f32 %v170, %v274
  %v276 = vpop.f32.mrf.mxu0
  %277 = vdwg.mxu0
  %v278 = vld [vmem:[%s4] sm:$0x1]
  %v280 = vlaneseq
  %v281 = vshrl.u32 %v280, 7
  %v282 = vsub.s32 0, %v281
  %v283 = vrot.slane %v278, %v282
  %v285 = vadd.f32 %v240, %v283
  %v286 = vadd.f32 %v245, %v283
  %v287 = vadd.f32 %v250, %v283
  %v288 = vadd.f32 %v255, %v283
  %v289 = vadd.f32 %v260, %v283
  %v290 = vadd.f32 %v265, %v283
  %v291 = vadd.f32 %v270, %v283
  %v292 = vadd.f32 %v275, %v283
  %293 = vst [vmem:[%s5] sm:$0xff] %v285
  %294 = vst [vmem:[%s5 + $0x8] sm:$0xff] %v286
  %295 = vst [vmem:[%s5 + $0x10] sm:$0xff] %v287
  %296 = vst [vmem:[%s5 + $0x18] sm:$0xff] %v288
  %297 = vst [vmem:[%s5 + $0x20] sm:$0xff] %v289
  %298 = vst [vmem:[%s5 + $0x28] sm:$0xff] %v290
  %299 = vst [vmem:[%s5 + $0x30] sm:$0xff] %v291
  %300 = vst [vmem:[%s5 + $0x38] sm:$0xff] %v292
  // Predicated region
  $region22: #{wordseg_forward.13} parent=0 // pred_check
    _
  $region23: #{wordseg_forward.13} parent=0 // pred_check_branch
    %302 = sbr.rel (0) target = $region25
  $region24: #{wordseg_forward.13} parent=0 // pred_region
    _
  $region25: #{wordseg_forward.13} parent=0 // pred_fallthru
    _
  // Predicated region
  $region26: #{wordseg_forward.13} parent=0 // pred_check
    _
  $region27: #{wordseg_forward.13} parent=0 // pred_check_branch
    %304 = sbr.rel (0) target = $region29
  $region28: #{wordseg_forward.13} parent=0 // pred_region
    _
  $region29: #{wordseg_forward.13} parent=0 // pred_fallthru
    _

// kernel: wordseg_forward.9
$region0: #{wordseg_forward.9}
  #allocation0 [shape = 'u32[]', space=smem, size = 0x4, offset = 0x4, fixed_abs, tag = 'smem constant byte address 0x4 - core index']
  #allocation1 [shape = 'u32[144,128]{1,0:T(1,128)}', space=vmem, size = 0x12000, scoped, tag = 'internal scratch']
  %s0 = inlined_call_operand.vmem [shape: f32[64,128], index: 0, kind: input, shape index: {}]
  %s1 = inlined_call_operand.vmem [shape: f32[64,128], index: 1, kind: input, shape index: {}]
  %s2 = inlined_call_operand.vmem [shape: f32[128,1024], index: 2, kind: input, shape index: {}]
  %s3 = inlined_call_operand.vmem [shape: f32[128,1024], index: 3, kind: input, shape index: {}]
  %s4 = inlined_call_operand.vmem [shape: f32[1,1024], index: 4, kind: input, shape index: {}]
  %s5 = inlined_call_operand.vmem [shape: f32[64,1024], index: 5, kind: output, shape index: {}]
  %s6 = sld [smem:[#allocation0]]
  $region30: #{wordseg_forward.9} parent=0
    _
  %s8 = ssub.s32 1, %s6
  %s9 = scalar_select 0, %s8, %s6
  // Predicated region
  $region2: #{wordseg_forward.9} parent=0 // pred_check
    _
  $region3: #{wordseg_forward.9} parent=0 // pred_check_branch
    %11 = sbr.rel (0) target = $region5
  $region4: #{wordseg_forward.9} parent=0 // pred_region
    _
  $region5: #{wordseg_forward.9} parent=0 // pred_fallthru
    _
  // Predicated region
  $region6: #{wordseg_forward.9} parent=0 // pred_check
    _
  $region7: #{wordseg_forward.9} parent=0 // pred_check_branch
    %13 = sbr.rel (0) target = $region9
  $region8: #{wordseg_forward.9} parent=0 // pred_region
    _
  $region9: #{wordseg_forward.9} parent=0 // pred_fallthru
    _
  // Predicated region
  $region10: #{wordseg_forward.9} parent=0 // pred_check
    _
  $region11: #{wordseg_forward.9} parent=0 // pred_check_branch
    %15 = sbr.rel (0) target = $region13
  $region12: #{wordseg_forward.9} parent=0 // pred_region
    _
  $region13: #{wordseg_forward.9} parent=0 // pred_fallthru
    _
  // Predicated region
  $region14: #{wordseg_forward.9} parent=0 // pred_check
    _
  $region15: #{wordseg_forward.9} parent=0 // pred_check_branch
    %17 = sbr.rel (0) target = $region17
  $region16: #{wordseg_forward.9} parent=0 // pred_region
    _
  $region17: #{wordseg_forward.9} parent=0 // pred_fallthru
    _
  // Predicated region
  $region18: #{wordseg_forward.9} parent=0 // pred_check
    _
  $region19: #{wordseg_forward.9} parent=0 // pred_check_branch
    %19 = sbr.rel (0) target = $region21
  $region20: #{wordseg_forward.9} parent=0 // pred_region
    _
  $region21: #{wordseg_forward.9} parent=0 // pred_fallthru
    _
  %v20 = vld [vmem:[%s0] sm:$0xff]
  %v21 = vld [vmem:[%s0 + $0x8] sm:$0xff]
  %v22 = vld [vmem:[%s0 + $0x10] sm:$0xff]
  %v23 = vld [vmem:[%s0 + $0x18] sm:$0xff]
  %v24 = vld [vmem:[%s0 + $0x20] sm:$0xff]
  %v25 = vld [vmem:[%s0 + $0x28] sm:$0xff]
  %v26 = vld [vmem:[%s0 + $0x30] sm:$0xff]
  %v27 = vld [vmem:[%s0 + $0x38] sm:$0xff]
  %v28 = vld [vmem:[%s1] sm:$0xff]
  %v29 = vld [vmem:[%s1 + $0x8] sm:$0xff]
  %v30 = vld [vmem:[%s1 + $0x10] sm:$0xff]
  %v31 = vld [vmem:[%s1 + $0x18] sm:$0xff]
  %v32 = vld [vmem:[%s1 + $0x20] sm:$0xff]
  %v33 = vld [vmem:[%s1 + $0x28] sm:$0xff]
  %v34 = vld [vmem:[%s1 + $0x30] sm:$0xff]
  %v35 = vld [vmem:[%s1 + $0x38] sm:$0xff]
  %v36 = vld [vmem:[%s2] sm:$0xff]
  %v37 = vld [vmem:[%s2 + $0x8] sm:$0xff]
  %v38 = vld [vmem:[%s2 + $0x10] sm:$0xff]
  %v39 = vld [vmem:[%s2 + $0x18] sm:$0xff]
  %v40 = vld [vmem:[%s2 + $0x20] sm:$0xff]
  %v41 = vld [vmem:[%s2 + $0x28] sm:$0xff]
  %v42 = vld [vmem:[%s2 + $0x30] sm:$0xff]
  %v43 = vld [vmem:[%s2 + $0x38] sm:$0xff]
  %v44 = vld [vmem:[%s2 + $0x40] sm:$0xff]
  %v45 = vld [vmem:[%s2 + $0x48] sm:$0xff]
  %v46 = vld [vmem:[%s2 + $0x50] sm:$0xff]
  %v47 = vld [vmem:[%s2 + $0x58] sm:$0xff]
  %v48 = vld [vmem:[%s2 + $0x60] sm:$0xff]
  %v49 = vld [vmem:[%s2 + $0x68] sm:$0xff]
  %v50 = vld [vmem:[%s2 + $0x70] sm:$0xff]
  %v51 = vld [vmem:[%s2 + $0x78] sm:$0xff]
  %v52 = vld [vmem:[%s2 + $0x80] sm:$0xff]
  %v53 = vld [vmem:[%s2 + $0x88] sm:$0xff]
  %v54 = vld [vmem:[%s2 + $0x90] sm:$0xff]
  %v55 = vld [vmem:[%s2 + $0x98] sm:$0xff]
  %v56 = vld [vmem:[%s2 + $0xa0] sm:$0xff]
  %v57 = vld [vmem:[%s2 + $0xa8] sm:$0xff]
  %v58 = vld [vmem:[%s2 + $0xb0] sm:$0xff]
  %v59 = vld [vmem:[%s2 + $0xb8] sm:$0xff]
  %v60 = vld [vmem:[%s2 + $0xc0] sm:$0xff]
  %v61 = vld [vmem:[%s2 + $0xc8] sm:$0xff]
  %v62 = vld [vmem:[%s2 + $0xd0] sm:$0xff]
  %v63 = vld [vmem:[%s2 + $0xd8] sm:$0xff]
  %v64 = vld [vmem:[%s2 + $0xe0] sm:$0xff]
  %v65 = vld [vmem:[%s2 + $0xe8] sm:$0xff]
  %v66 = vld [vmem:[%s2 + $0xf0] sm:$0xff]
  %v67 = vld [vmem:[%s2 + $0xf8] sm:$0xff]
  %v68 = vld [vmem:[%s2 + $0x100] sm:$0xff]
  %v69 = vld [vmem:[%s2 + $0x108] sm:$0xff]
  %v70 = vld [vmem:[%s2 + $0x110] sm:$0xff]
  %v71 = vld [vmem:[%s2 + $0x118] sm:$0xff]
  %v72 = vld [vmem:[%s2 + $0x120] sm:$0xff]
  %v73 = vld [vmem:[%s2 + $0x128] sm:$0xff]
  %v74 = vld [vmem:[%s2 + $0x130] sm:$0xff]
  %v75 = vld [vmem:[%s2 + $0x138] sm:$0xff]
  %v76 = vld [vmem:[%s2 + $0x140] sm:$0xff]
  %v77 = vld [vmem:[%s2 + $0x148] sm:$0xff]
  %v78 = vld [vmem:[%s2 + $0x150] sm:$0xff]
  %v79 = vld [vmem:[%s2 + $0x158] sm:$0xff]
  %v80 = vld [vmem:[%s2 + $0x160] sm:$0xff]
  %v81 = vld [vmem:[%s2 + $0x168] sm:$0xff]
  %v82 = vld [vmem:[%s2 + $0x170] sm:$0xff]
  %v83 = vld [vmem:[%s2 + $0x178] sm:$0xff]
  %v84 = vld [vmem:[%s2 + $0x180] sm:$0xff]
  %v85 = vld [vmem:[%s2 + $0x188] sm:$0xff]
  %v86 = vld [vmem:[%s2 + $0x190] sm:$0xff]
  %v87 = vld [vmem:[%s2 + $0x198] sm:$0xff]
  %v88 = vld [vmem:[%s2 + $0x1a0] sm:$0xff]
  %v89 = vld [vmem:[%s2 + $0x1a8] sm:$0xff]
  %v90 = vld [vmem:[%s2 + $0x1b0] sm:$0xff]
  %v91 = vld [vmem:[%s2 + $0x1b8] sm:$0xff]
  %v92 = vld [vmem:[%s2 + $0x1c0] sm:$0xff]
  %v93 = vld [vmem:[%s2 + $0x1c8] sm:$0xff]
  %v94 = vld [vmem:[%s2 + $0x1d0] sm:$0xff]
  %v95 = vld [vmem:[%s2 + $0x1d8] sm:$0xff]
  %v96 = vld [vmem:[%s2 + $0x1e0] sm:$0xff]
  %v97 = vld [vmem:[%s2 + $0x1e8] sm:$0xff]
  %v98 = vld [vmem:[%s2 + $0x1f0] sm:$0xff]
  %v99 = vld [vmem:[%s2 + $0x1f8] sm:$0xff]
  %v100 = vld [vmem:[%s2 + $0x200] sm:$0xff]
  %v101 = vld [vmem:[%s2 + $0x208] sm:$0xff]
  %v102 = vld [vmem:[%s2 + $0x210] sm:$0xff]
  %v103 = vld [vmem:[%s2 + $0x218] sm:$0xff]
  %v104 = vld [vmem:[%s2 + $0x220] sm:$0xff]
  %v105 = vld [vmem:[%s2 + $0x228] sm:$0xff]
  %v106 = vld [vmem:[%s2 + $0x230] sm:$0xff]
  %v107 = vld [vmem:[%s2 + $0x238] sm:$0xff]
  %v108 = vld [vmem:[%s2 + $0x240] sm:$0xff]
  %v109 = vld [vmem:[%s2 + $0x248] sm:$0xff]
  %v110 = vld [vmem:[%s2 + $0x250] sm:$0xff]
  %v111 = vld [vmem:[%s2 + $0x258] sm:$0xff]
  %v112 = vld [vmem:[%s2 + $0x260] sm:$0xff]
  %v113 = vld [vmem:[%s2 + $0x268] sm:$0xff]
  %v114 = vld [vmem:[%s2 + $0x270] sm:$0xff]
  %v115 = vld [vmem:[%s2 + $0x278] sm:$0xff]
  %v116 = vld [vmem:[%s2 + $0x280] sm:$0xff]
  %v117 = vld [vmem:[%s2 + $0x288] sm:$0xff]
  %v118 = vld [vmem:[%s2 + $0x290] sm:$0xff]
  %v119 = vld [vmem:[%s2 + $0x298] sm:$0xff]
  %v120 = vld [vmem:[%s2 + $0x2a0] sm:$0xff]
  %v121 = vld [vmem:[%s2 + $0x2a8] sm:$0xff]
  %v122 = vld [vmem:[%s2 + $0x2b0] sm:$0xff]
  %v123 = vld [vmem:[%s2 + $0x2b8] sm:$0xff]
  %v124 = vld [vmem:[%s2 + $0x2c0] sm:$0xff]
  %v125 = vld [vmem:[%s2 + $0x2c8] sm:$0xff]
  %v126 = vld [vmem:[%s2 + $0x2d0] sm:$0xff]
  %v127 = vld [vmem:[%s2 + $0x2d8] sm:$0xff]
  %v128 = vld [vmem:[%s2 + $0x2e0] sm:$0xff]
  %v129 = vld [vmem:[%s2 + $0x2e8] sm:$0xff]
  %v130 = vld [vmem:[%s2 + $0x2f0] sm:$0xff]
  %v131 = vld [vmem:[%s2 + $0x2f8] sm:$0xff]
  %v132 = vld [vmem:[%s2 + $0x300] sm:$0xff]
  %v133 = vld [vmem:[%s2 + $0x308] sm:$0xff]
  %v134 = vld [vmem:[%s2 + $0x310] sm:$0xff]
  %v135 = vld [vmem:[%s2 + $0x318] sm:$0xff]
  %v136 = vld [vmem:[%s2 + $0x320] sm:$0xff]
  %v137 = vld [vmem:[%s2 + $0x328] sm:$0xff]
  %v138 = vld [vmem:[%s2 + $0x330] sm:$0xff]
  %v139 = vld [vmem:[%s2 + $0x338] sm:$0xff]
  %v140 = vld [vmem:[%s2 + $0x340] sm:$0xff]
  %v141 = vld [vmem:[%s2 + $0x348] sm:$0xff]
  %v142 = vld [vmem:[%s2 + $0x350] sm:$0xff]
  %v143 = vld [vmem:[%s2 + $0x358] sm:$0xff]
  %v144 = vld [vmem:[%s2 + $0x360] sm:$0xff]
  %v145 = vld [vmem:[%s2 + $0x368] sm:$0xff]
  %v146 = vld [vmem:[%s2 + $0x370] sm:$0xff]
  %v147 = vld [vmem:[%s2 + $0x378] sm:$0xff]
  %v148 = vld [vmem:[%s2 + $0x380] sm:$0xff]
  %v149 = vld [vmem:[%s2 + $0x388] sm:$0xff]
  %v150 = vld [vmem:[%s2 + $0x390] sm:$0xff]
  %v151 = vld [vmem:[%s2 + $0x398] sm:$0xff]
  %v152 = vld [vmem:[%s2 + $0x3a0] sm:$0xff]
  %v153 = vld [vmem:[%s2 + $0x3a8] sm:$0xff]
  %v154 = vld [vmem:[%s2 + $0x3b0] sm:$0xff]
  %v155 = vld [vmem:[%s2 + $0x3b8] sm:$0xff]
  %v156 = vld [vmem:[%s2 + $0x3c0] sm:$0xff]
  %v157 = vld [vmem:[%s2 + $0x3c8] sm:$0xff]
  %v158 = vld [vmem:[%s2 + $0x3d0] sm:$0xff]
  %v159 = vld [vmem:[%s2 + $0x3d8] sm:$0xff]
  %v160 = vld [vmem:[%s2 + $0x3e0] sm:$0xff]
  %v161 = vld [vmem:[%s2 + $0x3e8] sm:$0xff]
  %v162 = vld [vmem:[%s2 + $0x3f0] sm:$0xff]
  %v163 = vld [vmem:[%s2 + $0x3f8] sm:$0xff]
  %v164 = vld [vmem:[%s3] sm:$0xff]
  %v165 = vld [vmem:[%s3 + $0x8] sm:$0xff]
  %v166 = vld [vmem:[%s3 + $0x10] sm:$0xff]
  %v167 = vld [vmem:[%s3 + $0x18] sm:$0xff]
  %v168 = vld [vmem:[%s3 + $0x20] sm:$0xff]
  %v169 = vld [vmem:[%s3 + $0x28] sm:$0xff]
  %v170 = vld [vmem:[%s3 + $0x30] sm:$0xff]
  %v171 = vld [vmem:[%s3 + $0x38] sm:$0xff]
  %v172 = vld [vmem:[%s3 + $0x40] sm:$0xff]
  %v173 = vld [vmem:[%s3 + $0x48] sm:$0xff]
  %v174 = vld [vmem:[%s3 + $0x50] sm:$0xff]
  %v175 = vld [vmem:[%s3 + $0x58] sm:$0xff]
  %v176 = vld [vmem:[%s3 + $0x60] sm:$0xff]
  %v177 = vld [vmem:[%s3 + $0x68] sm:$0xff]
  %v178 = vld [vmem:[%s3 + $0x70] sm:$0xff]
  %v179 = vld [vmem:[%s3 + $0x78] sm:$0xff]
  %v180 = vld [vmem:[%s3 + $0x80] sm:$0xff]
  %v181 = vld [vmem:[%s3 + $0x88] sm:$0xff]
  %v182 = vld [vmem:[%s3 + $0x90] sm:$0xff]
  %v183 = vld [vmem:[%s3 + $0x98] sm:$0xff]
  %v184 = vld [vmem:[%s3 + $0xa0] sm:$0xff]
  %v185 = vld [vmem:[%s3 + $0xa8] sm:$0xff]
  %v186 = vld [vmem:[%s3 + $0xb0] sm:$0xff]
  %v187 = vld [vmem:[%s3 + $0xb8] sm:$0xff]
  %v188 = vld [vmem:[%s3 + $0xc0] sm:$0xff]
  %v189 = vld [vmem:[%s3 + $0xc8] sm:$0xff]
  %v190 = vld [vmem:[%s3 + $0xd0] sm:$0xff]
  %v191 = vld [vmem:[%s3 + $0xd8] sm:$0xff]
  %v192 = vld [vmem:[%s3 + $0xe0] sm:$0xff]
  %v193 = vld [vmem:[%s3 + $0xe8] sm:$0xff]
  %v194 = vld [vmem:[%s3 + $0xf0] sm:$0xff]
  %v195 = vld [vmem:[%s3 + $0xf8] sm:$0xff]
  %v196 = vld [vmem:[%s3 + $0x100] sm:$0xff]
  %v197 = vld [vmem:[%s3 + $0x108] sm:$0xff]
  %v198 = vld [vmem:[%s3 + $0x110] sm:$0xff]
  %v199 = vld [vmem:[%s3 + $0x118] sm:$0xff]
  %v200 = vld [vmem:[%s3 + $0x120] sm:$0xff]
  %v201 = vld [vmem:[%s3 + $0x128] sm:$0xff]
  %v202 = vld [vmem:[%s3 + $0x130] sm:$0xff]
  %v203 = vld [vmem:[%s3 + $0x138] sm:$0xff]
  %v204 = vld [vmem:[%s3 + $0x140] sm:$0xff]
  %v205 = vld [vmem:[%s3 + $0x148] sm:$0xff]
  %v206 = vld [vmem:[%s3 + $0x150] sm:$0xff]
  %v207 = vld [vmem:[%s3 + $0x158] sm:$0xff]
  %v208 = vld [vmem:[%s3 + $0x160] sm:$0xff]
  %v209 = vld [vmem:[%s3 + $0x168] sm:$0xff]
  %v210 = vld [vmem:[%s3 + $0x170] sm:$0xff]
  %v211 = vld [vmem:[%s3 + $0x178] sm:$0xff]
  %v212 = vld [vmem:[%s3 + $0x180] sm:$0xff]
  %v213 = vld [vmem:[%s3 + $0x188] sm:$0xff]
  %v214 = vld [vmem:[%s3 + $0x190] sm:$0xff]
  %v215 = vld [vmem:[%s3 + $0x198] sm:$0xff]
  %v216 = vld [vmem:[%s3 + $0x1a0] sm:$0xff]
  %v217 = vld [vmem:[%s3 + $0x1a8] sm:$0xff]
  %v218 = vld [vmem:[%s3 + $0x1b0] sm:$0xff]
  %v219 = vld [vmem:[%s3 + $0x1b8] sm:$0xff]
  %v220 = vld [vmem:[%s3 + $0x1c0] sm:$0xff]
  %v221 = vld [vmem:[%s3 + $0x1c8] sm:$0xff]
  %v222 = vld [vmem:[%s3 + $0x1d0] sm:$0xff]
  %v223 = vld [vmem:[%s3 + $0x1d8] sm:$0xff]
  %v224 = vld [vmem:[%s3 + $0x1e0] sm:$0xff]
  %v225 = vld [vmem:[%s3 + $0x1e8] sm:$0xff]
  %v226 = vld [vmem:[%s3 + $0x1f0] sm:$0xff]
  %v227 = vld [vmem:[%s3 + $0x1f8] sm:$0xff]
  %v228 = vld [vmem:[%s3 + $0x200] sm:$0xff]
  %v229 = vld [vmem:[%s3 + $0x208] sm:$0xff]
  %v230 = vld [vmem:[%s3 + $0x210] sm:$0xff]
  %v231 = vld [vmem:[%s3 + $0x218] sm:$0xff]
  %v232 = vld [vmem:[%s3 + $0x220] sm:$0xff]
  %v233 = vld [vmem:[%s3 + $0x228] sm:$0xff]
  %v234 = vld [vmem:[%s3 + $0x230] sm:$0xff]
  %v235 = vld [vmem:[%s3 + $0x238] sm:$0xff]
  %v236 = vld [vmem:[%s3 + $0x240] sm:$0xff]
  %v237 = vld [vmem:[%s3 + $0x248] sm:$0xff]
  %v238 = vld [vmem:[%s3 + $0x250] sm:$0xff]
  %v239 = vld [vmem:[%s3 + $0x258] sm:$0xff]
  %v240 = vld [vmem:[%s3 + $0x260] sm:$0xff]
  %v241 = vld [vmem:[%s3 + $0x268] sm:$0xff]
  %v242 = vld [vmem:[%s3 + $0x270] sm:$0xff]
  %v243 = vld [vmem:[%s3 + $0x278] sm:$0xff]
  %v244 = vld [vmem:[%s3 + $0x280] sm:$0xff]
  %v245 = vld [vmem:[%s3 + $0x288] sm:$0xff]
  %v246 = vld [vmem:[%s3 + $0x290] sm:$0xff]
  %v247 = vld [vmem:[%s3 + $0x298] sm:$0xff]
  %v248 = vld [vmem:[%s3 + $0x2a0] sm:$0xff]
  %v249 = vld [vmem:[%s3 + $0x2a8] sm:$0xff]
  %v250 = vld [vmem:[%s3 + $0x2b0] sm:$0xff]
  %v251 = vld [vmem:[%s3 + $0x2b8] sm:$0xff]
  %v252 = vld [vmem:[%s3 + $0x2c0] sm:$0xff]
  %v253 = vld [vmem:[%s3 + $0x2c8] sm:$0xff]
  %v254 = vld [vmem:[%s3 + $0x2d0] sm:$0xff]
  %v255 = vld [vmem:[%s3 + $0x2d8] sm:$0xff]
  %v256 = vld [vmem:[%s3 + $0x2e0] sm:$0xff]
  %v257 = vld [vmem:[%s3 + $0x2e8] sm:$0xff]
  %v258 = vld [vmem:[%s3 + $0x2f0] sm:$0xff]
  %v259 = vld [vmem:[%s3 + $0x2f8] sm:$0xff]
  %v260 = vld [vmem:[%s3 + $0x300] sm:$0xff]
  %v261 = vld [vmem:[%s3 + $0x308] sm:$0xff]
  %v262 = vld [vmem:[%s3 + $0x310] sm:$0xff]
  %v263 = vld [vmem:[%s3 + $0x318] sm:$0xff]
  %v264 = vld [vmem:[%s3 + $0x320] sm:$0xff]
  %v265 = vld [vmem:[%s3 + $0x328] sm:$0xff]
  %v266 = vld [vmem:[%s3 + $0x330] sm:$0xff]
  %v267 = vld [vmem:[%s3 + $0x338] sm:$0xff]
  %v268 = vld [vmem:[%s3 + $0x340] sm:$0xff]
  %v269 = vld [vmem:[%s3 + $0x348] sm:$0xff]
  %v270 = vld [vmem:[%s3 + $0x350] sm:$0xff]
  %v271 = vld [vmem:[%s3 + $0x358] sm:$0xff]
  %v272 = vld [vmem:[%s3 + $0x360] sm:$0xff]
  %v273 = vld [vmem:[%s3 + $0x368] sm:$0xff]
  %v274 = vld [vmem:[%s3 + $0x370] sm:$0xff]
  %v275 = vld [vmem:[%s3 + $0x378] sm:$0xff]
  %v276 = vld [vmem:[%s3 + $0x380] sm:$0xff]
  %v277 = vld [vmem:[%s3 + $0x388] sm:$0xff]
  %v278 = vld [vmem:[%s3 + $0x390] sm:$0xff]
  %v279 = vld [vmem:[%s3 + $0x398] sm:$0xff]
  %v280 = vld [vmem:[%s3 + $0x3a0] sm:$0xff]
  %v281 = vld [vmem:[%s3 + $0x3a8] sm:$0xff]
  %v282 = vld [vmem:[%s3 + $0x3b0] sm:$0xff]
  %v283 = vld [vmem:[%s3 + $0x3b8] sm:$0xff]
  %v284 = vld [vmem:[%s3 + $0x3c0] sm:$0xff]
  %v285 = vld [vmem:[%s3 + $0x3c8] sm:$0xff]
  %v286 = vld [vmem:[%s3 + $0x3d0] sm:$0xff]
  %v287 = vld [vmem:[%s3 + $0x3d8] sm:$0xff]
  %v288 = vld [vmem:[%s3 + $0x3e0] sm:$0xff]
  %v289 = vld [vmem:[%s3 + $0x3e8] sm:$0xff]
  %v290 = vld [vmem:[%s3 + $0x3f0] sm:$0xff]
  %v291 = vld [vmem:[%s3 + $0x3f8] sm:$0xff]
  %292 = vmatprep.subr.mxu0 %v285
  %293 = vmatpush1.msra.mxu0 %v284
  %294 = vmatprep.subr.mxu0 %v277
  %295 = vmatpush1.msra.mxu0 %v276
  %296 = vmatprep.subr.mxu0 %v269
  %297 = vmatpush1.msra.mxu0 %v268
  %298 = vmatprep.subr.mxu0 %v261
  %299 = vmatpush1.msra.mxu0 %v260
  %300 = vmatprep.subr.mxu0 %v253
  %301 = vmatpush1.msra.mxu0 %v252
  %302 = vmatprep.subr.mxu0 %v245
  %303 = vmatpush1.msra.mxu0 %v244
  %304 = vmatprep.subr.mxu0 %v237
  %305 = vmatpush1.msra.mxu0 %v236
  %306 = vmatprep.subr.mxu0 %v229
  %307 = vmatpush1.msra.mxu0 %v228
  %308 = vmatprep.subr.mxu0 %v221
  %309 = vmatpush1.msra.mxu0 %v220
  %310 = vmatprep.subr.mxu0 %v213
  %311 = vmatpush1.msra.mxu0 %v212
  %312 = vmatprep.subr.mxu0 %v205
  %313 = vmatpush1.msra.mxu0 %v204
  %314 = vmatprep.subr.mxu0 %v197
  %315 = vmatpush1.msra.mxu0 %v196
  %316 = vmatprep.subr.mxu0 %v189
  %317 = vmatpush1.msra.mxu0 %v188
  %318 = vmatprep.subr.mxu0 %v181
  %319 = vmatpush1.msra.mxu0 %v180
  %320 = vmatprep.subr.mxu0 %v173
  %321 = vmatpush1.msra.mxu0 %v172
  %322 = vmatprep.subr.mxu0 %v165
  %323 = vmatpush1.msra.mxu0 %v164
  %324 = vmatprep.subr.mxu0 0.0
  %325 = vmatpush2.msra.mxu0 0.0
  %326 = vmatprep.subr.mxu0 0.0
  %327 = vmatpush2.msra.mxu0 0.0
  %328 = vmatprep.subr.mxu0 0.0
  %329 = vmatpush2.msra.mxu0 0.0
  %330 = vmatprep.subr.mxu0 0.0
  %331 = vmatpush2.msra.mxu0 0.0
  %332 = vmatprep.subr.mxu0 0.0
  %333 = vmatpush2.msra.mxu0 0.0
  %334 = vmatprep.subr.mxu0 0.0
  %335 = vmatpush2.msra.mxu0 0.0
  %336 = vmatprep.subr.mxu0 0.0
  %337 = vmatpush2.msra.mxu0 0.0
  %338 = vmatprep.subr.mxu0 0.0
  %339 = vmatpush2.msra.mxu0 0.0
  %340 = vmatprep.subr.mxu0 0.0
  %341 = vmatpush2.msra.mxu0 0.0
  %342 = vmatprep.subr.mxu0 0.0
  %343 = vmatpush2.msra.mxu0 0.0
  %344 = vmatprep.subr.mxu0 0.0
  %345 = vmatpush2.msra.mxu0 0.0
  %346 = vmatprep.subr.mxu0 0.0
  %347 = vmatpush2.msra.mxu0 0.0
  %348 = vmatprep.subr.mxu0 0.0
  %349 = vmatpush2.msra.mxu0 0.0
  %350 = vmatprep.subr.mxu0 0.0
  %351 = vmatpush2.msra.mxu0 0.0
  %352 = vmatprep.subr.mxu0 0.0
  %353 = vmatpush2.msra.mxu0 0.0
  %354 = vmatprep.subr.mxu0 0.0
  %355 = vmatpush2.msra.mxu0 0.0
  %356 = vmatprep.mubr.f32.mxu0 0.0
  %357 = vmatmul.mubr.f32.gmra.mxu0 %v28
  %v358 = vpop.f32.mrf.mxu0
  %v359 = vadd.f32 0.0, %v358
  %v360 = vpop.f32.mrf.mxu0
  %v361 = vadd.f32 0.0, %v360
  %362 = vmatprep.mubr.f32.mxu0 0.0
  %363 = vmatmul.mubr.f32.gmra.mxu0 %v29
  %v364 = vpop.f32.mrf.mxu0
  %v365 = vadd.f32 0.0, %v364
  %v366 = vpop.f32.mrf.mxu0
  %v367 = vadd.f32 0.0, %v366
  %368 = vmatprep.mubr.f32.mxu0 0.0
  %369 = vmatmul.mubr.f32.gmra.mxu0 %v30
  %v370 = vpop.f32.mrf.mxu0
  %v371 = vadd.f32 0.0, %v370
  %v372 = vpop.f32.mrf.mxu0
  %v373 = vadd.f32 0.0, %v372
  %374 = vmatprep.mubr.f32.mxu0 0.0
  %375 = vmatmul.mubr.f32.gmra.mxu0 %v31
  %v376 = vpop.f32.mrf.mxu0
  %v377 = vadd.f32 0.0, %v376
  %v378 = vpop.f32.mrf.mxu0
  %v379 = vadd.f32 0.0, %v378
  %380 = vmatprep.mubr.f32.mxu0 0.0
  %381 = vmatmul.mubr.f32.gmra.mxu0 %v32
  %v382 = vpop.f32.mrf.mxu0
  %v383 = vadd.f32 0.0, %v382
  %v384 = vpop.f32.mrf.mxu0
  %v385 = vadd.f32 0.0, %v384
  %386 = vmatprep.mubr.f32.mxu0 0.0
  %387 = vmatmul.mubr.f32.gmra.mxu0 %v33
  %v388 = vpop.f32.mrf.mxu0
  %v389 = vadd.f32 0.0, %v388
  %v390 = vpop.f32.mrf.mxu0
  %v391 = vadd.f32 0.0, %v390
  %392 = vmatprep.mubr.f32.mxu0 0.0
  %393 = vmatmul.mubr.f32.gmra.mxu0 %v34
  %v394 = vpop.f32.mrf.mxu0
  %v395 = vadd.f32 0.0, %v394
  %v396 = vpop.f32.mrf.mxu0
  %v397 = vadd.f32 0.0, %v396
  %398 = vmatprep.mubr.f32.mxu0 0.0
  %399 = vmatmul.mubr.f32.gmra.mxu0 %v35
  %v400 = vpop.f32.mrf.mxu0
  %v401 = vadd.f32 0.0, %v400
  %v402 = vpop.f32.mrf.mxu0
  %v403 = vadd.f32 0.0, %v402
  %404 = vdwg.mxu0
  %405 = vmatprep.subr.mxu0 %v287
  %406 = vmatpush1.msra.mxu0 %v286
  %407 = vmatprep.subr.mxu0 %v279
  %408 = vmatpush1.msra.mxu0 %v278
  %409 = vmatprep.subr.mxu0 %v271
  %410 = vmatpush1.msra.mxu0 %v270
  %411 = vmatprep.subr.mxu0 %v263
  %412 = vmatpush1.msra.mxu0 %v262
  %413 = vmatprep.subr.mxu0 %v255
  %414 = vmatpush1.msra.mxu0 %v254
  %415 = vmatprep.subr.mxu0 %v247
  %416 = vmatpush1.msra.mxu0 %v246
  %417 = vmatprep.subr.mxu0 %v239
  %418 = vmatpush1.msra.mxu0 %v238
  %419 = vmatprep.subr.mxu0 %v231
  %420 = vmatpush1.msra.mxu0 %v230
  %421 = vmatprep.subr.mxu0 %v223
  %422 = vmatpush1.msra.mxu0 %v222
  %423 = vmatprep.subr.mxu0 %v215
  %424 = vmatpush1.msra.mxu0 %v214
  %425 = vmatprep.subr.mxu0 %v207
  %426 = vmatpush1.msra.mxu0 %v206
  %427 = vmatprep.subr.mxu0 %v199
  %428 = vmatpush1.msra.mxu0 %v198
  %429 = vmatprep.subr.mxu0 %v191
  %430 = vmatpush1.msra.mxu0 %v190
  %431 = vmatprep.subr.mxu0 %v183
  %432 = vmatpush1.msra.mxu0 %v182
  %433 = vmatprep.subr.mxu0 %v175
  %434 = vmatpush1.msra.mxu0 %v174
  %435 = vmatprep.subr.mxu0 %v167
  %436 = vmatpush1.msra.mxu0 %v166
  %437 = vmatprep.subr.mxu0 0.0
  %438 = vmatpush2.msra.mxu0 0.0
  %439 = vmatprep.subr.mxu0 0.0
  %440 = vmatpush2.msra.mxu0 0.0
  %441 = vmatprep.subr.mxu0 0.0
  %442 = vmatpush2.msra.mxu0 0.0
  %443 = vmatprep.subr.mxu0 0.0
  %444 = vmatpush2.msra.mxu0 0.0
  %445 = vmatprep.subr.mxu0 0.0
  %446 = vmatpush2.msra.mxu0 0.0
  %447 = vmatprep.subr.mxu0 0.0
  %448 = vmatpush2.msra.mxu0 0.0
  %449 = vmatprep.subr.mxu0 0.0
  %450 = vmatpush2.msra.mxu0 0.0
  %451 = vmatprep.subr.mxu0 0.0
  %452 = vmatpush2.msra.mxu0 0.0
  %453 = vmatprep.subr.mxu0 0.0
  %454 = vmatpush2.msra.mxu0 0.0
  %455 = vmatprep.subr.mxu0 0.0
  %456 = vmatpush2.msra.mxu0 0.0
  %457 = vmatprep.subr.mxu0 0.0
  %458 = vmatpush2.msra.mxu0 0.0
  %459 = vmatprep.subr.mxu0 0.0
  %460 = vmatpush2.msra.mxu0 0.0
  %461 = vmatprep.subr.mxu0 0.0
  %462 = vmatpush2.msra.mxu0 0.0
  %463 = vmatprep.subr.mxu0 0.0
  %464 = vmatpush2.msra.mxu0 0.0
  %465 = vmatprep.subr.mxu0 0.0
  %466 = vmatpush2.msra.mxu0 0.0
  %467 = vmatprep.subr.mxu0 0.0
  %468 = vmatpush2.msra.mxu0 0.0
  %469 = vmatprep.mubr.f32.mxu0 0.0
  %470 = vmatmul.mubr.f32.gmra.mxu0 %v28
  %v471 = vpop.f32.mrf.mxu0
  %v472 = vadd.f32 0.0, %v471
  %v473 = vpop.f32.mrf.mxu0
  %v474 = vadd.f32 0.0, %v473
  %475 = vmatprep.mubr.f32.mxu0 0.0
  %476 = vmatmul.mubr.f32.gmra.mxu0 %v29
  %v477 = vpop.f32.mrf.mxu0
  %v478 = vadd.f32 0.0, %v477
  %v479 = vpop.f32.mrf.mxu0
  %v480 = vadd.f32 0.0, %v479
  %481 = vmatprep.mubr.f32.mxu0 0.0
  %482 = vmatmul.mubr.f32.gmra.mxu0 %v30
  %v483 = vpop.f32.mrf.mxu0
  %v484 = vadd.f32 0.0, %v483
  %v485 = vpop.f32.mrf.mxu0
  %v486 = vadd.f32 0.0, %v485
  %487 = vmatprep.mubr.f32.mxu0 0.0
  %488 = vmatmul.mubr.f32.gmra.mxu0 %v31
  %v489 = vpop.f32.mrf.mxu0
  %v490 = vadd.f32 0.0, %v489
  %v491 = vpop.f32.mrf.mxu0
  %v492 = vadd.f32 0.0, %v491
  %493 = vmatprep.mubr.f32.mxu0 0.0
  %494 = vmatmul.mubr.f32.gmra.mxu0 %v32
  %v495 = vpop.f32.mrf.mxu0
  %v496 = vadd.f32 0.0, %v495
  %v497 = vpop.f32.mrf.mxu0
  %v498 = vadd.f32 0.0, %v497
  %499 = vmatprep.mubr.f32.mxu0 0.0
  %500 = vmatmul.mubr.f32.gmra.mxu0 %v33
  %v501 = vpop.f32.mrf.mxu0
  %v502 = vadd.f32 0.0, %v501
  %v503 = vpop.f32.mrf.mxu0
  %v504 = vadd.f32 0.0, %v503
  %505 = vmatprep.mubr.f32.mxu0 0.0
  %506 = vmatmul.mubr.f32.gmra.mxu0 %v34
  %v507 = vpop.f32.mrf.mxu0
  %v508 = vadd.f32 0.0, %v507
  %v509 = vpop.f32.mrf.mxu0
  %v510 = vadd.f32 0.0, %v509
  %511 = vmatprep.mubr.f32.mxu0 0.0
  %512 = vmatmul.mubr.f32.gmra.mxu0 %v35
  %v513 = vpop.f32.mrf.mxu0
  %v514 = vadd.f32 0.0, %v513
  %v515 = vpop.f32.mrf.mxu0
  %v516 = vadd.f32 0.0, %v515
  %517 = vdwg.mxu0
  %518 = vmatprep.subr.mxu0 %v289
  %519 = vmatpush1.msra.mxu0 %v288
  %520 = vmatprep.subr.mxu0 %v281
  %521 = vmatpush1.msra.mxu0 %v280
  %522 = vmatprep.subr.mxu0 %v273
  %523 = vmatpush1.msra.mxu0 %v272
  %524 = vmatprep.subr.mxu0 %v265
  %525 = vmatpush1.msra.mxu0 %v264
  %526 = vmatprep.subr.mxu0 %v257
  %527 = vmatpush1.msra.mxu0 %v256
  %528 = vmatprep.subr.mxu0 %v249
  %529 = vmatpush1.msra.mxu0 %v248
  %530 = vmatprep.subr.mxu0 %v241
  %531 = vmatpush1.msra.mxu0 %v240
  %532 = vmatprep.subr.mxu0 %v233
  %533 = vmatpush1.msra.mxu0 %v232
  %534 = vmatprep.subr.mxu0 %v225
  %535 = vmatpush1.msra.mxu0 %v224
  %536 = vmatprep.subr.mxu0 %v217
  %537 = vmatpush1.msra.mxu0 %v216
  %538 = vmatprep.subr.mxu0 %v209
  %539 = vmatpush1.msra.mxu0 %v208
  %540 = vmatprep.subr.mxu0 %v201
  %541 = vmatpush1.msra.mxu0 %v200
  %542 = vmatprep.subr.mxu0 %v193
  %543 = vmatpush1.msra.mxu0 %v192
  %544 = vmatprep.subr.mxu0 %v185
  %545 = vmatpush1.msra.mxu0 %v184
  %546 = vmatprep.subr.mxu0 %v177
  %547 = vmatpush1.msra.mxu0 %v176
  %548 = vmatprep.subr.mxu0 %v169
  %549 = vmatpush1.msra.mxu0 %v168
  %550 = vmatprep.subr.mxu0 0.0
  %551 = vmatpush2.msra.mxu0 0.0
  %552 = vmatprep.subr.mxu0 0.0
  %553 = vmatpush2.msra.mxu0 0.0
  %554 = vmatprep.subr.mxu0 0.0
  %555 = vmatpush2.msra.mxu0 0.0
  %556 = vmatprep.subr.mxu0 0.0
  %557 = vmatpush2.msra.mxu0 0.0
  %558 = vmatprep.subr.mxu0 0.0
  %559 = vmatpush2.msra.mxu0 0.0
  %560 = vmatprep.subr.mxu0 0.0
  %561 = vmatpush2.msra.mxu0 0.0
  %562 = vmatprep.subr.mxu0 0.0
  %563 = vmatpush2.msra.mxu0 0.0
  %564 = vmatprep.subr.mxu0 0.0
  %565 = vmatpush2.msra.mxu0 0.0
  %566 = vmatprep.subr.mxu0 0.0
  %567 = vmatpush2.msra.mxu0 0.0
  %568 = vmatprep.subr.mxu0 0.0
  %569 = vmatpush2.msra.mxu0 0.0
  %570 = vmatprep.subr.mxu0 0.0
  %571 = vmatpush2.msra.mxu0 0.0
  %572 = vmatprep.subr.mxu0 0.0
  %573 = vmatpush2.msra.mxu0 0.0
  %574 = vmatprep.subr.mxu0 0.0
  %575 = vmatpush2.msra.mxu0 0.0
  %576 = vmatprep.subr.mxu0 0.0
  %577 = vmatpush2.msra.mxu0 0.0
  %578 = vmatprep.subr.mxu0 0.0
  %579 = vmatpush2.msra.mxu0 0.0
  %580 = vmatprep.subr.mxu0 0.0
  %581 = vmatpush2.msra.mxu0 0.0
  %582 = vmatprep.mubr.f32.mxu0 0.0
  %583 = vmatmul.mubr.f32.gmra.mxu0 %v28
  %v584 = vpop.f32.mrf.mxu0
  %v585 = vadd.f32 0.0, %v584
  %v586 = vpop.f32.mrf.mxu0
  %v587 = vadd.f32 0.0, %v586
  %588 = vmatprep.mubr.f32.mxu0 0.0
  %589 = vmatmul.mubr.f32.gmra.mxu0 %v29
  %v590 = vpop.f32.mrf.mxu0
  %v591 = vadd.f32 0.0, %v590
  %v592 = vpop.f32.mrf.mxu0
  %v593 = vadd.f32 0.0, %v592
  %594 = vmatprep.mubr.f32.mxu0 0.0
  %595 = vmatmul.mubr.f32.gmra.mxu0 %v30
  %v596 = vpop.f32.mrf.mxu0
  %v597 = vadd.f32 0.0, %v596
  %v598 = vpop.f32.mrf.mxu0
  %v599 = vadd.f32 0.0, %v598
  %600 = vmatprep.mubr.f32.mxu0 0.0
  %601 = vmatmul.mubr.f32.gmra.mxu0 %v31
  %v602 = vpop.f32.mrf.mxu0
  %v603 = vadd.f32 0.0, %v602
  %v604 = vpop.f32.mrf.mxu0
  %v605 = vadd.f32 0.0, %v604
  %606 = vmatprep.mubr.f32.mxu0 0.0
  %607 = vmatmul.mubr.f32.gmra.mxu0 %v32
  %v608 = vpop.f32.mrf.mxu0
  %v609 = vadd.f32 0.0, %v608
  %v610 = vpop.f32.mrf.mxu0
  %v611 = vadd.f32 0.0, %v610
  %612 = vmatprep.mubr.f32.mxu0 0.0
  %613 = vmatmul.mubr.f32.gmra.mxu0 %v33
  %v614 = vpop.f32.mrf.mxu0
  %v615 = vadd.f32 0.0, %v614
  %v616 = vpop.f32.mrf.mxu0
  %v617 = vadd.f32 0.0, %v616
  %618 = vmatprep.mubr.f32.mxu0 0.0
  %619 = vmatmul.mubr.f32.gmra.mxu0 %v34
  %v620 = vpop.f32.mrf.mxu0
  %v621 = vadd.f32 0.0, %v620
  %v622 = vpop.f32.mrf.mxu0
  %v623 = vadd.f32 0.0, %v622
  %624 = vmatprep.mubr.f32.mxu0 0.0
  %625 = vmatmul.mubr.f32.gmra.mxu0 %v35
  %v626 = vpop.f32.mrf.mxu0
  %v627 = vadd.f32 0.0, %v626
  %v628 = vpop.f32.mrf.mxu0
  %v629 = vadd.f32 0.0, %v628
  %630 = vdwg.mxu0
  %631 = vmatprep.subr.mxu0 %v291
  %632 = vmatpush1.msra.mxu0 %v290
  %633 = vmatprep.subr.mxu0 %v283
  %634 = vmatpush1.msra.mxu0 %v282
  %635 = vmatprep.subr.mxu0 %v275
  %636 = vmatpush1.msra.mxu0 %v274
  %637 = vmatprep.subr.mxu0 %v267
  %638 = vmatpush1.msra.mxu0 %v266
  %639 = vmatprep.subr.mxu0 %v259
  %640 = vmatpush1.msra.mxu0 %v258
  %641 = vmatprep.subr.mxu0 %v251
  %642 = vmatpush1.msra.mxu0 %v250
  %643 = vmatprep.subr.mxu0 %v243
  %644 = vmatpush1.msra.mxu0 %v242
  %645 = vmatprep.subr.mxu0 %v235
  %646 = vmatpush1.msra.mxu0 %v234
  %647 = vmatprep.subr.mxu0 %v227
  %648 = vmatpush1.msra.mxu0 %v226
  %649 = vmatprep.subr.mxu0 %v219
  %650 = vmatpush1.msra.mxu0 %v218
  %651 = vmatprep.subr.mxu0 %v211
  %652 = vmatpush1.msra.mxu0 %v210
  %653 = vmatprep.subr.mxu0 %v203
  %654 = vmatpush1.msra.mxu0 %v202
  %655 = vmatprep.subr.mxu0 %v195
  %656 = vmatpush1.msra.mxu0 %v194
  %657 = vmatprep.subr.mxu0 %v187
  %658 = vmatpush1.msra.mxu0 %v186
  %659 = vmatprep.subr.mxu0 %v179
  %660 = vmatpush1.msra.mxu0 %v178
  %661 = vmatprep.subr.mxu0 %v171
  %662 = vmatpush1.msra.mxu0 %v170
  %663 = vmatprep.subr.mxu0 0.0
  %664 = vmatpush2.msra.mxu0 0.0
  %665 = vmatprep.subr.mxu0 0.0
  %666 = vmatpush2.msra.mxu0 0.0
  %667 = vmatprep.subr.mxu0 0.0
  %668 = vmatpush2.msra.mxu0 0.0
  %669 = vmatprep.subr.mxu0 0.0
  %670 = vmatpush2.msra.mxu0 0.0
  %671 = vmatprep.subr.mxu0 0.0
  %672 = vmatpush2.msra.mxu0 0.0
  %673 = vmatprep.subr.mxu0 0.0
  %674 = vmatpush2.msra.mxu0 0.0
  %675 = vmatprep.subr.mxu0 0.0
  %676 = vmatpush2.msra.mxu0 0.0
  %677 = vmatprep.subr.mxu0 0.0
  %678 = vmatpush2.msra.mxu0 0.0
  %679 = vmatprep.subr.mxu0 0.0
  %680 = vmatpush2.msra.mxu0 0.0
  %681 = vmatprep.subr.mxu0 0.0
  %682 = vmatpush2.msra.mxu0 0.0
  %683 = vmatprep.subr.mxu0 0.0
  %684 = vmatpush2.msra.mxu0 0.0
  %685 = vmatprep.subr.mxu0 0.0
  %686 = vmatpush2.msra.mxu0 0.0
  %687 = vmatprep.subr.mxu0 0.0
  %688 = vmatpush2.msra.mxu0 0.0
  %689 = vmatprep.subr.mxu0 0.0
  %690 = vmatpush2.msra.mxu0 0.0
  %691 = vmatprep.subr.mxu0 0.0
  %692 = vmatpush2.msra.mxu0 0.0
  %693 = vmatprep.subr.mxu0 0.0
  %694 = vmatpush2.msra.mxu0 0.0
  %695 = vmatprep.mubr.f32.mxu0 0.0
  %696 = vmatmul.mubr.f32.gmra.mxu0 %v28
  %v697 = vpop.f32.mrf.mxu0
  %v698 = vadd.f32 0.0, %v697
  %v699 = vpop.f32.mrf.mxu0
  %v700 = vadd.f32 0.0, %v699
  %701 = vmatprep.mubr.f32.mxu0 0.0
  %702 = vmatmul.mubr.f32.gmra.mxu0 %v29
  %v703 = vpop.f32.mrf.mxu0
  %v704 = vadd.f32 0.0, %v703
  %v705 = vpop.f32.mrf.mxu0
  %v706 = vadd.f32 0.0, %v705
  %707 = vmatprep.mubr.f32.mxu0 0.0
  %708 = vmatmul.mubr.f32.gmra.mxu0 %v30
  %v709 = vpop.f32.mrf.mxu0
  %v710 = vadd.f32 0.0, %v709
  %v711 = vpop.f32.mrf.mxu0
  %v712 = vadd.f32 0.0, %v711
  %713 = vmatprep.mubr.f32.mxu0 0.0
  %714 = vmatmul.mubr.f32.gmra.mxu0 %v31
  %v715 = vpop.f32.mrf.mxu0
  %v716 = vadd.f32 0.0, %v715
  %v717 = vpop.f32.mrf.mxu0
  %v718 = vadd.f32 0.0, %v717
  %719 = vmatprep.mubr.f32.mxu0 0.0
  %720 = vmatmul.mubr.f32.gmra.mxu0 %v32
  %v721 = vpop.f32.mrf.mxu0
  %v722 = vadd.f32 0.0, %v721
  %v723 = vpop.f32.mrf.mxu0
  %v724 = vadd.f32 0.0, %v723
  %725 = vmatprep.mubr.f32.mxu0 0.0
  %726 = vmatmul.mubr.f32.gmra.mxu0 %v33
  %v727 = vpop.f32.mrf.mxu0
  %v728 = vadd.f32 0.0, %v727
  %v729 = vpop.f32.mrf.mxu0
  %v730 = vadd.f32 0.0, %v729
  %731 = vmatprep.mubr.f32.mxu0 0.0
  %732 = vmatmul.mubr.f32.gmra.mxu0 %v34
  %v733 = vpop.f32.mrf.mxu0
  %v734 = vadd.f32 0.0, %v733
  %v735 = vpop.f32.mrf.mxu0
  %v736 = vadd.f32 0.0, %v735
  %737 = vmatprep.mubr.f32.mxu0 0.0
  %738 = vmatmul.mubr.f32.gmra.mxu0 %v35
  %v739 = vpop.f32.mrf.mxu0
  %v740 = vadd.f32 0.0, %v739
  %v741 = vpop.f32.mrf.mxu0
  %v742 = vadd.f32 0.0, %v741
  %743 = vdwg.mxu0
  %744 = vmatprep.subr.mxu0 %v157
  %745 = vmatpush1.msra.mxu0 %v156
  %746 = vmatprep.subr.mxu0 %v149
  %747 = vmatpush1.msra.mxu0 %v148
  %748 = vmatprep.subr.mxu0 %v141
  %749 = vmatpush1.msra.mxu0 %v140
  %750 = vmatprep.subr.mxu0 %v133
  %751 = vmatpush1.msra.mxu0 %v132
  %752 = vmatprep.subr.mxu0 %v125
  %753 = vmatpush1.msra.mxu0 %v124
  %754 = vmatprep.subr.mxu0 %v117
  %755 = vmatpush1.msra.mxu0 %v116
  %756 = vmatprep.subr.mxu0 %v109
  %757 = vmatpush1.msra.mxu0 %v108
  %758 = vmatprep.subr.mxu0 %v101
  %759 = vmatpush1.msra.mxu0 %v100
  %760 = vmatprep.subr.mxu0 %v93
  %761 = vmatpush1.msra.mxu0 %v92
  %762 = vmatprep.subr.mxu0 %v85
  %763 = vmatpush1.msra.mxu0 %v84
  %764 = vmatprep.subr.mxu0 %v77
  %765 = vmatpush1.msra.mxu0 %v76
  %766 = vmatprep.subr.mxu0 %v69
  %767 = vmatpush1.msra.mxu0 %v68
  %768 = vmatprep.subr.mxu0 %v61
  %769 = vmatpush1.msra.mxu0 %v60
  %770 = vmatprep.subr.mxu0 %v53
  %771 = vmatpush1.msra.mxu0 %v52
  %772 = vmatprep.subr.mxu0 %v45
  %773 = vmatpush1.msra.mxu0 %v44
  %774 = vmatprep.subr.mxu0 %v37
  %775 = vmatpush1.msra.mxu0 %v36
  %776 = vmatprep.subr.mxu0 0.0
  %777 = vmatpush2.msra.mxu0 0.0
  %778 = vmatprep.subr.mxu0 0.0
  %779 = vmatpush2.msra.mxu0 0.0
  %780 = vmatprep.subr.mxu0 0.0
  %781 = vmatpush2.msra.mxu0 0.0
  %782 = vmatprep.subr.mxu0 0.0
  %783 = vmatpush2.msra.mxu0 0.0
  %784 = vmatprep.subr.mxu0 0.0
  %785 = vmatpush2.msra.mxu0 0.0
  %786 = vmatprep.subr.mxu0 0.0
  %787 = vmatpush2.msra.mxu0 0.0
  %788 = vmatprep.subr.mxu0 0.0
  %789 = vmatpush2.msra.mxu0 0.0
  %790 = vmatprep.subr.mxu0 0.0
  %791 = vmatpush2.msra.mxu0 0.0
  %792 = vmatprep.subr.mxu0 0.0
  %793 = vmatpush2.msra.mxu0 0.0
  %794 = vmatprep.subr.mxu0 0.0
  %795 = vmatpush2.msra.mxu0 0.0
  %796 = vmatprep.subr.mxu0 0.0
  %797 = vmatpush2.msra.mxu0 0.0
  %798 = vmatprep.subr.mxu0 0.0
  %799 = vmatpush2.msra.mxu0 0.0
  %800 = vmatprep.subr.mxu0 0.0
  %801 = vmatpush2.msra.mxu0 0.0
  %802 = vmatprep.subr.mxu0 0.0
  %803 = vmatpush2.msra.mxu0 0.0
  %804 = vmatprep.subr.mxu0 0.0
  %805 = vmatpush2.msra.mxu0 0.0
  %806 = vmatprep.subr.mxu0 0.0
  %807 = vmatpush2.msra.mxu0 0.0
  %808 = vmatprep.mubr.f32.mxu0 0.0
  %809 = vmatmul.mubr.f32.gmra.mxu0 %v20
  %v810 = vpop.f32.mrf.mxu0
  %v811 = vadd.f32 %v359, %v810
  %v812 = vpop.f32.mrf.mxu0
  %v813 = vadd.f32 %v361, %v812
  %814 = vmatprep.mubr.f32.mxu0 0.0
  %815 = vmatmul.mubr.f32.gmra.mxu0 %v21
  %v816 = vpop.f32.mrf.mxu0
  %v817 = vadd.f32 %v365, %v816
  %v818 = vpop.f32.mrf.mxu0
  %v819 = vadd.f32 %v367, %v818
  %820 = vmatprep.mubr.f32.mxu0 0.0
  %821 = vmatmul.mubr.f32.gmra.mxu0 %v22
  %v822 = vpop.f32.mrf.mxu0
  %v823 = vadd.f32 %v371, %v822
  %v824 = vpop.f32.mrf.mxu0
  %v825 = vadd.f32 %v373, %v824
  %826 = vmatprep.mubr.f32.mxu0 0.0
  %827 = vmatmul.mubr.f32.gmra.mxu0 %v23
  %v828 = vpop.f32.mrf.mxu0
  %v829 = vadd.f32 %v377, %v828
  %v830 = vpop.f32.mrf.mxu0
  %v831 = vadd.f32 %v379, %v830
  %832 = vmatprep.mubr.f32.mxu0 0.0
  %833 = vmatmul.mubr.f32.gmra.mxu0 %v24
  %v834 = vpop.f32.mrf.mxu0
  %v835 = vadd.f32 %v383, %v834
  %v836 = vpop.f32.mrf.mxu0
  %v837 = vadd.f32 %v385, %v836
  %838 = vmatprep.mubr.f32.mxu0 0.0
  %839 = vmatmul.mubr.f32.gmra.mxu0 %v25
  %v840 = vpop.f32.mrf.mxu0
  %v841 = vadd.f32 %v389, %v840
  %v842 = vpop.f32.mrf.mxu0
  %v843 = vadd.f32 %v391, %v842
  %844 = vmatprep.mubr.f32.mxu0 0.0
  %845 = vmatmul.mubr.f32.gmra.mxu0 %v26
  %v846 = vpop.f32.mrf.mxu0
  %v847 = vadd.f32 %v395, %v846
  %v848 = vpop.f32.mrf.mxu0
  %v849 = vadd.f32 %v397, %v848
  %850 = vmatprep.mubr.f32.mxu0 0.0
  %851 = vmatmul.mubr.f32.gmra.mxu0 %v27
  %v852 = vpop.f32.mrf.mxu0
  %v853 = vadd.f32 %v401, %v852
  %v854 = vpop.f32.mrf.mxu0
  %v855 = vadd.f32 %v403, %v854
  %856 = vdwg.mxu0
  %857 = vmatprep.subr.mxu0 %v159
  %858 = vmatpush1.msra.mxu0 %v158
  %859 = vmatprep.subr.mxu0 %v151
  %860 = vmatpush1.msra.mxu0 %v150
  %861 = vmatprep.subr.mxu0 %v143
  %862 = vmatpush1.msra.mxu0 %v142
  %863 = vmatprep.subr.mxu0 %v135
  %864 = vmatpush1.msra.mxu0 %v134
  %865 = vmatprep.subr.mxu0 %v127
  %866 = vmatpush1.msra.mxu0 %v126
  %867 = vmatprep.subr.mxu0 %v119
  %868 = vmatpush1.msra.mxu0 %v118
  %869 = vmatprep.subr.mxu0 %v111
  %870 = vmatpush1.msra.mxu0 %v110
  %871 = vmatprep.subr.mxu0 %v103
  %872 = vmatpush1.msra.mxu0 %v102
  %873 = vmatprep.subr.mxu0 %v95
  %874 = vmatpush1.msra.mxu0 %v94
  %875 = vmatprep.subr.mxu0 %v87
  %876 = vmatpush1.msra.mxu0 %v86
  %877 = vmatprep.subr.mxu0 %v79
  %878 = vmatpush1.msra.mxu0 %v78
  %879 = vmatprep.subr.mxu0 %v71
  %880 = vmatpush1.msra.mxu0 %v70
  %881 = vmatprep.subr.mxu0 %v63
  %882 = vmatpush1.msra.mxu0 %v62
  %883 = vmatprep.subr.mxu0 %v55
  %884 = vmatpush1.msra.mxu0 %v54
  %885 = vmatprep.subr.mxu0 %v47
  %886 = vmatpush1.msra.mxu0 %v46
  %887 = vmatprep.subr.mxu0 %v39
  %888 = vmatpush1.msra.mxu0 %v38
  %889 = vmatprep.subr.mxu0 0.0
  %890 = vmatpush2.msra.mxu0 0.0
  %891 = vmatprep.subr.mxu0 0.0
  %892 = vmatpush2.msra.mxu0 0.0
  %893 = vmatprep.subr.mxu0 0.0
  %894 = vmatpush2.msra.mxu0 0.0
  %895 = vmatprep.subr.mxu0 0.0
  %896 = vmatpush2.msra.mxu0 0.0
  %897 = vmatprep.subr.mxu0 0.0
  %898 = vmatpush2.msra.mxu0 0.0
  %899 = vmatprep.subr.mxu0 0.0
  %900 = vmatpush2.msra.mxu0 0.0
  %901 = vmatprep.subr.mxu0 0.0
  %902 = vmatpush2.msra.mxu0 0.0
  %903 = vmatprep.subr.mxu0 0.0
  %904 = vmatpush2.msra.mxu0 0.0
  %905 = vmatprep.subr.mxu0 0.0
  %906 = vmatpush2.msra.mxu0 0.0
  %907 = vmatprep.subr.mxu0 0.0
  %908 = vmatpush2.msra.mxu0 0.0
  %909 = vmatprep.subr.mxu0 0.0
  %910 = vmatpush2.msra.mxu0 0.0
  %911 = vmatprep.subr.mxu0 0.0
  %912 = vmatpush2.msra.mxu0 0.0
  %913 = vmatprep.subr.mxu0 0.0
  %914 = vmatpush2.msra.mxu0 0.0
  %915 = vmatprep.subr.mxu0 0.0
  %916 = vmatpush2.msra.mxu0 0.0
  %917 = vmatprep.subr.mxu0 0.0
  %918 = vmatpush2.msra.mxu0 0.0
  %919 = vmatprep.subr.mxu0 0.0
  %920 = vmatpush2.msra.mxu0 0.0
  %921 = vmatprep.mubr.f32.mxu0 0.0
  %922 = vmatmul.mubr.f32.gmra.mxu0 %v20
  %v923 = vpop.f32.mrf.mxu0
  %v924 = vadd.f32 %v472, %v923
  %v925 = vpop.f32.mrf.mxu0
  %v926 = vadd.f32 %v474, %v925
  %927 = vmatprep.mubr.f32.mxu0 0.0
  %928 = vmatmul.mubr.f32.gmra.mxu0 %v21
  %v929 = vpop.f32.mrf.mxu0
  %v930 = vadd.f32 %v478, %v929
  %v931 = vpop.f32.mrf.mxu0
  %v932 = vadd.f32 %v480, %v931
  %933 = vmatprep.mubr.f32.mxu0 0.0
  %934 = vmatmul.mubr.f32.gmra.mxu0 %v22
  %v935 = vpop.f32.mrf.mxu0
  %v936 = vadd.f32 %v484, %v935
  %v937 = vpop.f32.mrf.mxu0
  %v938 = vadd.f32 %v486, %v937
  %939 = vmatprep.mubr.f32.mxu0 0.0
  %940 = vmatmul.mubr.f32.gmra.mxu0 %v23
  %v941 = vpop.f32.mrf.mxu0
  %v942 = vadd.f32 %v490, %v941
  %v943 = vpop.f32.mrf.mxu0
  %v944 = vadd.f32 %v492, %v943
  %945 = vmatprep.mubr.f32.mxu0 0.0
  %946 = vmatmul.mubr.f32.gmra.mxu0 %v24
  %v947 = vpop.f32.mrf.mxu0
  %v948 = vadd.f32 %v496, %v947
  %v949 = vpop.f32.mrf.mxu0
  %v950 = vadd.f32 %v498, %v949
  %951 = vmatprep.mubr.f32.mxu0 0.0
  %952 = vmatmul.mubr.f32.gmra.mxu0 %v25
  %v953 = vpop.f32.mrf.mxu0
  %v954 = vadd.f32 %v502, %v953
  %v955 = vpop.f32.mrf.mxu0
  %v956 = vadd.f32 %v504, %v955
  %957 = vmatprep.mubr.f32.mxu0 0.0
  %958 = vmatmul.mubr.f32.gmra.mxu0 %v26
  %v959 = vpop.f32.mrf.mxu0
  %v960 = vadd.f32 %v508, %v959
  %v961 = vpop.f32.mrf.mxu0
  %v962 = vadd.f32 %v510, %v961
  %963 = vmatprep.mubr.f32.mxu0 0.0
  %964 = vmatmul.mubr.f32.gmra.mxu0 %v27
  %v965 = vpop.f32.mrf.mxu0
  %v966 = vadd.f32 %v514, %v965
  %v967 = vpop.f32.mrf.mxu0
  %v968 = vadd.f32 %v516, %v967
  %969 = vdwg.mxu0
  %970 = vmatprep.subr.mxu0 %v161
  %971 = vmatpush1.msra.mxu0 %v160
  %972 = vmatprep.subr.mxu0 %v153
  %973 = vmatpush1.msra.mxu0 %v152
  %974 = vmatprep.subr.mxu0 %v145
  %975 = vmatpush1.msra.mxu0 %v144
  %976 = vmatprep.subr.mxu0 %v137
  %977 = vmatpush1.msra.mxu0 %v136
  %978 = vmatprep.subr.mxu0 %v129
  %979 = vmatpush1.msra.mxu0 %v128
  %980 = vmatprep.subr.mxu0 %v121
  %981 = vmatpush1.msra.mxu0 %v120
  %982 = vmatprep.subr.mxu0 %v113
  %983 = vmatpush1.msra.mxu0 %v112
  %984 = vmatprep.subr.mxu0 %v105
  %985 = vmatpush1.msra.mxu0 %v104
  %986 = vmatprep.subr.mxu0 %v97
  %987 = vmatpush1.msra.mxu0 %v96
  %988 = vmatprep.subr.mxu0 %v89
  %989 = vmatpush1.msra.mxu0 %v88
  %990 = vmatprep.subr.mxu0 %v81
  %991 = vmatpush1.msra.mxu0 %v80
  %992 = vmatprep.subr.mxu0 %v73
  %993 = vmatpush1.msra.mxu0 %v72
  %994 = vmatprep.subr.mxu0 %v65
  %995 = vmatpush1.msra.mxu0 %v64
  %996 = vmatprep.subr.mxu0 %v57
  %997 = vmatpush1.msra.mxu0 %v56
  %998 = vmatprep.subr.mxu0 %v49
  %999 = vmatpush1.msra.mxu0 %v48
  %1000 = vmatprep.subr.mxu0 %v41
  %1001 = vmatpush1.msra.mxu0 %v40
  %1002 = vmatprep.subr.mxu0 0.0
  %1003 = vmatpush2.msra.mxu0 0.0
  %1004 = vmatprep.subr.mxu0 0.0
  %1005 = vmatpush2.msra.mxu0 0.0
  %1006 = vmatprep.subr.mxu0 0.0
  %1007 = vmatpush2.msra.mxu0 0.0
  %1008 = vmatprep.subr.mxu0 0.0
  %1009 = vmatpush2.msra.mxu0 0.0
  %1010 = vmatprep.subr.mxu0 0.0
  %1011 = vmatpush2.msra.mxu0 0.0
  %1012 = vmatprep.subr.mxu0 0.0
  %1013 = vmatpush2.msra.mxu0 0.0
  %1014 = vmatprep.subr.mxu0 0.0
  %1015 = vmatpush2.msra.mxu0 0.0
  %1016 = vmatprep.subr.mxu0 0.0
  %1017 = vmatpush2.msra.mxu0 0.0
  %1018 = vmatprep.subr.mxu0 0.0
  %1019 = vmatpush2.msra.mxu0 0.0
  %1020 = vmatprep.subr.mxu0 0.0
  %1021 = vmatpush2.msra.mxu0 0.0
  %1022 = vmatprep.subr.mxu0 0.0
  %1023 = vmatpush2.msra.mxu0 0.0
  %1024 = vmatprep.subr.mxu0 0.0
  %1025 = vmatpush2.msra.mxu0 0.0
  %1026 = vmatprep.subr.mxu0 0.0
  %1027 = vmatpush2.msra.mxu0 0.0
  %1028 = vmatprep.subr.mxu0 0.0
  %1029 = vmatpush2.msra.mxu0 0.0
  %1030 = vmatprep.subr.mxu0 0.0
  %1031 = vmatpush2.msra.mxu0 0.0
  %1032 = vmatprep.subr.mxu0 0.0
  %1033 = vmatpush2.msra.mxu0 0.0
  %1034 = vmatprep.mubr.f32.mxu0 0.0
  %1035 = vmatmul.mubr.f32.gmra.mxu0 %v20
  %v1036 = vpop.f32.mrf.mxu0
  %v1037 = vadd.f32 %v585, %v1036
  %v1038 = vpop.f32.mrf.mxu0
  %v1039 = vadd.f32 %v587, %v1038
  %1040 = vmatprep.mubr.f32.mxu0 0.0
  %1041 = vmatmul.mubr.f32.gmra.mxu0 %v21
  %v1042 = vpop.f32.mrf.mxu0
  %v1043 = vadd.f32 %v591, %v1042
  %v1044 = vpop.f32.mrf.mxu0
  %v1045 = vadd.f32 %v593, %v1044
  %1046 = vmatprep.mubr.f32.mxu0 0.0
  %1047 = vmatmul.mubr.f32.gmra.mxu0 %v22
  %v1048 = vpop.f32.mrf.mxu0
  %v1049 = vadd.f32 %v597, %v1048
  %v1050 = vpop.f32.mrf.mxu0
  %v1051 = vadd.f32 %v599, %v1050
  %1052 = vmatprep.mubr.f32.mxu0 0.0
  %1053 = vmatmul.mubr.f32.gmra.mxu0 %v23
  %v1054 = vpop.f32.mrf.mxu0
  %v1055 = vadd.f32 %v603, %v1054
  %v1056 = vpop.f32.mrf.mxu0
  %v1057 = vadd.f32 %v605, %v1056
  %1058 = vmatprep.mubr.f32.mxu0 0.0
  %1059 = vmatmul.mubr.f32.gmra.mxu0 %v24
  %v1060 = vpop.f32.mrf.mxu0
  %v1061 = vadd.f32 %v609, %v1060
  %v1062 = vpop.f32.mrf.mxu0
  %v1063 = vadd.f32 %v611, %v1062
  %1064 = vmatprep.mubr.f32.mxu0 0.0
  %1065 = vmatmul.mubr.f32.gmra.mxu0 %v25
  %v1066 = vpop.f32.mrf.mxu0
  %v1067 = vadd.f32 %v615, %v1066
  %v1068 = vpop.f32.mrf.mxu0
  %v1069 = vadd.f32 %v617, %v1068
  %1070 = vmatprep.mubr.f32.mxu0 0.0
  %1071 = vmatmul.mubr.f32.gmra.mxu0 %v26
  %v1072 = vpop.f32.mrf.mxu0
  %v1073 = vadd.f32 %v621, %v1072
  %v1074 = vpop.f32.mrf.mxu0
  %v1075 = vadd.f32 %v623, %v1074
  %1076 = vmatprep.mubr.f32.mxu0 0.0
  %1077 = vmatmul.mubr.f32.gmra.mxu0 %v27
  %v1078 = vpop.f32.mrf.mxu0
  %v1079 = vadd.f32 %v627, %v1078
  %v1080 = vpop.f32.mrf.mxu0
  %v1081 = vadd.f32 %v629, %v1080
  %1082 = vdwg.mxu0
  %1083 = vmatprep.subr.mxu0 %v163
  %1084 = vmatpush1.msra.mxu0 %v162
  %1085 = vmatprep.subr.mxu0 %v155
  %1086 = vmatpush1.msra.mxu0 %v154
  %1087 = vmatprep.subr.mxu0 %v147
  %1088 = vmatpush1.msra.mxu0 %v146
  %1089 = vmatprep.subr.mxu0 %v139
  %1090 = vmatpush1.msra.mxu0 %v138
  %1091 = vmatprep.subr.mxu0 %v131
  %1092 = vmatpush1.msra.mxu0 %v130
  %1093 = vmatprep.subr.mxu0 %v123
  %1094 = vmatpush1.msra.mxu0 %v122
  %1095 = vmatprep.subr.mxu0 %v115
  %1096 = vmatpush1.msra.mxu0 %v114
  %1097 = vmatprep.subr.mxu0 %v107
  %1098 = vmatpush1.msra.mxu0 %v106
  %1099 = vmatprep.subr.mxu0 %v99
  %1100 = vmatpush1.msra.mxu0 %v98
  %1101 = vmatprep.subr.mxu0 %v91
  %1102 = vmatpush1.msra.mxu0 %v90
  %1103 = vmatprep.subr.mxu0 %v83
  %1104 = vmatpush1.msra.mxu0 %v82
  %1105 = vmatprep.subr.mxu0 %v75
  %1106 = vmatpush1.msra.mxu0 %v74
  %1107 = vmatprep.subr.mxu0 %v67
  %1108 = vmatpush1.msra.mxu0 %v66
  %1109 = vmatprep.subr.mxu0 %v59
  %1110 = vmatpush1.msra.mxu0 %v58
  %1111 = vmatprep.subr.mxu0 %v51
  %1112 = vmatpush1.msra.mxu0 %v50
  %1113 = vmatprep.subr.mxu0 %v43
  %1114 = vmatpush1.msra.mxu0 %v42
  %1115 = vmatprep.subr.mxu0 0.0
  %1116 = vmatpush2.msra.mxu0 0.0
  %1117 = vmatprep.subr.mxu0 0.0
  %1118 = vmatpush2.msra.mxu0 0.0
  %1119 = vmatprep.subr.mxu0 0.0
  %1120 = vmatpush2.msra.mxu0 0.0
  %1121 = vmatprep.subr.mxu0 0.0
  %1122 = vmatpush2.msra.mxu0 0.0
  %1123 = vmatprep.subr.mxu0 0.0
  %1124 = vmatpush2.msra.mxu0 0.0
  %1125 = vmatprep.subr.mxu0 0.0
  %1126 = vmatpush2.msra.mxu0 0.0
  %1127 = vmatprep.subr.mxu0 0.0
  %1128 = vmatpush2.msra.mxu0 0.0
  %1129 = vmatprep.subr.mxu0 0.0
  %1130 = vmatpush2.msra.mxu0 0.0
  %1131 = vmatprep.subr.mxu0 0.0
  %1132 = vmatpush2.msra.mxu0 0.0
  %1133 = vmatprep.subr.mxu0 0.0
  %1134 = vmatpush2.msra.mxu0 0.0
  %1135 = vmatprep.subr.mxu0 0.0
  %1136 = vmatpush2.msra.mxu0 0.0
  %1137 = vmatprep.subr.mxu0 0.0
  %1138 = vmatpush2.msra.mxu0 0.0
  %1139 = vmatprep.subr.mxu0 0.0
  %1140 = vmatpush2.msra.mxu0 0.0
  %1141 = vmatprep.subr.mxu0 0.0
  %1142 = vmatpush2.msra.mxu0 0.0
  %1143 = vmatprep.subr.mxu0 0.0
  %1144 = vmatpush2.msra.mxu0 0.0
  %1145 = vmatprep.subr.mxu0 0.0
  %1146 = vmatpush2.msra.mxu0 0.0
  %1147 = vmatprep.mubr.f32.mxu0 0.0
  %1148 = vmatmul.mubr.f32.gmra.mxu0 %v20
  %v1149 = vpop.f32.mrf.mxu0
  %v1150 = vadd.f32 %v698, %v1149
  %v1151 = vpop.f32.mrf.mxu0
  %v1152 = vadd.f32 %v700, %v1151
  %1153 = vmatprep.mubr.f32.mxu0 0.0
  %1154 = vmatmul.mubr.f32.gmra.mxu0 %v21
  %v1155 = vpop.f32.mrf.mxu0
  %v1156 = vadd.f32 %v704, %v1155
  %v1157 = vpop.f32.mrf.mxu0
  %v1158 = vadd.f32 %v706, %v1157
  %1159 = vmatprep.mubr.f32.mxu0 0.0
  %1160 = vmatmul.mubr.f32.gmra.mxu0 %v22
  %v1161 = vpop.f32.mrf.mxu0
  %v1162 = vadd.f32 %v710, %v1161
  %v1163 = vpop.f32.mrf.mxu0
  %v1164 = vadd.f32 %v712, %v1163
  %1165 = vmatprep.mubr.f32.mxu0 0.0
  %1166 = vmatmul.mubr.f32.gmra.mxu0 %v23
  %v1167 = vpop.f32.mrf.mxu0
  %v1168 = vadd.f32 %v716, %v1167
  %v1169 = vpop.f32.mrf.mxu0
  %v1170 = vadd.f32 %v718, %v1169
  %1171 = vmatprep.mubr.f32.mxu0 0.0
  %1172 = vmatmul.mubr.f32.gmra.mxu0 %v24
  %v1173 = vpop.f32.mrf.mxu0
  %v1174 = vadd.f32 %v722, %v1173
  %v1175 = vpop.f32.mrf.mxu0
  %v1176 = vadd.f32 %v724, %v1175
  %1177 = vmatprep.mubr.f32.mxu0 0.0
  %1178 = vmatmul.mubr.f32.gmra.mxu0 %v25
  %v1179 = vpop.f32.mrf.mxu0
  %v1180 = vadd.f32 %v728, %v1179
  %v1181 = vpop.f32.mrf.mxu0
  %v1182 = vadd.f32 %v730, %v1181
  %1183 = vmatprep.mubr.f32.mxu0 0.0
  %1184 = vmatmul.mubr.f32.gmra.mxu0 %v26
  %v1185 = vpop.f32.mrf.mxu0
  %v1186 = vadd.f32 %v734, %v1185
  %v1187 = vpop.f32.mrf.mxu0
  %v1188 = vadd.f32 %v736, %v1187
  %1189 = vmatprep.mubr.f32.mxu0 0.0
  %1190 = vmatmul.mubr.f32.gmra.mxu0 %v27
  %v1191 = vpop.f32.mrf.mxu0
  %v1192 = vadd.f32 %v740, %v1191
  %v1193 = vpop.f32.mrf.mxu0
  %v1194 = vadd.f32 %v742, %v1193
  %1195 = vdwg.mxu0
  %v1196 = vld [vmem:[%s4] sm:$0xff]
  %v1198 = vlaneseq
  %v1199 = vshrl.u32 %v1198, 7
  %v1200 = vsub.s32 0, %v1199
  %v1201 = vrot.slane %v1196, %v1200
  %v1202 = vlaneseq
  %v1203 = vshrl.u32 %v1202, 7
  %v1204 = vsub.s32 1, %v1203
  %v1205 = vrot.slane %v1196, %v1204
  %v1206 = vlaneseq
  %v1207 = vshrl.u32 %v1206, 7
  %v1208 = vsub.s32 2, %v1207
  %v1209 = vrot.slane %v1196, %v1208
  %v1210 = vlaneseq
  %v1211 = vshrl.u32 %v1210, 7
  %v1212 = vsub.s32 3, %v1211
  %v1213 = vrot.slane %v1196, %v1212
  %v1214 = vlaneseq
  %v1215 = vshrl.u32 %v1214, 7
  %v1216 = vsub.s32 4, %v1215
  %v1217 = vrot.slane %v1196, %v1216
  %v1218 = vlaneseq
  %v1219 = vshrl.u32 %v1218, 7
  %v1220 = vsub.s32 5, %v1219
  %v1221 = vrot.slane %v1196, %v1220
  %v1222 = vlaneseq
  %v1223 = vshrl.u32 %v1222, 7
  %v1224 = vsub.s32 6, %v1223
  %v1225 = vrot.slane %v1196, %v1224
  %v1226 = vlaneseq
  %v1227 = vshrl.u32 %v1226, 7
  %v1228 = vsub.s32 7, %v1227
  %v1229 = vrot.slane %v1196, %v1228
  %v1238 = vadd.f32 %v811, %v1201
  %v1239 = vadd.f32 %v813, %v1205
  %v1240 = vadd.f32 %v924, %v1209
  %v1241 = vadd.f32 %v926, %v1213
  %v1242 = vadd.f32 %v1037, %v1217
  %v1243 = vadd.f32 %v1039, %v1221
  %v1244 = vadd.f32 %v1150, %v1225
  %v1245 = vadd.f32 %v1152, %v1229
  %v1246 = vadd.f32 %v817, %v1201
  %v1247 = vadd.f32 %v819, %v1205
  %v1248 = vadd.f32 %v930, %v1209
  %v1249 = vadd.f32 %v932, %v1213
  %v1250 = vadd.f32 %v1043, %v1217
  %v1251 = vadd.f32 %v1045, %v1221
  %v1252 = vadd.f32 %v1156, %v1225
  %v1253 = vadd.f32 %v1158, %v1229
  %v1254 = vadd.f32 %v823, %v1201
  %v1255 = vadd.f32 %v825, %v1205
  %v1256 = vadd.f32 %v936, %v1209
  %v1257 = vadd.f32 %v938, %v1213
  %v1258 = vadd.f32 %v1049, %v1217
  %v1259 = vadd.f32 %v1051, %v1221
  %v1260 = vadd.f32 %v1162, %v1225
  %v1261 = vadd.f32 %v1164, %v1229
  %v1262 = vadd.f32 %v829, %v1201
  %v1263 = vadd.f32 %v831, %v1205
  %v1264 = vadd.f32 %v942, %v1209
  %v1265 = vadd.f32 %v944, %v1213
  %v1266 = vadd.f32 %v1055, %v1217
  %v1267 = vadd.f32 %v1057, %v1221
  %v1268 = vadd.f32 %v1168, %v1225
  %v1269 = vadd.f32 %v1170, %v1229
  %v1270 = vadd.f32 %v835, %v1201
  %v1271 = vadd.f32 %v837, %v1205
  %v1272 = vadd.f32 %v948, %v1209
  %v1273 = vadd.f32 %v950, %v1213
  %v1274 = vadd.f32 %v1061, %v1217
  %v1275 = vadd.f32 %v1063, %v1221
  %v1276 = vadd.f32 %v1174, %v1225
  %v1277 = vadd.f32 %v1176, %v1229
  %v1278 = vadd.f32 %v841, %v1201
  %v1279 = vadd.f32 %v843, %v1205
  %v1280 = vadd.f32 %v954, %v1209
  %v1281 = vadd.f32 %v956, %v1213
  %v1282 = vadd.f32 %v1067, %v1217
  %v1283 = vadd.f32 %v1069, %v1221
  %v1284 = vadd.f32 %v1180, %v1225
  %v1285 = vadd.f32 %v1182, %v1229
  %v1286 = vadd.f32 %v847, %v1201
  %v1287 = vadd.f32 %v849, %v1205
  %v1288 = vadd.f32 %v960, %v1209
  %v1289 = vadd.f32 %v962, %v1213
  %v1290 = vadd.f32 %v1073, %v1217
  %v1291 = vadd.f32 %v1075, %v1221
  %v1292 = vadd.f32 %v1186, %v1225
  %v1293 = vadd.f32 %v1188, %v1229
  %v1294 = vadd.f32 %v853, %v1201
  %v1295 = vadd.f32 %v855, %v1205
  %v1296 = vadd.f32 %v966, %v1209
  %v1297 = vadd.f32 %v968, %v1213
  %v1298 = vadd.f32 %v1079, %v1217
  %v1299 = vadd.f32 %v1081, %v1221
  %v1300 = vadd.f32 %v1192, %v1225
  %v1301 = vadd.f32 %v1194, %v1229
  %1302 = vst [vmem:[%s5] sm:$0xff] %v1238
  %1303 = vst [vmem:[%s5 + $0x8] sm:$0xff] %v1239
  %1304 = vst [vmem:[%s5 + $0x10] sm:$0xff] %v1240
  %1305 = vst [vmem:[%s5 + $0x18] sm:$0xff] %v1241
  %1306 = vst [vmem:[%s5 + $0x20] sm:$0xff] %v1242
  %1307 = vst [vmem:[%s5 + $0x28] sm:$0xff] %v1243
  %1308 = vst [vmem:[%s5 + $0x30] sm:$0xff] %v1244
  %1309 = vst [vmem:[%s5 + $0x38] sm:$0xff] %v1245
  %1310 = vst [vmem:[%s5 + $0x40] sm:$0xff] %v1246
  %1311 = vst [vmem:[%s5 + $0x48] sm:$0xff] %v1247
  %1312 = vst [vmem:[%s5 + $0x50] sm:$0xff] %v1248
  %1313 = vst [vmem:[%s5 + $0x58] sm:$0xff] %v1249
  %1314 = vst [vmem:[%s5 + $0x60] sm:$0xff] %v1250
  %1315 = vst [vmem:[%s5 + $0x68] sm:$0xff] %v1251
  %1316 = vst [vmem:[%s5 + $0x70] sm:$0xff] %v1252
  %1317 = vst [vmem:[%s5 + $0x78] sm:$0xff] %v1253
  %1318 = vst [vmem:[%s5 + $0x80] sm:$0xff] %v1254
  %1319 = vst [vmem:[%s5 + $0x88] sm:$0xff] %v1255
  %1320 = vst [vmem:[%s5 + $0x90] sm:$0xff] %v1256
  %1321 = vst [vmem:[%s5 + $0x98] sm:$0xff] %v1257
  %1322 = vst [vmem:[%s5 + $0xa0] sm:$0xff] %v1258
  %1323 = vst [vmem:[%s5 + $0xa8] sm:$0xff] %v1259
  %1324 = vst [vmem:[%s5 + $0xb0] sm:$0xff] %v1260
  %1325 = vst [vmem:[%s5 + $0xb8] sm:$0xff] %v1261
  %1326 = vst [vmem:[%s5 + $0xc0] sm:$0xff] %v1262
  %1327 = vst [vmem:[%s5 + $0xc8] sm:$0xff] %v1263
  %1328 = vst [vmem:[%s5 + $0xd0] sm:$0xff] %v1264
  %1329 = vst [vmem:[%s5 + $0xd8] sm:$0xff] %v1265
  %1330 = vst [vmem:[%s5 + $0xe0] sm:$0xff] %v1266
  %1331 = vst [vmem:[%s5 + $0xe8] sm:$0xff] %v1267
  %1332 = vst [vmem:[%s5 + $0xf0] sm:$0xff] %v1268
  %1333 = vst [vmem:[%s5 + $0xf8] sm:$0xff] %v1269
  %1334 = vst [vmem:[%s5 + $0x100] sm:$0xff] %v1270
  %1335 = vst [vmem:[%s5 + $0x108] sm:$0xff] %v1271
  %1336 = vst [vmem:[%s5 + $0x110] sm:$0xff] %v1272
  %1337 = vst [vmem:[%s5 + $0x118] sm:$0xff] %v1273
  %1338 = vst [vmem:[%s5 + $0x120] sm:$0xff] %v1274
  %1339 = vst [vmem:[%s5 + $0x128] sm:$0xff] %v1275
  %1340 = vst [vmem:[%s5 + $0x130] sm:$0xff] %v1276
  %1341 = vst [vmem:[%s5 + $0x138] sm:$0xff] %v1277
  %1342 = vst [vmem:[%s5 + $0x140] sm:$0xff] %v1278
  %1343 = vst [vmem:[%s5 + $0x148] sm:$0xff] %v1279
  %1344 = vst [vmem:[%s5 + $0x150] sm:$0xff] %v1280
  %1345 = vst [vmem:[%s5 + $0x158] sm:$0xff] %v1281
  %1346 = vst [vmem:[%s5 + $0x160] sm:$0xff] %v1282
  %1347 = vst [vmem:[%s5 + $0x168] sm:$0xff] %v1283
  %1348 = vst [vmem:[%s5 + $0x170] sm:$0xff] %v1284
  %1349 = vst [vmem:[%s5 + $0x178] sm:$0xff] %v1285
  %1350 = vst [vmem:[%s5 + $0x180] sm:$0xff] %v1286
  %1351 = vst [vmem:[%s5 + $0x188] sm:$0xff] %v1287
  %1352 = vst [vmem:[%s5 + $0x190] sm:$0xff] %v1288
  %1353 = vst [vmem:[%s5 + $0x198] sm:$0xff] %v1289
  %1354 = vst [vmem:[%s5 + $0x1a0] sm:$0xff] %v1290
  %1355 = vst [vmem:[%s5 + $0x1a8] sm:$0xff] %v1291
  %1356 = vst [vmem:[%s5 + $0x1b0] sm:$0xff] %v1292
  %1357 = vst [vmem:[%s5 + $0x1b8] sm:$0xff] %v1293
  %1358 = vst [vmem:[%s5 + $0x1c0] sm:$0xff] %v1294
  %1359 = vst [vmem:[%s5 + $0x1c8] sm:$0xff] %v1295
  %1360 = vst [vmem:[%s5 + $0x1d0] sm:$0xff] %v1296
  %1361 = vst [vmem:[%s5 + $0x1d8] sm:$0xff] %v1297
  %1362 = vst [vmem:[%s5 + $0x1e0] sm:$0xff] %v1298
  %1363 = vst [vmem:[%s5 + $0x1e8] sm:$0xff] %v1299
  %1364 = vst [vmem:[%s5 + $0x1f0] sm:$0xff] %v1300
  %1365 = vst [vmem:[%s5 + $0x1f8] sm:$0xff] %v1301
  // Predicated region
  $region22: #{wordseg_forward.9} parent=0 // pred_check
    _
  $region23: #{wordseg_forward.9} parent=0 // pred_check_branch
    %1367 = sbr.rel (0) target = $region25
  $region24: #{wordseg_forward.9} parent=0 // pred_region
    _
  $region25: #{wordseg_forward.9} parent=0 // pred_fallthru
    _
  // Predicated region
  $region26: #{wordseg_forward.9} parent=0 // pred_check
    _
  $region27: #{wordseg_forward.9} parent=0 // pred_check_branch
    %1369 = sbr.rel (0) target = $region29
  $region28: #{wordseg_forward.9} parent=0 // pred_region
    _
  $region29: #{wordseg_forward.9} parent=0 // pred_fallthru
    _

// kernel: wordseg_forward.8
$region0: #{wordseg_forward.8}
  #allocation0 [shape = 'u32[]', space=smem, size = 0x4, offset = 0x4, fixed_abs, tag = 'smem constant byte address 0x4 - core index']
  #allocation1 [shape = 'u32[144,128]{1,0:T(1,128)}', space=vmem, size = 0x12000, scoped, tag = 'internal scratch']
  #allocation2 [shape = 'f32[8,128]{1,0:T(8,128)}', space=vmem, size = 0x1000, scoped, tag = 'scratch operand']
  #allocation3 [shape = 'f32[8,128]{1,0:T(8,128)}', space=vmem, size = 0x1000, scoped, tag = 'scratch operand']
  #allocation4 [shape = 'f32[8,128]{1,0:T(8,128)}', space=vmem, size = 0x1000, scoped, tag = 'scratch operand']
  #allocation5 [shape = 'f32[8,128]{1,0:T(8,128)}', space=vmem, size = 0x1000, scoped, tag = 'scratch operand']
  #allocation6 [shape = 's32[1]{0}', space=sflag, size = 0x4, scoped, tag = 'scoped memory for wordseg_forward.8']
  #allocation7 [shape = 'u8[512]{0}', space=smem, size = 0x200, scoped, tag = 'prefetched SMEM operand 0']
  %s0 = inlined_call_operand.vmem [shape: s32[8], index: 0, kind: input, shape index: {}]
  %s1 = inlined_call_operand.vmem [shape: f32[8,8,1024], index: 1, kind: input, shape index: {}, may-alias: {1,2}]
  %s2 = inlined_call_operand.vmem [shape: f32[8,8,1024], index: 2, kind: input, shape index: {}, may-alias: {1,2}]
  %s3 = inlined_call_operand.vmem [shape: f32[128,512], index: 3, kind: input, shape index: {}]
  %s4 = inlined_call_operand.vmem [shape: f32[128,512], index: 4, kind: input, shape index: {}]
  %s5 = inlined_call_operand.vmem [shape: f32[8,8,128], index: 5, kind: output, shape index: {0}]
  %s6 = inlined_call_operand.vmem [shape: f32[8,8,128], index: 6, kind: output, shape index: {1}]
  %7 = xla_tuple %s5, %s6
  %s8 = sld [smem:[#allocation0]]
  $region84: #{wordseg_forward.8} parent=0
    _
  %s10 = ssub.s32 1, %s8
  %s11 = scalar_select 0, %s10, %s8
  %s12 = sshll.u32 %s0, 4
  %s13 = int_to_ptr.vmem [resolvable:$true] %s12
  %15 = dma.vmem_to_smem %s13, 16, [#allocation7], [#allocation6]
  %16 = dma.done [#allocation6], 16
  %17 = sfence
  $region1: #{wordseg_forward.8} parent=0
    #allocation8 [shape = 'u8[131072]{0}', space=vmem, size = 0x20000, scoped, tag = 'input window, operand 1, single buffered']
    #allocation9 [shape = 'u8[131072]{0}', space=vmem, size = 0x20000, scoped, tag = 'input window, operand 2, single buffered']
    // Predicated region
    $region2: #{wordseg_forward.8} parent=1 // pred_check
      _
    $region3: #{wordseg_forward.8} parent=1 // pred_check_branch
      %19 = sbr.rel (0) target = $region5
    $region4: #{wordseg_forward.8} parent=1 // pred_region
      // Predicated region
      $region6: #{wordseg_forward.8} parent=4 // pred_check
        _
      $region7: #{wordseg_forward.8} parent=4 // pred_check_branch
        %21 = sbr.rel (0) target = $region9
      $region8: #{wordseg_forward.8} parent=4 // pred_region
        // Predicated region
        $region10: #{wordseg_forward.8} parent=8 // pred_check
          _
        $region11: #{wordseg_forward.8} parent=8 // pred_check_branch
          %23 = sbr.rel (0) target = $region13
        $region12: #{wordseg_forward.8} parent=8 // pred_region
          loop: start=0, step=1, limit=1
          $region14: #{wordseg_forward.8} parent=12 // loop_pre_header
            _
          $region15: #{wordseg_forward.8} parent=12 // loop_header
            %s25 = sphi 0, %s29
            %p26 = scmp.ge.s32.totalorder %s25, 1
            %s30 = sphi %s1, %s1
            %s31 = sphi [#allocation8], [#allocation8]
          $region16: #{wordseg_forward.8} parent=12 // loop_header_branch
            %28 = sbr.rel (%p26) target = $region20
          $region17: #{wordseg_forward.8} parent=12 // loop_body
            %v32 = vld [vmem:[%s30] sm:$0xff]
            %33 = vst [vmem:[%s31] sm:$0xff] %v32
            %v34 = vld [vmem:[%s30 + $0x8] sm:$0xff]
            %35 = vst [vmem:[%s31 + $0x8] sm:$0xff] %v34
            %v36 = vld [vmem:[%s30 + $0x10] sm:$0xff]
            %37 = vst [vmem:[%s31 + $0x10] sm:$0xff] %v36
            %v38 = vld [vmem:[%s30 + $0x18] sm:$0xff]
            %39 = vst [vmem:[%s31 + $0x18] sm:$0xff] %v38
            %v40 = vld [vmem:[%s30 + $0x40] sm:$0xff]
            %41 = vst [vmem:[%s31 + $0x20] sm:$0xff] %v40
            %v42 = vld [vmem:[%s30 + $0x48] sm:$0xff]
            %43 = vst [vmem:[%s31 + $0x28] sm:$0xff] %v42
            %v44 = vld [vmem:[%s30 + $0x50] sm:$0xff]
            %45 = vst [vmem:[%s31 + $0x30] sm:$0xff] %v44
            %v46 = vld [vmem:[%s30 + $0x58] sm:$0xff]
            %47 = vst [vmem:[%s31 + $0x38] sm:$0xff] %v46
            %v48 = vld [vmem:[%s30 + $0x80] sm:$0xff]
            %49 = vst [vmem:[%s31 + $0x40] sm:$0xff] %v48
            %v50 = vld [vmem:[%s30 + $0x88] sm:$0xff]
            %51 = vst [vmem:[%s31 + $0x48] sm:$0xff] %v50
            %v52 = vld [vmem:[%s30 + $0x90] sm:$0xff]
            %53 = vst [vmem:[%s31 + $0x50] sm:$0xff] %v52
            %v54 = vld [vmem:[%s30 + $0x98] sm:$0xff]
            %55 = vst [vmem:[%s31 + $0x58] sm:$0xff] %v54
            %v56 = vld [vmem:[%s30 + $0xc0] sm:$0xff]
            %57 = vst [vmem:[%s31 + $0x60] sm:$0xff] %v56
            %v58 = vld [vmem:[%s30 + $0xc8] sm:$0xff]
            %59 = vst [vmem:[%s31 + $0x68] sm:$0xff] %v58
            %v60 = vld [vmem:[%s30 + $0xd0] sm:$0xff]
            %61 = vst [vmem:[%s31 + $0x70] sm:$0xff] %v60
            %v62 = vld [vmem:[%s30 + $0xd8] sm:$0xff]
            %63 = vst [vmem:[%s31 + $0x78] sm:$0xff] %v62
            %v64 = vld [vmem:[%s30 + $0x100] sm:$0xff]
            %65 = vst [vmem:[%s31 + $0x80] sm:$0xff] %v64
            %v66 = vld [vmem:[%s30 + $0x108] sm:$0xff]
            %67 = vst [vmem:[%s31 + $0x88] sm:$0xff] %v66
            %v68 = vld [vmem:[%s30 + $0x110] sm:$0xff]
            %69 = vst [vmem:[%s31 + $0x90] sm:$0xff] %v68
            %v70 = vld [vmem:[%s30 + $0x118] sm:$0xff]
            %71 = vst [vmem:[%s31 + $0x98] sm:$0xff] %v70
            %v72 = vld [vmem:[%s30 + $0x140] sm:$0xff]
            %73 = vst [vmem:[%s31 + $0xa0] sm:$0xff] %v72
            %v74 = vld [vmem:[%s30 + $0x148] sm:$0xff]
            %75 = vst [vmem:[%s31 + $0xa8] sm:$0xff] %v74
            %v76 = vld [vmem:[%s30 + $0x150] sm:$0xff]
            %77 = vst [vmem:[%s31 + $0xb0] sm:$0xff] %v76
            %v78 = vld [vmem:[%s30 + $0x158] sm:$0xff]
            %79 = vst [vmem:[%s31 + $0xb8] sm:$0xff] %v78
            %v80 = vld [vmem:[%s30 + $0x180] sm:$0xff]
            %81 = vst [vmem:[%s31 + $0xc0] sm:$0xff] %v80
            %v82 = vld [vmem:[%s30 + $0x188] sm:$0xff]
            %83 = vst [vmem:[%s31 + $0xc8] sm:$0xff] %v82
            %v84 = vld [vmem:[%s30 + $0x190] sm:$0xff]
            %85 = vst [vmem:[%s31 + $0xd0] sm:$0xff] %v84
            %v86 = vld [vmem:[%s30 + $0x198] sm:$0xff]
            %87 = vst [vmem:[%s31 + $0xd8] sm:$0xff] %v86
            %v88 = vld [vmem:[%s30 + $0x1c0] sm:$0xff]
            %89 = vst [vmem:[%s31 + $0xe0] sm:$0xff] %v88
            %v90 = vld [vmem:[%s30 + $0x1c8] sm:$0xff]
            %91 = vst [vmem:[%s31 + $0xe8] sm:$0xff] %v90
            %v92 = vld [vmem:[%s30 + $0x1d0] sm:$0xff]
            %93 = vst [vmem:[%s31 + $0xf0] sm:$0xff] %v92
            %v94 = vld [vmem:[%s30 + $0x1d8] sm:$0xff]
            %95 = vst [vmem:[%s31 + $0xf8] sm:$0xff] %v94
          $region18: #{wordseg_forward.8} parent=12 // loop_footer
            %s29 = sadd.s32 1, %s25
          $region19: #{wordseg_forward.8} parent=12 // loop_footer_branch
            %24 = sbr.rel target = $region15
          $region20: #{wordseg_forward.8} parent=12 // loop_exit
            _
        $region13: #{wordseg_forward.8} parent=8 // pred_fallthru
          _
        // Predicated region
        $region21: #{wordseg_forward.8} parent=8 // pred_check
          _
        $region22: #{wordseg_forward.8} parent=8 // pred_check_branch
          %97 = sbr.rel target = $region24
        $region23: #{wordseg_forward.8} parent=8 // pred_region
          _
        $region24: #{wordseg_forward.8} parent=8 // pred_fallthru
          _
      $region9: #{wordseg_forward.8} parent=4 // pred_fallthru
        _
      %98 = vnop
    $region5: #{wordseg_forward.8} parent=1 // pred_fallthru
      _
    // Predicated region
    $region25: #{wordseg_forward.8} parent=1 // pred_check
      _
    $region26: #{wordseg_forward.8} parent=1 // pred_check_branch
      %100 = sbr.rel (0) target = $region28
    $region27: #{wordseg_forward.8} parent=1 // pred_region
      %s101 = ssub.s32 0, 0
      %s102 = smul.u32 8, %s101
      %s103 = smul.addr %s102, 8
      %s104 = sadd.s32 4, %s103
      %s105 = smul.addr %s104, 8
      %s106 = scalar_lea.vmem %s2, %s105
      // Predicated region
      $region29: #{wordseg_forward.8} parent=27 // pred_check
        _
      $region30: #{wordseg_forward.8} parent=27 // pred_check_branch
        %108 = sbr.rel (0) target = $region32
      $region31: #{wordseg_forward.8} parent=27 // pred_region
        // Predicated region
        $region33: #{wordseg_forward.8} parent=31 // pred_check
          _
        $region34: #{wordseg_forward.8} parent=31 // pred_check_branch
          %110 = sbr.rel (0) target = $region36
        $region35: #{wordseg_forward.8} parent=31 // pred_region
          loop: start=0, step=1, limit=1
          $region37: #{wordseg_forward.8} parent=35 // loop_pre_header
            _
          $region38: #{wordseg_forward.8} parent=35 // loop_header
            %s112 = sphi 0, %s116
            %p113 = scmp.ge.s32.totalorder %s112, 1
            %s117 = sphi %s106, %s106
            %s118 = sphi [#allocation9], [#allocation9]
          $region39: #{wordseg_forward.8} parent=35 // loop_header_branch
            %115 = sbr.rel (%p113) target = $region43
          $region40: #{wordseg_forward.8} parent=35 // loop_body
            %v119 = vld [vmem:[%s117] sm:$0xff]
            %120 = vst [vmem:[%s118] sm:$0xff] %v119
            %v121 = vld [vmem:[%s117 + $0x8] sm:$0xff]
            %122 = vst [vmem:[%s118 + $0x8] sm:$0xff] %v121
            %v123 = vld [vmem:[%s117 + $0x10] sm:$0xff]
            %124 = vst [vmem:[%s118 + $0x10] sm:$0xff] %v123
            %v125 = vld [vmem:[%s117 + $0x18] sm:$0xff]
            %126 = vst [vmem:[%s118 + $0x18] sm:$0xff] %v125
            %v127 = vld [vmem:[%s117 + $0x40] sm:$0xff]
            %128 = vst [vmem:[%s118 + $0x20] sm:$0xff] %v127
            %v129 = vld [vmem:[%s117 + $0x48] sm:$0xff]
            %130 = vst [vmem:[%s118 + $0x28] sm:$0xff] %v129
            %v131 = vld [vmem:[%s117 + $0x50] sm:$0xff]
            %132 = vst [vmem:[%s118 + $0x30] sm:$0xff] %v131
            %v133 = vld [vmem:[%s117 + $0x58] sm:$0xff]
            %134 = vst [vmem:[%s118 + $0x38] sm:$0xff] %v133
            %v135 = vld [vmem:[%s117 + $0x80] sm:$0xff]
            %136 = vst [vmem:[%s118 + $0x40] sm:$0xff] %v135
            %v137 = vld [vmem:[%s117 + $0x88] sm:$0xff]
            %138 = vst [vmem:[%s118 + $0x48] sm:$0xff] %v137
            %v139 = vld [vmem:[%s117 + $0x90] sm:$0xff]
            %140 = vst [vmem:[%s118 + $0x50] sm:$0xff] %v139
            %v141 = vld [vmem:[%s117 + $0x98] sm:$0xff]
            %142 = vst [vmem:[%s118 + $0x58] sm:$0xff] %v141
            %v143 = vld [vmem:[%s117 + $0xc0] sm:$0xff]
            %144 = vst [vmem:[%s118 + $0x60] sm:$0xff] %v143
            %v145 = vld [vmem:[%s117 + $0xc8] sm:$0xff]
            %146 = vst [vmem:[%s118 + $0x68] sm:$0xff] %v145
            %v147 = vld [vmem:[%s117 + $0xd0] sm:$0xff]
            %148 = vst [vmem:[%s118 + $0x70] sm:$0xff] %v147
            %v149 = vld [vmem:[%s117 + $0xd8] sm:$0xff]
            %150 = vst [vmem:[%s118 + $0x78] sm:$0xff] %v149
            %v151 = vld [vmem:[%s117 + $0x100] sm:$0xff]
            %152 = vst [vmem:[%s118 + $0x80] sm:$0xff] %v151
            %v153 = vld [vmem:[%s117 + $0x108] sm:$0xff]
            %154 = vst [vmem:[%s118 + $0x88] sm:$0xff] %v153
            %v155 = vld [vmem:[%s117 + $0x110] sm:$0xff]
            %156 = vst [vmem:[%s118 + $0x90] sm:$0xff] %v155
            %v157 = vld [vmem:[%s117 + $0x118] sm:$0xff]
            %158 = vst [vmem:[%s118 + $0x98] sm:$0xff] %v157
            %v159 = vld [vmem:[%s117 + $0x140] sm:$0xff]
            %160 = vst [vmem:[%s118 + $0xa0] sm:$0xff] %v159
            %v161 = vld [vmem:[%s117 + $0x148] sm:$0xff]
            %162 = vst [vmem:[%s118 + $0xa8] sm:$0xff] %v161
            %v163 = vld [vmem:[%s117 + $0x150] sm:$0xff]
            %164 = vst [vmem:[%s118 + $0xb0] sm:$0xff] %v163
            %v165 = vld [vmem:[%s117 + $0x158] sm:$0xff]
            %166 = vst [vmem:[%s118 + $0xb8] sm:$0xff] %v165
            %v167 = vld [vmem:[%s117 + $0x180] sm:$0xff]
            %168 = vst [vmem:[%s118 + $0xc0] sm:$0xff] %v167
            %v169 = vld [vmem:[%s117 + $0x188] sm:$0xff]
            %170 = vst [vmem:[%s118 + $0xc8] sm:$0xff] %v169
            %v171 = vld [vmem:[%s117 + $0x190] sm:$0xff]
            %172 = vst [vmem:[%s118 + $0xd0] sm:$0xff] %v171
            %v173 = vld [vmem:[%s117 + $0x198] sm:$0xff]
            %174 = vst [vmem:[%s118 + $0xd8] sm:$0xff] %v173
            %v175 = vld [vmem:[%s117 + $0x1c0] sm:$0xff]
            %176 = vst [vmem:[%s118 + $0xe0] sm:$0xff] %v175
            %v177 = vld [vmem:[%s117 + $0x1c8] sm:$0xff]
            %178 = vst [vmem:[%s118 + $0xe8] sm:$0xff] %v177
            %v179 = vld [vmem:[%s117 + $0x1d0] sm:$0xff]
            %180 = vst [vmem:[%s118 + $0xf0] sm:$0xff] %v179
            %v181 = vld [vmem:[%s117 + $0x1d8] sm:$0xff]
            %182 = vst [vmem:[%s118 + $0xf8] sm:$0xff] %v181
          $region41: #{wordseg_forward.8} parent=35 // loop_footer
            %s116 = sadd.s32 1, %s112
          $region42: #{wordseg_forward.8} parent=35 // loop_footer_branch
            %111 = sbr.rel target = $region38
          $region43: #{wordseg_forward.8} parent=35 // loop_exit
            _
        $region36: #{wordseg_forward.8} parent=31 // pred_fallthru
          _
        // Predicated region
        $region44: #{wordseg_forward.8} parent=31 // pred_check
          _
        $region45: #{wordseg_forward.8} parent=31 // pred_check_branch
          %184 = sbr.rel target = $region47
        $region46: #{wordseg_forward.8} parent=31 // pred_region
          _
        $region47: #{wordseg_forward.8} parent=31 // pred_fallthru
          _
      $region32: #{wordseg_forward.8} parent=27 // pred_fallthru
        _
      %185 = vnop
    $region28: #{wordseg_forward.8} parent=1 // pred_fallthru
      _
    // Predicated region
    $region48: #{wordseg_forward.8} parent=1 // pred_check
      _
    $region49: #{wordseg_forward.8} parent=1 // pred_check_branch
      %187 = sbr.rel (0) target = $region51
    $region50: #{wordseg_forward.8} parent=1 // pred_region
      _
    $region51: #{wordseg_forward.8} parent=1 // pred_fallthru
      _
    // Predicated region
    $region52: #{wordseg_forward.8} parent=1 // pred_check
      _
    $region53: #{wordseg_forward.8} parent=1 // pred_check_branch
      %189 = sbr.rel (0) target = $region55
    $region54: #{wordseg_forward.8} parent=1 // pred_region
      _
    $region55: #{wordseg_forward.8} parent=1 // pred_fallthru
      _
    // Predicated region
    $region56: #{wordseg_forward.8} parent=1 // pred_check
      _
    $region57: #{wordseg_forward.8} parent=1 // pred_check_branch
      %191 = sbr.rel (0) target = $region59
    $region58: #{wordseg_forward.8} parent=1 // pred_region
      _
    $region59: #{wordseg_forward.8} parent=1 // pred_fallthru
      _
    // Predicated region
    $region60: #{wordseg_forward.8} parent=1 // pred_check
      _
    $region61: #{wordseg_forward.8} parent=1 // pred_check_branch
      %193 = sbr.rel (0) target = $region63
    $region62: #{wordseg_forward.8} parent=1 // pred_region
      _
    $region63: #{wordseg_forward.8} parent=1 // pred_fallthru
      _
    %s194 = ssub.s32 0, 0
    %s195 = smul.u32 8, %s194
    %p196 = scmp.lt.s32.totalorder %s195, 7
    %s197 = scalar_select %p196, %s195, 7
    %s198 = smul.addr %s197, 8
    %s199 = scalar_lea.vmem %s6, %s198
    %s200 = ssub.s32 0, 0
    %s201 = smul.u32 8, %s200
    %s202 = ssub.s32 0, 0
    %s203 = smul.u32 8, %s202
    %p204 = scmp.lt.s32.totalorder %s203, 7
    %s205 = scalar_select %p204, %s203, 7
    %s206 = smul.addr %s205, 8
    %s207 = scalar_lea.vmem %s6, %s206
    %s208 = ssub.s32 0, 0
    %s209 = smul.u32 8, %s208
    %p210 = scmp.eq.s32.totalorder 0, 0
    // Predicated region
    $region64: #{wordseg_forward.8} parent=1 // pred_check
      %p211 = pneg %p210
    $region65: #{wordseg_forward.8} parent=1 // pred_check_branch
      %213 = sbr.rel (%p211) target = $region67
    $region66: #{wordseg_forward.8} parent=1 // pred_region
      %214 = vst [vmem:[#allocation2] sm:$0xff] 0.0
      %215 = vst [vmem:[#allocation3] sm:$0xff] 0.0
      %216 = vst [vmem:[#allocation4] sm:$0xff] 0.0
      %217 = vst [vmem:[#allocation5] sm:$0xff] 0.0
    $region67: #{wordseg_forward.8} parent=1 // pred_fallthru
      _
    %v218 = vlaneseq
    %v219 = vshrl.u32 %v218, 7
    %s220 = smul.u32 0, 8
    %s221 = ssub.s32 7, %s220
    %v222 = vld [vmem:[#allocation8] sm:$0xff]
    %v223 = vld [vmem:[#allocation8 + $0x8] sm:$0xff]
    %v224 = vld [vmem:[#allocation8 + $0x10] sm:$0xff]
    %v225 = vld [vmem:[#allocation8 + $0x18] sm:$0xff]
    %s226 = sld [smem:[#allocation7 + %s220]]
    %v227 = vld [vmem:[#allocation2] sm:$0xff]
    %v228 = vld [vmem:[#allocation3] sm:$0xff]
    %v229 = vld [vmem:[%s3] sm:$0xff]
    %v230 = vld [vmem:[%s3 + $0x8] sm:$0xff]
    %v231 = vld [vmem:[%s3 + $0x10] sm:$0xff]
    %v232 = vld [vmem:[%s3 + $0x18] sm:$0xff]
    %v233 = vld [vmem:[%s3 + $0x20] sm:$0xff]
    %v234 = vld [vmem:[%s3 + $0x28] sm:$0xff]
    %v235 = vld [vmem:[%s3 + $0x30] sm:$0xff]
    %v236 = vld [vmem:[%s3 + $0x38] sm:$0xff]
    %v237 = vld [vmem:[%s3 + $0x40] sm:$0xff]
    %v238 = vld [vmem:[%s3 + $0x48] sm:$0xff]
    %v239 = vld [vmem:[%s3 + $0x50] sm:$0xff]
    %v240 = vld [vmem:[%s3 + $0x58] sm:$0xff]
    %v241 = vld [vmem:[%s3 + $0x60] sm:$0xff]
    %v242 = vld [vmem:[%s3 + $0x68] sm:$0xff]
    %v243 = vld [vmem:[%s3 + $0x70] sm:$0xff]
    %v244 = vld [vmem:[%s3 + $0x78] sm:$0xff]
    %v245 = vld [vmem:[%s3 + $0x80] sm:$0xff]
    %v246 = vld [vmem:[%s3 + $0x88] sm:$0xff]
    %v247 = vld [vmem:[%s3 + $0x90] sm:$0xff]
    %v248 = vld [vmem:[%s3 + $0x98] sm:$0xff]
    %v249 = vld [vmem:[%s3 + $0xa0] sm:$0xff]
    %v250 = vld [vmem:[%s3 + $0xa8] sm:$0xff]
    %v251 = vld [vmem:[%s3 + $0xb0] sm:$0xff]
    %v252 = vld [vmem:[%s3 + $0xb8] sm:$0xff]
    %v253 = vld [vmem:[%s3 + $0xc0] sm:$0xff]
    %v254 = vld [vmem:[%s3 + $0xc8] sm:$0xff]
    %v255 = vld [vmem:[%s3 + $0xd0] sm:$0xff]
    %v256 = vld [vmem:[%s3 + $0xd8] sm:$0xff]
    %v257 = vld [vmem:[%s3 + $0xe0] sm:$0xff]
    %v258 = vld [vmem:[%s3 + $0xe8] sm:$0xff]
    %v259 = vld [vmem:[%s3 + $0xf0] sm:$0xff]
    %v260 = vld [vmem:[%s3 + $0xf8] sm:$0xff]
    %v261 = vld [vmem:[%s3 + $0x100] sm:$0xff]
    %v262 = vld [vmem:[%s3 + $0x108] sm:$0xff]
    %v263 = vld [vmem:[%s3 + $0x110] sm:$0xff]
    %v264 = vld [vmem:[%s3 + $0x118] sm:$0xff]
    %v265 = vld [vmem:[%s3 + $0x120] sm:$0xff]
    %v266 = vld [vmem:[%s3 + $0x128] sm:$0xff]
    %v267 = vld [vmem:[%s3 + $0x130] sm:$0xff]
    %v268 = vld [vmem:[%s3 + $0x138] sm:$0xff]
    %v269 = vld [vmem:[%s3 + $0x140] sm:$0xff]
    %v270 = vld [vmem:[%s3 + $0x148] sm:$0xff]
    %v271 = vld [vmem:[%s3 + $0x150] sm:$0xff]
    %v272 = vld [vmem:[%s3 + $0x158] sm:$0xff]
    %v273 = vld [vmem:[%s3 + $0x160] sm:$0xff]
    %v274 = vld [vmem:[%s3 + $0x168] sm:$0xff]
    %v275 = vld [vmem:[%s3 + $0x170] sm:$0xff]
    %v276 = vld [vmem:[%s3 + $0x178] sm:$0xff]
    %v277 = vld [vmem:[%s3 + $0x180] sm:$0xff]
    %v278 = vld [vmem:[%s3 + $0x188] sm:$0xff]
    %v279 = vld [vmem:[%s3 + $0x190] sm:$0xff]
    %v280 = vld [vmem:[%s3 + $0x198] sm:$0xff]
    %v281 = vld [vmem:[%s3 + $0x1a0] sm:$0xff]
    %v282 = vld [vmem:[%s3 + $0x1a8] sm:$0xff]
    %v283 = vld [vmem:[%s3 + $0x1b0] sm:$0xff]
    %v284 = vld [vmem:[%s3 + $0x1b8] sm:$0xff]
    %v285 = vld [vmem:[%s3 + $0x1c0] sm:$0xff]
    %v286 = vld [vmem:[%s3 + $0x1c8] sm:$0xff]
    %v287 = vld [vmem:[%s3 + $0x1d0] sm:$0xff]
    %v288 = vld [vmem:[%s3 + $0x1d8] sm:$0xff]
    %v289 = vld [vmem:[%s3 + $0x1e0] sm:$0xff]
    %v290 = vld [vmem:[%s3 + $0x1e8] sm:$0xff]
    %v291 = vld [vmem:[%s3 + $0x1f0] sm:$0xff]
    %v292 = vld [vmem:[%s3 + $0x1f8] sm:$0xff]
    %293 = vmatprep.subr.mxu0 %v290
    %294 = vmatpush1.msra.mxu0 %v289
    %295 = vmatprep.subr.mxu0 %v286
    %296 = vmatpush1.msra.mxu0 %v285
    %297 = vmatprep.subr.mxu0 %v282
    %298 = vmatpush1.msra.mxu0 %v281
    %299 = vmatprep.subr.mxu0 %v278
    %300 = vmatpush1.msra.mxu0 %v277
    %301 = vmatprep.subr.mxu0 %v274
    %302 = vmatpush1.msra.mxu0 %v273
    %303 = vmatprep.subr.mxu0 %v270
    %304 = vmatpush1.msra.mxu0 %v269
    %305 = vmatprep.subr.mxu0 %v266
    %306 = vmatpush1.msra.mxu0 %v265
    %307 = vmatprep.subr.mxu0 %v262
    %308 = vmatpush1.msra.mxu0 %v261
    %309 = vmatprep.subr.mxu0 %v258
    %310 = vmatpush1.msra.mxu0 %v257
    %311 = vmatprep.subr.mxu0 %v254
    %312 = vmatpush1.msra.mxu0 %v253
    %313 = vmatprep.subr.mxu0 %v250
    %314 = vmatpush1.msra.mxu0 %v249
    %315 = vmatprep.subr.mxu0 %v246
    %316 = vmatpush1.msra.mxu0 %v245
    %317 = vmatprep.subr.mxu0 %v242
    %318 = vmatpush1.msra.mxu0 %v241
    %319 = vmatprep.subr.mxu0 %v238
    %320 = vmatpush1.msra.mxu0 %v237
    %321 = vmatprep.subr.mxu0 %v234
    %322 = vmatpush1.msra.mxu0 %v233
    %323 = vmatprep.subr.mxu0 %v230
    %324 = vmatpush1.msra.mxu0 %v229
    %325 = vmatprep.subr.mxu0 0.0
    %326 = vmatpush2.msra.mxu0 0.0
    %327 = vmatprep.subr.mxu0 0.0
    %328 = vmatpush2.msra.mxu0 0.0
    %329 = vmatprep.subr.mxu0 0.0
    %330 = vmatpush2.msra.mxu0 0.0
    %331 = vmatprep.subr.mxu0 0.0
    %332 = vmatpush2.msra.mxu0 0.0
    %333 = vmatprep.subr.mxu0 0.0
    %334 = vmatpush2.msra.mxu0 0.0
    %335 = vmatprep.subr.mxu0 0.0
    %336 = vmatpush2.msra.mxu0 0.0
    %337 = vmatprep.subr.mxu0 0.0
    %338 = vmatpush2.msra.mxu0 0.0
    %339 = vmatprep.subr.mxu0 0.0
    %340 = vmatpush2.msra.mxu0 0.0
    %341 = vmatprep.subr.mxu0 0.0
    %342 = vmatpush2.msra.mxu0 0.0
    %343 = vmatprep.subr.mxu0 0.0
    %344 = vmatpush2.msra.mxu0 0.0
    %345 = vmatprep.subr.mxu0 0.0
    %346 = vmatpush2.msra.mxu0 0.0
    %347 = vmatprep.subr.mxu0 0.0
    %348 = vmatpush2.msra.mxu0 0.0
    %349 = vmatprep.subr.mxu0 0.0
    %350 = vmatpush2.msra.mxu0 0.0
    %351 = vmatprep.subr.mxu0 0.0
    %352 = vmatpush2.msra.mxu0 0.0
    %353 = vmatprep.subr.mxu0 0.0
    %354 = vmatpush2.msra.mxu0 0.0
    %355 = vmatprep.subr.mxu0 0.0
    %356 = vmatpush2.msra.mxu0 0.0
    %357 = vmatprep.mubr.f32.mxu0 0.0
    %358 = vmatmul.mubr.f32.gmra.mxu0 %v227
    %v359 = vpop.f32.mrf.mxu0
    %v360 = vadd.f32 0.0, %v359
    %v361 = vpop.f32.mrf.mxu0
    %v362 = vadd.f32 0.0, %v361
    %363 = vdwg.mxu0
    %364 = vmatprep.subr.mxu0 %v292
    %365 = vmatpush1.msra.mxu0 %v291
    %366 = vmatprep.subr.mxu0 %v288
    %367 = vmatpush1.msra.mxu0 %v287
    %368 = vmatprep.subr.mxu0 %v284
    %369 = vmatpush1.msra.mxu0 %v283
    %370 = vmatprep.subr.mxu0 %v280
    %371 = vmatpush1.msra.mxu0 %v279
    %372 = vmatprep.subr.mxu0 %v276
    %373 = vmatpush1.msra.mxu0 %v275
    %374 = vmatprep.subr.mxu0 %v272
    %375 = vmatpush1.msra.mxu0 %v271
    %376 = vmatprep.subr.mxu0 %v268
    %377 = vmatpush1.msra.mxu0 %v267
    %378 = vmatprep.subr.mxu0 %v264
    %379 = vmatpush1.msra.mxu0 %v263
    %380 = vmatprep.subr.mxu0 %v260
    %381 = vmatpush1.msra.mxu0 %v259
    %382 = vmatprep.subr.mxu0 %v256
    %383 = vmatpush1.msra.mxu0 %v255
    %384 = vmatprep.subr.mxu0 %v252
    %385 = vmatpush1.msra.mxu0 %v251
    %386 = vmatprep.subr.mxu0 %v248
    %387 = vmatpush1.msra.mxu0 %v247
    %388 = vmatprep.subr.mxu0 %v244
    %389 = vmatpush1.msra.mxu0 %v243
    %390 = vmatprep.subr.mxu0 %v240
    %391 = vmatpush1.msra.mxu0 %v239
    %392 = vmatprep.subr.mxu0 %v236
    %393 = vmatpush1.msra.mxu0 %v235
    %394 = vmatprep.subr.mxu0 %v232
    %395 = vmatpush1.msra.mxu0 %v231
    %396 = vmatprep.subr.mxu0 0.0
    %397 = vmatpush2.msra.mxu0 0.0
    %398 = vmatprep.subr.mxu0 0.0
    %399 = vmatpush2.msra.mxu0 0.0
    %400 = vmatprep.subr.mxu0 0.0
    %401 = vmatpush2.msra.mxu0 0.0
    %402 = vmatprep.subr.mxu0 0.0
    %403 = vmatpush2.msra.mxu0 0.0
    %404 = vmatprep.subr.mxu0 0.0
    %405 = vmatpush2.msra.mxu0 0.0
    %406 = vmatprep.subr.mxu0 0.0
    %407 = vmatpush2.msra.mxu0 0.0
    %408 = vmatprep.subr.mxu0 0.0
    %409 = vmatpush2.msra.mxu0 0.0
    %410 = vmatprep.subr.mxu0 0.0
    %411 = vmatpush2.msra.mxu0 0.0
    %412 = vmatprep.subr.mxu0 0.0
    %413 = vmatpush2.msra.mxu0 0.0
    %414 = vmatprep.subr.mxu0 0.0
    %415 = vmatpush2.msra.mxu0 0.0
    %416 = vmatprep.subr.mxu0 0.0
    %417 = vmatpush2.msra.mxu0 0.0
    %418 = vmatprep.subr.mxu0 0.0
    %419 = vmatpush2.msra.mxu0 0.0
    %420 = vmatprep.subr.mxu0 0.0
    %421 = vmatpush2.msra.mxu0 0.0
    %422 = vmatprep.subr.mxu0 0.0
    %423 = vmatpush2.msra.mxu0 0.0
    %424 = vmatprep.subr.mxu0 0.0
    %425 = vmatpush2.msra.mxu0 0.0
    %426 = vmatprep.subr.mxu0 0.0
    %427 = vmatpush2.msra.mxu0 0.0
    %428 = vmatprep.mubr.f32.mxu0 0.0
    %429 = vmatmul.mubr.f32.gmra.mxu0 %v227
    %v430 = vpop.f32.mrf.mxu0
    %v431 = vadd.f32 0.0, %v430
    %v432 = vpop.f32.mrf.mxu0
    %v433 = vadd.f32 0.0, %v432
    %434 = vdwg.mxu0
    %v435 = vadd.f32 %v222, %v360
    %v436 = vadd.f32 %v223, %v362
    %v437 = vadd.f32 %v224, %v431
    %v438 = vadd.f32 %v225, %v433
    %v439 = vxor.u32 %v435, 2147483648
    %v440 = vmul.f32 %v439, 1.442695
    %v441 = vpow.pop %v440
    %v442 = vadd.f32 %v441, 1.0
    %v443 = vrcp.pop %v442
    %v444 = vmul.f32 1.0, %v443
    %v445 = vxor.u32 %v436, 2147483648
    %v446 = vmul.f32 %v445, 1.442695
    %v447 = vpow.pop %v446
    %v448 = vadd.f32 %v447, 1.0
    %v449 = vrcp.pop %v448
    %v450 = vmul.f32 1.0, %v449
    %v451 = vtanh.pop %v437
    %v452 = vxor.u32 %v438, 2147483648
    %v453 = vmul.f32 %v452, 1.442695
    %v454 = vpow.pop %v453
    %v455 = vadd.f32 %v454, 1.0
    %v456 = vrcp.pop %v455
    %v457 = vmul.f32 1.0, %v456
    %v458 = vmul.f32 %v450, %v228
    %v459 = vmul.f32 %v444, %v451
    %v460 = vadd.f32 %v458, %v459
    %v461 = vtanh.pop %v460
    %v462 = vmul.f32 %v457, %v461
    %v463 = vstv %s226
    %vm464 = vcmp.lt.s32.totalorder %v219, %v463
    %v465 = vsel %vm464, 1, 0
    %vm466 = vcmp.eq.s32.totalorder %v465, 1
    %v467 = vsel %vm466, %v462, %v227
    %468 = vst [vmem:[#allocation2] sm:$0xff] %v467
    %v469 = vsel %vm466, %v460, %v228
    %470 = vst [vmem:[#allocation3] sm:$0xff] %v469
    %v471 = vsel %vm466, %v462, 0.0
    %472 = vst [vmem:[%s5] sm:$0xff] %v471
    %s473 = scalar_lea.vmem [#allocation9], 224
    %v474 = vld [vmem:[%s473] sm:$0xff]
    %v475 = vld [vmem:[%s473 + $0x8] sm:$0xff]
    %v476 = vld [vmem:[%s473 + $0x10] sm:$0xff]
    %v477 = vld [vmem:[%s473 + $0x18] sm:$0xff]
    %s478 = sld [smem:[#allocation7 + %s221]]
    %v479 = vld [vmem:[#allocation4] sm:$0xff]
    %v480 = vld [vmem:[#allocation5] sm:$0xff]
    %v481 = vld [vmem:[%s4] sm:$0xff]
    %v482 = vld [vmem:[%s4 + $0x8] sm:$0xff]
    %v483 = vld [vmem:[%s4 + $0x10] sm:$0xff]
    %v484 = vld [vmem:[%s4 + $0x18] sm:$0xff]
    %v485 = vld [vmem:[%s4 + $0x20] sm:$0xff]
    %v486 = vld [vmem:[%s4 + $0x28] sm:$0xff]
    %v487 = vld [vmem:[%s4 + $0x30] sm:$0xff]
    %v488 = vld [vmem:[%s4 + $0x38] sm:$0xff]
    %v489 = vld [vmem:[%s4 + $0x40] sm:$0xff]
    %v490 = vld [vmem:[%s4 + $0x48] sm:$0xff]
    %v491 = vld [vmem:[%s4 + $0x50] sm:$0xff]
    %v492 = vld [vmem:[%s4 + $0x58] sm:$0xff]
    %v493 = vld [vmem:[%s4 + $0x60] sm:$0xff]
    %v494 = vld [vmem:[%s4 + $0x68] sm:$0xff]
    %v495 = vld [vmem:[%s4 + $0x70] sm:$0xff]
    %v496 = vld [vmem:[%s4 + $0x78] sm:$0xff]
    %v497 = vld [vmem:[%s4 + $0x80] sm:$0xff]
    %v498 = vld [vmem:[%s4 + $0x88] sm:$0xff]
    %v499 = vld [vmem:[%s4 + $0x90] sm:$0xff]
    %v500 = vld [vmem:[%s4 + $0x98] sm:$0xff]
    %v501 = vld [vmem:[%s4 + $0xa0] sm:$0xff]
    %v502 = vld [vmem:[%s4 + $0xa8] sm:$0xff]
    %v503 = vld [vmem:[%s4 + $0xb0] sm:$0xff]
    %v504 = vld [vmem:[%s4 + $0xb8] sm:$0xff]
    %v505 = vld [vmem:[%s4 + $0xc0] sm:$0xff]
    %v506 = vld [vmem:[%s4 + $0xc8] sm:$0xff]
    %v507 = vld [vmem:[%s4 + $0xd0] sm:$0xff]
    %v508 = vld [vmem:[%s4 + $0xd8] sm:$0xff]
    %v509 = vld [vmem:[%s4 + $0xe0] sm:$0xff]
    %v510 = vld [vmem:[%s4 + $0xe8] sm:$0xff]
    %v511 = vld [vmem:[%s4 + $0xf0] sm:$0xff]
    %v512 = vld [vmem:[%s4 + $0xf8] sm:$0xff]
    %v513 = vld [vmem:[%s4 + $0x100] sm:$0xff]
    %v514 = vld [vmem:[%s4 + $0x108] sm:$0xff]
    %v515 = vld [vmem:[%s4 + $0x110] sm:$0xff]
    %v516 = vld [vmem:[%s4 + $0x118] sm:$0xff]
    %v517 = vld [vmem:[%s4 + $0x120] sm:$0xff]
    %v518 = vld [vmem:[%s4 + $0x128] sm:$0xff]
    %v519 = vld [vmem:[%s4 + $0x130] sm:$0xff]
    %v520 = vld [vmem:[%s4 + $0x138] sm:$0xff]
    %v521 = vld [vmem:[%s4 + $0x140] sm:$0xff]
    %v522 = vld [vmem:[%s4 + $0x148] sm:$0xff]
    %v523 = vld [vmem:[%s4 + $0x150] sm:$0xff]
    %v524 = vld [vmem:[%s4 + $0x158] sm:$0xff]
    %v525 = vld [vmem:[%s4 + $0x160] sm:$0xff]
    %v526 = vld [vmem:[%s4 + $0x168] sm:$0xff]
    %v527 = vld [vmem:[%s4 + $0x170] sm:$0xff]
    %v528 = vld [vmem:[%s4 + $0x178] sm:$0xff]
    %v529 = vld [vmem:[%s4 + $0x180] sm:$0xff]
    %v530 = vld [vmem:[%s4 + $0x188] sm:$0xff]
    %v531 = vld [vmem:[%s4 + $0x190] sm:$0xff]
    %v532 = vld [vmem:[%s4 + $0x198] sm:$0xff]
    %v533 = vld [vmem:[%s4 + $0x1a0] sm:$0xff]
    %v534 = vld [vmem:[%s4 + $0x1a8] sm:$0xff]
    %v535 = vld [vmem:[%s4 + $0x1b0] sm:$0xff]
    %v536 = vld [vmem:[%s4 + $0x1b8] sm:$0xff]
    %v537 = vld [vmem:[%s4 + $0x1c0] sm:$0xff]
    %v538 = vld [vmem:[%s4 + $0x1c8] sm:$0xff]
    %v539 = vld [vmem:[%s4 + $0x1d0] sm:$0xff]
    %v540 = vld [vmem:[%s4 + $0x1d8] sm:$0xff]
    %v541 = vld [vmem:[%s4 + $0x1e0] sm:$0xff]
    %v542 = vld [vmem:[%s4 + $0x1e8] sm:$0xff]
    %v543 = vld [vmem:[%s4 + $0x1f0] sm:$0xff]
    %v544 = vld [vmem:[%s4 + $0x1f8] sm:$0xff]
    %545 = vmatprep.subr.mxu0 %v542
    %546 = vmatpush1.msra.mxu0 %v541
    %547 = vmatprep.subr.mxu0 %v538
    %548 = vmatpush1.msra.mxu0 %v537
    %549 = vmatprep.subr.mxu0 %v534
    %550 = vmatpush1.msra.mxu0 %v533
    %551 = vmatprep.subr.mxu0 %v530
    %552 = vmatpush1.msra.mxu0 %v529
    %553 = vmatprep.subr.mxu0 %v526
    %554 = vmatpush1.msra.mxu0 %v525
    %555 = vmatprep.subr.mxu0 %v522
    %556 = vmatpush1.msra.mxu0 %v521
    %557 = vmatprep.subr.mxu0 %v518
    %558 = vmatpush1.msra.mxu0 %v517
    %559 = vmatprep.subr.mxu0 %v514
    %560 = vmatpush1.msra.mxu0 %v513
    %561 = vmatprep.subr.mxu0 %v510
    %562 = vmatpush1.msra.mxu0 %v509
    %563 = vmatprep.subr.mxu0 %v506
    %564 = vmatpush1.msra.mxu0 %v505
    %565 = vmatprep.subr.mxu0 %v502
    %566 = vmatpush1.msra.mxu0 %v501
    %567 = vmatprep.subr.mxu0 %v498
    %568 = vmatpush1.msra.mxu0 %v497
    %569 = vmatprep.subr.mxu0 %v494
    %570 = vmatpush1.msra.mxu0 %v493
    %571 = vmatprep.subr.mxu0 %v490
    %572 = vmatpush1.msra.mxu0 %v489
    %573 = vmatprep.subr.mxu0 %v486
    %574 = vmatpush1.msra.mxu0 %v485
    %575 = vmatprep.subr.mxu0 %v482
    %576 = vmatpush1.msra.mxu0 %v481
    %577 = vmatprep.subr.mxu0 0.0
    %578 = vmatpush2.msra.mxu0 0.0
    %579 = vmatprep.subr.mxu0 0.0
    %580 = vmatpush2.msra.mxu0 0.0
    %581 = vmatprep.subr.mxu0 0.0
    %582 = vmatpush2.msra.mxu0 0.0
    %583 = vmatprep.subr.mxu0 0.0
    %584 = vmatpush2.msra.mxu0 0.0
    %585 = vmatprep.subr.mxu0 0.0
    %586 = vmatpush2.msra.mxu0 0.0
    %587 = vmatprep.subr.mxu0 0.0
    %588 = vmatpush2.msra.mxu0 0.0
    %589 = vmatprep.subr.mxu0 0.0
    %590 = vmatpush2.msra.mxu0 0.0
    %591 = vmatprep.subr.mxu0 0.0
    %592 = vmatpush2.msra.mxu0 0.0
    %593 = vmatprep.subr.mxu0 0.0
    %594 = vmatpush2.msra.mxu0 0.0
    %595 = vmatprep.subr.mxu0 0.0
    %596 = vmatpush2.msra.mxu0 0.0
    %597 = vmatprep.subr.mxu0 0.0
    %598 = vmatpush2.msra.mxu0 0.0
    %599 = vmatprep.subr.mxu0 0.0
    %600 = vmatpush2.msra.mxu0 0.0
    %601 = vmatprep.subr.mxu0 0.0
    %602 = vmatpush2.msra.mxu0 0.0
    %603 = vmatprep.subr.mxu0 0.0
    %604 = vmatpush2.msra.mxu0 0.0
    %605 = vmatprep.subr.mxu0 0.0
    %606 = vmatpush2.msra.mxu0 0.0
    %607 = vmatprep.subr.mxu0 0.0
    %608 = vmatpush2.msra.mxu0 0.0
    %609 = vmatprep.mubr.f32.mxu0 0.0
    %610 = vmatmul.mubr.f32.gmra.mxu0 %v479
    %v611 = vpop.f32.mrf.mxu0
    %v612 = vadd.f32 0.0, %v611
    %v613 = vpop.f32.mrf.mxu0
    %v614 = vadd.f32 0.0, %v613
    %615 = vdwg.mxu0
    %616 = vmatprep.subr.mxu0 %v544
    %617 = vmatpush1.msra.mxu0 %v543
    %618 = vmatprep.subr.mxu0 %v540
    %619 = vmatpush1.msra.mxu0 %v539
    %620 = vmatprep.subr.mxu0 %v536
    %621 = vmatpush1.msra.mxu0 %v535
    %622 = vmatprep.subr.mxu0 %v532
    %623 = vmatpush1.msra.mxu0 %v531
    %624 = vmatprep.subr.mxu0 %v528
    %625 = vmatpush1.msra.mxu0 %v527
    %626 = vmatprep.subr.mxu0 %v524
    %627 = vmatpush1.msra.mxu0 %v523
    %628 = vmatprep.subr.mxu0 %v520
    %629 = vmatpush1.msra.mxu0 %v519
    %630 = vmatprep.subr.mxu0 %v516
    %631 = vmatpush1.msra.mxu0 %v515
    %632 = vmatprep.subr.mxu0 %v512
    %633 = vmatpush1.msra.mxu0 %v511
    %634 = vmatprep.subr.mxu0 %v508
    %635 = vmatpush1.msra.mxu0 %v507
    %636 = vmatprep.subr.mxu0 %v504
    %637 = vmatpush1.msra.mxu0 %v503
    %638 = vmatprep.subr.mxu0 %v500
    %639 = vmatpush1.msra.mxu0 %v499
    %640 = vmatprep.subr.mxu0 %v496
    %641 = vmatpush1.msra.mxu0 %v495
    %642 = vmatprep.subr.mxu0 %v492
    %643 = vmatpush1.msra.mxu0 %v491
    %644 = vmatprep.subr.mxu0 %v488
    %645 = vmatpush1.msra.mxu0 %v487
    %646 = vmatprep.subr.mxu0 %v484
    %647 = vmatpush1.msra.mxu0 %v483
    %648 = vmatprep.subr.mxu0 0.0
    %649 = vmatpush2.msra.mxu0 0.0
    %650 = vmatprep.subr.mxu0 0.0
    %651 = vmatpush2.msra.mxu0 0.0
    %652 = vmatprep.subr.mxu0 0.0
    %653 = vmatpush2.msra.mxu0 0.0
    %654 = vmatprep.subr.mxu0 0.0
    %655 = vmatpush2.msra.mxu0 0.0
    %656 = vmatprep.subr.mxu0 0.0
    %657 = vmatpush2.msra.mxu0 0.0
    %658 = vmatprep.subr.mxu0 0.0
    %659 = vmatpush2.msra.mxu0 0.0
    %660 = vmatprep.subr.mxu0 0.0
    %661 = vmatpush2.msra.mxu0 0.0
    %662 = vmatprep.subr.mxu0 0.0
    %663 = vmatpush2.msra.mxu0 0.0
    %664 = vmatprep.subr.mxu0 0.0
    %665 = vmatpush2.msra.mxu0 0.0
    %666 = vmatprep.subr.mxu0 0.0
    %667 = vmatpush2.msra.mxu0 0.0
    %668 = vmatprep.subr.mxu0 0.0
    %669 = vmatpush2.msra.mxu0 0.0
    %670 = vmatprep.subr.mxu0 0.0
    %671 = vmatpush2.msra.mxu0 0.0
    %672 = vmatprep.subr.mxu0 0.0
    %673 = vmatpush2.msra.mxu0 0.0
    %674 = vmatprep.subr.mxu0 0.0
    %675 = vmatpush2.msra.mxu0 0.0
    %676 = vmatprep.subr.mxu0 0.0
    %677 = vmatpush2.msra.mxu0 0.0
    %678 = vmatprep.subr.mxu0 0.0
    %679 = vmatpush2.msra.mxu0 0.0
    %680 = vmatprep.mubr.f32.mxu0 0.0
    %681 = vmatmul.mubr.f32.gmra.mxu0 %v479
    %v682 = vpop.f32.mrf.mxu0
    %v683 = vadd.f32 0.0, %v682
    %v684 = vpop.f32.mrf.mxu0
    %v685 = vadd.f32 0.0, %v684
    %686 = vdwg.mxu0
    %v687 = vadd.f32 %v474, %v612
    %v688 = vadd.f32 %v475, %v614
    %v689 = vadd.f32 %v476, %v683
    %v690 = vadd.f32 %v477, %v685
    %v691 = vxor.u32 %v687, 2147483648
    %v692 = vmul.f32 %v691, 1.442695
    %v693 = vpow.pop %v692
    %v694 = vadd.f32 %v693, 1.0
    %v695 = vrcp.pop %v694
    %v696 = vmul.f32 1.0, %v695
    %v697 = vxor.u32 %v688, 2147483648
    %v698 = vmul.f32 %v697, 1.442695
    %v699 = vpow.pop %v698
    %v700 = vadd.f32 %v699, 1.0
    %v701 = vrcp.pop %v700
    %v702 = vmul.f32 1.0, %v701
    %v703 = vtanh.pop %v689
    %v704 = vxor.u32 %v690, 2147483648
    %v705 = vmul.f32 %v704, 1.442695
    %v706 = vpow.pop %v705
    %v707 = vadd.f32 %v706, 1.0
    %v708 = vrcp.pop %v707
    %v709 = vmul.f32 1.0, %v708
    %v710 = vmul.f32 %v702, %v480
    %v711 = vmul.f32 %v696, %v703
    %v712 = vadd.f32 %v710, %v711
    %v713 = vtanh.pop %v712
    %v714 = vmul.f32 %v709, %v713
    %v715 = vstv %s478
    %vm716 = vcmp.lt.s32.totalorder %v219, %v715
    %v717 = vsel %vm716, 1, 0
    %vm718 = vcmp.eq.s32.totalorder %v717, 1
    %v719 = vsel %vm718, %v714, %v479
    %720 = vst [vmem:[#allocation4] sm:$0xff] %v719
    %v721 = vsel %vm718, %v712, %v480
    %722 = vst [vmem:[#allocation5] sm:$0xff] %v721
    %v723 = vsel %vm718, %v714, 0.0
    %s724 = scalar_lea.vmem %s207, 56
    %725 = vst [vmem:[%s724] sm:$0xff] %v723
    %s726 = sadd.s32 %s220, 1
    %s727 = ssub.s32 6, %s220
    %s728 = scalar_lea.vmem [#allocation8], 32
    %v729 = vld [vmem:[%s728] sm:$0xff]
    %v730 = vld [vmem:[%s728 + $0x8] sm:$0xff]
    %v731 = vld [vmem:[%s728 + $0x10] sm:$0xff]
    %v732 = vld [vmem:[%s728 + $0x18] sm:$0xff]
    %s733 = sld [smem:[#allocation7 + %s726]]
    %v734 = vld [vmem:[#allocation2] sm:$0xff]
    %v735 = vld [vmem:[#allocation3] sm:$0xff]
    %v736 = vld [vmem:[%s3] sm:$0xff]
    %v737 = vld [vmem:[%s3 + $0x8] sm:$0xff]
    %v738 = vld [vmem:[%s3 + $0x10] sm:$0xff]
    %v739 = vld [vmem:[%s3 + $0x18] sm:$0xff]
    %v740 = vld [vmem:[%s3 + $0x20] sm:$0xff]
    %v741 = vld [vmem:[%s3 + $0x28] sm:$0xff]
    %v742 = vld [vmem:[%s3 + $0x30] sm:$0xff]
    %v743 = vld [vmem:[%s3 + $0x38] sm:$0xff]
    %v744 = vld [vmem:[%s3 + $0x40] sm:$0xff]
    %v745 = vld [vmem:[%s3 + $0x48] sm:$0xff]
    %v746 = vld [vmem:[%s3 + $0x50] sm:$0xff]
    %v747 = vld [vmem:[%s3 + $0x58] sm:$0xff]
    %v748 = vld [vmem:[%s3 + $0x60] sm:$0xff]
    %v749 = vld [vmem:[%s3 + $0x68] sm:$0xff]
    %v750 = vld [vmem:[%s3 + $0x70] sm:$0xff]
    %v751 = vld [vmem:[%s3 + $0x78] sm:$0xff]
    %v752 = vld [vmem:[%s3 + $0x80] sm:$0xff]
    %v753 = vld [vmem:[%s3 + $0x88] sm:$0xff]
    %v754 = vld [vmem:[%s3 + $0x90] sm:$0xff]
    %v755 = vld [vmem:[%s3 + $0x98] sm:$0xff]
    %v756 = vld [vmem:[%s3 + $0xa0] sm:$0xff]
    %v757 = vld [vmem:[%s3 + $0xa8] sm:$0xff]
    %v758 = vld [vmem:[%s3 + $0xb0] sm:$0xff]
    %v759 = vld [vmem:[%s3 + $0xb8] sm:$0xff]
    %v760 = vld [vmem:[%s3 + $0xc0] sm:$0xff]
    %v761 = vld [vmem:[%s3 + $0xc8] sm:$0xff]
    %v762 = vld [vmem:[%s3 + $0xd0] sm:$0xff]
    %v763 = vld [vmem:[%s3 + $0xd8] sm:$0xff]
    %v764 = vld [vmem:[%s3 + $0xe0] sm:$0xff]
    %v765 = vld [vmem:[%s3 + $0xe8] sm:$0xff]
    %v766 = vld [vmem:[%s3 + $0xf0] sm:$0xff]
    %v767 = vld [vmem:[%s3 + $0xf8] sm:$0xff]
    %v768 = vld [vmem:[%s3 + $0x100] sm:$0xff]
    %v769 = vld [vmem:[%s3 + $0x108] sm:$0xff]
    %v770 = vld [vmem:[%s3 + $0x110] sm:$0xff]
    %v771 = vld [vmem:[%s3 + $0x118] sm:$0xff]
    %v772 = vld [vmem:[%s3 + $0x120] sm:$0xff]
    %v773 = vld [vmem:[%s3 + $0x128] sm:$0xff]
    %v774 = vld [vmem:[%s3 + $0x130] sm:$0xff]
    %v775 = vld [vmem:[%s3 + $0x138] sm:$0xff]
    %v776 = vld [vmem:[%s3 + $0x140] sm:$0xff]
    %v777 = vld [vmem:[%s3 + $0x148] sm:$0xff]
    %v778 = vld [vmem:[%s3 + $0x150] sm:$0xff]
    %v779 = vld [vmem:[%s3 + $0x158] sm:$0xff]
    %v780 = vld [vmem:[%s3 + $0x160] sm:$0xff]
    %v781 = vld [vmem:[%s3 + $0x168] sm:$0xff]
    %v782 = vld [vmem:[%s3 + $0x170] sm:$0xff]
    %v783 = vld [vmem:[%s3 + $0x178] sm:$0xff]
    %v784 = vld [vmem:[%s3 + $0x180] sm:$0xff]
    %v785 = vld [vmem:[%s3 + $0x188] sm:$0xff]
    %v786 = vld [vmem:[%s3 + $0x190] sm:$0xff]
    %v787 = vld [vmem:[%s3 + $0x198] sm:$0xff]
    %v788 = vld [vmem:[%s3 + $0x1a0] sm:$0xff]
    %v789 = vld [vmem:[%s3 + $0x1a8] sm:$0xff]
    %v790 = vld [vmem:[%s3 + $0x1b0] sm:$0xff]
    %v791 = vld [vmem:[%s3 + $0x1b8] sm:$0xff]
    %v792 = vld [vmem:[%s3 + $0x1c0] sm:$0xff]
    %v793 = vld [vmem:[%s3 + $0x1c8] sm:$0xff]
    %v794 = vld [vmem:[%s3 + $0x1d0] sm:$0xff]
    %v795 = vld [vmem:[%s3 + $0x1d8] sm:$0xff]
    %v796 = vld [vmem:[%s3 + $0x1e0] sm:$0xff]
    %v797 = vld [vmem:[%s3 + $0x1e8] sm:$0xff]
    %v798 = vld [vmem:[%s3 + $0x1f0] sm:$0xff]
    %v799 = vld [vmem:[%s3 + $0x1f8] sm:$0xff]
    %800 = vmatprep.subr.mxu0 %v797
    %801 = vmatpush1.msra.mxu0 %v796
    %802 = vmatprep.subr.mxu0 %v793
    %803 = vmatpush1.msra.mxu0 %v792
    %804 = vmatprep.subr.mxu0 %v789
    %805 = vmatpush1.msra.mxu0 %v788
    %806 = vmatprep.subr.mxu0 %v785
    %807 = vmatpush1.msra.mxu0 %v784
    %808 = vmatprep.subr.mxu0 %v781
    %809 = vmatpush1.msra.mxu0 %v780
    %810 = vmatprep.subr.mxu0 %v777
    %811 = vmatpush1.msra.mxu0 %v776
    %812 = vmatprep.subr.mxu0 %v773
    %813 = vmatpush1.msra.mxu0 %v772
    %814 = vmatprep.subr.mxu0 %v769
    %815 = vmatpush1.msra.mxu0 %v768
    %816 = vmatprep.subr.mxu0 %v765
    %817 = vmatpush1.msra.mxu0 %v764
    %818 = vmatprep.subr.mxu0 %v761
    %819 = vmatpush1.msra.mxu0 %v760
    %820 = vmatprep.subr.mxu0 %v757
    %821 = vmatpush1.msra.mxu0 %v756
    %822 = vmatprep.subr.mxu0 %v753
    %823 = vmatpush1.msra.mxu0 %v752
    %824 = vmatprep.subr.mxu0 %v749
    %825 = vmatpush1.msra.mxu0 %v748
    %826 = vmatprep.subr.mxu0 %v745
    %827 = vmatpush1.msra.mxu0 %v744
    %828 = vmatprep.subr.mxu0 %v741
    %829 = vmatpush1.msra.mxu0 %v740
    %830 = vmatprep.subr.mxu0 %v737
    %831 = vmatpush1.msra.mxu0 %v736
    %832 = vmatprep.subr.mxu0 0.0
    %833 = vmatpush2.msra.mxu0 0.0
    %834 = vmatprep.subr.mxu0 0.0
    %835 = vmatpush2.msra.mxu0 0.0
    %836 = vmatprep.subr.mxu0 0.0
    %837 = vmatpush2.msra.mxu0 0.0
    %838 = vmatprep.subr.mxu0 0.0
    %839 = vmatpush2.msra.mxu0 0.0
    %840 = vmatprep.subr.mxu0 0.0
    %841 = vmatpush2.msra.mxu0 0.0
    %842 = vmatprep.subr.mxu0 0.0
    %843 = vmatpush2.msra.mxu0 0.0
    %844 = vmatprep.subr.mxu0 0.0
    %845 = vmatpush2.msra.mxu0 0.0
    %846 = vmatprep.subr.mxu0 0.0
    %847 = vmatpush2.msra.mxu0 0.0
    %848 = vmatprep.subr.mxu0 0.0
    %849 = vmatpush2.msra.mxu0 0.0
    %850 = vmatprep.subr.mxu0 0.0
    %851 = vmatpush2.msra.mxu0 0.0
    %852 = vmatprep.subr.mxu0 0.0
    %853 = vmatpush2.msra.mxu0 0.0
    %854 = vmatprep.subr.mxu0 0.0
    %855 = vmatpush2.msra.mxu0 0.0
    %856 = vmatprep.subr.mxu0 0.0
    %857 = vmatpush2.msra.mxu0 0.0
    %858 = vmatprep.subr.mxu0 0.0
    %859 = vmatpush2.msra.mxu0 0.0
    %860 = vmatprep.subr.mxu0 0.0
    %861 = vmatpush2.msra.mxu0 0.0
    %862 = vmatprep.subr.mxu0 0.0
    %863 = vmatpush2.msra.mxu0 0.0
    %864 = vmatprep.mubr.f32.mxu0 0.0
    %865 = vmatmul.mubr.f32.gmra.mxu0 %v734
    %v866 = vpop.f32.mrf.mxu0
    %v867 = vadd.f32 0.0, %v866
    %v868 = vpop.f32.mrf.mxu0
    %v869 = vadd.f32 0.0, %v868
    %870 = vdwg.mxu0
    %871 = vmatprep.subr.mxu0 %v799
    %872 = vmatpush1.msra.mxu0 %v798
    %873 = vmatprep.subr.mxu0 %v795
    %874 = vmatpush1.msra.mxu0 %v794
    %875 = vmatprep.subr.mxu0 %v791
    %876 = vmatpush1.msra.mxu0 %v790
    %877 = vmatprep.subr.mxu0 %v787
    %878 = vmatpush1.msra.mxu0 %v786
    %879 = vmatprep.subr.mxu0 %v783
    %880 = vmatpush1.msra.mxu0 %v782
    %881 = vmatprep.subr.mxu0 %v779
    %882 = vmatpush1.msra.mxu0 %v778
    %883 = vmatprep.subr.mxu0 %v775
    %884 = vmatpush1.msra.mxu0 %v774
    %885 = vmatprep.subr.mxu0 %v771
    %886 = vmatpush1.msra.mxu0 %v770
    %887 = vmatprep.subr.mxu0 %v767
    %888 = vmatpush1.msra.mxu0 %v766
    %889 = vmatprep.subr.mxu0 %v763
    %890 = vmatpush1.msra.mxu0 %v762
    %891 = vmatprep.subr.mxu0 %v759
    %892 = vmatpush1.msra.mxu0 %v758
    %893 = vmatprep.subr.mxu0 %v755
    %894 = vmatpush1.msra.mxu0 %v754
    %895 = vmatprep.subr.mxu0 %v751
    %896 = vmatpush1.msra.mxu0 %v750
    %897 = vmatprep.subr.mxu0 %v747
    %898 = vmatpush1.msra.mxu0 %v746
    %899 = vmatprep.subr.mxu0 %v743
    %900 = vmatpush1.msra.mxu0 %v742
    %901 = vmatprep.subr.mxu0 %v739
    %902 = vmatpush1.msra.mxu0 %v738
    %903 = vmatprep.subr.mxu0 0.0
    %904 = vmatpush2.msra.mxu0 0.0
    %905 = vmatprep.subr.mxu0 0.0
    %906 = vmatpush2.msra.mxu0 0.0
    %907 = vmatprep.subr.mxu0 0.0
    %908 = vmatpush2.msra.mxu0 0.0
    %909 = vmatprep.subr.mxu0 0.0
    %910 = vmatpush2.msra.mxu0 0.0
    %911 = vmatprep.subr.mxu0 0.0
    %912 = vmatpush2.msra.mxu0 0.0
    %913 = vmatprep.subr.mxu0 0.0
    %914 = vmatpush2.msra.mxu0 0.0
    %915 = vmatprep.subr.mxu0 0.0
    %916 = vmatpush2.msra.mxu0 0.0
    %917 = vmatprep.subr.mxu0 0.0
    %918 = vmatpush2.msra.mxu0 0.0
    %919 = vmatprep.subr.mxu0 0.0
    %920 = vmatpush2.msra.mxu0 0.0
    %921 = vmatprep.subr.mxu0 0.0
    %922 = vmatpush2.msra.mxu0 0.0
    %923 = vmatprep.subr.mxu0 0.0
    %924 = vmatpush2.msra.mxu0 0.0
    %925 = vmatprep.subr.mxu0 0.0
    %926 = vmatpush2.msra.mxu0 0.0
    %927 = vmatprep.subr.mxu0 0.0
    %928 = vmatpush2.msra.mxu0 0.0
    %929 = vmatprep.subr.mxu0 0.0
    %930 = vmatpush2.msra.mxu0 0.0
    %931 = vmatprep.subr.mxu0 0.0
    %932 = vmatpush2.msra.mxu0 0.0
    %933 = vmatprep.subr.mxu0 0.0
    %934 = vmatpush2.msra.mxu0 0.0
    %935 = vmatprep.mubr.f32.mxu0 0.0
    %936 = vmatmul.mubr.f32.gmra.mxu0 %v734
    %v937 = vpop.f32.mrf.mxu0
    %v938 = vadd.f32 0.0, %v937
    %v939 = vpop.f32.mrf.mxu0
    %v940 = vadd.f32 0.0, %v939
    %941 = vdwg.mxu0
    %v942 = vadd.f32 %v729, %v867
    %v943 = vadd.f32 %v730, %v869
    %v944 = vadd.f32 %v731, %v938
    %v945 = vadd.f32 %v732, %v940
    %v946 = vxor.u32 %v942, 2147483648
    %v947 = vmul.f32 %v946, 1.442695
    %v948 = vpow.pop %v947
    %v949 = vadd.f32 %v948, 1.0
    %v950 = vrcp.pop %v949
    %v951 = vmul.f32 1.0, %v950
    %v952 = vxor.u32 %v943, 2147483648
    %v953 = vmul.f32 %v952, 1.442695
    %v954 = vpow.pop %v953
    %v955 = vadd.f32 %v954, 1.0
    %v956 = vrcp.pop %v955
    %v957 = vmul.f32 1.0, %v956
    %v958 = vtanh.pop %v944
    %v959 = vxor.u32 %v945, 2147483648
    %v960 = vmul.f32 %v959, 1.442695
    %v961 = vpow.pop %v960
    %v962 = vadd.f32 %v961, 1.0
    %v963 = vrcp.pop %v962
    %v964 = vmul.f32 1.0, %v963
    %v965 = vmul.f32 %v957, %v735
    %v966 = vmul.f32 %v951, %v958
    %v967 = vadd.f32 %v965, %v966
    %v968 = vtanh.pop %v967
    %v969 = vmul.f32 %v964, %v968
    %v970 = vstv %s733
    %vm971 = vcmp.lt.s32.totalorder %v219, %v970
    %v972 = vsel %vm971, 1, 0
    %vm973 = vcmp.eq.s32.totalorder %v972, 1
    %v974 = vsel %vm973, %v969, %v734
    %975 = vst [vmem:[#allocation2] sm:$0xff] %v974
    %v976 = vsel %vm973, %v967, %v735
    %977 = vst [vmem:[#allocation3] sm:$0xff] %v976
    %v978 = vsel %vm973, %v969, 0.0
    %s979 = scalar_lea.vmem %s5, 8
    %980 = vst [vmem:[%s979] sm:$0xff] %v978
    %s981 = scalar_lea.vmem [#allocation9], 192
    %v982 = vld [vmem:[%s981] sm:$0xff]
    %v983 = vld [vmem:[%s981 + $0x8] sm:$0xff]
    %v984 = vld [vmem:[%s981 + $0x10] sm:$0xff]
    %v985 = vld [vmem:[%s981 + $0x18] sm:$0xff]
    %s986 = sld [smem:[#allocation7 + %s727]]
    %v987 = vld [vmem:[#allocation4] sm:$0xff]
    %v988 = vld [vmem:[#allocation5] sm:$0xff]
    %v989 = vld [vmem:[%s4] sm:$0xff]
    %v990 = vld [vmem:[%s4 + $0x8] sm:$0xff]
    %v991 = vld [vmem:[%s4 + $0x10] sm:$0xff]
    %v992 = vld [vmem:[%s4 + $0x18] sm:$0xff]
    %v993 = vld [vmem:[%s4 + $0x20] sm:$0xff]
    %v994 = vld [vmem:[%s4 + $0x28] sm:$0xff]
    %v995 = vld [vmem:[%s4 + $0x30] sm:$0xff]
    %v996 = vld [vmem:[%s4 + $0x38] sm:$0xff]
    %v997 = vld [vmem:[%s4 + $0x40] sm:$0xff]
    %v998 = vld [vmem:[%s4 + $0x48] sm:$0xff]
    %v999 = vld [vmem:[%s4 + $0x50] sm:$0xff]
    %v1000 = vld [vmem:[%s4 + $0x58] sm:$0xff]
    %v1001 = vld [vmem:[%s4 + $0x60] sm:$0xff]
    %v1002 = vld [vmem:[%s4 + $0x68] sm:$0xff]
    %v1003 = vld [vmem:[%s4 + $0x70] sm:$0xff]
    %v1004 = vld [vmem:[%s4 + $0x78] sm:$0xff]
    %v1005 = vld [vmem:[%s4 + $0x80] sm:$0xff]
    %v1006 = vld [vmem:[%s4 + $0x88] sm:$0xff]
    %v1007 = vld [vmem:[%s4 + $0x90] sm:$0xff]
    %v1008 = vld [vmem:[%s4 + $0x98] sm:$0xff]
    %v1009 = vld [vmem:[%s4 + $0xa0] sm:$0xff]
    %v1010 = vld [vmem:[%s4 + $0xa8] sm:$0xff]
    %v1011 = vld [vmem:[%s4 + $0xb0] sm:$0xff]
    %v1012 = vld [vmem:[%s4 + $0xb8] sm:$0xff]
    %v1013 = vld [vmem:[%s4 + $0xc0] sm:$0xff]
    %v1014 = vld [vmem:[%s4 + $0xc8] sm:$0xff]
    %v1015 = vld [vmem:[%s4 + $0xd0] sm:$0xff]
    %v1016 = vld [vmem:[%s4 + $0xd8] sm:$0xff]
    %v1017 = vld [vmem:[%s4 + $0xe0] sm:$0xff]
    %v1018 = vld [vmem:[%s4 + $0xe8] sm:$0xff]
    %v1019 = vld [vmem:[%s4 + $0xf0] sm:$0xff]
    %v1020 = vld [vmem:[%s4 + $0xf8] sm:$0xff]
    %v1021 = vld [vmem:[%s4 + $0x100] sm:$0xff]
    %v1022 = vld [vmem:[%s4 + $0x108] sm:$0xff]
    %v1023 = vld [vmem:[%s4 + $0x110] sm:$0xff]
    %v1024 = vld [vmem:[%s4 + $0x118] sm:$0xff]
    %v1025 = vld [vmem:[%s4 + $0x120] sm:$0xff]
    %v1026 = vld [vmem:[%s4 + $0x128] sm:$0xff]
    %v1027 = vld [vmem:[%s4 + $0x130] sm:$0xff]
    %v1028 = vld [vmem:[%s4 + $0x138] sm:$0xff]
    %v1029 = vld [vmem:[%s4 + $0x140] sm:$0xff]
    %v1030 = vld [vmem:[%s4 + $0x148] sm:$0xff]
    %v1031 = vld [vmem:[%s4 + $0x150] sm:$0xff]
    %v1032 = vld [vmem:[%s4 + $0x158] sm:$0xff]
    %v1033 = vld [vmem:[%s4 + $0x160] sm:$0xff]
    %v1034 = vld [vmem:[%s4 + $0x168] sm:$0xff]
    %v1035 = vld [vmem:[%s4 + $0x170] sm:$0xff]
    %v1036 = vld [vmem:[%s4 + $0x178] sm:$0xff]
    %v1037 = vld [vmem:[%s4 + $0x180] sm:$0xff]
    %v1038 = vld [vmem:[%s4 + $0x188] sm:$0xff]
    %v1039 = vld [vmem:[%s4 + $0x190] sm:$0xff]
    %v1040 = vld [vmem:[%s4 + $0x198] sm:$0xff]
    %v1041 = vld [vmem:[%s4 + $0x1a0] sm:$0xff]
    %v1042 = vld [vmem:[%s4 + $0x1a8] sm:$0xff]
    %v1043 = vld [vmem:[%s4 + $0x1b0] sm:$0xff]
    %v1044 = vld [vmem:[%s4 + $0x1b8] sm:$0xff]
    %v1045 = vld [vmem:[%s4 + $0x1c0] sm:$0xff]
    %v1046 = vld [vmem:[%s4 + $0x1c8] sm:$0xff]
    %v1047 = vld [vmem:[%s4 + $0x1d0] sm:$0xff]
    %v1048 = vld [vmem:[%s4 + $0x1d8] sm:$0xff]
    %v1049 = vld [vmem:[%s4 + $0x1e0] sm:$0xff]
    %v1050 = vld [vmem:[%s4 + $0x1e8] sm:$0xff]
    %v1051 = vld [vmem:[%s4 + $0x1f0] sm:$0xff]
    %v1052 = vld [vmem:[%s4 + $0x1f8] sm:$0xff]
    %1053 = vmatprep.subr.mxu0 %v1050
    %1054 = vmatpush1.msra.mxu0 %v1049
    %1055 = vmatprep.subr.mxu0 %v1046
    %1056 = vmatpush1.msra.mxu0 %v1045
    %1057 = vmatprep.subr.mxu0 %v1042
    %1058 = vmatpush1.msra.mxu0 %v1041
    %1059 = vmatprep.subr.mxu0 %v1038
    %1060 = vmatpush1.msra.mxu0 %v1037
    %1061 = vmatprep.subr.mxu0 %v1034
    %1062 = vmatpush1.msra.mxu0 %v1033
    %1063 = vmatprep.subr.mxu0 %v1030
    %1064 = vmatpush1.msra.mxu0 %v1029
    %1065 = vmatprep.subr.mxu0 %v1026
    %1066 = vmatpush1.msra.mxu0 %v1025
    %1067 = vmatprep.subr.mxu0 %v1022
    %1068 = vmatpush1.msra.mxu0 %v1021
    %1069 = vmatprep.subr.mxu0 %v1018
    %1070 = vmatpush1.msra.mxu0 %v1017
    %1071 = vmatprep.subr.mxu0 %v1014
    %1072 = vmatpush1.msra.mxu0 %v1013
    %1073 = vmatprep.subr.mxu0 %v1010
    %1074 = vmatpush1.msra.mxu0 %v1009
    %1075 = vmatprep.subr.mxu0 %v1006
    %1076 = vmatpush1.msra.mxu0 %v1005
    %1077 = vmatprep.subr.mxu0 %v1002
    %1078 = vmatpush1.msra.mxu0 %v1001
    %1079 = vmatprep.subr.mxu0 %v998
    %1080 = vmatpush1.msra.mxu0 %v997
    %1081 = vmatprep.subr.mxu0 %v994
    %1082 = vmatpush1.msra.mxu0 %v993
    %1083 = vmatprep.subr.mxu0 %v990
    %1084 = vmatpush1.msra.mxu0 %v989
    %1085 = vmatprep.subr.mxu0 0.0
    %1086 = vmatpush2.msra.mxu0 0.0
    %1087 = vmatprep.subr.mxu0 0.0
    %1088 = vmatpush2.msra.mxu0 0.0
    %1089 = vmatprep.subr.mxu0 0.0
    %1090 = vmatpush2.msra.mxu0 0.0
    %1091 = vmatprep.subr.mxu0 0.0
    %1092 = vmatpush2.msra.mxu0 0.0
    %1093 = vmatprep.subr.mxu0 0.0
    %1094 = vmatpush2.msra.mxu0 0.0
    %1095 = vmatprep.subr.mxu0 0.0
    %1096 = vmatpush2.msra.mxu0 0.0
    %1097 = vmatprep.subr.mxu0 0.0
    %1098 = vmatpush2.msra.mxu0 0.0
    %1099 = vmatprep.subr.mxu0 0.0
    %1100 = vmatpush2.msra.mxu0 0.0
    %1101 = vmatprep.subr.mxu0 0.0
    %1102 = vmatpush2.msra.mxu0 0.0
    %1103 = vmatprep.subr.mxu0 0.0
    %1104 = vmatpush2.msra.mxu0 0.0
    %1105 = vmatprep.subr.mxu0 0.0
    %1106 = vmatpush2.msra.mxu0 0.0
    %1107 = vmatprep.subr.mxu0 0.0
    %1108 = vmatpush2.msra.mxu0 0.0
    %1109 = vmatprep.subr.mxu0 0.0
    %1110 = vmatpush2.msra.mxu0 0.0
    %1111 = vmatprep.subr.mxu0 0.0
    %1112 = vmatpush2.msra.mxu0 0.0
    %1113 = vmatprep.subr.mxu0 0.0
    %1114 = vmatpush2.msra.mxu0 0.0
    %1115 = vmatprep.subr.mxu0 0.0
    %1116 = vmatpush2.msra.mxu0 0.0
    %1117 = vmatprep.mubr.f32.mxu0 0.0
    %1118 = vmatmul.mubr.f32.gmra.mxu0 %v987
    %v1119 = vpop.f32.mrf.mxu0
    %v1120 = vadd.f32 0.0, %v1119
    %v1121 = vpop.f32.mrf.mxu0
    %v1122 = vadd.f32 0.0, %v1121
    %1123 = vdwg.mxu0
    %1124 = vmatprep.subr.mxu0 %v1052
    %1125 = vmatpush1.msra.mxu0 %v1051
    %1126 = vmatprep.subr.mxu0 %v1048
    %1127 = vmatpush1.msra.mxu0 %v1047
    %1128 = vmatprep.subr.mxu0 %v1044
    %1129 = vmatpush1.msra.mxu0 %v1043
    %1130 = vmatprep.subr.mxu0 %v1040
    %1131 = vmatpush1.msra.mxu0 %v1039
    %1132 = vmatprep.subr.mxu0 %v1036
    %1133 = vmatpush1.msra.mxu0 %v1035
    %1134 = vmatprep.subr.mxu0 %v1032
    %1135 = vmatpush1.msra.mxu0 %v1031
    %1136 = vmatprep.subr.mxu0 %v1028
    %1137 = vmatpush1.msra.mxu0 %v1027
    %1138 = vmatprep.subr.mxu0 %v1024
    %1139 = vmatpush1.msra.mxu0 %v1023
    %1140 = vmatprep.subr.mxu0 %v1020
    %1141 = vmatpush1.msra.mxu0 %v1019
    %1142 = vmatprep.subr.mxu0 %v1016
    %1143 = vmatpush1.msra.mxu0 %v1015
    %1144 = vmatprep.subr.mxu0 %v1012
    %1145 = vmatpush1.msra.mxu0 %v1011
    %1146 = vmatprep.subr.mxu0 %v1008
    %1147 = vmatpush1.msra.mxu0 %v1007
    %1148 = vmatprep.subr.mxu0 %v1004
    %1149 = vmatpush1.msra.mxu0 %v1003
    %1150 = vmatprep.subr.mxu0 %v1000
    %1151 = vmatpush1.msra.mxu0 %v999
    %1152 = vmatprep.subr.mxu0 %v996
    %1153 = vmatpush1.msra.mxu0 %v995
    %1154 = vmatprep.subr.mxu0 %v992
    %1155 = vmatpush1.msra.mxu0 %v991
    %1156 = vmatprep.subr.mxu0 0.0
    %1157 = vmatpush2.msra.mxu0 0.0
    %1158 = vmatprep.subr.mxu0 0.0
    %1159 = vmatpush2.msra.mxu0 0.0
    %1160 = vmatprep.subr.mxu0 0.0
    %1161 = vmatpush2.msra.mxu0 0.0
    %1162 = vmatprep.subr.mxu0 0.0
    %1163 = vmatpush2.msra.mxu0 0.0
    %1164 = vmatprep.subr.mxu0 0.0
    %1165 = vmatpush2.msra.mxu0 0.0
    %1166 = vmatprep.subr.mxu0 0.0
    %1167 = vmatpush2.msra.mxu0 0.0
    %1168 = vmatprep.subr.mxu0 0.0
    %1169 = vmatpush2.msra.mxu0 0.0
    %1170 = vmatprep.subr.mxu0 0.0
    %1171 = vmatpush2.msra.mxu0 0.0
    %1172 = vmatprep.subr.mxu0 0.0
    %1173 = vmatpush2.msra.mxu0 0.0
    %1174 = vmatprep.subr.mxu0 0.0
    %1175 = vmatpush2.msra.mxu0 0.0
    %1176 = vmatprep.subr.mxu0 0.0
    %1177 = vmatpush2.msra.mxu0 0.0
    %1178 = vmatprep.subr.mxu0 0.0
    %1179 = vmatpush2.msra.mxu0 0.0
    %1180 = vmatprep.subr.mxu0 0.0
    %1181 = vmatpush2.msra.mxu0 0.0
    %1182 = vmatprep.subr.mxu0 0.0
    %1183 = vmatpush2.msra.mxu0 0.0
    %1184 = vmatprep.subr.mxu0 0.0
    %1185 = vmatpush2.msra.mxu0 0.0
    %1186 = vmatprep.subr.mxu0 0.0
    %1187 = vmatpush2.msra.mxu0 0.0
    %1188 = vmatprep.mubr.f32.mxu0 0.0
    %1189 = vmatmul.mubr.f32.gmra.mxu0 %v987
    %v1190 = vpop.f32.mrf.mxu0
    %v1191 = vadd.f32 0.0, %v1190
    %v1192 = vpop.f32.mrf.mxu0
    %v1193 = vadd.f32 0.0, %v1192
    %1194 = vdwg.mxu0
    %v1195 = vadd.f32 %v982, %v1120
    %v1196 = vadd.f32 %v983, %v1122
    %v1197 = vadd.f32 %v984, %v1191
    %v1198 = vadd.f32 %v985, %v1193
    %v1199 = vxor.u32 %v1195, 2147483648
    %v1200 = vmul.f32 %v1199, 1.442695
    %v1201 = vpow.pop %v1200
    %v1202 = vadd.f32 %v1201, 1.0
    %v1203 = vrcp.pop %v1202
    %v1204 = vmul.f32 1.0, %v1203
    %v1205 = vxor.u32 %v1196, 2147483648
    %v1206 = vmul.f32 %v1205, 1.442695
    %v1207 = vpow.pop %v1206
    %v1208 = vadd.f32 %v1207, 1.0
    %v1209 = vrcp.pop %v1208
    %v1210 = vmul.f32 1.0, %v1209
    %v1211 = vtanh.pop %v1197
    %v1212 = vxor.u32 %v1198, 2147483648
    %v1213 = vmul.f32 %v1212, 1.442695
    %v1214 = vpow.pop %v1213
    %v1215 = vadd.f32 %v1214, 1.0
    %v1216 = vrcp.pop %v1215
    %v1217 = vmul.f32 1.0, %v1216
    %v1218 = vmul.f32 %v1210, %v988
    %v1219 = vmul.f32 %v1204, %v1211
    %v1220 = vadd.f32 %v1218, %v1219
    %v1221 = vtanh.pop %v1220
    %v1222 = vmul.f32 %v1217, %v1221
    %v1223 = vstv %s986
    %vm1224 = vcmp.lt.s32.totalorder %v219, %v1223
    %v1225 = vsel %vm1224, 1, 0
    %vm1226 = vcmp.eq.s32.totalorder %v1225, 1
    %v1227 = vsel %vm1226, %v1222, %v987
    %1228 = vst [vmem:[#allocation4] sm:$0xff] %v1227
    %v1229 = vsel %vm1226, %v1220, %v988
    %1230 = vst [vmem:[#allocation5] sm:$0xff] %v1229
    %v1231 = vsel %vm1226, %v1222, 0.0
    %s1232 = scalar_lea.vmem %s207, 48
    %1233 = vst [vmem:[%s1232] sm:$0xff] %v1231
    %s1234 = sadd.s32 %s220, 2
    %s1235 = ssub.s32 5, %s220
    %s1236 = scalar_lea.vmem [#allocation8], 64
    %v1237 = vld [vmem:[%s1236] sm:$0xff]
    %v1238 = vld [vmem:[%s1236 + $0x8] sm:$0xff]
    %v1239 = vld [vmem:[%s1236 + $0x10] sm:$0xff]
    %v1240 = vld [vmem:[%s1236 + $0x18] sm:$0xff]
    %s1241 = sld [smem:[#allocation7 + %s1234]]
    %v1242 = vld [vmem:[#allocation2] sm:$0xff]
    %v1243 = vld [vmem:[#allocation3] sm:$0xff]
    %v1244 = vld [vmem:[%s3] sm:$0xff]
    %v1245 = vld [vmem:[%s3 + $0x8] sm:$0xff]
    %v1246 = vld [vmem:[%s3 + $0x10] sm:$0xff]
    %v1247 = vld [vmem:[%s3 + $0x18] sm:$0xff]
    %v1248 = vld [vmem:[%s3 + $0x20] sm:$0xff]
    %v1249 = vld [vmem:[%s3 + $0x28] sm:$0xff]
    %v1250 = vld [vmem:[%s3 + $0x30] sm:$0xff]
    %v1251 = vld [vmem:[%s3 + $0x38] sm:$0xff]
    %v1252 = vld [vmem:[%s3 + $0x40] sm:$0xff]
    %v1253 = vld [vmem:[%s3 + $0x48] sm:$0xff]
    %v1254 = vld [vmem:[%s3 + $0x50] sm:$0xff]
    %v1255 = vld [vmem:[%s3 + $0x58] sm:$0xff]
    %v1256 = vld [vmem:[%s3 + $0x60] sm:$0xff]
    %v1257 = vld [vmem:[%s3 + $0x68] sm:$0xff]
    %v1258 = vld [vmem:[%s3 + $0x70] sm:$0xff]
    %v1259 = vld [vmem:[%s3 + $0x78] sm:$0xff]
    %v1260 = vld [vmem:[%s3 + $0x80] sm:$0xff]
    %v1261 = vld [vmem:[%s3 + $0x88] sm:$0xff]
    %v1262 = vld [vmem:[%s3 + $0x90] sm:$0xff]
    %v1263 = vld [vmem:[%s3 + $0x98] sm:$0xff]
    %v1264 = vld [vmem:[%s3 + $0xa0] sm:$0xff]
    %v1265 = vld [vmem:[%s3 + $0xa8] sm:$0xff]
    %v1266 = vld [vmem:[%s3 + $0xb0] sm:$0xff]
    %v1267 = vld [vmem:[%s3 + $0xb8] sm:$0xff]
    %v1268 = vld [vmem:[%s3 + $0xc0] sm:$0xff]
    %v1269 = vld [vmem:[%s3 + $0xc8] sm:$0xff]
    %v1270 = vld [vmem:[%s3 + $0xd0] sm:$0xff]
    %v1271 = vld [vmem:[%s3 + $0xd8] sm:$0xff]
    %v1272 = vld [vmem:[%s3 + $0xe0] sm:$0xff]
    %v1273 = vld [vmem:[%s3 + $0xe8] sm:$0xff]
    %v1274 = vld [vmem:[%s3 + $0xf0] sm:$0xff]
    %v1275 = vld [vmem:[%s3 + $0xf8] sm:$0xff]
    %v1276 = vld [vmem:[%s3 + $0x100] sm:$0xff]
    %v1277 = vld [vmem:[%s3 + $0x108] sm:$0xff]
    %v1278 = vld [vmem:[%s3 + $0x110] sm:$0xff]
    %v1279 = vld [vmem:[%s3 + $0x118] sm:$0xff]
    %v1280 = vld [vmem:[%s3 + $0x120] sm:$0xff]
    %v1281 = vld [vmem:[%s3 + $0x128] sm:$0xff]
    %v1282 = vld [vmem:[%s3 + $0x130] sm:$0xff]
    %v1283 = vld [vmem:[%s3 + $0x138] sm:$0xff]
    %v1284 = vld [vmem:[%s3 + $0x140] sm:$0xff]
    %v1285 = vld [vmem:[%s3 + $0x148] sm:$0xff]
    %v1286 = vld [vmem:[%s3 + $0x150] sm:$0xff]
    %v1287 = vld [vmem:[%s3 + $0x158] sm:$0xff]
    %v1288 = vld [vmem:[%s3 + $0x160] sm:$0xff]
    %v1289 = vld [vmem:[%s3 + $0x168] sm:$0xff]
    %v1290 = vld [vmem:[%s3 + $0x170] sm:$0xff]
    %v1291 = vld [vmem:[%s3 + $0x178] sm:$0xff]
    %v1292 = vld [vmem:[%s3 + $0x180] sm:$0xff]
    %v1293 = vld [vmem:[%s3 + $0x188] sm:$0xff]
    %v1294 = vld [vmem:[%s3 + $0x190] sm:$0xff]
    %v1295 = vld [vmem:[%s3 + $0x198] sm:$0xff]
    %v1296 = vld [vmem:[%s3 + $0x1a0] sm:$0xff]
    %v1297 = vld [vmem:[%s3 + $0x1a8] sm:$0xff]
    %v1298 = vld [vmem:[%s3 + $0x1b0] sm:$0xff]
    %v1299 = vld [vmem:[%s3 + $0x1b8] sm:$0xff]
    %v1300 = vld [vmem:[%s3 + $0x1c0] sm:$0xff]
    %v1301 = vld [vmem:[%s3 + $0x1c8] sm:$0xff]
    %v1302 = vld [vmem:[%s3 + $0x1d0] sm:$0xff]
    %v1303 = vld [vmem:[%s3 + $0x1d8] sm:$0xff]
    %v1304 = vld [vmem:[%s3 + $0x1e0] sm:$0xff]
    %v1305 = vld [vmem:[%s3 + $0x1e8] sm:$0xff]
    %v1306 = vld [vmem:[%s3 + $0x1f0] sm:$0xff]
    %v1307 = vld [vmem:[%s3 + $0x1f8] sm:$0xff]
    %1308 = vmatprep.subr.mxu0 %v1305
    %1309 = vmatpush1.msra.mxu0 %v1304
    %1310 = vmatprep.subr.mxu0 %v1301
    %1311 = vmatpush1.msra.mxu0 %v1300
    %1312 = vmatprep.subr.mxu0 %v1297
    %1313 = vmatpush1.msra.mxu0 %v1296
    %1314 = vmatprep.subr.mxu0 %v1293
    %1315 = vmatpush1.msra.mxu0 %v1292
    %1316 = vmatprep.subr.mxu0 %v1289
    %1317 = vmatpush1.msra.mxu0 %v1288
    %1318 = vmatprep.subr.mxu0 %v1285
    %1319 = vmatpush1.msra.mxu0 %v1284
    %1320 = vmatprep.subr.mxu0 %v1281
    %1321 = vmatpush1.msra.mxu0 %v1280
    %1322 = vmatprep.subr.mxu0 %v1277
    %1323 = vmatpush1.msra.mxu0 %v1276
    %1324 = vmatprep.subr.mxu0 %v1273
    %1325 = vmatpush1.msra.mxu0 %v1272
    %1326 = vmatprep.subr.mxu0 %v1269
    %1327 = vmatpush1.msra.mxu0 %v1268
    %1328 = vmatprep.subr.mxu0 %v1265
    %1329 = vmatpush1.msra.mxu0 %v1264
    %1330 = vmatprep.subr.mxu0 %v1261
    %1331 = vmatpush1.msra.mxu0 %v1260
    %1332 = vmatprep.subr.mxu0 %v1257
    %1333 = vmatpush1.msra.mxu0 %v1256
    %1334 = vmatprep.subr.mxu0 %v1253
    %1335 = vmatpush1.msra.mxu0 %v1252
    %1336 = vmatprep.subr.mxu0 %v1249
    %1337 = vmatpush1.msra.mxu0 %v1248
    %1338 = vmatprep.subr.mxu0 %v1245
    %1339 = vmatpush1.msra.mxu0 %v1244
    %1340 = vmatprep.subr.mxu0 0.0
    %1341 = vmatpush2.msra.mxu0 0.0
    %1342 = vmatprep.subr.mxu0 0.0
    %1343 = vmatpush2.msra.mxu0 0.0
    %1344 = vmatprep.subr.mxu0 0.0
    %1345 = vmatpush2.msra.mxu0 0.0
    %1346 = vmatprep.subr.mxu0 0.0
    %1347 = vmatpush2.msra.mxu0 0.0
    %1348 = vmatprep.subr.mxu0 0.0
    %1349 = vmatpush2.msra.mxu0 0.0
    %1350 = vmatprep.subr.mxu0 0.0
    %1351 = vmatpush2.msra.mxu0 0.0
    %1352 = vmatprep.subr.mxu0 0.0
    %1353 = vmatpush2.msra.mxu0 0.0
    %1354 = vmatprep.subr.mxu0 0.0
    %1355 = vmatpush2.msra.mxu0 0.0
    %1356 = vmatprep.subr.mxu0 0.0
    %1357 = vmatpush2.msra.mxu0 0.0
    %1358 = vmatprep.subr.mxu0 0.0
    %1359 = vmatpush2.msra.mxu0 0.0
    %1360 = vmatprep.subr.mxu0 0.0
    %1361 = vmatpush2.msra.mxu0 0.0
    %1362 = vmatprep.subr.mxu0 0.0
    %1363 = vmatpush2.msra.mxu0 0.0
    %1364 = vmatprep.subr.mxu0 0.0
    %1365 = vmatpush2.msra.mxu0 0.0
    %1366 = vmatprep.subr.mxu0 0.0
    %1367 = vmatpush2.msra.mxu0 0.0
    %1368 = vmatprep.subr.mxu0 0.0
    %1369 = vmatpush2.msra.mxu0 0.0
    %1370 = vmatprep.subr.mxu0 0.0
    %1371 = vmatpush2.msra.mxu0 0.0
    %1372 = vmatprep.mubr.f32.mxu0 0.0
    %1373 = vmatmul.mubr.f32.gmra.mxu0 %v1242
    %v1374 = vpop.f32.mrf.mxu0
    %v1375 = vadd.f32 0.0, %v1374
    %v1376 = vpop.f32.mrf.mxu0
    %v1377 = vadd.f32 0.0, %v1376
    %1378 = vdwg.mxu0
    %1379 = vmatprep.subr.mxu0 %v1307
    %1380 = vmatpush1.msra.mxu0 %v1306
    %1381 = vmatprep.subr.mxu0 %v1303
    %1382 = vmatpush1.msra.mxu0 %v1302
    %1383 = vmatprep.subr.mxu0 %v1299
    %1384 = vmatpush1.msra.mxu0 %v1298
    %1385 = vmatprep.subr.mxu0 %v1295
    %1386 = vmatpush1.msra.mxu0 %v1294
    %1387 = vmatprep.subr.mxu0 %v1291
    %1388 = vmatpush1.msra.mxu0 %v1290
    %1389 = vmatprep.subr.mxu0 %v1287
    %1390 = vmatpush1.msra.mxu0 %v1286
    %1391 = vmatprep.subr.mxu0 %v1283
    %1392 = vmatpush1.msra.mxu0 %v1282
    %1393 = vmatprep.subr.mxu0 %v1279
    %1394 = vmatpush1.msra.mxu0 %v1278
    %1395 = vmatprep.subr.mxu0 %v1275
    %1396 = vmatpush1.msra.mxu0 %v1274
    %1397 = vmatprep.subr.mxu0 %v1271
    %1398 = vmatpush1.msra.mxu0 %v1270
    %1399 = vmatprep.subr.mxu0 %v1267
    %1400 = vmatpush1.msra.mxu0 %v1266
    %1401 = vmatprep.subr.mxu0 %v1263
    %1402 = vmatpush1.msra.mxu0 %v1262
    %1403 = vmatprep.subr.mxu0 %v1259
    %1404 = vmatpush1.msra.mxu0 %v1258
    %1405 = vmatprep.subr.mxu0 %v1255
    %1406 = vmatpush1.msra.mxu0 %v1254
    %1407 = vmatprep.subr.mxu0 %v1251
    %1408 = vmatpush1.msra.mxu0 %v1250
    %1409 = vmatprep.subr.mxu0 %v1247
    %1410 = vmatpush1.msra.mxu0 %v1246
    %1411 = vmatprep.subr.mxu0 0.0
    %1412 = vmatpush2.msra.mxu0 0.0
    %1413 = vmatprep.subr.mxu0 0.0
    %1414 = vmatpush2.msra.mxu0 0.0
    %1415 = vmatprep.subr.mxu0 0.0
    %1416 = vmatpush2.msra.mxu0 0.0
    %1417 = vmatprep.subr.mxu0 0.0
    %1418 = vmatpush2.msra.mxu0 0.0
    %1419 = vmatprep.subr.mxu0 0.0
    %1420 = vmatpush2.msra.mxu0 0.0
    %1421 = vmatprep.subr.mxu0 0.0
    %1422 = vmatpush2.msra.mxu0 0.0
    %1423 = vmatprep.subr.mxu0 0.0
    %1424 = vmatpush2.msra.mxu0 0.0
    %1425 = vmatprep.subr.mxu0 0.0
    %1426 = vmatpush2.msra.mxu0 0.0
    %1427 = vmatprep.subr.mxu0 0.0
    %1428 = vmatpush2.msra.mxu0 0.0
    %1429 = vmatprep.subr.mxu0 0.0
    %1430 = vmatpush2.msra.mxu0 0.0
    %1431 = vmatprep.subr.mxu0 0.0
    %1432 = vmatpush2.msra.mxu0 0.0
    %1433 = vmatprep.subr.mxu0 0.0
    %1434 = vmatpush2.msra.mxu0 0.0
    %1435 = vmatprep.subr.mxu0 0.0
    %1436 = vmatpush2.msra.mxu0 0.0
    %1437 = vmatprep.subr.mxu0 0.0
    %1438 = vmatpush2.msra.mxu0 0.0
    %1439 = vmatprep.subr.mxu0 0.0
    %1440 = vmatpush2.msra.mxu0 0.0
    %1441 = vmatprep.subr.mxu0 0.0
    %1442 = vmatpush2.msra.mxu0 0.0
    %1443 = vmatprep.mubr.f32.mxu0 0.0
    %1444 = vmatmul.mubr.f32.gmra.mxu0 %v1242
    %v1445 = vpop.f32.mrf.mxu0
    %v1446 = vadd.f32 0.0, %v1445
    %v1447 = vpop.f32.mrf.mxu0
    %v1448 = vadd.f32 0.0, %v1447
    %1449 = vdwg.mxu0
    %v1450 = vadd.f32 %v1237, %v1375
    %v1451 = vadd.f32 %v1238, %v1377
    %v1452 = vadd.f32 %v1239, %v1446
    %v1453 = vadd.f32 %v1240, %v1448
    %v1454 = vxor.u32 %v1450, 2147483648
    %v1455 = vmul.f32 %v1454, 1.442695
    %v1456 = vpow.pop %v1455
    %v1457 = vadd.f32 %v1456, 1.0
    %v1458 = vrcp.pop %v1457
    %v1459 = vmul.f32 1.0, %v1458
    %v1460 = vxor.u32 %v1451, 2147483648
    %v1461 = vmul.f32 %v1460, 1.442695
    %v1462 = vpow.pop %v1461
    %v1463 = vadd.f32 %v1462, 1.0
    %v1464 = vrcp.pop %v1463
    %v1465 = vmul.f32 1.0, %v1464
    %v1466 = vtanh.pop %v1452
    %v1467 = vxor.u32 %v1453, 2147483648
    %v1468 = vmul.f32 %v1467, 1.442695
    %v1469 = vpow.pop %v1468
    %v1470 = vadd.f32 %v1469, 1.0
    %v1471 = vrcp.pop %v1470
    %v1472 = vmul.f32 1.0, %v1471
    %v1473 = vmul.f32 %v1465, %v1243
    %v1474 = vmul.f32 %v1459, %v1466
    %v1475 = vadd.f32 %v1473, %v1474
    %v1476 = vtanh.pop %v1475
    %v1477 = vmul.f32 %v1472, %v1476
    %v1478 = vstv %s1241
    %vm1479 = vcmp.lt.s32.totalorder %v219, %v1478
    %v1480 = vsel %vm1479, 1, 0
    %vm1481 = vcmp.eq.s32.totalorder %v1480, 1
    %v1482 = vsel %vm1481, %v1477, %v1242
    %1483 = vst [vmem:[#allocation2] sm:$0xff] %v1482
    %v1484 = vsel %vm1481, %v1475, %v1243
    %1485 = vst [vmem:[#allocation3] sm:$0xff] %v1484
    %v1486 = vsel %vm1481, %v1477, 0.0
    %s1487 = scalar_lea.vmem %s5, 16
    %1488 = vst [vmem:[%s1487] sm:$0xff] %v1486
    %s1489 = scalar_lea.vmem [#allocation9], 160
    %v1490 = vld [vmem:[%s1489] sm:$0xff]
    %v1491 = vld [vmem:[%s1489 + $0x8] sm:$0xff]
    %v1492 = vld [vmem:[%s1489 + $0x10] sm:$0xff]
    %v1493 = vld [vmem:[%s1489 + $0x18] sm:$0xff]
    %s1494 = sld [smem:[#allocation7 + %s1235]]
    %v1495 = vld [vmem:[#allocation4] sm:$0xff]
    %v1496 = vld [vmem:[#allocation5] sm:$0xff]
    %v1497 = vld [vmem:[%s4] sm:$0xff]
    %v1498 = vld [vmem:[%s4 + $0x8] sm:$0xff]
    %v1499 = vld [vmem:[%s4 + $0x10] sm:$0xff]
    %v1500 = vld [vmem:[%s4 + $0x18] sm:$0xff]
    %v1501 = vld [vmem:[%s4 + $0x20] sm:$0xff]
    %v1502 = vld [vmem:[%s4 + $0x28] sm:$0xff]
    %v1503 = vld [vmem:[%s4 + $0x30] sm:$0xff]
    %v1504 = vld [vmem:[%s4 + $0x38] sm:$0xff]
    %v1505 = vld [vmem:[%s4 + $0x40] sm:$0xff]
    %v1506 = vld [vmem:[%s4 + $0x48] sm:$0xff]
    %v1507 = vld [vmem:[%s4 + $0x50] sm:$0xff]
    %v1508 = vld [vmem:[%s4 + $0x58] sm:$0xff]
    %v1509 = vld [vmem:[%s4 + $0x60] sm:$0xff]
    %v1510 = vld [vmem:[%s4 + $0x68] sm:$0xff]
    %v1511 = vld [vmem:[%s4 + $0x70] sm:$0xff]
    %v1512 = vld [vmem:[%s4 + $0x78] sm:$0xff]
    %v1513 = vld [vmem:[%s4 + $0x80] sm:$0xff]
    %v1514 = vld [vmem:[%s4 + $0x88] sm:$0xff]
    %v1515 = vld [vmem:[%s4 + $0x90] sm:$0xff]
    %v1516 = vld [vmem:[%s4 + $0x98] sm:$0xff]
    %v1517 = vld [vmem:[%s4 + $0xa0] sm:$0xff]
    %v1518 = vld [vmem:[%s4 + $0xa8] sm:$0xff]
    %v1519 = vld [vmem:[%s4 + $0xb0] sm:$0xff]
    %v1520 = vld [vmem:[%s4 + $0xb8] sm:$0xff]
    %v1521 = vld [vmem:[%s4 + $0xc0] sm:$0xff]
    %v1522 = vld [vmem:[%s4 + $0xc8] sm:$0xff]
    %v1523 = vld [vmem:[%s4 + $0xd0] sm:$0xff]
    %v1524 = vld [vmem:[%s4 + $0xd8] sm:$0xff]
    %v1525 = vld [vmem:[%s4 + $0xe0] sm:$0xff]
    %v1526 = vld [vmem:[%s4 + $0xe8] sm:$0xff]
    %v1527 = vld [vmem:[%s4 + $0xf0] sm:$0xff]
    %v1528 = vld [vmem:[%s4 + $0xf8] sm:$0xff]
    %v1529 = vld [vmem:[%s4 + $0x100] sm:$0xff]
    %v1530 = vld [vmem:[%s4 + $0x108] sm:$0xff]
    %v1531 = vld [vmem:[%s4 + $0x110] sm:$0xff]
    %v1532 = vld [vmem:[%s4 + $0x118] sm:$0xff]
    %v1533 = vld [vmem:[%s4 + $0x120] sm:$0xff]
    %v1534 = vld [vmem:[%s4 + $0x128] sm:$0xff]
    %v1535 = vld [vmem:[%s4 + $0x130] sm:$0xff]
    %v1536 = vld [vmem:[%s4 + $0x138] sm:$0xff]
    %v1537 = vld [vmem:[%s4 + $0x140] sm:$0xff]
    %v1538 = vld [vmem:[%s4 + $0x148] sm:$0xff]
    %v1539 = vld [vmem:[%s4 + $0x150] sm:$0xff]
    %v1540 = vld [vmem:[%s4 + $0x158] sm:$0xff]
    %v1541 = vld [vmem:[%s4 + $0x160] sm:$0xff]
    %v1542 = vld [vmem:[%s4 + $0x168] sm:$0xff]
    %v1543 = vld [vmem:[%s4 + $0x170] sm:$0xff]
    %v1544 = vld [vmem:[%s4 + $0x178] sm:$0xff]
    %v1545 = vld [vmem:[%s4 + $0x180] sm:$0xff]
    %v1546 = vld [vmem:[%s4 + $0x188] sm:$0xff]
    %v1547 = vld [vmem:[%s4 + $0x190] sm:$0xff]
    %v1548 = vld [vmem:[%s4 + $0x198] sm:$0xff]
    %v1549 = vld [vmem:[%s4 + $0x1a0] sm:$0xff]
    %v1550 = vld [vmem:[%s4 + $0x1a8] sm:$0xff]
    %v1551 = vld [vmem:[%s4 + $0x1b0] sm:$0xff]
    %v1552 = vld [vmem:[%s4 + $0x1b8] sm:$0xff]
    %v1553 = vld [vmem:[%s4 + $0x1c0] sm:$0xff]
    %v1554 = vld [vmem:[%s4 + $0x1c8] sm:$0xff]
    %v1555 = vld [vmem:[%s4 + $0x1d0] sm:$0xff]
    %v1556 = vld [vmem:[%s4 + $0x1d8] sm:$0xff]
    %v1557 = vld [vmem:[%s4 + $0x1e0] sm:$0xff]
    %v1558 = vld [vmem:[%s4 + $0x1e8] sm:$0xff]
    %v1559 = vld [vmem:[%s4 + $0x1f0] sm:$0xff]
    %v1560 = vld [vmem:[%s4 + $0x1f8] sm:$0xff]
    %1561 = vmatprep.subr.mxu0 %v1558
    %1562 = vmatpush1.msra.mxu0 %v1557
    %1563 = vmatprep.subr.mxu0 %v1554
    %1564 = vmatpush1.msra.mxu0 %v1553
    %1565 = vmatprep.subr.mxu0 %v1550
    %1566 = vmatpush1.msra.mxu0 %v1549
    %1567 = vmatprep.subr.mxu0 %v1546
    %1568 = vmatpush1.msra.mxu0 %v1545
    %1569 = vmatprep.subr.mxu0 %v1542
    %1570 = vmatpush1.msra.mxu0 %v1541
    %1571 = vmatprep.subr.mxu0 %v1538
    %1572 = vmatpush1.msra.mxu0 %v1537
    %1573 = vmatprep.subr.mxu0 %v1534
    %1574 = vmatpush1.msra.mxu0 %v1533
    %1575 = vmatprep.subr.mxu0 %v1530
    %1576 = vmatpush1.msra.mxu0 %v1529
    %1577 = vmatprep.subr.mxu0 %v1526
    %1578 = vmatpush1.msra.mxu0 %v1525
    %1579 = vmatprep.subr.mxu0 %v1522
    %1580 = vmatpush1.msra.mxu0 %v1521
    %1581 = vmatprep.subr.mxu0 %v1518
    %1582 = vmatpush1.msra.mxu0 %v1517
    %1583 = vmatprep.subr.mxu0 %v1514
    %1584 = vmatpush1.msra.mxu0 %v1513
    %1585 = vmatprep.subr.mxu0 %v1510
    %1586 = vmatpush1.msra.mxu0 %v1509
    %1587 = vmatprep.subr.mxu0 %v1506
    %1588 = vmatpush1.msra.mxu0 %v1505
    %1589 = vmatprep.subr.mxu0 %v1502
    %1590 = vmatpush1.msra.mxu0 %v1501
    %1591 = vmatprep.subr.mxu0 %v1498
    %1592 = vmatpush1.msra.mxu0 %v1497
    %1593 = vmatprep.subr.mxu0 0.0
    %1594 = vmatpush2.msra.mxu0 0.0
    %1595 = vmatprep.subr.mxu0 0.0
    %1596 = vmatpush2.msra.mxu0 0.0
    %1597 = vmatprep.subr.mxu0 0.0
    %1598 = vmatpush2.msra.mxu0 0.0
    %1599 = vmatprep.subr.mxu0 0.0
    %1600 = vmatpush2.msra.mxu0 0.0
    %1601 = vmatprep.subr.mxu0 0.0
    %1602 = vmatpush2.msra.mxu0 0.0
    %1603 = vmatprep.subr.mxu0 0.0
    %1604 = vmatpush2.msra.mxu0 0.0
    %1605 = vmatprep.subr.mxu0 0.0
    %1606 = vmatpush2.msra.mxu0 0.0
    %1607 = vmatprep.subr.mxu0 0.0
    %1608 = vmatpush2.msra.mxu0 0.0
    %1609 = vmatprep.subr.mxu0 0.0
    %1610 = vmatpush2.msra.mxu0 0.0
    %1611 = vmatprep.subr.mxu0 0.0
    %1612 = vmatpush2.msra.mxu0 0.0
    %1613 = vmatprep.subr.mxu0 0.0
    %1614 = vmatpush2.msra.mxu0 0.0
    %1615 = vmatprep.subr.mxu0 0.0
    %1616 = vmatpush2.msra.mxu0 0.0
    %1617 = vmatprep.subr.mxu0 0.0
    %1618 = vmatpush2.msra.mxu0 0.0
    %1619 = vmatprep.subr.mxu0 0.0
    %1620 = vmatpush2.msra.mxu0 0.0
    %1621 = vmatprep.subr.mxu0 0.0
    %1622 = vmatpush2.msra.mxu0 0.0
    %1623 = vmatprep.subr.mxu0 0.0
    %1624 = vmatpush2.msra.mxu0 0.0
    %1625 = vmatprep.mubr.f32.mxu0 0.0
    %1626 = vmatmul.mubr.f32.gmra.mxu0 %v1495
    %v1627 = vpop.f32.mrf.mxu0
    %v1628 = vadd.f32 0.0, %v1627
    %v1629 = vpop.f32.mrf.mxu0
    %v1630 = vadd.f32 0.0, %v1629
    %1631 = vdwg.mxu0
    %1632 = vmatprep.subr.mxu0 %v1560
    %1633 = vmatpush1.msra.mxu0 %v1559
    %1634 = vmatprep.subr.mxu0 %v1556
    %1635 = vmatpush1.msra.mxu0 %v1555
    %1636 = vmatprep.subr.mxu0 %v1552
    %1637 = vmatpush1.msra.mxu0 %v1551
    %1638 = vmatprep.subr.mxu0 %v1548
    %1639 = vmatpush1.msra.mxu0 %v1547
    %1640 = vmatprep.subr.mxu0 %v1544
    %1641 = vmatpush1.msra.mxu0 %v1543
    %1642 = vmatprep.subr.mxu0 %v1540
    %1643 = vmatpush1.msra.mxu0 %v1539
    %1644 = vmatprep.subr.mxu0 %v1536
    %1645 = vmatpush1.msra.mxu0 %v1535
    %1646 = vmatprep.subr.mxu0 %v1532
    %1647 = vmatpush1.msra.mxu0 %v1531
    %1648 = vmatprep.subr.mxu0 %v1528
    %1649 = vmatpush1.msra.mxu0 %v1527
    %1650 = vmatprep.subr.mxu0 %v1524
    %1651 = vmatpush1.msra.mxu0 %v1523
    %1652 = vmatprep.subr.mxu0 %v1520
    %1653 = vmatpush1.msra.mxu0 %v1519
    %1654 = vmatprep.subr.mxu0 %v1516
    %1655 = vmatpush1.msra.mxu0 %v1515
    %1656 = vmatprep.subr.mxu0 %v1512
    %1657 = vmatpush1.msra.mxu0 %v1511
    %1658 = vmatprep.subr.mxu0 %v1508
    %1659 = vmatpush1.msra.mxu0 %v1507
    %1660 = vmatprep.subr.mxu0 %v1504
    %1661 = vmatpush1.msra.mxu0 %v1503
    %1662 = vmatprep.subr.mxu0 %v1500
    %1663 = vmatpush1.msra.mxu0 %v1499
    %1664 = vmatprep.subr.mxu0 0.0
    %1665 = vmatpush2.msra.mxu0 0.0
    %1666 = vmatprep.subr.mxu0 0.0
    %1667 = vmatpush2.msra.mxu0 0.0
    %1668 = vmatprep.subr.mxu0 0.0
    %1669 = vmatpush2.msra.mxu0 0.0
    %1670 = vmatprep.subr.mxu0 0.0
    %1671 = vmatpush2.msra.mxu0 0.0
    %1672 = vmatprep.subr.mxu0 0.0
    %1673 = vmatpush2.msra.mxu0 0.0
    %1674 = vmatprep.subr.mxu0 0.0
    %1675 = vmatpush2.msra.mxu0 0.0
    %1676 = vmatprep.subr.mxu0 0.0
    %1677 = vmatpush2.msra.mxu0 0.0
    %1678 = vmatprep.subr.mxu0 0.0
    %1679 = vmatpush2.msra.mxu0 0.0
    %1680 = vmatprep.subr.mxu0 0.0
    %1681 = vmatpush2.msra.mxu0 0.0
    %1682 = vmatprep.subr.mxu0 0.0
    %1683 = vmatpush2.msra.mxu0 0.0
    %1684 = vmatprep.subr.mxu0 0.0
    %1685 = vmatpush2.msra.mxu0 0.0
    %1686 = vmatprep.subr.mxu0 0.0
    %1687 = vmatpush2.msra.mxu0 0.0
    %1688 = vmatprep.subr.mxu0 0.0
    %1689 = vmatpush2.msra.mxu0 0.0
    %1690 = vmatprep.subr.mxu0 0.0
    %1691 = vmatpush2.msra.mxu0 0.0
    %1692 = vmatprep.subr.mxu0 0.0
    %1693 = vmatpush2.msra.mxu0 0.0
    %1694 = vmatprep.subr.mxu0 0.0
    %1695 = vmatpush2.msra.mxu0 0.0
    %1696 = vmatprep.mubr.f32.mxu0 0.0
    %1697 = vmatmul.mubr.f32.gmra.mxu0 %v1495
    %v1698 = vpop.f32.mrf.mxu0
    %v1699 = vadd.f32 0.0, %v1698
    %v1700 = vpop.f32.mrf.mxu0
    %v1701 = vadd.f32 0.0, %v1700
    %1702 = vdwg.mxu0
    %v1703 = vadd.f32 %v1490, %v1628
    %v1704 = vadd.f32 %v1491, %v1630
    %v1705 = vadd.f32 %v1492, %v1699
    %v1706 = vadd.f32 %v1493, %v1701
    %v1707 = vxor.u32 %v1703, 2147483648
    %v1708 = vmul.f32 %v1707, 1.442695
    %v1709 = vpow.pop %v1708
    %v1710 = vadd.f32 %v1709, 1.0
    %v1711 = vrcp.pop %v1710
    %v1712 = vmul.f32 1.0, %v1711
    %v1713 = vxor.u32 %v1704, 2147483648
    %v1714 = vmul.f32 %v1713, 1.442695
    %v1715 = vpow.pop %v1714
    %v1716 = vadd.f32 %v1715, 1.0
    %v1717 = vrcp.pop %v1716
    %v1718 = vmul.f32 1.0, %v1717
    %v1719 = vtanh.pop %v1705
    %v1720 = vxor.u32 %v1706, 2147483648
    %v1721 = vmul.f32 %v1720, 1.442695
    %v1722 = vpow.pop %v1721
    %v1723 = vadd.f32 %v1722, 1.0
    %v1724 = vrcp.pop %v1723
    %v1725 = vmul.f32 1.0, %v1724
    %v1726 = vmul.f32 %v1718, %v1496
    %v1727 = vmul.f32 %v1712, %v1719
    %v1728 = vadd.f32 %v1726, %v1727
    %v1729 = vtanh.pop %v1728
    %v1730 = vmul.f32 %v1725, %v1729
    %v1731 = vstv %s1494
    %vm1732 = vcmp.lt.s32.totalorder %v219, %v1731
    %v1733 = vsel %vm1732, 1, 0
    %vm1734 = vcmp.eq.s32.totalorder %v1733, 1
    %v1735 = vsel %vm1734, %v1730, %v1495
    %1736 = vst [vmem:[#allocation4] sm:$0xff] %v1735
    %v1737 = vsel %vm1734, %v1728, %v1496
    %1738 = vst [vmem:[#allocation5] sm:$0xff] %v1737
    %v1739 = vsel %vm1734, %v1730, 0.0
    %s1740 = scalar_lea.vmem %s207, 40
    %1741 = vst [vmem:[%s1740] sm:$0xff] %v1739
    %s1742 = sadd.s32 %s220, 3
    %s1743 = ssub.s32 4, %s220
    %s1744 = scalar_lea.vmem [#allocation8], 96
    %v1745 = vld [vmem:[%s1744] sm:$0xff]
    %v1746 = vld [vmem:[%s1744 + $0x8] sm:$0xff]
    %v1747 = vld [vmem:[%s1744 + $0x10] sm:$0xff]
    %v1748 = vld [vmem:[%s1744 + $0x18] sm:$0xff]
    %s1749 = sld [smem:[#allocation7 + %s1742]]
    %v1750 = vld [vmem:[#allocation2] sm:$0xff]
    %v1751 = vld [vmem:[#allocation3] sm:$0xff]
    %v1752 = vld [vmem:[%s3] sm:$0xff]
    %v1753 = vld [vmem:[%s3 + $0x8] sm:$0xff]
    %v1754 = vld [vmem:[%s3 + $0x10] sm:$0xff]
    %v1755 = vld [vmem:[%s3 + $0x18] sm:$0xff]
    %v1756 = vld [vmem:[%s3 + $0x20] sm:$0xff]
    %v1757 = vld [vmem:[%s3 + $0x28] sm:$0xff]
    %v1758 = vld [vmem:[%s3 + $0x30] sm:$0xff]
    %v1759 = vld [vmem:[%s3 + $0x38] sm:$0xff]
    %v1760 = vld [vmem:[%s3 + $0x40] sm:$0xff]
    %v1761 = vld [vmem:[%s3 + $0x48] sm:$0xff]
    %v1762 = vld [vmem:[%s3 + $0x50] sm:$0xff]
    %v1763 = vld [vmem:[%s3 + $0x58] sm:$0xff]
    %v1764 = vld [vmem:[%s3 + $0x60] sm:$0xff]
    %v1765 = vld [vmem:[%s3 + $0x68] sm:$0xff]
    %v1766 = vld [vmem:[%s3 + $0x70] sm:$0xff]
    %v1767 = vld [vmem:[%s3 + $0x78] sm:$0xff]
    %v1768 = vld [vmem:[%s3 + $0x80] sm:$0xff]
    %v1769 = vld [vmem:[%s3 + $0x88] sm:$0xff]
    %v1770 = vld [vmem:[%s3 + $0x90] sm:$0xff]
    %v1771 = vld [vmem:[%s3 + $0x98] sm:$0xff]
    %v1772 = vld [vmem:[%s3 + $0xa0] sm:$0xff]
    %v1773 = vld [vmem:[%s3 + $0xa8] sm:$0xff]
    %v1774 = vld [vmem:[%s3 + $0xb0] sm:$0xff]
    %v1775 = vld [vmem:[%s3 + $0xb8] sm:$0xff]
    %v1776 = vld [vmem:[%s3 + $0xc0] sm:$0xff]
    %v1777 = vld [vmem:[%s3 + $0xc8] sm:$0xff]
    %v1778 = vld [vmem:[%s3 + $0xd0] sm:$0xff]
    %v1779 = vld [vmem:[%s3 + $0xd8] sm:$0xff]
    %v1780 = vld [vmem:[%s3 + $0xe0] sm:$0xff]
    %v1781 = vld [vmem:[%s3 + $0xe8] sm:$0xff]
    %v1782 = vld [vmem:[%s3 + $0xf0] sm:$0xff]
    %v1783 = vld [vmem:[%s3 + $0xf8] sm:$0xff]
    %v1784 = vld [vmem:[%s3 + $0x100] sm:$0xff]
    %v1785 = vld [vmem:[%s3 + $0x108] sm:$0xff]
    %v1786 = vld [vmem:[%s3 + $0x110] sm:$0xff]
    %v1787 = vld [vmem:[%s3 + $0x118] sm:$0xff]
    %v1788 = vld [vmem:[%s3 + $0x120] sm:$0xff]
    %v1789 = vld [vmem:[%s3 + $0x128] sm:$0xff]
    %v1790 = vld [vmem:[%s3 + $0x130] sm:$0xff]
    %v1791 = vld [vmem:[%s3 + $0x138] sm:$0xff]
    %v1792 = vld [vmem:[%s3 + $0x140] sm:$0xff]
    %v1793 = vld [vmem:[%s3 + $0x148] sm:$0xff]
    %v1794 = vld [vmem:[%s3 + $0x150] sm:$0xff]
    %v1795 = vld [vmem:[%s3 + $0x158] sm:$0xff]
    %v1796 = vld [vmem:[%s3 + $0x160] sm:$0xff]
    %v1797 = vld [vmem:[%s3 + $0x168] sm:$0xff]
    %v1798 = vld [vmem:[%s3 + $0x170] sm:$0xff]
    %v1799 = vld [vmem:[%s3 + $0x178] sm:$0xff]
    %v1800 = vld [vmem:[%s3 + $0x180] sm:$0xff]
    %v1801 = vld [vmem:[%s3 + $0x188] sm:$0xff]
    %v1802 = vld [vmem:[%s3 + $0x190] sm:$0xff]
    %v1803 = vld [vmem:[%s3 + $0x198] sm:$0xff]
    %v1804 = vld [vmem:[%s3 + $0x1a0] sm:$0xff]
    %v1805 = vld [vmem:[%s3 + $0x1a8] sm:$0xff]
    %v1806 = vld [vmem:[%s3 + $0x1b0] sm:$0xff]
    %v1807 = vld [vmem:[%s3 + $0x1b8] sm:$0xff]
    %v1808 = vld [vmem:[%s3 + $0x1c0] sm:$0xff]
    %v1809 = vld [vmem:[%s3 + $0x1c8] sm:$0xff]
    %v1810 = vld [vmem:[%s3 + $0x1d0] sm:$0xff]
    %v1811 = vld [vmem:[%s3 + $0x1d8] sm:$0xff]
    %v1812 = vld [vmem:[%s3 + $0x1e0] sm:$0xff]
    %v1813 = vld [vmem:[%s3 + $0x1e8] sm:$0xff]
    %v1814 = vld [vmem:[%s3 + $0x1f0] sm:$0xff]
    %v1815 = vld [vmem:[%s3 + $0x1f8] sm:$0xff]
    %1816 = vmatprep.subr.mxu0 %v1813
    %1817 = vmatpush1.msra.mxu0 %v1812
    %1818 = vmatprep.subr.mxu0 %v1809
    %1819 = vmatpush1.msra.mxu0 %v1808
    %1820 = vmatprep.subr.mxu0 %v1805
    %1821 = vmatpush1.msra.mxu0 %v1804
    %1822 = vmatprep.subr.mxu0 %v1801
    %1823 = vmatpush1.msra.mxu0 %v1800
    %1824 = vmatprep.subr.mxu0 %v1797
    %1825 = vmatpush1.msra.mxu0 %v1796
    %1826 = vmatprep.subr.mxu0 %v1793
    %1827 = vmatpush1.msra.mxu0 %v1792
    %1828 = vmatprep.subr.mxu0 %v1789
    %1829 = vmatpush1.msra.mxu0 %v1788
    %1830 = vmatprep.subr.mxu0 %v1785
    %1831 = vmatpush1.msra.mxu0 %v1784
    %1832 = vmatprep.subr.mxu0 %v1781
    %1833 = vmatpush1.msra.mxu0 %v1780
    %1834 = vmatprep.subr.mxu0 %v1777
    %1835 = vmatpush1.msra.mxu0 %v1776
    %1836 = vmatprep.subr.mxu0 %v1773
    %1837 = vmatpush1.msra.mxu0 %v1772
    %1838 = vmatprep.subr.mxu0 %v1769
    %1839 = vmatpush1.msra.mxu0 %v1768
    %1840 = vmatprep.subr.mxu0 %v1765
    %1841 = vmatpush1.msra.mxu0 %v1764
    %1842 = vmatprep.subr.mxu0 %v1761
    %1843 = vmatpush1.msra.mxu0 %v1760
    %1844 = vmatprep.subr.mxu0 %v1757
    %1845 = vmatpush1.msra.mxu0 %v1756
    %1846 = vmatprep.subr.mxu0 %v1753
    %1847 = vmatpush1.msra.mxu0 %v1752
    %1848 = vmatprep.subr.mxu0 0.0
    %1849 = vmatpush2.msra.mxu0 0.0
    %1850 = vmatprep.subr.mxu0 0.0
    %1851 = vmatpush2.msra.mxu0 0.0
    %1852 = vmatprep.subr.mxu0 0.0
    %1853 = vmatpush2.msra.mxu0 0.0
    %1854 = vmatprep.subr.mxu0 0.0
    %1855 = vmatpush2.msra.mxu0 0.0
    %1856 = vmatprep.subr.mxu0 0.0
    %1857 = vmatpush2.msra.mxu0 0.0
    %1858 = vmatprep.subr.mxu0 0.0
    %1859 = vmatpush2.msra.mxu0 0.0
    %1860 = vmatprep.subr.mxu0 0.0
    %1861 = vmatpush2.msra.mxu0 0.0
    %1862 = vmatprep.subr.mxu0 0.0
    %1863 = vmatpush2.msra.mxu0 0.0
    %1864 = vmatprep.subr.mxu0 0.0
    %1865 = vmatpush2.msra.mxu0 0.0
    %1866 = vmatprep.subr.mxu0 0.0
    %1867 = vmatpush2.msra.mxu0 0.0
    %1868 = vmatprep.subr.mxu0 0.0
    %1869 = vmatpush2.msra.mxu0 0.0
    %1870 = vmatprep.subr.mxu0 0.0
    %1871 = vmatpush2.msra.mxu0 0.0
    %1872 = vmatprep.subr.mxu0 0.0
    %1873 = vmatpush2.msra.mxu0 0.0
    %1874 = vmatprep.subr.mxu0 0.0
    %1875 = vmatpush2.msra.mxu0 0.0
    %1876 = vmatprep.subr.mxu0 0.0
    %1877 = vmatpush2.msra.mxu0 0.0
    %1878 = vmatprep.subr.mxu0 0.0
    %1879 = vmatpush2.msra.mxu0 0.0
    %1880 = vmatprep.mubr.f32.mxu0 0.0
    %1881 = vmatmul.mubr.f32.gmra.mxu0 %v1750
    %v1882 = vpop.f32.mrf.mxu0
    %v1883 = vadd.f32 0.0, %v1882
    %v1884 = vpop.f32.mrf.mxu0
    %v1885 = vadd.f32 0.0, %v1884
    %1886 = vdwg.mxu0
    %1887 = vmatprep.subr.mxu0 %v1815
    %1888 = vmatpush1.msra.mxu0 %v1814
    %1889 = vmatprep.subr.mxu0 %v1811
    %1890 = vmatpush1.msra.mxu0 %v1810
    %1891 = vmatprep.subr.mxu0 %v1807
    %1892 = vmatpush1.msra.mxu0 %v1806
    %1893 = vmatprep.subr.mxu0 %v1803
    %1894 = vmatpush1.msra.mxu0 %v1802
    %1895 = vmatprep.subr.mxu0 %v1799
    %1896 = vmatpush1.msra.mxu0 %v1798
    %1897 = vmatprep.subr.mxu0 %v1795
    %1898 = vmatpush1.msra.mxu0 %v1794
    %1899 = vmatprep.subr.mxu0 %v1791
    %1900 = vmatpush1.msra.mxu0 %v1790
    %1901 = vmatprep.subr.mxu0 %v1787
    %1902 = vmatpush1.msra.mxu0 %v1786
    %1903 = vmatprep.subr.mxu0 %v1783
    %1904 = vmatpush1.msra.mxu0 %v1782
    %1905 = vmatprep.subr.mxu0 %v1779
    %1906 = vmatpush1.msra.mxu0 %v1778
    %1907 = vmatprep.subr.mxu0 %v1775
    %1908 = vmatpush1.msra.mxu0 %v1774
    %1909 = vmatprep.subr.mxu0 %v1771
    %1910 = vmatpush1.msra.mxu0 %v1770
    %1911 = vmatprep.subr.mxu0 %v1767
    %1912 = vmatpush1.msra.mxu0 %v1766
    %1913 = vmatprep.subr.mxu0 %v1763
    %1914 = vmatpush1.msra.mxu0 %v1762
    %1915 = vmatprep.subr.mxu0 %v1759
    %1916 = vmatpush1.msra.mxu0 %v1758
    %1917 = vmatprep.subr.mxu0 %v1755
    %1918 = vmatpush1.msra.mxu0 %v1754
    %1919 = vmatprep.subr.mxu0 0.0
    %1920 = vmatpush2.msra.mxu0 0.0
    %1921 = vmatprep.subr.mxu0 0.0
    %1922 = vmatpush2.msra.mxu0 0.0
    %1923 = vmatprep.subr.mxu0 0.0
    %1924 = vmatpush2.msra.mxu0 0.0
    %1925 = vmatprep.subr.mxu0 0.0
    %1926 = vmatpush2.msra.mxu0 0.0
    %1927 = vmatprep.subr.mxu0 0.0
    %1928 = vmatpush2.msra.mxu0 0.0
    %1929 = vmatprep.subr.mxu0 0.0
    %1930 = vmatpush2.msra.mxu0 0.0
    %1931 = vmatprep.subr.mxu0 0.0
    %1932 = vmatpush2.msra.mxu0 0.0
    %1933 = vmatprep.subr.mxu0 0.0
    %1934 = vmatpush2.msra.mxu0 0.0
    %1935 = vmatprep.subr.mxu0 0.0
    %1936 = vmatpush2.msra.mxu0 0.0
    %1937 = vmatprep.subr.mxu0 0.0
    %1938 = vmatpush2.msra.mxu0 0.0
    %1939 = vmatprep.subr.mxu0 0.0
    %1940 = vmatpush2.msra.mxu0 0.0
    %1941 = vmatprep.subr.mxu0 0.0
    %1942 = vmatpush2.msra.mxu0 0.0
    %1943 = vmatprep.subr.mxu0 0.0
    %1944 = vmatpush2.msra.mxu0 0.0
    %1945 = vmatprep.subr.mxu0 0.0
    %1946 = vmatpush2.msra.mxu0 0.0
    %1947 = vmatprep.subr.mxu0 0.0
    %1948 = vmatpush2.msra.mxu0 0.0
    %1949 = vmatprep.subr.mxu0 0.0
    %1950 = vmatpush2.msra.mxu0 0.0
    %1951 = vmatprep.mubr.f32.mxu0 0.0
    %1952 = vmatmul.mubr.f32.gmra.mxu0 %v1750
    %v1953 = vpop.f32.mrf.mxu0
    %v1954 = vadd.f32 0.0, %v1953
    %v1955 = vpop.f32.mrf.mxu0
    %v1956 = vadd.f32 0.0, %v1955
    %1957 = vdwg.mxu0
    %v1958 = vadd.f32 %v1745, %v1883
    %v1959 = vadd.f32 %v1746, %v1885
    %v1960 = vadd.f32 %v1747, %v1954
    %v1961 = vadd.f32 %v1748, %v1956
    %v1962 = vxor.u32 %v1958, 2147483648
    %v1963 = vmul.f32 %v1962, 1.442695
    %v1964 = vpow.pop %v1963
    %v1965 = vadd.f32 %v1964, 1.0
    %v1966 = vrcp.pop %v1965
    %v1967 = vmul.f32 1.0, %v1966
    %v1968 = vxor.u32 %v1959, 2147483648
    %v1969 = vmul.f32 %v1968, 1.442695
    %v1970 = vpow.pop %v1969
    %v1971 = vadd.f32 %v1970, 1.0
    %v1972 = vrcp.pop %v1971
    %v1973 = vmul.f32 1.0, %v1972
    %v1974 = vtanh.pop %v1960
    %v1975 = vxor.u32 %v1961, 2147483648
    %v1976 = vmul.f32 %v1975, 1.442695
    %v1977 = vpow.pop %v1976
    %v1978 = vadd.f32 %v1977, 1.0
    %v1979 = vrcp.pop %v1978
    %v1980 = vmul.f32 1.0, %v1979
    %v1981 = vmul.f32 %v1973, %v1751
    %v1982 = vmul.f32 %v1967, %v1974
    %v1983 = vadd.f32 %v1981, %v1982
    %v1984 = vtanh.pop %v1983
    %v1985 = vmul.f32 %v1980, %v1984
    %v1986 = vstv %s1749
    %vm1987 = vcmp.lt.s32.totalorder %v219, %v1986
    %v1988 = vsel %vm1987, 1, 0
    %vm1989 = vcmp.eq.s32.totalorder %v1988, 1
    %v1990 = vsel %vm1989, %v1985, %v1750
    %1991 = vst [vmem:[#allocation2] sm:$0xff] %v1990
    %v1992 = vsel %vm1989, %v1983, %v1751
    %1993 = vst [vmem:[#allocation3] sm:$0xff] %v1992
    %v1994 = vsel %vm1989, %v1985, 0.0
    %s1995 = scalar_lea.vmem %s5, 24
    %1996 = vst [vmem:[%s1995] sm:$0xff] %v1994
    %s1997 = scalar_lea.vmem [#allocation9], 128
    %v1998 = vld [vmem:[%s1997] sm:$0xff]
    %v1999 = vld [vmem:[%s1997 + $0x8] sm:$0xff]
    %v2000 = vld [vmem:[%s1997 + $0x10] sm:$0xff]
    %v2001 = vld [vmem:[%s1997 + $0x18] sm:$0xff]
    %s2002 = sld [smem:[#allocation7 + %s1743]]
    %v2003 = vld [vmem:[#allocation4] sm:$0xff]
    %v2004 = vld [vmem:[#allocation5] sm:$0xff]
    %v2005 = vld [vmem:[%s4] sm:$0xff]
    %v2006 = vld [vmem:[%s4 + $0x8] sm:$0xff]
    %v2007 = vld [vmem:[%s4 + $0x10] sm:$0xff]
    %v2008 = vld [vmem:[%s4 + $0x18] sm:$0xff]
    %v2009 = vld [vmem:[%s4 + $0x20] sm:$0xff]
    %v2010 = vld [vmem:[%s4 + $0x28] sm:$0xff]
    %v2011 = vld [vmem:[%s4 + $0x30] sm:$0xff]
    %v2012 = vld [vmem:[%s4 + $0x38] sm:$0xff]
    %v2013 = vld [vmem:[%s4 + $0x40] sm:$0xff]
    %v2014 = vld [vmem:[%s4 + $0x48] sm:$0xff]
    %v2015 = vld [vmem:[%s4 + $0x50] sm:$0xff]
    %v2016 = vld [vmem:[%s4 + $0x58] sm:$0xff]
    %v2017 = vld [vmem:[%s4 + $0x60] sm:$0xff]
    %v2018 = vld [vmem:[%s4 + $0x68] sm:$0xff]
    %v2019 = vld [vmem:[%s4 + $0x70] sm:$0xff]
    %v2020 = vld [vmem:[%s4 + $0x78] sm:$0xff]
    %v2021 = vld [vmem:[%s4 + $0x80] sm:$0xff]
    %v2022 = vld [vmem:[%s4 + $0x88] sm:$0xff]
    %v2023 = vld [vmem:[%s4 + $0x90] sm:$0xff]
    %v2024 = vld [vmem:[%s4 + $0x98] sm:$0xff]
    %v2025 = vld [vmem:[%s4 + $0xa0] sm:$0xff]
    %v2026 = vld [vmem:[%s4 + $0xa8] sm:$0xff]
    %v2027 = vld [vmem:[%s4 + $0xb0] sm:$0xff]
    %v2028 = vld [vmem:[%s4 + $0xb8] sm:$0xff]
    %v2029 = vld [vmem:[%s4 + $0xc0] sm:$0xff]
    %v2030 = vld [vmem:[%s4 + $0xc8] sm:$0xff]
    %v2031 = vld [vmem:[%s4 + $0xd0] sm:$0xff]
    %v2032 = vld [vmem:[%s4 + $0xd8] sm:$0xff]
    %v2033 = vld [vmem:[%s4 + $0xe0] sm:$0xff]
    %v2034 = vld [vmem:[%s4 + $0xe8] sm:$0xff]
    %v2035 = vld [vmem:[%s4 + $0xf0] sm:$0xff]
    %v2036 = vld [vmem:[%s4 + $0xf8] sm:$0xff]
    %v2037 = vld [vmem:[%s4 + $0x100] sm:$0xff]
    %v2038 = vld [vmem:[%s4 + $0x108] sm:$0xff]
    %v2039 = vld [vmem:[%s4 + $0x110] sm:$0xff]
    %v2040 = vld [vmem:[%s4 + $0x118] sm:$0xff]
    %v2041 = vld [vmem:[%s4 + $0x120] sm:$0xff]
    %v2042 = vld [vmem:[%s4 + $0x128] sm:$0xff]
    %v2043 = vld [vmem:[%s4 + $0x130] sm:$0xff]
    %v2044 = vld [vmem:[%s4 + $0x138] sm:$0xff]
    %v2045 = vld [vmem:[%s4 + $0x140] sm:$0xff]
    %v2046 = vld [vmem:[%s4 + $0x148] sm:$0xff]
    %v2047 = vld [vmem:[%s4 + $0x150] sm:$0xff]
    %v2048 = vld [vmem:[%s4 + $0x158] sm:$0xff]
    %v2049 = vld [vmem:[%s4 + $0x160] sm:$0xff]
    %v2050 = vld [vmem:[%s4 + $0x168] sm:$0xff]
    %v2051 = vld [vmem:[%s4 + $0x170] sm:$0xff]
    %v2052 = vld [vmem:[%s4 + $0x178] sm:$0xff]
    %v2053 = vld [vmem:[%s4 + $0x180] sm:$0xff]
    %v2054 = vld [vmem:[%s4 + $0x188] sm:$0xff]
    %v2055 = vld [vmem:[%s4 + $0x190] sm:$0xff]
    %v2056 = vld [vmem:[%s4 + $0x198] sm:$0xff]
    %v2057 = vld [vmem:[%s4 + $0x1a0] sm:$0xff]
    %v2058 = vld [vmem:[%s4 + $0x1a8] sm:$0xff]
    %v2059 = vld [vmem:[%s4 + $0x1b0] sm:$0xff]
    %v2060 = vld [vmem:[%s4 + $0x1b8] sm:$0xff]
    %v2061 = vld [vmem:[%s4 + $0x1c0] sm:$0xff]
    %v2062 = vld [vmem:[%s4 + $0x1c8] sm:$0xff]
    %v2063 = vld [vmem:[%s4 + $0x1d0] sm:$0xff]
    %v2064 = vld [vmem:[%s4 + $0x1d8] sm:$0xff]
    %v2065 = vld [vmem:[%s4 + $0x1e0] sm:$0xff]
    %v2066 = vld [vmem:[%s4 + $0x1e8] sm:$0xff]
    %v2067 = vld [vmem:[%s4 + $0x1f0] sm:$0xff]
    %v2068 = vld [vmem:[%s4 + $0x1f8] sm:$0xff]
    %2069 = vmatprep.subr.mxu0 %v2066
    %2070 = vmatpush1.msra.mxu0 %v2065
    %2071 = vmatprep.subr.mxu0 %v2062
    %2072 = vmatpush1.msra.mxu0 %v2061
    %2073 = vmatprep.subr.mxu0 %v2058
    %2074 = vmatpush1.msra.mxu0 %v2057
    %2075 = vmatprep.subr.mxu0 %v2054
    %2076 = vmatpush1.msra.mxu0 %v2053
    %2077 = vmatprep.subr.mxu0 %v2050
    %2078 = vmatpush1.msra.mxu0 %v2049
    %2079 = vmatprep.subr.mxu0 %v2046
    %2080 = vmatpush1.msra.mxu0 %v2045
    %2081 = vmatprep.subr.mxu0 %v2042
    %2082 = vmatpush1.msra.mxu0 %v2041
    %2083 = vmatprep.subr.mxu0 %v2038
    %2084 = vmatpush1.msra.mxu0 %v2037
    %2085 = vmatprep.subr.mxu0 %v2034
    %2086 = vmatpush1.msra.mxu0 %v2033
    %2087 = vmatprep.subr.mxu0 %v2030
    %2088 = vmatpush1.msra.mxu0 %v2029
    %2089 = vmatprep.subr.mxu0 %v2026
    %2090 = vmatpush1.msra.mxu0 %v2025
    %2091 = vmatprep.subr.mxu0 %v2022
    %2092 = vmatpush1.msra.mxu0 %v2021
    %2093 = vmatprep.subr.mxu0 %v2018
    %2094 = vmatpush1.msra.mxu0 %v2017
    %2095 = vmatprep.subr.mxu0 %v2014
    %2096 = vmatpush1.msra.mxu0 %v2013
    %2097 = vmatprep.subr.mxu0 %v2010
    %2098 = vmatpush1.msra.mxu0 %v2009
    %2099 = vmatprep.subr.mxu0 %v2006
    %2100 = vmatpush1.msra.mxu0 %v2005
    %2101 = vmatprep.subr.mxu0 0.0
    %2102 = vmatpush2.msra.mxu0 0.0
    %2103 = vmatprep.subr.mxu0 0.0
    %2104 = vmatpush2.msra.mxu0 0.0
    %2105 = vmatprep.subr.mxu0 0.0
    %2106 = vmatpush2.msra.mxu0 0.0
    %2107 = vmatprep.subr.mxu0 0.0
    %2108 = vmatpush2.msra.mxu0 0.0
    %2109 = vmatprep.subr.mxu0 0.0
    %2110 = vmatpush2.msra.mxu0 0.0
    %2111 = vmatprep.subr.mxu0 0.0
    %2112 = vmatpush2.msra.mxu0 0.0
    %2113 = vmatprep.subr.mxu0 0.0
    %2114 = vmatpush2.msra.mxu0 0.0
    %2115 = vmatprep.subr.mxu0 0.0
    %2116 = vmatpush2.msra.mxu0 0.0
    %2117 = vmatprep.subr.mxu0 0.0
    %2118 = vmatpush2.msra.mxu0 0.0
    %2119 = vmatprep.subr.mxu0 0.0
    %2120 = vmatpush2.msra.mxu0 0.0
    %2121 = vmatprep.subr.mxu0 0.0
    %2122 = vmatpush2.msra.mxu0 0.0
    %2123 = vmatprep.subr.mxu0 0.0
    %2124 = vmatpush2.msra.mxu0 0.0
    %2125 = vmatprep.subr.mxu0 0.0
    %2126 = vmatpush2.msra.mxu0 0.0
    %2127 = vmatprep.subr.mxu0 0.0
    %2128 = vmatpush2.msra.mxu0 0.0
    %2129 = vmatprep.subr.mxu0 0.0
    %2130 = vmatpush2.msra.mxu0 0.0
    %2131 = vmatprep.subr.mxu0 0.0
    %2132 = vmatpush2.msra.mxu0 0.0
    %2133 = vmatprep.mubr.f32.mxu0 0.0
    %2134 = vmatmul.mubr.f32.gmra.mxu0 %v2003
    %v2135 = vpop.f32.mrf.mxu0
    %v2136 = vadd.f32 0.0, %v2135
    %v2137 = vpop.f32.mrf.mxu0
    %v2138 = vadd.f32 0.0, %v2137
    %2139 = vdwg.mxu0
    %2140 = vmatprep.subr.mxu0 %v2068
    %2141 = vmatpush1.msra.mxu0 %v2067
    %2142 = vmatprep.subr.mxu0 %v2064
    %2143 = vmatpush1.msra.mxu0 %v2063
    %2144 = vmatprep.subr.mxu0 %v2060
    %2145 = vmatpush1.msra.mxu0 %v2059
    %2146 = vmatprep.subr.mxu0 %v2056
    %2147 = vmatpush1.msra.mxu0 %v2055
    %2148 = vmatprep.subr.mxu0 %v2052
    %2149 = vmatpush1.msra.mxu0 %v2051
    %2150 = vmatprep.subr.mxu0 %v2048
    %2151 = vmatpush1.msra.mxu0 %v2047
    %2152 = vmatprep.subr.mxu0 %v2044
    %2153 = vmatpush1.msra.mxu0 %v2043
    %2154 = vmatprep.subr.mxu0 %v2040
    %2155 = vmatpush1.msra.mxu0 %v2039
    %2156 = vmatprep.subr.mxu0 %v2036
    %2157 = vmatpush1.msra.mxu0 %v2035
    %2158 = vmatprep.subr.mxu0 %v2032
    %2159 = vmatpush1.msra.mxu0 %v2031
    %2160 = vmatprep.subr.mxu0 %v2028
    %2161 = vmatpush1.msra.mxu0 %v2027
    %2162 = vmatprep.subr.mxu0 %v2024
    %2163 = vmatpush1.msra.mxu0 %v2023
    %2164 = vmatprep.subr.mxu0 %v2020
    %2165 = vmatpush1.msra.mxu0 %v2019
    %2166 = vmatprep.subr.mxu0 %v2016
    %2167 = vmatpush1.msra.mxu0 %v2015
    %2168 = vmatprep.subr.mxu0 %v2012
    %2169 = vmatpush1.msra.mxu0 %v2011
    %2170 = vmatprep.subr.mxu0 %v2008
    %2171 = vmatpush1.msra.mxu0 %v2007
    %2172 = vmatprep.subr.mxu0 0.0
    %2173 = vmatpush2.msra.mxu0 0.0
    %2174 = vmatprep.subr.mxu0 0.0
    %2175 = vmatpush2.msra.mxu0 0.0
    %2176 = vmatprep.subr.mxu0 0.0
    %2177 = vmatpush2.msra.mxu0 0.0
    %2178 = vmatprep.subr.mxu0 0.0
    %2179 = vmatpush2.msra.mxu0 0.0
    %2180 = vmatprep.subr.mxu0 0.0
    %2181 = vmatpush2.msra.mxu0 0.0
    %2182 = vmatprep.subr.mxu0 0.0
    %2183 = vmatpush2.msra.mxu0 0.0
    %2184 = vmatprep.subr.mxu0 0.0
    %2185 = vmatpush2.msra.mxu0 0.0
    %2186 = vmatprep.subr.mxu0 0.0
    %2187 = vmatpush2.msra.mxu0 0.0
    %2188 = vmatprep.subr.mxu0 0.0
    %2189 = vmatpush2.msra.mxu0 0.0
    %2190 = vmatprep.subr.mxu0 0.0
    %2191 = vmatpush2.msra.mxu0 0.0
    %2192 = vmatprep.subr.mxu0 0.0
    %2193 = vmatpush2.msra.mxu0 0.0
    %2194 = vmatprep.subr.mxu0 0.0
    %2195 = vmatpush2.msra.mxu0 0.0
    %2196 = vmatprep.subr.mxu0 0.0
    %2197 = vmatpush2.msra.mxu0 0.0
    %2198 = vmatprep.subr.mxu0 0.0
    %2199 = vmatpush2.msra.mxu0 0.0
    %2200 = vmatprep.subr.mxu0 0.0
    %2201 = vmatpush2.msra.mxu0 0.0
    %2202 = vmatprep.subr.mxu0 0.0
    %2203 = vmatpush2.msra.mxu0 0.0
    %2204 = vmatprep.mubr.f32.mxu0 0.0
    %2205 = vmatmul.mubr.f32.gmra.mxu0 %v2003
    %v2206 = vpop.f32.mrf.mxu0
    %v2207 = vadd.f32 0.0, %v2206
    %v2208 = vpop.f32.mrf.mxu0
    %v2209 = vadd.f32 0.0, %v2208
    %2210 = vdwg.mxu0
    %v2211 = vadd.f32 %v1998, %v2136
    %v2212 = vadd.f32 %v1999, %v2138
    %v2213 = vadd.f32 %v2000, %v2207
    %v2214 = vadd.f32 %v2001, %v2209
    %v2215 = vxor.u32 %v2211, 2147483648
    %v2216 = vmul.f32 %v2215, 1.442695
    %v2217 = vpow.pop %v2216
    %v2218 = vadd.f32 %v2217, 1.0
    %v2219 = vrcp.pop %v2218
    %v2220 = vmul.f32 1.0, %v2219
    %v2221 = vxor.u32 %v2212, 2147483648
    %v2222 = vmul.f32 %v2221, 1.442695
    %v2223 = vpow.pop %v2222
    %v2224 = vadd.f32 %v2223, 1.0
    %v2225 = vrcp.pop %v2224
    %v2226 = vmul.f32 1.0, %v2225
    %v2227 = vtanh.pop %v2213
    %v2228 = vxor.u32 %v2214, 2147483648
    %v2229 = vmul.f32 %v2228, 1.442695
    %v2230 = vpow.pop %v2229
    %v2231 = vadd.f32 %v2230, 1.0
    %v2232 = vrcp.pop %v2231
    %v2233 = vmul.f32 1.0, %v2232
    %v2234 = vmul.f32 %v2226, %v2004
    %v2235 = vmul.f32 %v2220, %v2227
    %v2236 = vadd.f32 %v2234, %v2235
    %v2237 = vtanh.pop %v2236
    %v2238 = vmul.f32 %v2233, %v2237
    %v2239 = vstv %s2002
    %vm2240 = vcmp.lt.s32.totalorder %v219, %v2239
    %v2241 = vsel %vm2240, 1, 0
    %vm2242 = vcmp.eq.s32.totalorder %v2241, 1
    %v2243 = vsel %vm2242, %v2238, %v2003
    %2244 = vst [vmem:[#allocation4] sm:$0xff] %v2243
    %v2245 = vsel %vm2242, %v2236, %v2004
    %2246 = vst [vmem:[#allocation5] sm:$0xff] %v2245
    %v2247 = vsel %vm2242, %v2238, 0.0
    %s2248 = scalar_lea.vmem %s207, 32
    %2249 = vst [vmem:[%s2248] sm:$0xff] %v2247
    %s2250 = sadd.s32 %s220, 4
    %s2251 = ssub.s32 3, %s220
    %s2252 = scalar_lea.vmem [#allocation8], 128
    %v2253 = vld [vmem:[%s2252] sm:$0xff]
    %v2254 = vld [vmem:[%s2252 + $0x8] sm:$0xff]
    %v2255 = vld [vmem:[%s2252 + $0x10] sm:$0xff]
    %v2256 = vld [vmem:[%s2252 + $0x18] sm:$0xff]
    %s2257 = sld [smem:[#allocation7 + %s2250]]
    %v2258 = vld [vmem:[#allocation2] sm:$0xff]
    %v2259 = vld [vmem:[#allocation3] sm:$0xff]
    %v2260 = vld [vmem:[%s3] sm:$0xff]
    %v2261 = vld [vmem:[%s3 + $0x8] sm:$0xff]
    %v2262 = vld [vmem:[%s3 + $0x10] sm:$0xff]
    %v2263 = vld [vmem:[%s3 + $0x18] sm:$0xff]
    %v2264 = vld [vmem:[%s3 + $0x20] sm:$0xff]
    %v2265 = vld [vmem:[%s3 + $0x28] sm:$0xff]
    %v2266 = vld [vmem:[%s3 + $0x30] sm:$0xff]
    %v2267 = vld [vmem:[%s3 + $0x38] sm:$0xff]
    %v2268 = vld [vmem:[%s3 + $0x40] sm:$0xff]
    %v2269 = vld [vmem:[%s3 + $0x48] sm:$0xff]
    %v2270 = vld [vmem:[%s3 + $0x50] sm:$0xff]
    %v2271 = vld [vmem:[%s3 + $0x58] sm:$0xff]
    %v2272 = vld [vmem:[%s3 + $0x60] sm:$0xff]
    %v2273 = vld [vmem:[%s3 + $0x68] sm:$0xff]
    %v2274 = vld [vmem:[%s3 + $0x70] sm:$0xff]
    %v2275 = vld [vmem:[%s3 + $0x78] sm:$0xff]
    %v2276 = vld [vmem:[%s3 + $0x80] sm:$0xff]
    %v2277 = vld [vmem:[%s3 + $0x88] sm:$0xff]
    %v2278 = vld [vmem:[%s3 + $0x90] sm:$0xff]
    %v2279 = vld [vmem:[%s3 + $0x98] sm:$0xff]
    %v2280 = vld [vmem:[%s3 + $0xa0] sm:$0xff]
    %v2281 = vld [vmem:[%s3 + $0xa8] sm:$0xff]
    %v2282 = vld [vmem:[%s3 + $0xb0] sm:$0xff]
    %v2283 = vld [vmem:[%s3 + $0xb8] sm:$0xff]
    %v2284 = vld [vmem:[%s3 + $0xc0] sm:$0xff]
    %v2285 = vld [vmem:[%s3 + $0xc8] sm:$0xff]
    %v2286 = vld [vmem:[%s3 + $0xd0] sm:$0xff]
    %v2287 = vld [vmem:[%s3 + $0xd8] sm:$0xff]
    %v2288 = vld [vmem:[%s3 + $0xe0] sm:$0xff]
    %v2289 = vld [vmem:[%s3 + $0xe8] sm:$0xff]
    %v2290 = vld [vmem:[%s3 + $0xf0] sm:$0xff]
    %v2291 = vld [vmem:[%s3 + $0xf8] sm:$0xff]
    %v2292 = vld [vmem:[%s3 + $0x100] sm:$0xff]
    %v2293 = vld [vmem:[%s3 + $0x108] sm:$0xff]
    %v2294 = vld [vmem:[%s3 + $0x110] sm:$0xff]
    %v2295 = vld [vmem:[%s3 + $0x118] sm:$0xff]
    %v2296 = vld [vmem:[%s3 + $0x120] sm:$0xff]
    %v2297 = vld [vmem:[%s3 + $0x128] sm:$0xff]
    %v2298 = vld [vmem:[%s3 + $0x130] sm:$0xff]
    %v2299 = vld [vmem:[%s3 + $0x138] sm:$0xff]
    %v2300 = vld [vmem:[%s3 + $0x140] sm:$0xff]
    %v2301 = vld [vmem:[%s3 + $0x148] sm:$0xff]
    %v2302 = vld [vmem:[%s3 + $0x150] sm:$0xff]
    %v2303 = vld [vmem:[%s3 + $0x158] sm:$0xff]
    %v2304 = vld [vmem:[%s3 + $0x160] sm:$0xff]
    %v2305 = vld [vmem:[%s3 + $0x168] sm:$0xff]
    %v2306 = vld [vmem:[%s3 + $0x170] sm:$0xff]
    %v2307 = vld [vmem:[%s3 + $0x178] sm:$0xff]
    %v2308 = vld [vmem:[%s3 + $0x180] sm:$0xff]
    %v2309 = vld [vmem:[%s3 + $0x188] sm:$0xff]
    %v2310 = vld [vmem:[%s3 + $0x190] sm:$0xff]
    %v2311 = vld [vmem:[%s3 + $0x198] sm:$0xff]
    %v2312 = vld [vmem:[%s3 + $0x1a0] sm:$0xff]
    %v2313 = vld [vmem:[%s3 + $0x1a8] sm:$0xff]
    %v2314 = vld [vmem:[%s3 + $0x1b0] sm:$0xff]
    %v2315 = vld [vmem:[%s3 + $0x1b8] sm:$0xff]
    %v2316 = vld [vmem:[%s3 + $0x1c0] sm:$0xff]
    %v2317 = vld [vmem:[%s3 + $0x1c8] sm:$0xff]
    %v2318 = vld [vmem:[%s3 + $0x1d0] sm:$0xff]
    %v2319 = vld [vmem:[%s3 + $0x1d8] sm:$0xff]
    %v2320 = vld [vmem:[%s3 + $0x1e0] sm:$0xff]
    %v2321 = vld [vmem:[%s3 + $0x1e8] sm:$0xff]
    %v2322 = vld [vmem:[%s3 + $0x1f0] sm:$0xff]
    %v2323 = vld [vmem:[%s3 + $0x1f8] sm:$0xff]
    %2324 = vmatprep.subr.mxu0 %v2321
    %2325 = vmatpush1.msra.mxu0 %v2320
    %2326 = vmatprep.subr.mxu0 %v2317
    %2327 = vmatpush1.msra.mxu0 %v2316
    %2328 = vmatprep.subr.mxu0 %v2313
    %2329 = vmatpush1.msra.mxu0 %v2312
    %2330 = vmatprep.subr.mxu0 %v2309
    %2331 = vmatpush1.msra.mxu0 %v2308
    %2332 = vmatprep.subr.mxu0 %v2305
    %2333 = vmatpush1.msra.mxu0 %v2304
    %2334 = vmatprep.subr.mxu0 %v2301
    %2335 = vmatpush1.msra.mxu0 %v2300
    %2336 = vmatprep.subr.mxu0 %v2297
    %2337 = vmatpush1.msra.mxu0 %v2296
    %2338 = vmatprep.subr.mxu0 %v2293
    %2339 = vmatpush1.msra.mxu0 %v2292
    %2340 = vmatprep.subr.mxu0 %v2289
    %2341 = vmatpush1.msra.mxu0 %v2288
    %2342 = vmatprep.subr.mxu0 %v2285
    %2343 = vmatpush1.msra.mxu0 %v2284
    %2344 = vmatprep.subr.mxu0 %v2281
    %2345 = vmatpush1.msra.mxu0 %v2280
    %2346 = vmatprep.subr.mxu0 %v2277
    %2347 = vmatpush1.msra.mxu0 %v2276
    %2348 = vmatprep.subr.mxu0 %v2273
    %2349 = vmatpush1.msra.mxu0 %v2272
    %2350 = vmatprep.subr.mxu0 %v2269
    %2351 = vmatpush1.msra.mxu0 %v2268
    %2352 = vmatprep.subr.mxu0 %v2265
    %2353 = vmatpush1.msra.mxu0 %v2264
    %2354 = vmatprep.subr.mxu0 %v2261
    %2355 = vmatpush1.msra.mxu0 %v2260
    %2356 = vmatprep.subr.mxu0 0.0
    %2357 = vmatpush2.msra.mxu0 0.0
    %2358 = vmatprep.subr.mxu0 0.0
    %2359 = vmatpush2.msra.mxu0 0.0
    %2360 = vmatprep.subr.mxu0 0.0
    %2361 = vmatpush2.msra.mxu0 0.0
    %2362 = vmatprep.subr.mxu0 0.0
    %2363 = vmatpush2.msra.mxu0 0.0
    %2364 = vmatprep.subr.mxu0 0.0
    %2365 = vmatpush2.msra.mxu0 0.0
    %2366 = vmatprep.subr.mxu0 0.0
    %2367 = vmatpush2.msra.mxu0 0.0
    %2368 = vmatprep.subr.mxu0 0.0
    %2369 = vmatpush2.msra.mxu0 0.0
    %2370 = vmatprep.subr.mxu0 0.0
    %2371 = vmatpush2.msra.mxu0 0.0
    %2372 = vmatprep.subr.mxu0 0.0
    %2373 = vmatpush2.msra.mxu0 0.0
    %2374 = vmatprep.subr.mxu0 0.0
    %2375 = vmatpush2.msra.mxu0 0.0
    %2376 = vmatprep.subr.mxu0 0.0
    %2377 = vmatpush2.msra.mxu0 0.0
    %2378 = vmatprep.subr.mxu0 0.0
    %2379 = vmatpush2.msra.mxu0 0.0
    %2380 = vmatprep.subr.mxu0 0.0
    %2381 = vmatpush2.msra.mxu0 0.0
    %2382 = vmatprep.subr.mxu0 0.0
    %2383 = vmatpush2.msra.mxu0 0.0
    %2384 = vmatprep.subr.mxu0 0.0
    %2385 = vmatpush2.msra.mxu0 0.0
    %2386 = vmatprep.subr.mxu0 0.0
    %2387 = vmatpush2.msra.mxu0 0.0
    %2388 = vmatprep.mubr.f32.mxu0 0.0
    %2389 = vmatmul.mubr.f32.gmra.mxu0 %v2258
    %v2390 = vpop.f32.mrf.mxu0
    %v2391 = vadd.f32 0.0, %v2390
    %v2392 = vpop.f32.mrf.mxu0
    %v2393 = vadd.f32 0.0, %v2392
    %2394 = vdwg.mxu0
    %2395 = vmatprep.subr.mxu0 %v2323
    %2396 = vmatpush1.msra.mxu0 %v2322
    %2397 = vmatprep.subr.mxu0 %v2319
    %2398 = vmatpush1.msra.mxu0 %v2318
    %2399 = vmatprep.subr.mxu0 %v2315
    %2400 = vmatpush1.msra.mxu0 %v2314
    %2401 = vmatprep.subr.mxu0 %v2311
    %2402 = vmatpush1.msra.mxu0 %v2310
    %2403 = vmatprep.subr.mxu0 %v2307
    %2404 = vmatpush1.msra.mxu0 %v2306
    %2405 = vmatprep.subr.mxu0 %v2303
    %2406 = vmatpush1.msra.mxu0 %v2302
    %2407 = vmatprep.subr.mxu0 %v2299
    %2408 = vmatpush1.msra.mxu0 %v2298
    %2409 = vmatprep.subr.mxu0 %v2295
    %2410 = vmatpush1.msra.mxu0 %v2294
    %2411 = vmatprep.subr.mxu0 %v2291
    %2412 = vmatpush1.msra.mxu0 %v2290
    %2413 = vmatprep.subr.mxu0 %v2287
    %2414 = vmatpush1.msra.mxu0 %v2286
    %2415 = vmatprep.subr.mxu0 %v2283
    %2416 = vmatpush1.msra.mxu0 %v2282
    %2417 = vmatprep.subr.mxu0 %v2279
    %2418 = vmatpush1.msra.mxu0 %v2278
    %2419 = vmatprep.subr.mxu0 %v2275
    %2420 = vmatpush1.msra.mxu0 %v2274
    %2421 = vmatprep.subr.mxu0 %v2271
    %2422 = vmatpush1.msra.mxu0 %v2270
    %2423 = vmatprep.subr.mxu0 %v2267
    %2424 = vmatpush1.msra.mxu0 %v2266
    %2425 = vmatprep.subr.mxu0 %v2263
    %2426 = vmatpush1.msra.mxu0 %v2262
    %2427 = vmatprep.subr.mxu0 0.0
    %2428 = vmatpush2.msra.mxu0 0.0
    %2429 = vmatprep.subr.mxu0 0.0
    %2430 = vmatpush2.msra.mxu0 0.0
    %2431 = vmatprep.subr.mxu0 0.0
    %2432 = vmatpush2.msra.mxu0 0.0
    %2433 = vmatprep.subr.mxu0 0.0
    %2434 = vmatpush2.msra.mxu0 0.0
    %2435 = vmatprep.subr.mxu0 0.0
    %2436 = vmatpush2.msra.mxu0 0.0
    %2437 = vmatprep.subr.mxu0 0.0
    %2438 = vmatpush2.msra.mxu0 0.0
    %2439 = vmatprep.subr.mxu0 0.0
    %2440 = vmatpush2.msra.mxu0 0.0
    %2441 = vmatprep.subr.mxu0 0.0
    %2442 = vmatpush2.msra.mxu0 0.0
    %2443 = vmatprep.subr.mxu0 0.0
    %2444 = vmatpush2.msra.mxu0 0.0
    %2445 = vmatprep.subr.mxu0 0.0
    %2446 = vmatpush2.msra.mxu0 0.0
    %2447 = vmatprep.subr.mxu0 0.0
    %2448 = vmatpush2.msra.mxu0 0.0
    %2449 = vmatprep.subr.mxu0 0.0
    %2450 = vmatpush2.msra.mxu0 0.0
    %2451 = vmatprep.subr.mxu0 0.0
    %2452 = vmatpush2.msra.mxu0 0.0
    %2453 = vmatprep.subr.mxu0 0.0
    %2454 = vmatpush2.msra.mxu0 0.0
    %2455 = vmatprep.subr.mxu0 0.0
    %2456 = vmatpush2.msra.mxu0 0.0
    %2457 = vmatprep.subr.mxu0 0.0
    %2458 = vmatpush2.msra.mxu0 0.0
    %2459 = vmatprep.mubr.f32.mxu0 0.0
    %2460 = vmatmul.mubr.f32.gmra.mxu0 %v2258
    %v2461 = vpop.f32.mrf.mxu0
    %v2462 = vadd.f32 0.0, %v2461
    %v2463 = vpop.f32.mrf.mxu0
    %v2464 = vadd.f32 0.0, %v2463
    %2465 = vdwg.mxu0
    %v2466 = vadd.f32 %v2253, %v2391
    %v2467 = vadd.f32 %v2254, %v2393
    %v2468 = vadd.f32 %v2255, %v2462
    %v2469 = vadd.f32 %v2256, %v2464
    %v2470 = vxor.u32 %v2466, 2147483648
    %v2471 = vmul.f32 %v2470, 1.442695
    %v2472 = vpow.pop %v2471
    %v2473 = vadd.f32 %v2472, 1.0
    %v2474 = vrcp.pop %v2473
    %v2475 = vmul.f32 1.0, %v2474
    %v2476 = vxor.u32 %v2467, 2147483648
    %v2477 = vmul.f32 %v2476, 1.442695
    %v2478 = vpow.pop %v2477
    %v2479 = vadd.f32 %v2478, 1.0
    %v2480 = vrcp.pop %v2479
    %v2481 = vmul.f32 1.0, %v2480
    %v2482 = vtanh.pop %v2468
    %v2483 = vxor.u32 %v2469, 2147483648
    %v2484 = vmul.f32 %v2483, 1.442695
    %v2485 = vpow.pop %v2484
    %v2486 = vadd.f32 %v2485, 1.0
    %v2487 = vrcp.pop %v2486
    %v2488 = vmul.f32 1.0, %v2487
    %v2489 = vmul.f32 %v2481, %v2259
    %v2490 = vmul.f32 %v2475, %v2482
    %v2491 = vadd.f32 %v2489, %v2490
    %v2492 = vtanh.pop %v2491
    %v2493 = vmul.f32 %v2488, %v2492
    %v2494 = vstv %s2257
    %vm2495 = vcmp.lt.s32.totalorder %v219, %v2494
    %v2496 = vsel %vm2495, 1, 0
    %vm2497 = vcmp.eq.s32.totalorder %v2496, 1
    %v2498 = vsel %vm2497, %v2493, %v2258
    %2499 = vst [vmem:[#allocation2] sm:$0xff] %v2498
    %v2500 = vsel %vm2497, %v2491, %v2259
    %2501 = vst [vmem:[#allocation3] sm:$0xff] %v2500
    %v2502 = vsel %vm2497, %v2493, 0.0
    %s2503 = scalar_lea.vmem %s5, 32
    %2504 = vst [vmem:[%s2503] sm:$0xff] %v2502
    %s2505 = scalar_lea.vmem [#allocation9], 96
    %v2506 = vld [vmem:[%s2505] sm:$0xff]
    %v2507 = vld [vmem:[%s2505 + $0x8] sm:$0xff]
    %v2508 = vld [vmem:[%s2505 + $0x10] sm:$0xff]
    %v2509 = vld [vmem:[%s2505 + $0x18] sm:$0xff]
    %s2510 = sld [smem:[#allocation7 + %s2251]]
    %v2511 = vld [vmem:[#allocation4] sm:$0xff]
    %v2512 = vld [vmem:[#allocation5] sm:$0xff]
    %v2513 = vld [vmem:[%s4] sm:$0xff]
    %v2514 = vld [vmem:[%s4 + $0x8] sm:$0xff]
    %v2515 = vld [vmem:[%s4 + $0x10] sm:$0xff]
    %v2516 = vld [vmem:[%s4 + $0x18] sm:$0xff]
    %v2517 = vld [vmem:[%s4 + $0x20] sm:$0xff]
    %v2518 = vld [vmem:[%s4 + $0x28] sm:$0xff]
    %v2519 = vld [vmem:[%s4 + $0x30] sm:$0xff]
    %v2520 = vld [vmem:[%s4 + $0x38] sm:$0xff]
    %v2521 = vld [vmem:[%s4 + $0x40] sm:$0xff]
    %v2522 = vld [vmem:[%s4 + $0x48] sm:$0xff]
    %v2523 = vld [vmem:[%s4 + $0x50] sm:$0xff]
    %v2524 = vld [vmem:[%s4 + $0x58] sm:$0xff]
    %v2525 = vld [vmem:[%s4 + $0x60] sm:$0xff]
    %v2526 = vld [vmem:[%s4 + $0x68] sm:$0xff]
    %v2527 = vld [vmem:[%s4 + $0x70] sm:$0xff]
    %v2528 = vld [vmem:[%s4 + $0x78] sm:$0xff]
    %v2529 = vld [vmem:[%s4 + $0x80] sm:$0xff]
    %v2530 = vld [vmem:[%s4 + $0x88] sm:$0xff]
    %v2531 = vld [vmem:[%s4 + $0x90] sm:$0xff]
    %v2532 = vld [vmem:[%s4 + $0x98] sm:$0xff]
    %v2533 = vld [vmem:[%s4 + $0xa0] sm:$0xff]
    %v2534 = vld [vmem:[%s4 + $0xa8] sm:$0xff]
    %v2535 = vld [vmem:[%s4 + $0xb0] sm:$0xff]
    %v2536 = vld [vmem:[%s4 + $0xb8] sm:$0xff]
    %v2537 = vld [vmem:[%s4 + $0xc0] sm:$0xff]
    %v2538 = vld [vmem:[%s4 + $0xc8] sm:$0xff]
    %v2539 = vld [vmem:[%s4 + $0xd0] sm:$0xff]
    %v2540 = vld [vmem:[%s4 + $0xd8] sm:$0xff]
    %v2541 = vld [vmem:[%s4 + $0xe0] sm:$0xff]
    %v2542 = vld [vmem:[%s4 + $0xe8] sm:$0xff]
    %v2543 = vld [vmem:[%s4 + $0xf0] sm:$0xff]
    %v2544 = vld [vmem:[%s4 + $0xf8] sm:$0xff]
    %v2545 = vld [vmem:[%s4 + $0x100] sm:$0xff]
    %v2546 = vld [vmem:[%s4 + $0x108] sm:$0xff]
    %v2547 = vld [vmem:[%s4 + $0x110] sm:$0xff]
    %v2548 = vld [vmem:[%s4 + $0x118] sm:$0xff]
    %v2549 = vld [vmem:[%s4 + $0x120] sm:$0xff]
    %v2550 = vld [vmem:[%s4 + $0x128] sm:$0xff]
    %v2551 = vld [vmem:[%s4 + $0x130] sm:$0xff]
    %v2552 = vld [vmem:[%s4 + $0x138] sm:$0xff]
    %v2553 = vld [vmem:[%s4 + $0x140] sm:$0xff]
    %v2554 = vld [vmem:[%s4 + $0x148] sm:$0xff]
    %v2555 = vld [vmem:[%s4 + $0x150] sm:$0xff]
    %v2556 = vld [vmem:[%s4 + $0x158] sm:$0xff]
    %v2557 = vld [vmem:[%s4 + $0x160] sm:$0xff]
    %v2558 = vld [vmem:[%s4 + $0x168] sm:$0xff]
    %v2559 = vld [vmem:[%s4 + $0x170] sm:$0xff]
    %v2560 = vld [vmem:[%s4 + $0x178] sm:$0xff]
    %v2561 = vld [vmem:[%s4 + $0x180] sm:$0xff]
    %v2562 = vld [vmem:[%s4 + $0x188] sm:$0xff]
    %v2563 = vld [vmem:[%s4 + $0x190] sm:$0xff]
    %v2564 = vld [vmem:[%s4 + $0x198] sm:$0xff]
    %v2565 = vld [vmem:[%s4 + $0x1a0] sm:$0xff]
    %v2566 = vld [vmem:[%s4 + $0x1a8] sm:$0xff]
    %v2567 = vld [vmem:[%s4 + $0x1b0] sm:$0xff]
    %v2568 = vld [vmem:[%s4 + $0x1b8] sm:$0xff]
    %v2569 = vld [vmem:[%s4 + $0x1c0] sm:$0xff]
    %v2570 = vld [vmem:[%s4 + $0x1c8] sm:$0xff]
    %v2571 = vld [vmem:[%s4 + $0x1d0] sm:$0xff]
    %v2572 = vld [vmem:[%s4 + $0x1d8] sm:$0xff]
    %v2573 = vld [vmem:[%s4 + $0x1e0] sm:$0xff]
    %v2574 = vld [vmem:[%s4 + $0x1e8] sm:$0xff]
    %v2575 = vld [vmem:[%s4 + $0x1f0] sm:$0xff]
    %v2576 = vld [vmem:[%s4 + $0x1f8] sm:$0xff]
    %2577 = vmatprep.subr.mxu0 %v2574
    %2578 = vmatpush1.msra.mxu0 %v2573
    %2579 = vmatprep.subr.mxu0 %v2570
    %2580 = vmatpush1.msra.mxu0 %v2569
    %2581 = vmatprep.subr.mxu0 %v2566
    %2582 = vmatpush1.msra.mxu0 %v2565
    %2583 = vmatprep.subr.mxu0 %v2562
    %2584 = vmatpush1.msra.mxu0 %v2561
    %2585 = vmatprep.subr.mxu0 %v2558
    %2586 = vmatpush1.msra.mxu0 %v2557
    %2587 = vmatprep.subr.mxu0 %v2554
    %2588 = vmatpush1.msra.mxu0 %v2553
    %2589 = vmatprep.subr.mxu0 %v2550
    %2590 = vmatpush1.msra.mxu0 %v2549
    %2591 = vmatprep.subr.mxu0 %v2546
    %2592 = vmatpush1.msra.mxu0 %v2545
    %2593 = vmatprep.subr.mxu0 %v2542
    %2594 = vmatpush1.msra.mxu0 %v2541
    %2595 = vmatprep.subr.mxu0 %v2538
    %2596 = vmatpush1.msra.mxu0 %v2537
    %2597 = vmatprep.subr.mxu0 %v2534
    %2598 = vmatpush1.msra.mxu0 %v2533
    %2599 = vmatprep.subr.mxu0 %v2530
    %2600 = vmatpush1.msra.mxu0 %v2529
    %2601 = vmatprep.subr.mxu0 %v2526
    %2602 = vmatpush1.msra.mxu0 %v2525
    %2603 = vmatprep.subr.mxu0 %v2522
    %2604 = vmatpush1.msra.mxu0 %v2521
    %2605 = vmatprep.subr.mxu0 %v2518
    %2606 = vmatpush1.msra.mxu0 %v2517
    %2607 = vmatprep.subr.mxu0 %v2514
    %2608 = vmatpush1.msra.mxu0 %v2513
    %2609 = vmatprep.subr.mxu0 0.0
    %2610 = vmatpush2.msra.mxu0 0.0
    %2611 = vmatprep.subr.mxu0 0.0
    %2612 = vmatpush2.msra.mxu0 0.0
    %2613 = vmatprep.subr.mxu0 0.0
    %2614 = vmatpush2.msra.mxu0 0.0
    %2615 = vmatprep.subr.mxu0 0.0
    %2616 = vmatpush2.msra.mxu0 0.0
    %2617 = vmatprep.subr.mxu0 0.0
    %2618 = vmatpush2.msra.mxu0 0.0
    %2619 = vmatprep.subr.mxu0 0.0
    %2620 = vmatpush2.msra.mxu0 0.0
    %2621 = vmatprep.subr.mxu0 0.0
    %2622 = vmatpush2.msra.mxu0 0.0
    %2623 = vmatprep.subr.mxu0 0.0
    %2624 = vmatpush2.msra.mxu0 0.0
    %2625 = vmatprep.subr.mxu0 0.0
    %2626 = vmatpush2.msra.mxu0 0.0
    %2627 = vmatprep.subr.mxu0 0.0
    %2628 = vmatpush2.msra.mxu0 0.0
    %2629 = vmatprep.subr.mxu0 0.0
    %2630 = vmatpush2.msra.mxu0 0.0
    %2631 = vmatprep.subr.mxu0 0.0
    %2632 = vmatpush2.msra.mxu0 0.0
    %2633 = vmatprep.subr.mxu0 0.0
    %2634 = vmatpush2.msra.mxu0 0.0
    %2635 = vmatprep.subr.mxu0 0.0
    %2636 = vmatpush2.msra.mxu0 0.0
    %2637 = vmatprep.subr.mxu0 0.0
    %2638 = vmatpush2.msra.mxu0 0.0
    %2639 = vmatprep.subr.mxu0 0.0
    %2640 = vmatpush2.msra.mxu0 0.0
    %2641 = vmatprep.mubr.f32.mxu0 0.0
    %2642 = vmatmul.mubr.f32.gmra.mxu0 %v2511
    %v2643 = vpop.f32.mrf.mxu0
    %v2644 = vadd.f32 0.0, %v2643
    %v2645 = vpop.f32.mrf.mxu0
    %v2646 = vadd.f32 0.0, %v2645
    %2647 = vdwg.mxu0
    %2648 = vmatprep.subr.mxu0 %v2576
    %2649 = vmatpush1.msra.mxu0 %v2575
    %2650 = vmatprep.subr.mxu0 %v2572
    %2651 = vmatpush1.msra.mxu0 %v2571
    %2652 = vmatprep.subr.mxu0 %v2568
    %2653 = vmatpush1.msra.mxu0 %v2567
    %2654 = vmatprep.subr.mxu0 %v2564
    %2655 = vmatpush1.msra.mxu0 %v2563
    %2656 = vmatprep.subr.mxu0 %v2560
    %2657 = vmatpush1.msra.mxu0 %v2559
    %2658 = vmatprep.subr.mxu0 %v2556
    %2659 = vmatpush1.msra.mxu0 %v2555
    %2660 = vmatprep.subr.mxu0 %v2552
    %2661 = vmatpush1.msra.mxu0 %v2551
    %2662 = vmatprep.subr.mxu0 %v2548
    %2663 = vmatpush1.msra.mxu0 %v2547
    %2664 = vmatprep.subr.mxu0 %v2544
    %2665 = vmatpush1.msra.mxu0 %v2543
    %2666 = vmatprep.subr.mxu0 %v2540
    %2667 = vmatpush1.msra.mxu0 %v2539
    %2668 = vmatprep.subr.mxu0 %v2536
    %2669 = vmatpush1.msra.mxu0 %v2535
    %2670 = vmatprep.subr.mxu0 %v2532
    %2671 = vmatpush1.msra.mxu0 %v2531
    %2672 = vmatprep.subr.mxu0 %v2528
    %2673 = vmatpush1.msra.mxu0 %v2527
    %2674 = vmatprep.subr.mxu0 %v2524
    %2675 = vmatpush1.msra.mxu0 %v2523
    %2676 = vmatprep.subr.mxu0 %v2520
    %2677 = vmatpush1.msra.mxu0 %v2519
    %2678 = vmatprep.subr.mxu0 %v2516
    %2679 = vmatpush1.msra.mxu0 %v2515
    %2680 = vmatprep.subr.mxu0 0.0
    %2681 = vmatpush2.msra.mxu0 0.0
    %2682 = vmatprep.subr.mxu0 0.0
    %2683 = vmatpush2.msra.mxu0 0.0
    %2684 = vmatprep.subr.mxu0 0.0
    %2685 = vmatpush2.msra.mxu0 0.0
    %2686 = vmatprep.subr.mxu0 0.0
    %2687 = vmatpush2.msra.mxu0 0.0
    %2688 = vmatprep.subr.mxu0 0.0
    %2689 = vmatpush2.msra.mxu0 0.0
    %2690 = vmatprep.subr.mxu0 0.0
    %2691 = vmatpush2.msra.mxu0 0.0
    %2692 = vmatprep.subr.mxu0 0.0
    %2693 = vmatpush2.msra.mxu0 0.0
    %2694 = vmatprep.subr.mxu0 0.0
    %2695 = vmatpush2.msra.mxu0 0.0
    %2696 = vmatprep.subr.mxu0 0.0
    %2697 = vmatpush2.msra.mxu0 0.0
    %2698 = vmatprep.subr.mxu0 0.0
    %2699 = vmatpush2.msra.mxu0 0.0
    %2700 = vmatprep.subr.mxu0 0.0
    %2701 = vmatpush2.msra.mxu0 0.0
    %2702 = vmatprep.subr.mxu0 0.0
    %2703 = vmatpush2.msra.mxu0 0.0
    %2704 = vmatprep.subr.mxu0 0.0
    %2705 = vmatpush2.msra.mxu0 0.0
    %2706 = vmatprep.subr.mxu0 0.0
    %2707 = vmatpush2.msra.mxu0 0.0
    %2708 = vmatprep.subr.mxu0 0.0
    %2709 = vmatpush2.msra.mxu0 0.0
    %2710 = vmatprep.subr.mxu0 0.0
    %2711 = vmatpush2.msra.mxu0 0.0
    %2712 = vmatprep.mubr.f32.mxu0 0.0
    %2713 = vmatmul.mubr.f32.gmra.mxu0 %v2511
    %v2714 = vpop.f32.mrf.mxu0
    %v2715 = vadd.f32 0.0, %v2714
    %v2716 = vpop.f32.mrf.mxu0
    %v2717 = vadd.f32 0.0, %v2716
    %2718 = vdwg.mxu0
    %v2719 = vadd.f32 %v2506, %v2644
    %v2720 = vadd.f32 %v2507, %v2646
    %v2721 = vadd.f32 %v2508, %v2715
    %v2722 = vadd.f32 %v2509, %v2717
    %v2723 = vxor.u32 %v2719, 2147483648
    %v2724 = vmul.f32 %v2723, 1.442695
    %v2725 = vpow.pop %v2724
    %v2726 = vadd.f32 %v2725, 1.0
    %v2727 = vrcp.pop %v2726
    %v2728 = vmul.f32 1.0, %v2727
    %v2729 = vxor.u32 %v2720, 2147483648
    %v2730 = vmul.f32 %v2729, 1.442695
    %v2731 = vpow.pop %v2730
    %v2732 = vadd.f32 %v2731, 1.0
    %v2733 = vrcp.pop %v2732
    %v2734 = vmul.f32 1.0, %v2733
    %v2735 = vtanh.pop %v2721
    %v2736 = vxor.u32 %v2722, 2147483648
    %v2737 = vmul.f32 %v2736, 1.442695
    %v2738 = vpow.pop %v2737
    %v2739 = vadd.f32 %v2738, 1.0
    %v2740 = vrcp.pop %v2739
    %v2741 = vmul.f32 1.0, %v2740
    %v2742 = vmul.f32 %v2734, %v2512
    %v2743 = vmul.f32 %v2728, %v2735
    %v2744 = vadd.f32 %v2742, %v2743
    %v2745 = vtanh.pop %v2744
    %v2746 = vmul.f32 %v2741, %v2745
    %v2747 = vstv %s2510
    %vm2748 = vcmp.lt.s32.totalorder %v219, %v2747
    %v2749 = vsel %vm2748, 1, 0
    %vm2750 = vcmp.eq.s32.totalorder %v2749, 1
    %v2751 = vsel %vm2750, %v2746, %v2511
    %2752 = vst [vmem:[#allocation4] sm:$0xff] %v2751
    %v2753 = vsel %vm2750, %v2744, %v2512
    %2754 = vst [vmem:[#allocation5] sm:$0xff] %v2753
    %v2755 = vsel %vm2750, %v2746, 0.0
    %s2756 = scalar_lea.vmem %s207, 24
    %2757 = vst [vmem:[%s2756] sm:$0xff] %v2755
    %s2758 = sadd.s32 %s220, 5
    %s2759 = ssub.s32 2, %s220
    %s2760 = scalar_lea.vmem [#allocation8], 160
    %v2761 = vld [vmem:[%s2760] sm:$0xff]
    %v2762 = vld [vmem:[%s2760 + $0x8] sm:$0xff]
    %v2763 = vld [vmem:[%s2760 + $0x10] sm:$0xff]
    %v2764 = vld [vmem:[%s2760 + $0x18] sm:$0xff]
    %s2765 = sld [smem:[#allocation7 + %s2758]]
    %v2766 = vld [vmem:[#allocation2] sm:$0xff]
    %v2767 = vld [vmem:[#allocation3] sm:$0xff]
    %v2768 = vld [vmem:[%s3] sm:$0xff]
    %v2769 = vld [vmem:[%s3 + $0x8] sm:$0xff]
    %v2770 = vld [vmem:[%s3 + $0x10] sm:$0xff]
    %v2771 = vld [vmem:[%s3 + $0x18] sm:$0xff]
    %v2772 = vld [vmem:[%s3 + $0x20] sm:$0xff]
    %v2773 = vld [vmem:[%s3 + $0x28] sm:$0xff]
    %v2774 = vld [vmem:[%s3 + $0x30] sm:$0xff]
    %v2775 = vld [vmem:[%s3 + $0x38] sm:$0xff]
    %v2776 = vld [vmem:[%s3 + $0x40] sm:$0xff]
    %v2777 = vld [vmem:[%s3 + $0x48] sm:$0xff]
    %v2778 = vld [vmem:[%s3 + $0x50] sm:$0xff]
    %v2779 = vld [vmem:[%s3 + $0x58] sm:$0xff]
    %v2780 = vld [vmem:[%s3 + $0x60] sm:$0xff]
    %v2781 = vld [vmem:[%s3 + $0x68] sm:$0xff]
    %v2782 = vld [vmem:[%s3 + $0x70] sm:$0xff]
    %v2783 = vld [vmem:[%s3 + $0x78] sm:$0xff]
    %v2784 = vld [vmem:[%s3 + $0x80] sm:$0xff]
    %v2785 = vld [vmem:[%s3 + $0x88] sm:$0xff]
    %v2786 = vld [vmem:[%s3 + $0x90] sm:$0xff]
    %v2787 = vld [vmem:[%s3 + $0x98] sm:$0xff]
    %v2788 = vld [vmem:[%s3 + $0xa0] sm:$0xff]
    %v2789 = vld [vmem:[%s3 + $0xa8] sm:$0xff]
    %v2790 = vld [vmem:[%s3 + $0xb0] sm:$0xff]
    %v2791 = vld [vmem:[%s3 + $0xb8] sm:$0xff]
    %v2792 = vld [vmem:[%s3 + $0xc0] sm:$0xff]
    %v2793 = vld [vmem:[%s3 + $0xc8] sm:$0xff]
    %v2794 = vld [vmem:[%s3 + $0xd0] sm:$0xff]
    %v2795 = vld [vmem:[%s3 + $0xd8] sm:$0xff]
    %v2796 = vld [vmem:[%s3 + $0xe0] sm:$0xff]
    %v2797 = vld [vmem:[%s3 + $0xe8] sm:$0xff]
    %v2798 = vld [vmem:[%s3 + $0xf0] sm:$0xff]
    %v2799 = vld [vmem:[%s3 + $0xf8] sm:$0xff]
    %v2800 = vld [vmem:[%s3 + $0x100] sm:$0xff]
    %v2801 = vld [vmem:[%s3 + $0x108] sm:$0xff]
    %v2802 = vld [vmem:[%s3 + $0x110] sm:$0xff]
    %v2803 = vld [vmem:[%s3 + $0x118] sm:$0xff]
    %v2804 = vld [vmem:[%s3 + $0x120] sm:$0xff]
    %v2805 = vld [vmem:[%s3 + $0x128] sm:$0xff]
    %v2806 = vld [vmem:[%s3 + $0x130] sm:$0xff]
    %v2807 = vld [vmem:[%s3 + $0x138] sm:$0xff]
    %v2808 = vld [vmem:[%s3 + $0x140] sm:$0xff]
    %v2809 = vld [vmem:[%s3 + $0x148] sm:$0xff]
    %v2810 = vld [vmem:[%s3 + $0x150] sm:$0xff]
    %v2811 = vld [vmem:[%s3 + $0x158] sm:$0xff]
    %v2812 = vld [vmem:[%s3 + $0x160] sm:$0xff]
    %v2813 = vld [vmem:[%s3 + $0x168] sm:$0xff]
    %v2814 = vld [vmem:[%s3 + $0x170] sm:$0xff]
    %v2815 = vld [vmem:[%s3 + $0x178] sm:$0xff]
    %v2816 = vld [vmem:[%s3 + $0x180] sm:$0xff]
    %v2817 = vld [vmem:[%s3 + $0x188] sm:$0xff]
    %v2818 = vld [vmem:[%s3 + $0x190] sm:$0xff]
    %v2819 = vld [vmem:[%s3 + $0x198] sm:$0xff]
    %v2820 = vld [vmem:[%s3 + $0x1a0] sm:$0xff]
    %v2821 = vld [vmem:[%s3 + $0x1a8] sm:$0xff]
    %v2822 = vld [vmem:[%s3 + $0x1b0] sm:$0xff]
    %v2823 = vld [vmem:[%s3 + $0x1b8] sm:$0xff]
    %v2824 = vld [vmem:[%s3 + $0x1c0] sm:$0xff]
    %v2825 = vld [vmem:[%s3 + $0x1c8] sm:$0xff]
    %v2826 = vld [vmem:[%s3 + $0x1d0] sm:$0xff]
    %v2827 = vld [vmem:[%s3 + $0x1d8] sm:$0xff]
    %v2828 = vld [vmem:[%s3 + $0x1e0] sm:$0xff]
    %v2829 = vld [vmem:[%s3 + $0x1e8] sm:$0xff]
    %v2830 = vld [vmem:[%s3 + $0x1f0] sm:$0xff]
    %v2831 = vld [vmem:[%s3 + $0x1f8] sm:$0xff]
    %2832 = vmatprep.subr.mxu0 %v2829
    %2833 = vmatpush1.msra.mxu0 %v2828
    %2834 = vmatprep.subr.mxu0 %v2825
    %2835 = vmatpush1.msra.mxu0 %v2824
    %2836 = vmatprep.subr.mxu0 %v2821
    %2837 = vmatpush1.msra.mxu0 %v2820
    %2838 = vmatprep.subr.mxu0 %v2817
    %2839 = vmatpush1.msra.mxu0 %v2816
    %2840 = vmatprep.subr.mxu0 %v2813
    %2841 = vmatpush1.msra.mxu0 %v2812
    %2842 = vmatprep.subr.mxu0 %v2809
    %2843 = vmatpush1.msra.mxu0 %v2808
    %2844 = vmatprep.subr.mxu0 %v2805
    %2845 = vmatpush1.msra.mxu0 %v2804
    %2846 = vmatprep.subr.mxu0 %v2801
    %2847 = vmatpush1.msra.mxu0 %v2800
    %2848 = vmatprep.subr.mxu0 %v2797
    %2849 = vmatpush1.msra.mxu0 %v2796
    %2850 = vmatprep.subr.mxu0 %v2793
    %2851 = vmatpush1.msra.mxu0 %v2792
    %2852 = vmatprep.subr.mxu0 %v2789
    %2853 = vmatpush1.msra.mxu0 %v2788
    %2854 = vmatprep.subr.mxu0 %v2785
    %2855 = vmatpush1.msra.mxu0 %v2784
    %2856 = vmatprep.subr.mxu0 %v2781
    %2857 = vmatpush1.msra.mxu0 %v2780
    %2858 = vmatprep.subr.mxu0 %v2777
    %2859 = vmatpush1.msra.mxu0 %v2776
    %2860 = vmatprep.subr.mxu0 %v2773
    %2861 = vmatpush1.msra.mxu0 %v2772
    %2862 = vmatprep.subr.mxu0 %v2769
    %2863 = vmatpush1.msra.mxu0 %v2768
    %2864 = vmatprep.subr.mxu0 0.0
    %2865 = vmatpush2.msra.mxu0 0.0
    %2866 = vmatprep.subr.mxu0 0.0
    %2867 = vmatpush2.msra.mxu0 0.0
    %2868 = vmatprep.subr.mxu0 0.0
    %2869 = vmatpush2.msra.mxu0 0.0
    %2870 = vmatprep.subr.mxu0 0.0
    %2871 = vmatpush2.msra.mxu0 0.0
    %2872 = vmatprep.subr.mxu0 0.0
    %2873 = vmatpush2.msra.mxu0 0.0
    %2874 = vmatprep.subr.mxu0 0.0
    %2875 = vmatpush2.msra.mxu0 0.0
    %2876 = vmatprep.subr.mxu0 0.0
    %2877 = vmatpush2.msra.mxu0 0.0
    %2878 = vmatprep.subr.mxu0 0.0
    %2879 = vmatpush2.msra.mxu0 0.0
    %2880 = vmatprep.subr.mxu0 0.0
    %2881 = vmatpush2.msra.mxu0 0.0
    %2882 = vmatprep.subr.mxu0 0.0
    %2883 = vmatpush2.msra.mxu0 0.0
    %2884 = vmatprep.subr.mxu0 0.0
    %2885 = vmatpush2.msra.mxu0 0.0
    %2886 = vmatprep.subr.mxu0 0.0
    %2887 = vmatpush2.msra.mxu0 0.0
    %2888 = vmatprep.subr.mxu0 0.0
    %2889 = vmatpush2.msra.mxu0 0.0
    %2890 = vmatprep.subr.mxu0 0.0
    %2891 = vmatpush2.msra.mxu0 0.0
    %2892 = vmatprep.subr.mxu0 0.0
    %2893 = vmatpush2.msra.mxu0 0.0
    %2894 = vmatprep.subr.mxu0 0.0
    %2895 = vmatpush2.msra.mxu0 0.0
    %2896 = vmatprep.mubr.f32.mxu0 0.0
    %2897 = vmatmul.mubr.f32.gmra.mxu0 %v2766
    %v2898 = vpop.f32.mrf.mxu0
    %v2899 = vadd.f32 0.0, %v2898
    %v2900 = vpop.f32.mrf.mxu0
    %v2901 = vadd.f32 0.0, %v2900
    %2902 = vdwg.mxu0
    %2903 = vmatprep.subr.mxu0 %v2831
    %2904 = vmatpush1.msra.mxu0 %v2830
    %2905 = vmatprep.subr.mxu0 %v2827
    %2906 = vmatpush1.msra.mxu0 %v2826
    %2907 = vmatprep.subr.mxu0 %v2823
    %2908 = vmatpush1.msra.mxu0 %v2822
    %2909 = vmatprep.subr.mxu0 %v2819
    %2910 = vmatpush1.msra.mxu0 %v2818
    %2911 = vmatprep.subr.mxu0 %v2815
    %2912 = vmatpush1.msra.mxu0 %v2814
    %2913 = vmatprep.subr.mxu0 %v2811
    %2914 = vmatpush1.msra.mxu0 %v2810
    %2915 = vmatprep.subr.mxu0 %v2807
    %2916 = vmatpush1.msra.mxu0 %v2806
    %2917 = vmatprep.subr.mxu0 %v2803
    %2918 = vmatpush1.msra.mxu0 %v2802
    %2919 = vmatprep.subr.mxu0 %v2799
    %2920 = vmatpush1.msra.mxu0 %v2798
    %2921 = vmatprep.subr.mxu0 %v2795
    %2922 = vmatpush1.msra.mxu0 %v2794
    %2923 = vmatprep.subr.mxu0 %v2791
    %2924 = vmatpush1.msra.mxu0 %v2790
    %2925 = vmatprep.subr.mxu0 %v2787
    %2926 = vmatpush1.msra.mxu0 %v2786
    %2927 = vmatprep.subr.mxu0 %v2783
    %2928 = vmatpush1.msra.mxu0 %v2782
    %2929 = vmatprep.subr.mxu0 %v2779
    %2930 = vmatpush1.msra.mxu0 %v2778
    %2931 = vmatprep.subr.mxu0 %v2775
    %2932 = vmatpush1.msra.mxu0 %v2774
    %2933 = vmatprep.subr.mxu0 %v2771
    %2934 = vmatpush1.msra.mxu0 %v2770
    %2935 = vmatprep.subr.mxu0 0.0
    %2936 = vmatpush2.msra.mxu0 0.0
    %2937 = vmatprep.subr.mxu0 0.0
    %2938 = vmatpush2.msra.mxu0 0.0
    %2939 = vmatprep.subr.mxu0 0.0
    %2940 = vmatpush2.msra.mxu0 0.0
    %2941 = vmatprep.subr.mxu0 0.0
    %2942 = vmatpush2.msra.mxu0 0.0
    %2943 = vmatprep.subr.mxu0 0.0
    %2944 = vmatpush2.msra.mxu0 0.0
    %2945 = vmatprep.subr.mxu0 0.0
    %2946 = vmatpush2.msra.mxu0 0.0
    %2947 = vmatprep.subr.mxu0 0.0
    %2948 = vmatpush2.msra.mxu0 0.0
    %2949 = vmatprep.subr.mxu0 0.0
    %2950 = vmatpush2.msra.mxu0 0.0
    %2951 = vmatprep.subr.mxu0 0.0
    %2952 = vmatpush2.msra.mxu0 0.0
    %2953 = vmatprep.subr.mxu0 0.0
    %2954 = vmatpush2.msra.mxu0 0.0
    %2955 = vmatprep.subr.mxu0 0.0
    %2956 = vmatpush2.msra.mxu0 0.0
    %2957 = vmatprep.subr.mxu0 0.0
    %2958 = vmatpush2.msra.mxu0 0.0
    %2959 = vmatprep.subr.mxu0 0.0
    %2960 = vmatpush2.msra.mxu0 0.0
    %2961 = vmatprep.subr.mxu0 0.0
    %2962 = vmatpush2.msra.mxu0 0.0
    %2963 = vmatprep.subr.mxu0 0.0
    %2964 = vmatpush2.msra.mxu0 0.0
    %2965 = vmatprep.subr.mxu0 0.0
    %2966 = vmatpush2.msra.mxu0 0.0
    %2967 = vmatprep.mubr.f32.mxu0 0.0
    %2968 = vmatmul.mubr.f32.gmra.mxu0 %v2766
    %v2969 = vpop.f32.mrf.mxu0
    %v2970 = vadd.f32 0.0, %v2969
    %v2971 = vpop.f32.mrf.mxu0
    %v2972 = vadd.f32 0.0, %v2971
    %2973 = vdwg.mxu0
    %v2974 = vadd.f32 %v2761, %v2899
    %v2975 = vadd.f32 %v2762, %v2901
    %v2976 = vadd.f32 %v2763, %v2970
    %v2977 = vadd.f32 %v2764, %v2972
    %v2978 = vxor.u32 %v2974, 2147483648
    %v2979 = vmul.f32 %v2978, 1.442695
    %v2980 = vpow.pop %v2979
    %v2981 = vadd.f32 %v2980, 1.0
    %v2982 = vrcp.pop %v2981
    %v2983 = vmul.f32 1.0, %v2982
    %v2984 = vxor.u32 %v2975, 2147483648
    %v2985 = vmul.f32 %v2984, 1.442695
    %v2986 = vpow.pop %v2985
    %v2987 = vadd.f32 %v2986, 1.0
    %v2988 = vrcp.pop %v2987
    %v2989 = vmul.f32 1.0, %v2988
    %v2990 = vtanh.pop %v2976
    %v2991 = vxor.u32 %v2977, 2147483648
    %v2992 = vmul.f32 %v2991, 1.442695
    %v2993 = vpow.pop %v2992
    %v2994 = vadd.f32 %v2993, 1.0
    %v2995 = vrcp.pop %v2994
    %v2996 = vmul.f32 1.0, %v2995
    %v2997 = vmul.f32 %v2989, %v2767
    %v2998 = vmul.f32 %v2983, %v2990
    %v2999 = vadd.f32 %v2997, %v2998
    %v3000 = vtanh.pop %v2999
    %v3001 = vmul.f32 %v2996, %v3000
    %v3002 = vstv %s2765
    %vm3003 = vcmp.lt.s32.totalorder %v219, %v3002
    %v3004 = vsel %vm3003, 1, 0
    %vm3005 = vcmp.eq.s32.totalorder %v3004, 1
    %v3006 = vsel %vm3005, %v3001, %v2766
    %3007 = vst [vmem:[#allocation2] sm:$0xff] %v3006
    %v3008 = vsel %vm3005, %v2999, %v2767
    %3009 = vst [vmem:[#allocation3] sm:$0xff] %v3008
    %v3010 = vsel %vm3005, %v3001, 0.0
    %s3011 = scalar_lea.vmem %s5, 40
    %3012 = vst [vmem:[%s3011] sm:$0xff] %v3010
    %s3013 = scalar_lea.vmem [#allocation9], 64
    %v3014 = vld [vmem:[%s3013] sm:$0xff]
    %v3015 = vld [vmem:[%s3013 + $0x8] sm:$0xff]
    %v3016 = vld [vmem:[%s3013 + $0x10] sm:$0xff]
    %v3017 = vld [vmem:[%s3013 + $0x18] sm:$0xff]
    %s3018 = sld [smem:[#allocation7 + %s2759]]
    %v3019 = vld [vmem:[#allocation4] sm:$0xff]
    %v3020 = vld [vmem:[#allocation5] sm:$0xff]
    %v3021 = vld [vmem:[%s4] sm:$0xff]
    %v3022 = vld [vmem:[%s4 + $0x8] sm:$0xff]
    %v3023 = vld [vmem:[%s4 + $0x10] sm:$0xff]
    %v3024 = vld [vmem:[%s4 + $0x18] sm:$0xff]
    %v3025 = vld [vmem:[%s4 + $0x20] sm:$0xff]
    %v3026 = vld [vmem:[%s4 + $0x28] sm:$0xff]
    %v3027 = vld [vmem:[%s4 + $0x30] sm:$0xff]
    %v3028 = vld [vmem:[%s4 + $0x38] sm:$0xff]
    %v3029 = vld [vmem:[%s4 + $0x40] sm:$0xff]
    %v3030 = vld [vmem:[%s4 + $0x48] sm:$0xff]
    %v3031 = vld [vmem:[%s4 + $0x50] sm:$0xff]
    %v3032 = vld [vmem:[%s4 + $0x58] sm:$0xff]
    %v3033 = vld [vmem:[%s4 + $0x60] sm:$0xff]
    %v3034 = vld [vmem:[%s4 + $0x68] sm:$0xff]
    %v3035 = vld [vmem:[%s4 + $0x70] sm:$0xff]
    %v3036 = vld [vmem:[%s4 + $0x78] sm:$0xff]
    %v3037 = vld [vmem:[%s4 + $0x80] sm:$0xff]
    %v3038 = vld [vmem:[%s4 + $0x88] sm:$0xff]
    %v3039 = vld [vmem:[%s4 + $0x90] sm:$0xff]
    %v3040 = vld [vmem:[%s4 + $0x98] sm:$0xff]
    %v3041 = vld [vmem:[%s4 + $0xa0] sm:$0xff]
    %v3042 = vld [vmem:[%s4 + $0xa8] sm:$0xff]
    %v3043 = vld [vmem:[%s4 + $0xb0] sm:$0xff]
    %v3044 = vld [vmem:[%s4 + $0xb8] sm:$0xff]
    %v3045 = vld [vmem:[%s4 + $0xc0] sm:$0xff]
    %v3046 = vld [vmem:[%s4 + $0xc8] sm:$0xff]
    %v3047 = vld [vmem:[%s4 + $0xd0] sm:$0xff]
    %v3048 = vld [vmem:[%s4 + $0xd8] sm:$0xff]
    %v3049 = vld [vmem:[%s4 + $0xe0] sm:$0xff]
    %v3050 = vld [vmem:[%s4 + $0xe8] sm:$0xff]
    %v3051 = vld [vmem:[%s4 + $0xf0] sm:$0xff]
    %v3052 = vld [vmem:[%s4 + $0xf8] sm:$0xff]
    %v3053 = vld [vmem:[%s4 + $0x100] sm:$0xff]
    %v3054 = vld [vmem:[%s4 + $0x108] sm:$0xff]
    %v3055 = vld [vmem:[%s4 + $0x110] sm:$0xff]
    %v3056 = vld [vmem:[%s4 + $0x118] sm:$0xff]
    %v3057 = vld [vmem:[%s4 + $0x120] sm:$0xff]
    %v3058 = vld [vmem:[%s4 + $0x128] sm:$0xff]
    %v3059 = vld [vmem:[%s4 + $0x130] sm:$0xff]
    %v3060 = vld [vmem:[%s4 + $0x138] sm:$0xff]
    %v3061 = vld [vmem:[%s4 + $0x140] sm:$0xff]
    %v3062 = vld [vmem:[%s4 + $0x148] sm:$0xff]
    %v3063 = vld [vmem:[%s4 + $0x150] sm:$0xff]
    %v3064 = vld [vmem:[%s4 + $0x158] sm:$0xff]
    %v3065 = vld [vmem:[%s4 + $0x160] sm:$0xff]
    %v3066 = vld [vmem:[%s4 + $0x168] sm:$0xff]
    %v3067 = vld [vmem:[%s4 + $0x170] sm:$0xff]
    %v3068 = vld [vmem:[%s4 + $0x178] sm:$0xff]
    %v3069 = vld [vmem:[%s4 + $0x180] sm:$0xff]
    %v3070 = vld [vmem:[%s4 + $0x188] sm:$0xff]
    %v3071 = vld [vmem:[%s4 + $0x190] sm:$0xff]
    %v3072 = vld [vmem:[%s4 + $0x198] sm:$0xff]
    %v3073 = vld [vmem:[%s4 + $0x1a0] sm:$0xff]
    %v3074 = vld [vmem:[%s4 + $0x1a8] sm:$0xff]
    %v3075 = vld [vmem:[%s4 + $0x1b0] sm:$0xff]
    %v3076 = vld [vmem:[%s4 + $0x1b8] sm:$0xff]
    %v3077 = vld [vmem:[%s4 + $0x1c0] sm:$0xff]
    %v3078 = vld [vmem:[%s4 + $0x1c8] sm:$0xff]
    %v3079 = vld [vmem:[%s4 + $0x1d0] sm:$0xff]
    %v3080 = vld [vmem:[%s4 + $0x1d8] sm:$0xff]
    %v3081 = vld [vmem:[%s4 + $0x1e0] sm:$0xff]
    %v3082 = vld [vmem:[%s4 + $0x1e8] sm:$0xff]
    %v3083 = vld [vmem:[%s4 + $0x1f0] sm:$0xff]
    %v3084 = vld [vmem:[%s4 + $0x1f8] sm:$0xff]
    %3085 = vmatprep.subr.mxu0 %v3082
    %3086 = vmatpush1.msra.mxu0 %v3081
    %3087 = vmatprep.subr.mxu0 %v3078
    %3088 = vmatpush1.msra.mxu0 %v3077
    %3089 = vmatprep.subr.mxu0 %v3074
    %3090 = vmatpush1.msra.mxu0 %v3073
    %3091 = vmatprep.subr.mxu0 %v3070
    %3092 = vmatpush1.msra.mxu0 %v3069
    %3093 = vmatprep.subr.mxu0 %v3066
    %3094 = vmatpush1.msra.mxu0 %v3065
    %3095 = vmatprep.subr.mxu0 %v3062
    %3096 = vmatpush1.msra.mxu0 %v3061
    %3097 = vmatprep.subr.mxu0 %v3058
    %3098 = vmatpush1.msra.mxu0 %v3057
    %3099 = vmatprep.subr.mxu0 %v3054
    %3100 = vmatpush1.msra.mxu0 %v3053
    %3101 = vmatprep.subr.mxu0 %v3050
    %3102 = vmatpush1.msra.mxu0 %v3049
    %3103 = vmatprep.subr.mxu0 %v3046
    %3104 = vmatpush1.msra.mxu0 %v3045
    %3105 = vmatprep.subr.mxu0 %v3042
    %3106 = vmatpush1.msra.mxu0 %v3041
    %3107 = vmatprep.subr.mxu0 %v3038
    %3108 = vmatpush1.msra.mxu0 %v3037
    %3109 = vmatprep.subr.mxu0 %v3034
    %3110 = vmatpush1.msra.mxu0 %v3033
    %3111 = vmatprep.subr.mxu0 %v3030
    %3112 = vmatpush1.msra.mxu0 %v3029
    %3113 = vmatprep.subr.mxu0 %v3026
    %3114 = vmatpush1.msra.mxu0 %v3025
    %3115 = vmatprep.subr.mxu0 %v3022
    %3116 = vmatpush1.msra.mxu0 %v3021
    %3117 = vmatprep.subr.mxu0 0.0
    %3118 = vmatpush2.msra.mxu0 0.0
    %3119 = vmatprep.subr.mxu0 0.0
    %3120 = vmatpush2.msra.mxu0 0.0
    %3121 = vmatprep.subr.mxu0 0.0
    %3122 = vmatpush2.msra.mxu0 0.0
    %3123 = vmatprep.subr.mxu0 0.0
    %3124 = vmatpush2.msra.mxu0 0.0
    %3125 = vmatprep.subr.mxu0 0.0
    %3126 = vmatpush2.msra.mxu0 0.0
    %3127 = vmatprep.subr.mxu0 0.0
    %3128 = vmatpush2.msra.mxu0 0.0
    %3129 = vmatprep.subr.mxu0 0.0
    %3130 = vmatpush2.msra.mxu0 0.0
    %3131 = vmatprep.subr.mxu0 0.0
    %3132 = vmatpush2.msra.mxu0 0.0
    %3133 = vmatprep.subr.mxu0 0.0
    %3134 = vmatpush2.msra.mxu0 0.0
    %3135 = vmatprep.subr.mxu0 0.0
    %3136 = vmatpush2.msra.mxu0 0.0
    %3137 = vmatprep.subr.mxu0 0.0
    %3138 = vmatpush2.msra.mxu0 0.0
    %3139 = vmatprep.subr.mxu0 0.0
    %3140 = vmatpush2.msra.mxu0 0.0
    %3141 = vmatprep.subr.mxu0 0.0
    %3142 = vmatpush2.msra.mxu0 0.0
    %3143 = vmatprep.subr.mxu0 0.0
    %3144 = vmatpush2.msra.mxu0 0.0
    %3145 = vmatprep.subr.mxu0 0.0
    %3146 = vmatpush2.msra.mxu0 0.0
    %3147 = vmatprep.subr.mxu0 0.0
    %3148 = vmatpush2.msra.mxu0 0.0
    %3149 = vmatprep.mubr.f32.mxu0 0.0
    %3150 = vmatmul.mubr.f32.gmra.mxu0 %v3019
    %v3151 = vpop.f32.mrf.mxu0
    %v3152 = vadd.f32 0.0, %v3151
    %v3153 = vpop.f32.mrf.mxu0
    %v3154 = vadd.f32 0.0, %v3153
    %3155 = vdwg.mxu0
    %3156 = vmatprep.subr.mxu0 %v3084
    %3157 = vmatpush1.msra.mxu0 %v3083
    %3158 = vmatprep.subr.mxu0 %v3080
    %3159 = vmatpush1.msra.mxu0 %v3079
    %3160 = vmatprep.subr.mxu0 %v3076
    %3161 = vmatpush1.msra.mxu0 %v3075
    %3162 = vmatprep.subr.mxu0 %v3072
    %3163 = vmatpush1.msra.mxu0 %v3071
    %3164 = vmatprep.subr.mxu0 %v3068
    %3165 = vmatpush1.msra.mxu0 %v3067
    %3166 = vmatprep.subr.mxu0 %v3064
    %3167 = vmatpush1.msra.mxu0 %v3063
    %3168 = vmatprep.subr.mxu0 %v3060
    %3169 = vmatpush1.msra.mxu0 %v3059
    %3170 = vmatprep.subr.mxu0 %v3056
    %3171 = vmatpush1.msra.mxu0 %v3055
    %3172 = vmatprep.subr.mxu0 %v3052
    %3173 = vmatpush1.msra.mxu0 %v3051
    %3174 = vmatprep.subr.mxu0 %v3048
    %3175 = vmatpush1.msra.mxu0 %v3047
    %3176 = vmatprep.subr.mxu0 %v3044
    %3177 = vmatpush1.msra.mxu0 %v3043
    %3178 = vmatprep.subr.mxu0 %v3040
    %3179 = vmatpush1.msra.mxu0 %v3039
    %3180 = vmatprep.subr.mxu0 %v3036
    %3181 = vmatpush1.msra.mxu0 %v3035
    %3182 = vmatprep.subr.mxu0 %v3032
    %3183 = vmatpush1.msra.mxu0 %v3031
    %3184 = vmatprep.subr.mxu0 %v3028
    %3185 = vmatpush1.msra.mxu0 %v3027
    %3186 = vmatprep.subr.mxu0 %v3024
    %3187 = vmatpush1.msra.mxu0 %v3023
    %3188 = vmatprep.subr.mxu0 0.0
    %3189 = vmatpush2.msra.mxu0 0.0
    %3190 = vmatprep.subr.mxu0 0.0
    %3191 = vmatpush2.msra.mxu0 0.0
    %3192 = vmatprep.subr.mxu0 0.0
    %3193 = vmatpush2.msra.mxu0 0.0
    %3194 = vmatprep.subr.mxu0 0.0
    %3195 = vmatpush2.msra.mxu0 0.0
    %3196 = vmatprep.subr.mxu0 0.0
    %3197 = vmatpush2.msra.mxu0 0.0
    %3198 = vmatprep.subr.mxu0 0.0
    %3199 = vmatpush2.msra.mxu0 0.0
    %3200 = vmatprep.subr.mxu0 0.0
    %3201 = vmatpush2.msra.mxu0 0.0
    %3202 = vmatprep.subr.mxu0 0.0
    %3203 = vmatpush2.msra.mxu0 0.0
    %3204 = vmatprep.subr.mxu0 0.0
    %3205 = vmatpush2.msra.mxu0 0.0
    %3206 = vmatprep.subr.mxu0 0.0
    %3207 = vmatpush2.msra.mxu0 0.0
    %3208 = vmatprep.subr.mxu0 0.0
    %3209 = vmatpush2.msra.mxu0 0.0
    %3210 = vmatprep.subr.mxu0 0.0
    %3211 = vmatpush2.msra.mxu0 0.0
    %3212 = vmatprep.subr.mxu0 0.0
    %3213 = vmatpush2.msra.mxu0 0.0
    %3214 = vmatprep.subr.mxu0 0.0
    %3215 = vmatpush2.msra.mxu0 0.0
    %3216 = vmatprep.subr.mxu0 0.0
    %3217 = vmatpush2.msra.mxu0 0.0
    %3218 = vmatprep.subr.mxu0 0.0
    %3219 = vmatpush2.msra.mxu0 0.0
    %3220 = vmatprep.mubr.f32.mxu0 0.0
    %3221 = vmatmul.mubr.f32.gmra.mxu0 %v3019
    %v3222 = vpop.f32.mrf.mxu0
    %v3223 = vadd.f32 0.0, %v3222
    %v3224 = vpop.f32.mrf.mxu0
    %v3225 = vadd.f32 0.0, %v3224
    %3226 = vdwg.mxu0
    %v3227 = vadd.f32 %v3014, %v3152
    %v3228 = vadd.f32 %v3015, %v3154
    %v3229 = vadd.f32 %v3016, %v3223
    %v3230 = vadd.f32 %v3017, %v3225
    %v3231 = vxor.u32 %v3227, 2147483648
    %v3232 = vmul.f32 %v3231, 1.442695
    %v3233 = vpow.pop %v3232
    %v3234 = vadd.f32 %v3233, 1.0
    %v3235 = vrcp.pop %v3234
    %v3236 = vmul.f32 1.0, %v3235
    %v3237 = vxor.u32 %v3228, 2147483648
    %v3238 = vmul.f32 %v3237, 1.442695
    %v3239 = vpow.pop %v3238
    %v3240 = vadd.f32 %v3239, 1.0
    %v3241 = vrcp.pop %v3240
    %v3242 = vmul.f32 1.0, %v3241
    %v3243 = vtanh.pop %v3229
    %v3244 = vxor.u32 %v3230, 2147483648
    %v3245 = vmul.f32 %v3244, 1.442695
    %v3246 = vpow.pop %v3245
    %v3247 = vadd.f32 %v3246, 1.0
    %v3248 = vrcp.pop %v3247
    %v3249 = vmul.f32 1.0, %v3248
    %v3250 = vmul.f32 %v3242, %v3020
    %v3251 = vmul.f32 %v3236, %v3243
    %v3252 = vadd.f32 %v3250, %v3251
    %v3253 = vtanh.pop %v3252
    %v3254 = vmul.f32 %v3249, %v3253
    %v3255 = vstv %s3018
    %vm3256 = vcmp.lt.s32.totalorder %v219, %v3255
    %v3257 = vsel %vm3256, 1, 0
    %vm3258 = vcmp.eq.s32.totalorder %v3257, 1
    %v3259 = vsel %vm3258, %v3254, %v3019
    %3260 = vst [vmem:[#allocation4] sm:$0xff] %v3259
    %v3261 = vsel %vm3258, %v3252, %v3020
    %3262 = vst [vmem:[#allocation5] sm:$0xff] %v3261
    %v3263 = vsel %vm3258, %v3254, 0.0
    %s3264 = scalar_lea.vmem %s207, 16
    %3265 = vst [vmem:[%s3264] sm:$0xff] %v3263
    %s3266 = sadd.s32 %s220, 6
    %s3267 = ssub.s32 1, %s220
    %s3268 = scalar_lea.vmem [#allocation8], 192
    %v3269 = vld [vmem:[%s3268] sm:$0xff]
    %v3270 = vld [vmem:[%s3268 + $0x8] sm:$0xff]
    %v3271 = vld [vmem:[%s3268 + $0x10] sm:$0xff]
    %v3272 = vld [vmem:[%s3268 + $0x18] sm:$0xff]
    %s3273 = sld [smem:[#allocation7 + %s3266]]
    %v3274 = vld [vmem:[#allocation2] sm:$0xff]
    %v3275 = vld [vmem:[#allocation3] sm:$0xff]
    %v3276 = vld [vmem:[%s3] sm:$0xff]
    %v3277 = vld [vmem:[%s3 + $0x8] sm:$0xff]
    %v3278 = vld [vmem:[%s3 + $0x10] sm:$0xff]
    %v3279 = vld [vmem:[%s3 + $0x18] sm:$0xff]
    %v3280 = vld [vmem:[%s3 + $0x20] sm:$0xff]
    %v3281 = vld [vmem:[%s3 + $0x28] sm:$0xff]
    %v3282 = vld [vmem:[%s3 + $0x30] sm:$0xff]
    %v3283 = vld [vmem:[%s3 + $0x38] sm:$0xff]
    %v3284 = vld [vmem:[%s3 + $0x40] sm:$0xff]
    %v3285 = vld [vmem:[%s3 + $0x48] sm:$0xff]
    %v3286 = vld [vmem:[%s3 + $0x50] sm:$0xff]
    %v3287 = vld [vmem:[%s3 + $0x58] sm:$0xff]
    %v3288 = vld [vmem:[%s3 + $0x60] sm:$0xff]
    %v3289 = vld [vmem:[%s3 + $0x68] sm:$0xff]
    %v3290 = vld [vmem:[%s3 + $0x70] sm:$0xff]
    %v3291 = vld [vmem:[%s3 + $0x78] sm:$0xff]
    %v3292 = vld [vmem:[%s3 + $0x80] sm:$0xff]
    %v3293 = vld [vmem:[%s3 + $0x88] sm:$0xff]
    %v3294 = vld [vmem:[%s3 + $0x90] sm:$0xff]
    %v3295 = vld [vmem:[%s3 + $0x98] sm:$0xff]
    %v3296 = vld [vmem:[%s3 + $0xa0] sm:$0xff]
    %v3297 = vld [vmem:[%s3 + $0xa8] sm:$0xff]
    %v3298 = vld [vmem:[%s3 + $0xb0] sm:$0xff]
    %v3299 = vld [vmem:[%s3 + $0xb8] sm:$0xff]
    %v3300 = vld [vmem:[%s3 + $0xc0] sm:$0xff]
    %v3301 = vld [vmem:[%s3 + $0xc8] sm:$0xff]
    %v3302 = vld [vmem:[%s3 + $0xd0] sm:$0xff]
    %v3303 = vld [vmem:[%s3 + $0xd8] sm:$0xff]
    %v3304 = vld [vmem:[%s3 + $0xe0] sm:$0xff]
    %v3305 = vld [vmem:[%s3 + $0xe8] sm:$0xff]
    %v3306 = vld [vmem:[%s3 + $0xf0] sm:$0xff]
    %v3307 = vld [vmem:[%s3 + $0xf8] sm:$0xff]
    %v3308 = vld [vmem:[%s3 + $0x100] sm:$0xff]
    %v3309 = vld [vmem:[%s3 + $0x108] sm:$0xff]
    %v3310 = vld [vmem:[%s3 + $0x110] sm:$0xff]
    %v3311 = vld [vmem:[%s3 + $0x118] sm:$0xff]
    %v3312 = vld [vmem:[%s3 + $0x120] sm:$0xff]
    %v3313 = vld [vmem:[%s3 + $0x128] sm:$0xff]
    %v3314 = vld [vmem:[%s3 + $0x130] sm:$0xff]
    %v3315 = vld [vmem:[%s3 + $0x138] sm:$0xff]
    %v3316 = vld [vmem:[%s3 + $0x140] sm:$0xff]
    %v3317 = vld [vmem:[%s3 + $0x148] sm:$0xff]
    %v3318 = vld [vmem:[%s3 + $0x150] sm:$0xff]
    %v3319 = vld [vmem:[%s3 + $0x158] sm:$0xff]
    %v3320 = vld [vmem:[%s3 + $0x160] sm:$0xff]
    %v3321 = vld [vmem:[%s3 + $0x168] sm:$0xff]
    %v3322 = vld [vmem:[%s3 + $0x170] sm:$0xff]
    %v3323 = vld [vmem:[%s3 + $0x178] sm:$0xff]
    %v3324 = vld [vmem:[%s3 + $0x180] sm:$0xff]
    %v3325 = vld [vmem:[%s3 + $0x188] sm:$0xff]
    %v3326 = vld [vmem:[%s3 + $0x190] sm:$0xff]
    %v3327 = vld [vmem:[%s3 + $0x198] sm:$0xff]
    %v3328 = vld [vmem:[%s3 + $0x1a0] sm:$0xff]
    %v3329 = vld [vmem:[%s3 + $0x1a8] sm:$0xff]
    %v3330 = vld [vmem:[%s3 + $0x1b0] sm:$0xff]
    %v3331 = vld [vmem:[%s3 + $0x1b8] sm:$0xff]
    %v3332 = vld [vmem:[%s3 + $0x1c0] sm:$0xff]
    %v3333 = vld [vmem:[%s3 + $0x1c8] sm:$0xff]
    %v3334 = vld [vmem:[%s3 + $0x1d0] sm:$0xff]
    %v3335 = vld [vmem:[%s3 + $0x1d8] sm:$0xff]
    %v3336 = vld [vmem:[%s3 + $0x1e0] sm:$0xff]
    %v3337 = vld [vmem:[%s3 + $0x1e8] sm:$0xff]
    %v3338 = vld [vmem:[%s3 + $0x1f0] sm:$0xff]
    %v3339 = vld [vmem:[%s3 + $0x1f8] sm:$0xff]
    %3340 = vmatprep.subr.mxu0 %v3337
    %3341 = vmatpush1.msra.mxu0 %v3336
    %3342 = vmatprep.subr.mxu0 %v3333
    %3343 = vmatpush1.msra.mxu0 %v3332
    %3344 = vmatprep.subr.mxu0 %v3329
    %3345 = vmatpush1.msra.mxu0 %v3328
    %3346 = vmatprep.subr.mxu0 %v3325
    %3347 = vmatpush1.msra.mxu0 %v3324
    %3348 = vmatprep.subr.mxu0 %v3321
    %3349 = vmatpush1.msra.mxu0 %v3320
    %3350 = vmatprep.subr.mxu0 %v3317
    %3351 = vmatpush1.msra.mxu0 %v3316
    %3352 = vmatprep.subr.mxu0 %v3313
    %3353 = vmatpush1.msra.mxu0 %v3312
    %3354 = vmatprep.subr.mxu0 %v3309
    %3355 = vmatpush1.msra.mxu0 %v3308
    %3356 = vmatprep.subr.mxu0 %v3305
    %3357 = vmatpush1.msra.mxu0 %v3304
    %3358 = vmatprep.subr.mxu0 %v3301
    %3359 = vmatpush1.msra.mxu0 %v3300
    %3360 = vmatprep.subr.mxu0 %v3297
    %3361 = vmatpush1.msra.mxu0 %v3296
    %3362 = vmatprep.subr.mxu0 %v3293
    %3363 = vmatpush1.msra.mxu0 %v3292
    %3364 = vmatprep.subr.mxu0 %v3289
    %3365 = vmatpush1.msra.mxu0 %v3288
    %3366 = vmatprep.subr.mxu0 %v3285
    %3367 = vmatpush1.msra.mxu0 %v3284
    %3368 = vmatprep.subr.mxu0 %v3281
    %3369 = vmatpush1.msra.mxu0 %v3280
    %3370 = vmatprep.subr.mxu0 %v3277
    %3371 = vmatpush1.msra.mxu0 %v3276
    %3372 = vmatprep.subr.mxu0 0.0
    %3373 = vmatpush2.msra.mxu0 0.0
    %3374 = vmatprep.subr.mxu0 0.0
    %3375 = vmatpush2.msra.mxu0 0.0
    %3376 = vmatprep.subr.mxu0 0.0
    %3377 = vmatpush2.msra.mxu0 0.0
    %3378 = vmatprep.subr.mxu0 0.0
    %3379 = vmatpush2.msra.mxu0 0.0
    %3380 = vmatprep.subr.mxu0 0.0
    %3381 = vmatpush2.msra.mxu0 0.0
    %3382 = vmatprep.subr.mxu0 0.0
    %3383 = vmatpush2.msra.mxu0 0.0
    %3384 = vmatprep.subr.mxu0 0.0
    %3385 = vmatpush2.msra.mxu0 0.0
    %3386 = vmatprep.subr.mxu0 0.0
    %3387 = vmatpush2.msra.mxu0 0.0
    %3388 = vmatprep.subr.mxu0 0.0
    %3389 = vmatpush2.msra.mxu0 0.0
    %3390 = vmatprep.subr.mxu0 0.0
    %3391 = vmatpush2.msra.mxu0 0.0
    %3392 = vmatprep.subr.mxu0 0.0
    %3393 = vmatpush2.msra.mxu0 0.0
    %3394 = vmatprep.subr.mxu0 0.0
    %3395 = vmatpush2.msra.mxu0 0.0
    %3396 = vmatprep.subr.mxu0 0.0
    %3397 = vmatpush2.msra.mxu0 0.0
    %3398 = vmatprep.subr.mxu0 0.0
    %3399 = vmatpush2.msra.mxu0 0.0
    %3400 = vmatprep.subr.mxu0 0.0
    %3401 = vmatpush2.msra.mxu0 0.0
    %3402 = vmatprep.subr.mxu0 0.0
    %3403 = vmatpush2.msra.mxu0 0.0
    %3404 = vmatprep.mubr.f32.mxu0 0.0
    %3405 = vmatmul.mubr.f32.gmra.mxu0 %v3274
    %v3406 = vpop.f32.mrf.mxu0
    %v3407 = vadd.f32 0.0, %v3406
    %v3408 = vpop.f32.mrf.mxu0
    %v3409 = vadd.f32 0.0, %v3408
    %3410 = vdwg.mxu0
    %3411 = vmatprep.subr.mxu0 %v3339
    %3412 = vmatpush1.msra.mxu0 %v3338
    %3413 = vmatprep.subr.mxu0 %v3335
    %3414 = vmatpush1.msra.mxu0 %v3334
    %3415 = vmatprep.subr.mxu0 %v3331
    %3416 = vmatpush1.msra.mxu0 %v3330
    %3417 = vmatprep.subr.mxu0 %v3327
    %3418 = vmatpush1.msra.mxu0 %v3326
    %3419 = vmatprep.subr.mxu0 %v3323
    %3420 = vmatpush1.msra.mxu0 %v3322
    %3421 = vmatprep.subr.mxu0 %v3319
    %3422 = vmatpush1.msra.mxu0 %v3318
    %3423 = vmatprep.subr.mxu0 %v3315
    %3424 = vmatpush1.msra.mxu0 %v3314
    %3425 = vmatprep.subr.mxu0 %v3311
    %3426 = vmatpush1.msra.mxu0 %v3310
    %3427 = vmatprep.subr.mxu0 %v3307
    %3428 = vmatpush1.msra.mxu0 %v3306
    %3429 = vmatprep.subr.mxu0 %v3303
    %3430 = vmatpush1.msra.mxu0 %v3302
    %3431 = vmatprep.subr.mxu0 %v3299
    %3432 = vmatpush1.msra.mxu0 %v3298
    %3433 = vmatprep.subr.mxu0 %v3295
    %3434 = vmatpush1.msra.mxu0 %v3294
    %3435 = vmatprep.subr.mxu0 %v3291
    %3436 = vmatpush1.msra.mxu0 %v3290
    %3437 = vmatprep.subr.mxu0 %v3287
    %3438 = vmatpush1.msra.mxu0 %v3286
    %3439 = vmatprep.subr.mxu0 %v3283
    %3440 = vmatpush1.msra.mxu0 %v3282
    %3441 = vmatprep.subr.mxu0 %v3279
    %3442 = vmatpush1.msra.mxu0 %v3278
    %3443 = vmatprep.subr.mxu0 0.0
    %3444 = vmatpush2.msra.mxu0 0.0
    %3445 = vmatprep.subr.mxu0 0.0
    %3446 = vmatpush2.msra.mxu0 0.0
    %3447 = vmatprep.subr.mxu0 0.0
    %3448 = vmatpush2.msra.mxu0 0.0
    %3449 = vmatprep.subr.mxu0 0.0
    %3450 = vmatpush2.msra.mxu0 0.0
    %3451 = vmatprep.subr.mxu0 0.0
    %3452 = vmatpush2.msra.mxu0 0.0
    %3453 = vmatprep.subr.mxu0 0.0
    %3454 = vmatpush2.msra.mxu0 0.0
    %3455 = vmatprep.subr.mxu0 0.0
    %3456 = vmatpush2.msra.mxu0 0.0
    %3457 = vmatprep.subr.mxu0 0.0
    %3458 = vmatpush2.msra.mxu0 0.0
    %3459 = vmatprep.subr.mxu0 0.0
    %3460 = vmatpush2.msra.mxu0 0.0
    %3461 = vmatprep.subr.mxu0 0.0
    %3462 = vmatpush2.msra.mxu0 0.0
    %3463 = vmatprep.subr.mxu0 0.0
    %3464 = vmatpush2.msra.mxu0 0.0
    %3465 = vmatprep.subr.mxu0 0.0
    %3466 = vmatpush2.msra.mxu0 0.0
    %3467 = vmatprep.subr.mxu0 0.0
    %3468 = vmatpush2.msra.mxu0 0.0
    %3469 = vmatprep.subr.mxu0 0.0
    %3470 = vmatpush2.msra.mxu0 0.0
    %3471 = vmatprep.subr.mxu0 0.0
    %3472 = vmatpush2.msra.mxu0 0.0
    %3473 = vmatprep.subr.mxu0 0.0
    %3474 = vmatpush2.msra.mxu0 0.0
    %3475 = vmatprep.mubr.f32.mxu0 0.0
    %3476 = vmatmul.mubr.f32.gmra.mxu0 %v3274
    %v3477 = vpop.f32.mrf.mxu0
    %v3478 = vadd.f32 0.0, %v3477
    %v3479 = vpop.f32.mrf.mxu0
    %v3480 = vadd.f32 0.0, %v3479
    %3481 = vdwg.mxu0
    %v3482 = vadd.f32 %v3269, %v3407
    %v3483 = vadd.f32 %v3270, %v3409
    %v3484 = vadd.f32 %v3271, %v3478
    %v3485 = vadd.f32 %v3272, %v3480
    %v3486 = vxor.u32 %v3482, 2147483648
    %v3487 = vmul.f32 %v3486, 1.442695
    %v3488 = vpow.pop %v3487
    %v3489 = vadd.f32 %v3488, 1.0
    %v3490 = vrcp.pop %v3489
    %v3491 = vmul.f32 1.0, %v3490
    %v3492 = vxor.u32 %v3483, 2147483648
    %v3493 = vmul.f32 %v3492, 1.442695
    %v3494 = vpow.pop %v3493
    %v3495 = vadd.f32 %v3494, 1.0
    %v3496 = vrcp.pop %v3495
    %v3497 = vmul.f32 1.0, %v3496
    %v3498 = vtanh.pop %v3484
    %v3499 = vxor.u32 %v3485, 2147483648
    %v3500 = vmul.f32 %v3499, 1.442695
    %v3501 = vpow.pop %v3500
    %v3502 = vadd.f32 %v3501, 1.0
    %v3503 = vrcp.pop %v3502
    %v3504 = vmul.f32 1.0, %v3503
    %v3505 = vmul.f32 %v3497, %v3275
    %v3506 = vmul.f32 %v3491, %v3498
    %v3507 = vadd.f32 %v3505, %v3506
    %v3508 = vtanh.pop %v3507
    %v3509 = vmul.f32 %v3504, %v3508
    %v3510 = vstv %s3273
    %vm3511 = vcmp.lt.s32.totalorder %v219, %v3510
    %v3512 = vsel %vm3511, 1, 0
    %vm3513 = vcmp.eq.s32.totalorder %v3512, 1
    %v3514 = vsel %vm3513, %v3509, %v3274
    %3515 = vst [vmem:[#allocation2] sm:$0xff] %v3514
    %v3516 = vsel %vm3513, %v3507, %v3275
    %3517 = vst [vmem:[#allocation3] sm:$0xff] %v3516
    %v3518 = vsel %vm3513, %v3509, 0.0
    %s3519 = scalar_lea.vmem %s5, 48
    %3520 = vst [vmem:[%s3519] sm:$0xff] %v3518
    %s3521 = scalar_lea.vmem [#allocation9], 32
    %v3522 = vld [vmem:[%s3521] sm:$0xff]
    %v3523 = vld [vmem:[%s3521 + $0x8] sm:$0xff]
    %v3524 = vld [vmem:[%s3521 + $0x10] sm:$0xff]
    %v3525 = vld [vmem:[%s3521 + $0x18] sm:$0xff]
    %s3526 = sld [smem:[#allocation7 + %s3267]]
    %v3527 = vld [vmem:[#allocation4] sm:$0xff]
    %v3528 = vld [vmem:[#allocation5] sm:$0xff]
    %v3529 = vld [vmem:[%s4] sm:$0xff]
    %v3530 = vld [vmem:[%s4 + $0x8] sm:$0xff]
    %v3531 = vld [vmem:[%s4 + $0x10] sm:$0xff]
    %v3532 = vld [vmem:[%s4 + $0x18] sm:$0xff]
    %v3533 = vld [vmem:[%s4 + $0x20] sm:$0xff]
    %v3534 = vld [vmem:[%s4 + $0x28] sm:$0xff]
    %v3535 = vld [vmem:[%s4 + $0x30] sm:$0xff]
    %v3536 = vld [vmem:[%s4 + $0x38] sm:$0xff]
    %v3537 = vld [vmem:[%s4 + $0x40] sm:$0xff]
    %v3538 = vld [vmem:[%s4 + $0x48] sm:$0xff]
    %v3539 = vld [vmem:[%s4 + $0x50] sm:$0xff]
    %v3540 = vld [vmem:[%s4 + $0x58] sm:$0xff]
    %v3541 = vld [vmem:[%s4 + $0x60] sm:$0xff]
    %v3542 = vld [vmem:[%s4 + $0x68] sm:$0xff]
    %v3543 = vld [vmem:[%s4 + $0x70] sm:$0xff]
    %v3544 = vld [vmem:[%s4 + $0x78] sm:$0xff]
    %v3545 = vld [vmem:[%s4 + $0x80] sm:$0xff]
    %v3546 = vld [vmem:[%s4 + $0x88] sm:$0xff]
    %v3547 = vld [vmem:[%s4 + $0x90] sm:$0xff]
    %v3548 = vld [vmem:[%s4 + $0x98] sm:$0xff]
    %v3549 = vld [vmem:[%s4 + $0xa0] sm:$0xff]
    %v3550 = vld [vmem:[%s4 + $0xa8] sm:$0xff]
    %v3551 = vld [vmem:[%s4 + $0xb0] sm:$0xff]
    %v3552 = vld [vmem:[%s4 + $0xb8] sm:$0xff]
    %v3553 = vld [vmem:[%s4 + $0xc0] sm:$0xff]
    %v3554 = vld [vmem:[%s4 + $0xc8] sm:$0xff]
    %v3555 = vld [vmem:[%s4 + $0xd0] sm:$0xff]
    %v3556 = vld [vmem:[%s4 + $0xd8] sm:$0xff]
    %v3557 = vld [vmem:[%s4 + $0xe0] sm:$0xff]
    %v3558 = vld [vmem:[%s4 + $0xe8] sm:$0xff]
    %v3559 = vld [vmem:[%s4 + $0xf0] sm:$0xff]
    %v3560 = vld [vmem:[%s4 + $0xf8] sm:$0xff]
    %v3561 = vld [vmem:[%s4 + $0x100] sm:$0xff]
    %v3562 = vld [vmem:[%s4 + $0x108] sm:$0xff]
    %v3563 = vld [vmem:[%s4 + $0x110] sm:$0xff]
    %v3564 = vld [vmem:[%s4 + $0x118] sm:$0xff]
    %v3565 = vld [vmem:[%s4 + $0x120] sm:$0xff]
    %v3566 = vld [vmem:[%s4 + $0x128] sm:$0xff]
    %v3567 = vld [vmem:[%s4 + $0x130] sm:$0xff]
    %v3568 = vld [vmem:[%s4 + $0x138] sm:$0xff]
    %v3569 = vld [vmem:[%s4 + $0x140] sm:$0xff]
    %v3570 = vld [vmem:[%s4 + $0x148] sm:$0xff]
    %v3571 = vld [vmem:[%s4 + $0x150] sm:$0xff]
    %v3572 = vld [vmem:[%s4 + $0x158] sm:$0xff]
    %v3573 = vld [vmem:[%s4 + $0x160] sm:$0xff]
    %v3574 = vld [vmem:[%s4 + $0x168] sm:$0xff]
    %v3575 = vld [vmem:[%s4 + $0x170] sm:$0xff]
    %v3576 = vld [vmem:[%s4 + $0x178] sm:$0xff]
    %v3577 = vld [vmem:[%s4 + $0x180] sm:$0xff]
    %v3578 = vld [vmem:[%s4 + $0x188] sm:$0xff]
    %v3579 = vld [vmem:[%s4 + $0x190] sm:$0xff]
    %v3580 = vld [vmem:[%s4 + $0x198] sm:$0xff]
    %v3581 = vld [vmem:[%s4 + $0x1a0] sm:$0xff]
    %v3582 = vld [vmem:[%s4 + $0x1a8] sm:$0xff]
    %v3583 = vld [vmem:[%s4 + $0x1b0] sm:$0xff]
    %v3584 = vld [vmem:[%s4 + $0x1b8] sm:$0xff]
    %v3585 = vld [vmem:[%s4 + $0x1c0] sm:$0xff]
    %v3586 = vld [vmem:[%s4 + $0x1c8] sm:$0xff]
    %v3587 = vld [vmem:[%s4 + $0x1d0] sm:$0xff]
    %v3588 = vld [vmem:[%s4 + $0x1d8] sm:$0xff]
    %v3589 = vld [vmem:[%s4 + $0x1e0] sm:$0xff]
    %v3590 = vld [vmem:[%s4 + $0x1e8] sm:$0xff]
    %v3591 = vld [vmem:[%s4 + $0x1f0] sm:$0xff]
    %v3592 = vld [vmem:[%s4 + $0x1f8] sm:$0xff]
    %3593 = vmatprep.subr.mxu0 %v3590
    %3594 = vmatpush1.msra.mxu0 %v3589
    %3595 = vmatprep.subr.mxu0 %v3586
    %3596 = vmatpush1.msra.mxu0 %v3585
    %3597 = vmatprep.subr.mxu0 %v3582
    %3598 = vmatpush1.msra.mxu0 %v3581
    %3599 = vmatprep.subr.mxu0 %v3578
    %3600 = vmatpush1.msra.mxu0 %v3577
    %3601 = vmatprep.subr.mxu0 %v3574
    %3602 = vmatpush1.msra.mxu0 %v3573
    %3603 = vmatprep.subr.mxu0 %v3570
    %3604 = vmatpush1.msra.mxu0 %v3569
    %3605 = vmatprep.subr.mxu0 %v3566
    %3606 = vmatpush1.msra.mxu0 %v3565
    %3607 = vmatprep.subr.mxu0 %v3562
    %3608 = vmatpush1.msra.mxu0 %v3561
    %3609 = vmatprep.subr.mxu0 %v3558
    %3610 = vmatpush1.msra.mxu0 %v3557
    %3611 = vmatprep.subr.mxu0 %v3554
    %3612 = vmatpush1.msra.mxu0 %v3553
    %3613 = vmatprep.subr.mxu0 %v3550
    %3614 = vmatpush1.msra.mxu0 %v3549
    %3615 = vmatprep.subr.mxu0 %v3546
    %3616 = vmatpush1.msra.mxu0 %v3545
    %3617 = vmatprep.subr.mxu0 %v3542
    %3618 = vmatpush1.msra.mxu0 %v3541
    %3619 = vmatprep.subr.mxu0 %v3538
    %3620 = vmatpush1.msra.mxu0 %v3537
    %3621 = vmatprep.subr.mxu0 %v3534
    %3622 = vmatpush1.msra.mxu0 %v3533
    %3623 = vmatprep.subr.mxu0 %v3530
    %3624 = vmatpush1.msra.mxu0 %v3529
    %3625 = vmatprep.subr.mxu0 0.0
    %3626 = vmatpush2.msra.mxu0 0.0
    %3627 = vmatprep.subr.mxu0 0.0
    %3628 = vmatpush2.msra.mxu0 0.0
    %3629 = vmatprep.subr.mxu0 0.0
    %3630 = vmatpush2.msra.mxu0 0.0
    %3631 = vmatprep.subr.mxu0 0.0
    %3632 = vmatpush2.msra.mxu0 0.0
    %3633 = vmatprep.subr.mxu0 0.0
    %3634 = vmatpush2.msra.mxu0 0.0
    %3635 = vmatprep.subr.mxu0 0.0
    %3636 = vmatpush2.msra.mxu0 0.0
    %3637 = vmatprep.subr.mxu0 0.0
    %3638 = vmatpush2.msra.mxu0 0.0
    %3639 = vmatprep.subr.mxu0 0.0
    %3640 = vmatpush2.msra.mxu0 0.0
    %3641 = vmatprep.subr.mxu0 0.0
    %3642 = vmatpush2.msra.mxu0 0.0
    %3643 = vmatprep.subr.mxu0 0.0
    %3644 = vmatpush2.msra.mxu0 0.0
    %3645 = vmatprep.subr.mxu0 0.0
    %3646 = vmatpush2.msra.mxu0 0.0
    %3647 = vmatprep.subr.mxu0 0.0
    %3648 = vmatpush2.msra.mxu0 0.0
    %3649 = vmatprep.subr.mxu0 0.0
    %3650 = vmatpush2.msra.mxu0 0.0
    %3651 = vmatprep.subr.mxu0 0.0
    %3652 = vmatpush2.msra.mxu0 0.0
    %3653 = vmatprep.subr.mxu0 0.0
    %3654 = vmatpush2.msra.mxu0 0.0
    %3655 = vmatprep.subr.mxu0 0.0
    %3656 = vmatpush2.msra.mxu0 0.0
    %3657 = vmatprep.mubr.f32.mxu0 0.0
    %3658 = vmatmul.mubr.f32.gmra.mxu0 %v3527
    %v3659 = vpop.f32.mrf.mxu0
    %v3660 = vadd.f32 0.0, %v3659
    %v3661 = vpop.f32.mrf.mxu0
    %v3662 = vadd.f32 0.0, %v3661
    %3663 = vdwg.mxu0
    %3664 = vmatprep.subr.mxu0 %v3592
    %3665 = vmatpush1.msra.mxu0 %v3591
    %3666 = vmatprep.subr.mxu0 %v3588
    %3667 = vmatpush1.msra.mxu0 %v3587
    %3668 = vmatprep.subr.mxu0 %v3584
    %3669 = vmatpush1.msra.mxu0 %v3583
    %3670 = vmatprep.subr.mxu0 %v3580
    %3671 = vmatpush1.msra.mxu0 %v3579
    %3672 = vmatprep.subr.mxu0 %v3576
    %3673 = vmatpush1.msra.mxu0 %v3575
    %3674 = vmatprep.subr.mxu0 %v3572
    %3675 = vmatpush1.msra.mxu0 %v3571
    %3676 = vmatprep.subr.mxu0 %v3568
    %3677 = vmatpush1.msra.mxu0 %v3567
    %3678 = vmatprep.subr.mxu0 %v3564
    %3679 = vmatpush1.msra.mxu0 %v3563
    %3680 = vmatprep.subr.mxu0 %v3560
    %3681 = vmatpush1.msra.mxu0 %v3559
    %3682 = vmatprep.subr.mxu0 %v3556
    %3683 = vmatpush1.msra.mxu0 %v3555
    %3684 = vmatprep.subr.mxu0 %v3552
    %3685 = vmatpush1.msra.mxu0 %v3551
    %3686 = vmatprep.subr.mxu0 %v3548
    %3687 = vmatpush1.msra.mxu0 %v3547
    %3688 = vmatprep.subr.mxu0 %v3544
    %3689 = vmatpush1.msra.mxu0 %v3543
    %3690 = vmatprep.subr.mxu0 %v3540
    %3691 = vmatpush1.msra.mxu0 %v3539
    %3692 = vmatprep.subr.mxu0 %v3536
    %3693 = vmatpush1.msra.mxu0 %v3535
    %3694 = vmatprep.subr.mxu0 %v3532
    %3695 = vmatpush1.msra.mxu0 %v3531
    %3696 = vmatprep.subr.mxu0 0.0
    %3697 = vmatpush2.msra.mxu0 0.0
    %3698 = vmatprep.subr.mxu0 0.0
    %3699 = vmatpush2.msra.mxu0 0.0
    %3700 = vmatprep.subr.mxu0 0.0
    %3701 = vmatpush2.msra.mxu0 0.0
    %3702 = vmatprep.subr.mxu0 0.0
    %3703 = vmatpush2.msra.mxu0 0.0
    %3704 = vmatprep.subr.mxu0 0.0
    %3705 = vmatpush2.msra.mxu0 0.0
    %3706 = vmatprep.subr.mxu0 0.0
    %3707 = vmatpush2.msra.mxu0 0.0
    %3708 = vmatprep.subr.mxu0 0.0
    %3709 = vmatpush2.msra.mxu0 0.0
    %3710 = vmatprep.subr.mxu0 0.0
    %3711 = vmatpush2.msra.mxu0 0.0
    %3712 = vmatprep.subr.mxu0 0.0
    %3713 = vmatpush2.msra.mxu0 0.0
    %3714 = vmatprep.subr.mxu0 0.0
    %3715 = vmatpush2.msra.mxu0 0.0
    %3716 = vmatprep.subr.mxu0 0.0
    %3717 = vmatpush2.msra.mxu0 0.0
    %3718 = vmatprep.subr.mxu0 0.0
    %3719 = vmatpush2.msra.mxu0 0.0
    %3720 = vmatprep.subr.mxu0 0.0
    %3721 = vmatpush2.msra.mxu0 0.0
    %3722 = vmatprep.subr.mxu0 0.0
    %3723 = vmatpush2.msra.mxu0 0.0
    %3724 = vmatprep.subr.mxu0 0.0
    %3725 = vmatpush2.msra.mxu0 0.0
    %3726 = vmatprep.subr.mxu0 0.0
    %3727 = vmatpush2.msra.mxu0 0.0
    %3728 = vmatprep.mubr.f32.mxu0 0.0
    %3729 = vmatmul.mubr.f32.gmra.mxu0 %v3527
    %v3730 = vpop.f32.mrf.mxu0
    %v3731 = vadd.f32 0.0, %v3730
    %v3732 = vpop.f32.mrf.mxu0
    %v3733 = vadd.f32 0.0, %v3732
    %3734 = vdwg.mxu0
    %v3735 = vadd.f32 %v3522, %v3660
    %v3736 = vadd.f32 %v3523, %v3662
    %v3737 = vadd.f32 %v3524, %v3731
    %v3738 = vadd.f32 %v3525, %v3733
    %v3739 = vxor.u32 %v3735, 2147483648
    %v3740 = vmul.f32 %v3739, 1.442695
    %v3741 = vpow.pop %v3740
    %v3742 = vadd.f32 %v3741, 1.0
    %v3743 = vrcp.pop %v3742
    %v3744 = vmul.f32 1.0, %v3743
    %v3745 = vxor.u32 %v3736, 2147483648
    %v3746 = vmul.f32 %v3745, 1.442695
    %v3747 = vpow.pop %v3746
    %v3748 = vadd.f32 %v3747, 1.0
    %v3749 = vrcp.pop %v3748
    %v3750 = vmul.f32 1.0, %v3749
    %v3751 = vtanh.pop %v3737
    %v3752 = vxor.u32 %v3738, 2147483648
    %v3753 = vmul.f32 %v3752, 1.442695
    %v3754 = vpow.pop %v3753
    %v3755 = vadd.f32 %v3754, 1.0
    %v3756 = vrcp.pop %v3755
    %v3757 = vmul.f32 1.0, %v3756
    %v3758 = vmul.f32 %v3750, %v3528
    %v3759 = vmul.f32 %v3744, %v3751
    %v3760 = vadd.f32 %v3758, %v3759
    %v3761 = vtanh.pop %v3760
    %v3762 = vmul.f32 %v3757, %v3761
    %v3763 = vstv %s3526
    %vm3764 = vcmp.lt.s32.totalorder %v219, %v3763
    %v3765 = vsel %vm3764, 1, 0
    %vm3766 = vcmp.eq.s32.totalorder %v3765, 1
    %v3767 = vsel %vm3766, %v3762, %v3527
    %3768 = vst [vmem:[#allocation4] sm:$0xff] %v3767
    %v3769 = vsel %vm3766, %v3760, %v3528
    %3770 = vst [vmem:[#allocation5] sm:$0xff] %v3769
    %v3771 = vsel %vm3766, %v3762, 0.0
    %s3772 = scalar_lea.vmem %s207, 8
    %3773 = vst [vmem:[%s3772] sm:$0xff] %v3771
    %s3774 = sadd.s32 %s220, 7
    %s3775 = ssub.s32 0, %s220
    %s3776 = scalar_lea.vmem [#allocation8], 224
    %v3777 = vld [vmem:[%s3776] sm:$0xff]
    %v3778 = vld [vmem:[%s3776 + $0x8] sm:$0xff]
    %v3779 = vld [vmem:[%s3776 + $0x10] sm:$0xff]
    %v3780 = vld [vmem:[%s3776 + $0x18] sm:$0xff]
    %s3781 = sld [smem:[#allocation7 + %s3774]]
    %v3782 = vld [vmem:[#allocation2] sm:$0xff]
    %v3783 = vld [vmem:[#allocation3] sm:$0xff]
    %v3784 = vld [vmem:[%s3] sm:$0xff]
    %v3785 = vld [vmem:[%s3 + $0x8] sm:$0xff]
    %v3786 = vld [vmem:[%s3 + $0x10] sm:$0xff]
    %v3787 = vld [vmem:[%s3 + $0x18] sm:$0xff]
    %v3788 = vld [vmem:[%s3 + $0x20] sm:$0xff]
    %v3789 = vld [vmem:[%s3 + $0x28] sm:$0xff]
    %v3790 = vld [vmem:[%s3 + $0x30] sm:$0xff]
    %v3791 = vld [vmem:[%s3 + $0x38] sm:$0xff]
    %v3792 = vld [vmem:[%s3 + $0x40] sm:$0xff]
    %v3793 = vld [vmem:[%s3 + $0x48] sm:$0xff]
    %v3794 = vld [vmem:[%s3 + $0x50] sm:$0xff]
    %v3795 = vld [vmem:[%s3 + $0x58] sm:$0xff]
    %v3796 = vld [vmem:[%s3 + $0x60] sm:$0xff]
    %v3797 = vld [vmem:[%s3 + $0x68] sm:$0xff]
    %v3798 = vld [vmem:[%s3 + $0x70] sm:$0xff]
    %v3799 = vld [vmem:[%s3 + $0x78] sm:$0xff]
    %v3800 = vld [vmem:[%s3 + $0x80] sm:$0xff]
    %v3801 = vld [vmem:[%s3 + $0x88] sm:$0xff]
    %v3802 = vld [vmem:[%s3 + $0x90] sm:$0xff]
    %v3803 = vld [vmem:[%s3 + $0x98] sm:$0xff]
    %v3804 = vld [vmem:[%s3 + $0xa0] sm:$0xff]
    %v3805 = vld [vmem:[%s3 + $0xa8] sm:$0xff]
    %v3806 = vld [vmem:[%s3 + $0xb0] sm:$0xff]
    %v3807 = vld [vmem:[%s3 + $0xb8] sm:$0xff]
    %v3808 = vld [vmem:[%s3 + $0xc0] sm:$0xff]
    %v3809 = vld [vmem:[%s3 + $0xc8] sm:$0xff]
    %v3810 = vld [vmem:[%s3 + $0xd0] sm:$0xff]
    %v3811 = vld [vmem:[%s3 + $0xd8] sm:$0xff]
    %v3812 = vld [vmem:[%s3 + $0xe0] sm:$0xff]
    %v3813 = vld [vmem:[%s3 + $0xe8] sm:$0xff]
    %v3814 = vld [vmem:[%s3 + $0xf0] sm:$0xff]
    %v3815 = vld [vmem:[%s3 + $0xf8] sm:$0xff]
    %v3816 = vld [vmem:[%s3 + $0x100] sm:$0xff]
    %v3817 = vld [vmem:[%s3 + $0x108] sm:$0xff]
    %v3818 = vld [vmem:[%s3 + $0x110] sm:$0xff]
    %v3819 = vld [vmem:[%s3 + $0x118] sm:$0xff]
    %v3820 = vld [vmem:[%s3 + $0x120] sm:$0xff]
    %v3821 = vld [vmem:[%s3 + $0x128] sm:$0xff]
    %v3822 = vld [vmem:[%s3 + $0x130] sm:$0xff]
    %v3823 = vld [vmem:[%s3 + $0x138] sm:$0xff]
    %v3824 = vld [vmem:[%s3 + $0x140] sm:$0xff]
    %v3825 = vld [vmem:[%s3 + $0x148] sm:$0xff]
    %v3826 = vld [vmem:[%s3 + $0x150] sm:$0xff]
    %v3827 = vld [vmem:[%s3 + $0x158] sm:$0xff]
    %v3828 = vld [vmem:[%s3 + $0x160] sm:$0xff]
    %v3829 = vld [vmem:[%s3 + $0x168] sm:$0xff]
    %v3830 = vld [vmem:[%s3 + $0x170] sm:$0xff]
    %v3831 = vld [vmem:[%s3 + $0x178] sm:$0xff]
    %v3832 = vld [vmem:[%s3 + $0x180] sm:$0xff]
    %v3833 = vld [vmem:[%s3 + $0x188] sm:$0xff]
    %v3834 = vld [vmem:[%s3 + $0x190] sm:$0xff]
    %v3835 = vld [vmem:[%s3 + $0x198] sm:$0xff]
    %v3836 = vld [vmem:[%s3 + $0x1a0] sm:$0xff]
    %v3837 = vld [vmem:[%s3 + $0x1a8] sm:$0xff]
    %v3838 = vld [vmem:[%s3 + $0x1b0] sm:$0xff]
    %v3839 = vld [vmem:[%s3 + $0x1b8] sm:$0xff]
    %v3840 = vld [vmem:[%s3 + $0x1c0] sm:$0xff]
    %v3841 = vld [vmem:[%s3 + $0x1c8] sm:$0xff]
    %v3842 = vld [vmem:[%s3 + $0x1d0] sm:$0xff]
    %v3843 = vld [vmem:[%s3 + $0x1d8] sm:$0xff]
    %v3844 = vld [vmem:[%s3 + $0x1e0] sm:$0xff]
    %v3845 = vld [vmem:[%s3 + $0x1e8] sm:$0xff]
    %v3846 = vld [vmem:[%s3 + $0x1f0] sm:$0xff]
    %v3847 = vld [vmem:[%s3 + $0x1f8] sm:$0xff]
    %3848 = vmatprep.subr.mxu0 %v3845
    %3849 = vmatpush1.msra.mxu0 %v3844
    %3850 = vmatprep.subr.mxu0 %v3841
    %3851 = vmatpush1.msra.mxu0 %v3840
    %3852 = vmatprep.subr.mxu0 %v3837
    %3853 = vmatpush1.msra.mxu0 %v3836
    %3854 = vmatprep.subr.mxu0 %v3833
    %3855 = vmatpush1.msra.mxu0 %v3832
    %3856 = vmatprep.subr.mxu0 %v3829
    %3857 = vmatpush1.msra.mxu0 %v3828
    %3858 = vmatprep.subr.mxu0 %v3825
    %3859 = vmatpush1.msra.mxu0 %v3824
    %3860 = vmatprep.subr.mxu0 %v3821
    %3861 = vmatpush1.msra.mxu0 %v3820
    %3862 = vmatprep.subr.mxu0 %v3817
    %3863 = vmatpush1.msra.mxu0 %v3816
    %3864 = vmatprep.subr.mxu0 %v3813
    %3865 = vmatpush1.msra.mxu0 %v3812
    %3866 = vmatprep.subr.mxu0 %v3809
    %3867 = vmatpush1.msra.mxu0 %v3808
    %3868 = vmatprep.subr.mxu0 %v3805
    %3869 = vmatpush1.msra.mxu0 %v3804
    %3870 = vmatprep.subr.mxu0 %v3801
    %3871 = vmatpush1.msra.mxu0 %v3800
    %3872 = vmatprep.subr.mxu0 %v3797
    %3873 = vmatpush1.msra.mxu0 %v3796
    %3874 = vmatprep.subr.mxu0 %v3793
    %3875 = vmatpush1.msra.mxu0 %v3792
    %3876 = vmatprep.subr.mxu0 %v3789
    %3877 = vmatpush1.msra.mxu0 %v3788
    %3878 = vmatprep.subr.mxu0 %v3785
    %3879 = vmatpush1.msra.mxu0 %v3784
    %3880 = vmatprep.subr.mxu0 0.0
    %3881 = vmatpush2.msra.mxu0 0.0
    %3882 = vmatprep.subr.mxu0 0.0
    %3883 = vmatpush2.msra.mxu0 0.0
    %3884 = vmatprep.subr.mxu0 0.0
    %3885 = vmatpush2.msra.mxu0 0.0
    %3886 = vmatprep.subr.mxu0 0.0
    %3887 = vmatpush2.msra.mxu0 0.0
    %3888 = vmatprep.subr.mxu0 0.0
    %3889 = vmatpush2.msra.mxu0 0.0
    %3890 = vmatprep.subr.mxu0 0.0
    %3891 = vmatpush2.msra.mxu0 0.0
    %3892 = vmatprep.subr.mxu0 0.0
    %3893 = vmatpush2.msra.mxu0 0.0
    %3894 = vmatprep.subr.mxu0 0.0
    %3895 = vmatpush2.msra.mxu0 0.0
    %3896 = vmatprep.subr.mxu0 0.0
    %3897 = vmatpush2.msra.mxu0 0.0
    %3898 = vmatprep.subr.mxu0 0.0
    %3899 = vmatpush2.msra.mxu0 0.0
    %3900 = vmatprep.subr.mxu0 0.0
    %3901 = vmatpush2.msra.mxu0 0.0
    %3902 = vmatprep.subr.mxu0 0.0
    %3903 = vmatpush2.msra.mxu0 0.0
    %3904 = vmatprep.subr.mxu0 0.0
    %3905 = vmatpush2.msra.mxu0 0.0
    %3906 = vmatprep.subr.mxu0 0.0
    %3907 = vmatpush2.msra.mxu0 0.0
    %3908 = vmatprep.subr.mxu0 0.0
    %3909 = vmatpush2.msra.mxu0 0.0
    %3910 = vmatprep.subr.mxu0 0.0
    %3911 = vmatpush2.msra.mxu0 0.0
    %3912 = vmatprep.mubr.f32.mxu0 0.0
    %3913 = vmatmul.mubr.f32.gmra.mxu0 %v3782
    %v3914 = vpop.f32.mrf.mxu0
    %v3915 = vadd.f32 0.0, %v3914
    %v3916 = vpop.f32.mrf.mxu0
    %v3917 = vadd.f32 0.0, %v3916
    %3918 = vdwg.mxu0
    %3919 = vmatprep.subr.mxu0 %v3847
    %3920 = vmatpush1.msra.mxu0 %v3846
    %3921 = vmatprep.subr.mxu0 %v3843
    %3922 = vmatpush1.msra.mxu0 %v3842
    %3923 = vmatprep.subr.mxu0 %v3839
    %3924 = vmatpush1.msra.mxu0 %v3838
    %3925 = vmatprep.subr.mxu0 %v3835
    %3926 = vmatpush1.msra.mxu0 %v3834
    %3927 = vmatprep.subr.mxu0 %v3831
    %3928 = vmatpush1.msra.mxu0 %v3830
    %3929 = vmatprep.subr.mxu0 %v3827
    %3930 = vmatpush1.msra.mxu0 %v3826
    %3931 = vmatprep.subr.mxu0 %v3823
    %3932 = vmatpush1.msra.mxu0 %v3822
    %3933 = vmatprep.subr.mxu0 %v3819
    %3934 = vmatpush1.msra.mxu0 %v3818
    %3935 = vmatprep.subr.mxu0 %v3815
    %3936 = vmatpush1.msra.mxu0 %v3814
    %3937 = vmatprep.subr.mxu0 %v3811
    %3938 = vmatpush1.msra.mxu0 %v3810
    %3939 = vmatprep.subr.mxu0 %v3807
    %3940 = vmatpush1.msra.mxu0 %v3806
    %3941 = vmatprep.subr.mxu0 %v3803
    %3942 = vmatpush1.msra.mxu0 %v3802
    %3943 = vmatprep.subr.mxu0 %v3799
    %3944 = vmatpush1.msra.mxu0 %v3798
    %3945 = vmatprep.subr.mxu0 %v3795
    %3946 = vmatpush1.msra.mxu0 %v3794
    %3947 = vmatprep.subr.mxu0 %v3791
    %3948 = vmatpush1.msra.mxu0 %v3790
    %3949 = vmatprep.subr.mxu0 %v3787
    %3950 = vmatpush1.msra.mxu0 %v3786
    %3951 = vmatprep.subr.mxu0 0.0
    %3952 = vmatpush2.msra.mxu0 0.0
    %3953 = vmatprep.subr.mxu0 0.0
    %3954 = vmatpush2.msra.mxu0 0.0
    %3955 = vmatprep.subr.mxu0 0.0
    %3956 = vmatpush2.msra.mxu0 0.0
    %3957 = vmatprep.subr.mxu0 0.0
    %3958 = vmatpush2.msra.mxu0 0.0
    %3959 = vmatprep.subr.mxu0 0.0
    %3960 = vmatpush2.msra.mxu0 0.0
    %3961 = vmatprep.subr.mxu0 0.0
    %3962 = vmatpush2.msra.mxu0 0.0
    %3963 = vmatprep.subr.mxu0 0.0
    %3964 = vmatpush2.msra.mxu0 0.0
    %3965 = vmatprep.subr.mxu0 0.0
    %3966 = vmatpush2.msra.mxu0 0.0
    %3967 = vmatprep.subr.mxu0 0.0
    %3968 = vmatpush2.msra.mxu0 0.0
    %3969 = vmatprep.subr.mxu0 0.0
    %3970 = vmatpush2.msra.mxu0 0.0
    %3971 = vmatprep.subr.mxu0 0.0
    %3972 = vmatpush2.msra.mxu0 0.0
    %3973 = vmatprep.subr.mxu0 0.0
    %3974 = vmatpush2.msra.mxu0 0.0
    %3975 = vmatprep.subr.mxu0 0.0
    %3976 = vmatpush2.msra.mxu0 0.0
    %3977 = vmatprep.subr.mxu0 0.0
    %3978 = vmatpush2.msra.mxu0 0.0
    %3979 = vmatprep.subr.mxu0 0.0
    %3980 = vmatpush2.msra.mxu0 0.0
    %3981 = vmatprep.subr.mxu0 0.0
    %3982 = vmatpush2.msra.mxu0 0.0
    %3983 = vmatprep.mubr.f32.mxu0 0.0
    %3984 = vmatmul.mubr.f32.gmra.mxu0 %v3782
    %v3985 = vpop.f32.mrf.mxu0
    %v3986 = vadd.f32 0.0, %v3985
    %v3987 = vpop.f32.mrf.mxu0
    %v3988 = vadd.f32 0.0, %v3987
    %3989 = vdwg.mxu0
    %v3990 = vadd.f32 %v3777, %v3915
    %v3991 = vadd.f32 %v3778, %v3917
    %v3992 = vadd.f32 %v3779, %v3986
    %v3993 = vadd.f32 %v3780, %v3988
    %v3994 = vxor.u32 %v3990, 2147483648
    %v3995 = vmul.f32 %v3994, 1.442695
    %v3996 = vpow.pop %v3995
    %v3997 = vadd.f32 %v3996, 1.0
    %v3998 = vrcp.pop %v3997
    %v3999 = vmul.f32 1.0, %v3998
    %v4000 = vxor.u32 %v3991, 2147483648
    %v4001 = vmul.f32 %v4000, 1.442695
    %v4002 = vpow.pop %v4001
    %v4003 = vadd.f32 %v4002, 1.0
    %v4004 = vrcp.pop %v4003
    %v4005 = vmul.f32 1.0, %v4004
    %v4006 = vtanh.pop %v3992
    %v4007 = vxor.u32 %v3993, 2147483648
    %v4008 = vmul.f32 %v4007, 1.442695
    %v4009 = vpow.pop %v4008
    %v4010 = vadd.f32 %v4009, 1.0
    %v4011 = vrcp.pop %v4010
    %v4012 = vmul.f32 1.0, %v4011
    %v4013 = vmul.f32 %v4005, %v3783
    %v4014 = vmul.f32 %v3999, %v4006
    %v4015 = vadd.f32 %v4013, %v4014
    %v4016 = vtanh.pop %v4015
    %v4017 = vmul.f32 %v4012, %v4016
    %v4018 = vstv %s3781
    %vm4019 = vcmp.lt.s32.totalorder %v219, %v4018
    %v4020 = vsel %vm4019, 1, 0
    %vm4021 = vcmp.eq.s32.totalorder %v4020, 1
    %v4022 = vsel %vm4021, %v4017, %v3782
    %4023 = vst [vmem:[#allocation2] sm:$0xff] %v4022
    %v4024 = vsel %vm4021, %v4015, %v3783
    %4025 = vst [vmem:[#allocation3] sm:$0xff] %v4024
    %v4026 = vsel %vm4021, %v4017, 0.0
    %s4027 = scalar_lea.vmem %s5, 56
    %4028 = vst [vmem:[%s4027] sm:$0xff] %v4026
    %v4029 = vld [vmem:[#allocation9] sm:$0xff]
    %v4030 = vld [vmem:[#allocation9 + $0x8] sm:$0xff]
    %v4031 = vld [vmem:[#allocation9 + $0x10] sm:$0xff]
    %v4032 = vld [vmem:[#allocation9 + $0x18] sm:$0xff]
    %s4033 = sld [smem:[#allocation7 + %s3775]]
    %v4034 = vld [vmem:[#allocation4] sm:$0xff]
    %v4035 = vld [vmem:[#allocation5] sm:$0xff]
    %v4036 = vld [vmem:[%s4] sm:$0xff]
    %v4037 = vld [vmem:[%s4 + $0x8] sm:$0xff]
    %v4038 = vld [vmem:[%s4 + $0x10] sm:$0xff]
    %v4039 = vld [vmem:[%s4 + $0x18] sm:$0xff]
    %v4040 = vld [vmem:[%s4 + $0x20] sm:$0xff]
    %v4041 = vld [vmem:[%s4 + $0x28] sm:$0xff]
    %v4042 = vld [vmem:[%s4 + $0x30] sm:$0xff]
    %v4043 = vld [vmem:[%s4 + $0x38] sm:$0xff]
    %v4044 = vld [vmem:[%s4 + $0x40] sm:$0xff]
    %v4045 = vld [vmem:[%s4 + $0x48] sm:$0xff]
    %v4046 = vld [vmem:[%s4 + $0x50] sm:$0xff]
    %v4047 = vld [vmem:[%s4 + $0x58] sm:$0xff]
    %v4048 = vld [vmem:[%s4 + $0x60] sm:$0xff]
    %v4049 = vld [vmem:[%s4 + $0x68] sm:$0xff]
    %v4050 = vld [vmem:[%s4 + $0x70] sm:$0xff]
    %v4051 = vld [vmem:[%s4 + $0x78] sm:$0xff]
    %v4052 = vld [vmem:[%s4 + $0x80] sm:$0xff]
    %v4053 = vld [vmem:[%s4 + $0x88] sm:$0xff]
    %v4054 = vld [vmem:[%s4 + $0x90] sm:$0xff]
    %v4055 = vld [vmem:[%s4 + $0x98] sm:$0xff]
    %v4056 = vld [vmem:[%s4 + $0xa0] sm:$0xff]
    %v4057 = vld [vmem:[%s4 + $0xa8] sm:$0xff]
    %v4058 = vld [vmem:[%s4 + $0xb0] sm:$0xff]
    %v4059 = vld [vmem:[%s4 + $0xb8] sm:$0xff]
    %v4060 = vld [vmem:[%s4 + $0xc0] sm:$0xff]
    %v4061 = vld [vmem:[%s4 + $0xc8] sm:$0xff]
    %v4062 = vld [vmem:[%s4 + $0xd0] sm:$0xff]
    %v4063 = vld [vmem:[%s4 + $0xd8] sm:$0xff]
    %v4064 = vld [vmem:[%s4 + $0xe0] sm:$0xff]
    %v4065 = vld [vmem:[%s4 + $0xe8] sm:$0xff]
    %v4066 = vld [vmem:[%s4 + $0xf0] sm:$0xff]
    %v4067 = vld [vmem:[%s4 + $0xf8] sm:$0xff]
    %v4068 = vld [vmem:[%s4 + $0x100] sm:$0xff]
    %v4069 = vld [vmem:[%s4 + $0x108] sm:$0xff]
    %v4070 = vld [vmem:[%s4 + $0x110] sm:$0xff]
    %v4071 = vld [vmem:[%s4 + $0x118] sm:$0xff]
    %v4072 = vld [vmem:[%s4 + $0x120] sm:$0xff]
    %v4073 = vld [vmem:[%s4 + $0x128] sm:$0xff]
    %v4074 = vld [vmem:[%s4 + $0x130] sm:$0xff]
    %v4075 = vld [vmem:[%s4 + $0x138] sm:$0xff]
    %v4076 = vld [vmem:[%s4 + $0x140] sm:$0xff]
    %v4077 = vld [vmem:[%s4 + $0x148] sm:$0xff]
    %v4078 = vld [vmem:[%s4 + $0x150] sm:$0xff]
    %v4079 = vld [vmem:[%s4 + $0x158] sm:$0xff]
    %v4080 = vld [vmem:[%s4 + $0x160] sm:$0xff]
    %v4081 = vld [vmem:[%s4 + $0x168] sm:$0xff]
    %v4082 = vld [vmem:[%s4 + $0x170] sm:$0xff]
    %v4083 = vld [vmem:[%s4 + $0x178] sm:$0xff]
    %v4084 = vld [vmem:[%s4 + $0x180] sm:$0xff]
    %v4085 = vld [vmem:[%s4 + $0x188] sm:$0xff]
    %v4086 = vld [vmem:[%s4 + $0x190] sm:$0xff]
    %v4087 = vld [vmem:[%s4 + $0x198] sm:$0xff]
    %v4088 = vld [vmem:[%s4 + $0x1a0] sm:$0xff]
    %v4089 = vld [vmem:[%s4 + $0x1a8] sm:$0xff]
    %v4090 = vld [vmem:[%s4 + $0x1b0] sm:$0xff]
    %v4091 = vld [vmem:[%s4 + $0x1b8] sm:$0xff]
    %v4092 = vld [vmem:[%s4 + $0x1c0] sm:$0xff]
    %v4093 = vld [vmem:[%s4 + $0x1c8] sm:$0xff]
    %v4094 = vld [vmem:[%s4 + $0x1d0] sm:$0xff]
    %v4095 = vld [vmem:[%s4 + $0x1d8] sm:$0xff]
    %v4096 = vld [vmem:[%s4 + $0x1e0] sm:$0xff]
    %v4097 = vld [vmem:[%s4 + $0x1e8] sm:$0xff]
    %v4098 = vld [vmem:[%s4 + $0x1f0] sm:$0xff]
    %v4099 = vld [vmem:[%s4 + $0x1f8] sm:$0xff]
    %4100 = vmatprep.subr.mxu0 %v4097
    %4101 = vmatpush1.msra.mxu0 %v4096
    %4102 = vmatprep.subr.mxu0 %v4093
    %4103 = vmatpush1.msra.mxu0 %v4092
    %4104 = vmatprep.subr.mxu0 %v4089
    %4105 = vmatpush1.msra.mxu0 %v4088
    %4106 = vmatprep.subr.mxu0 %v4085
    %4107 = vmatpush1.msra.mxu0 %v4084
    %4108 = vmatprep.subr.mxu0 %v4081
    %4109 = vmatpush1.msra.mxu0 %v4080
    %4110 = vmatprep.subr.mxu0 %v4077
    %4111 = vmatpush1.msra.mxu0 %v4076
    %4112 = vmatprep.subr.mxu0 %v4073
    %4113 = vmatpush1.msra.mxu0 %v4072
    %4114 = vmatprep.subr.mxu0 %v4069
    %4115 = vmatpush1.msra.mxu0 %v4068
    %4116 = vmatprep.subr.mxu0 %v4065
    %4117 = vmatpush1.msra.mxu0 %v4064
    %4118 = vmatprep.subr.mxu0 %v4061
    %4119 = vmatpush1.msra.mxu0 %v4060
    %4120 = vmatprep.subr.mxu0 %v4057
    %4121 = vmatpush1.msra.mxu0 %v4056
    %4122 = vmatprep.subr.mxu0 %v4053
    %4123 = vmatpush1.msra.mxu0 %v4052
    %4124 = vmatprep.subr.mxu0 %v4049
    %4125 = vmatpush1.msra.mxu0 %v4048
    %4126 = vmatprep.subr.mxu0 %v4045
    %4127 = vmatpush1.msra.mxu0 %v4044
    %4128 = vmatprep.subr.mxu0 %v4041
    %4129 = vmatpush1.msra.mxu0 %v4040
    %4130 = vmatprep.subr.mxu0 %v4037
    %4131 = vmatpush1.msra.mxu0 %v4036
    %4132 = vmatprep.subr.mxu0 0.0
    %4133 = vmatpush2.msra.mxu0 0.0
    %4134 = vmatprep.subr.mxu0 0.0
    %4135 = vmatpush2.msra.mxu0 0.0
    %4136 = vmatprep.subr.mxu0 0.0
    %4137 = vmatpush2.msra.mxu0 0.0
    %4138 = vmatprep.subr.mxu0 0.0
    %4139 = vmatpush2.msra.mxu0 0.0
    %4140 = vmatprep.subr.mxu0 0.0
    %4141 = vmatpush2.msra.mxu0 0.0
    %4142 = vmatprep.subr.mxu0 0.0
    %4143 = vmatpush2.msra.mxu0 0.0
    %4144 = vmatprep.subr.mxu0 0.0
    %4145 = vmatpush2.msra.mxu0 0.0
    %4146 = vmatprep.subr.mxu0 0.0
    %4147 = vmatpush2.msra.mxu0 0.0
    %4148 = vmatprep.subr.mxu0 0.0
    %4149 = vmatpush2.msra.mxu0 0.0
    %4150 = vmatprep.subr.mxu0 0.0
    %4151 = vmatpush2.msra.mxu0 0.0
    %4152 = vmatprep.subr.mxu0 0.0
    %4153 = vmatpush2.msra.mxu0 0.0
    %4154 = vmatprep.subr.mxu0 0.0
    %4155 = vmatpush2.msra.mxu0 0.0
    %4156 = vmatprep.subr.mxu0 0.0
    %4157 = vmatpush2.msra.mxu0 0.0
    %4158 = vmatprep.subr.mxu0 0.0
    %4159 = vmatpush2.msra.mxu0 0.0
    %4160 = vmatprep.subr.mxu0 0.0
    %4161 = vmatpush2.msra.mxu0 0.0
    %4162 = vmatprep.subr.mxu0 0.0
    %4163 = vmatpush2.msra.mxu0 0.0
    %4164 = vmatprep.mubr.f32.mxu0 0.0
    %4165 = vmatmul.mubr.f32.gmra.mxu0 %v4034
    %v4166 = vpop.f32.mrf.mxu0
    %v4167 = vadd.f32 0.0, %v4166
    %v4168 = vpop.f32.mrf.mxu0
    %v4169 = vadd.f32 0.0, %v4168
    %4170 = vdwg.mxu0
    %4171 = vmatprep.subr.mxu0 %v4099
    %4172 = vmatpush1.msra.mxu0 %v4098
    %4173 = vmatprep.subr.mxu0 %v4095
    %4174 = vmatpush1.msra.mxu0 %v4094
    %4175 = vmatprep.subr.mxu0 %v4091
    %4176 = vmatpush1.msra.mxu0 %v4090
    %4177 = vmatprep.subr.mxu0 %v4087
    %4178 = vmatpush1.msra.mxu0 %v4086
    %4179 = vmatprep.subr.mxu0 %v4083
    %4180 = vmatpush1.msra.mxu0 %v4082
    %4181 = vmatprep.subr.mxu0 %v4079
    %4182 = vmatpush1.msra.mxu0 %v4078
    %4183 = vmatprep.subr.mxu0 %v4075
    %4184 = vmatpush1.msra.mxu0 %v4074
    %4185 = vmatprep.subr.mxu0 %v4071
    %4186 = vmatpush1.msra.mxu0 %v4070
    %4187 = vmatprep.subr.mxu0 %v4067
    %4188 = vmatpush1.msra.mxu0 %v4066
    %4189 = vmatprep.subr.mxu0 %v4063
    %4190 = vmatpush1.msra.mxu0 %v4062
    %4191 = vmatprep.subr.mxu0 %v4059
    %4192 = vmatpush1.msra.mxu0 %v4058
    %4193 = vmatprep.subr.mxu0 %v4055
    %4194 = vmatpush1.msra.mxu0 %v4054
    %4195 = vmatprep.subr.mxu0 %v4051
    %4196 = vmatpush1.msra.mxu0 %v4050
    %4197 = vmatprep.subr.mxu0 %v4047
    %4198 = vmatpush1.msra.mxu0 %v4046
    %4199 = vmatprep.subr.mxu0 %v4043
    %4200 = vmatpush1.msra.mxu0 %v4042
    %4201 = vmatprep.subr.mxu0 %v4039
    %4202 = vmatpush1.msra.mxu0 %v4038
    %4203 = vmatprep.subr.mxu0 0.0
    %4204 = vmatpush2.msra.mxu0 0.0
    %4205 = vmatprep.subr.mxu0 0.0
    %4206 = vmatpush2.msra.mxu0 0.0
    %4207 = vmatprep.subr.mxu0 0.0
    %4208 = vmatpush2.msra.mxu0 0.0
    %4209 = vmatprep.subr.mxu0 0.0
    %4210 = vmatpush2.msra.mxu0 0.0
    %4211 = vmatprep.subr.mxu0 0.0
    %4212 = vmatpush2.msra.mxu0 0.0
    %4213 = vmatprep.subr.mxu0 0.0
    %4214 = vmatpush2.msra.mxu0 0.0
    %4215 = vmatprep.subr.mxu0 0.0
    %4216 = vmatpush2.msra.mxu0 0.0
    %4217 = vmatprep.subr.mxu0 0.0
    %4218 = vmatpush2.msra.mxu0 0.0
    %4219 = vmatprep.subr.mxu0 0.0
    %4220 = vmatpush2.msra.mxu0 0.0
    %4221 = vmatprep.subr.mxu0 0.0
    %4222 = vmatpush2.msra.mxu0 0.0
    %4223 = vmatprep.subr.mxu0 0.0
    %4224 = vmatpush2.msra.mxu0 0.0
    %4225 = vmatprep.subr.mxu0 0.0
    %4226 = vmatpush2.msra.mxu0 0.0
    %4227 = vmatprep.subr.mxu0 0.0
    %4228 = vmatpush2.msra.mxu0 0.0
    %4229 = vmatprep.subr.mxu0 0.0
    %4230 = vmatpush2.msra.mxu0 0.0
    %4231 = vmatprep.subr.mxu0 0.0
    %4232 = vmatpush2.msra.mxu0 0.0
    %4233 = vmatprep.subr.mxu0 0.0
    %4234 = vmatpush2.msra.mxu0 0.0
    %4235 = vmatprep.mubr.f32.mxu0 0.0
    %4236 = vmatmul.mubr.f32.gmra.mxu0 %v4034
    %v4237 = vpop.f32.mrf.mxu0
    %v4238 = vadd.f32 0.0, %v4237
    %v4239 = vpop.f32.mrf.mxu0
    %v4240 = vadd.f32 0.0, %v4239
    %4241 = vdwg.mxu0
    %v4242 = vadd.f32 %v4029, %v4167
    %v4243 = vadd.f32 %v4030, %v4169
    %v4244 = vadd.f32 %v4031, %v4238
    %v4245 = vadd.f32 %v4032, %v4240
    %v4246 = vxor.u32 %v4242, 2147483648
    %v4247 = vmul.f32 %v4246, 1.442695
    %v4248 = vpow.pop %v4247
    %v4249 = vadd.f32 %v4248, 1.0
    %v4250 = vrcp.pop %v4249
    %v4251 = vmul.f32 1.0, %v4250
    %v4252 = vxor.u32 %v4243, 2147483648
    %v4253 = vmul.f32 %v4252, 1.442695
    %v4254 = vpow.pop %v4253
    %v4255 = vadd.f32 %v4254, 1.0
    %v4256 = vrcp.pop %v4255
    %v4257 = vmul.f32 1.0, %v4256
    %v4258 = vtanh.pop %v4244
    %v4259 = vxor.u32 %v4245, 2147483648
    %v4260 = vmul.f32 %v4259, 1.442695
    %v4261 = vpow.pop %v4260
    %v4262 = vadd.f32 %v4261, 1.0
    %v4263 = vrcp.pop %v4262
    %v4264 = vmul.f32 1.0, %v4263
    %v4265 = vmul.f32 %v4257, %v4035
    %v4266 = vmul.f32 %v4251, %v4258
    %v4267 = vadd.f32 %v4265, %v4266
    %v4268 = vtanh.pop %v4267
    %v4269 = vmul.f32 %v4264, %v4268
    %v4270 = vstv %s4033
    %vm4271 = vcmp.lt.s32.totalorder %v219, %v4270
    %v4272 = vsel %vm4271, 1, 0
    %vm4273 = vcmp.eq.s32.totalorder %v4272, 1
    %v4274 = vsel %vm4273, %v4269, %v4034
    %4275 = vst [vmem:[#allocation4] sm:$0xff] %v4274
    %v4276 = vsel %vm4273, %v4267, %v4035
    %4277 = vst [vmem:[#allocation5] sm:$0xff] %v4276
    %v4278 = vsel %vm4273, %v4269, 0.0
    %4279 = vst [vmem:[%s207] sm:$0xff] %v4278
    %s4280 = ssub.s32 0, 0
    %s4281 = smul.u32 8, %s4280
    %p4282 = scmp.lt.s32.totalorder %s4281, 7
    %s4283 = scalar_select %p4282, %s4281, 7
    %s4284 = smul.addr %s4283, 8
    %s4285 = scalar_lea.vmem %s6, %s4284
    // Predicated region
    $region68: #{wordseg_forward.8} parent=1 // pred_check
      _
    $region69: #{wordseg_forward.8} parent=1 // pred_check_branch
      %4287 = sbr.rel (0) target = $region71
    $region70: #{wordseg_forward.8} parent=1 // pred_region
      _
    $region71: #{wordseg_forward.8} parent=1 // pred_fallthru
      _
    // Predicated region
    $region72: #{wordseg_forward.8} parent=1 // pred_check
      _
    $region73: #{wordseg_forward.8} parent=1 // pred_check_branch
      %4289 = sbr.rel (0) target = $region75
    $region74: #{wordseg_forward.8} parent=1 // pred_region
      %s4290 = ssub.s32 0, 0
      %s4291 = smul.u32 8, %s4290
    $region75: #{wordseg_forward.8} parent=1 // pred_fallthru
      _
    // Predicated region
    $region76: #{wordseg_forward.8} parent=1 // pred_check
      _
    $region77: #{wordseg_forward.8} parent=1 // pred_check_branch
      %4293 = sbr.rel (0) target = $region79
    $region78: #{wordseg_forward.8} parent=1 // pred_region
      _
    $region79: #{wordseg_forward.8} parent=1 // pred_fallthru
      _
    // Predicated region
    $region80: #{wordseg_forward.8} parent=1 // pred_check
      _
    $region81: #{wordseg_forward.8} parent=1 // pred_check_branch
      %4295 = sbr.rel (0) target = $region83
    $region82: #{wordseg_forward.8} parent=1 // pred_region
      %s4296 = ssub.s32 0, 0
      %s4297 = smul.u32 8, %s4296
      %p4298 = scmp.lt.s32.totalorder %s4297, 7
      %s4299 = scalar_select %p4298, %s4297, 7
      %s4300 = smul.addr %s4299, 8
      %s4301 = scalar_lea.vmem %s6, %s4300
    $region83: #{wordseg_forward.8} parent=1 // pred_fallthru
      _

</llo_original>
